<compile_context>
chip_gen: v7x
topology: tpu7x:2x2x1
jax: 0.10.0
libtpu: 0.0.40
codegen_flags: <defaults>
</compile_context>

<pallas_src>
import functools

import jax
import jax.numpy as jnp
from jax.experimental import pallas as pl
from jax.experimental.pallas import tpu as pltpu


# ---------------------------------------------------------------------------
# K1: 3x3 conv (stride 1, pad 1, no bias), optional fused input BN+ReLU,
#     fused per-image BN partial statistics of its own output.
# ---------------------------------------------------------------------------

def _conv3x3_kernel(x_ref, w_ref, sc_ref, sh_ref,
                    y_ref, psum_ref, psq_ref, xpad_ref, *,
                    H, W, Cin, Cout, fuse_bn_relu):
    f32 = jnp.float32

    # Zero ONLY the 1-pixel pad ring each step; the interior is fully
    # overwritten below.  (Gating on program_id==0 would leave garbage borders
    # on the second TensorCore when the "parallel" axis is megacore-split.)
    xpad_ref[0:1, :, :] = jnp.zeros((1, W + 2, Cin), f32)
    xpad_ref[H + 1:H + 2, :, :] = jnp.zeros((1, W + 2, Cin), f32)
    xpad_ref[1:H + 1, 0:1, :] = jnp.zeros((H, 1, Cin), f32)
    xpad_ref[1:H + 1, W + 1:W + 2, :] = jnp.zeros((H, 1, Cin), f32)

    x = x_ref[0].astype(f32)                                   # (H, W, Cin)
    if fuse_bn_relu:
        # relu(bn(prev conv out)) applied on the fly; conv then pads the
        # post-BN/ReLU map, matching PyTorch semantics.
        x = jnp.maximum(x * sc_ref[...] + sh_ref[...], 0.0)
    xpad_ref[1:H + 1, 1:W + 1, :] = x                          # padded tile

    # 9 shifted-window MXU matmuls accumulated in registers; single store.
    acc = jnp.zeros((H * W, Cout), f32)
    for t in range(9):
        ky, kx = divmod(t, 3)
        win = xpad_ref[ky:ky + H, kx:kx + W, :]                # (H, W, Cin)
        win = win.reshape(H * W, Cin).astype(jnp.bfloat16)
        acc = acc + jnp.dot(win, w_ref[t], preferred_element_type=f32)

    # Per-image BN partial stats of THIS conv's output (from the f32
    # accumulator, before the bf16 downcast).  Combined over the batch in
    # plain JAX by the wrapper -> no standalone BN-stat kernels / re-reads.
    psum_ref[0] = jnp.sum(acc, axis=0, keepdims=True)          # (1, Cout)
    psq_ref[0] = jnp.sum(acc * acc, axis=0, keepdims=True)     # (1, Cout)

    y_ref[0] = acc.astype(y_ref.dtype)                         # (H*W, Cout) bf16


def conv3x3_bn_partials(x_nhwc, w9_bf16, in_scale, in_shift, *, fuse_bn_relu):
    N, H, W, Cin = x_nhwc.shape
    Cout = w9_bf16.shape[-1]
    kernel = functools.partial(_conv3x3_kernel, H=H, W=W, Cin=Cin, Cout=Cout,
                               fuse_bn_relu=fuse_bn_relu)
    flops = 2 * N * H * W * 9 * Cin * Cout
    bytes_accessed = (x_nhwc.size * x_nhwc.dtype.itemsize
                      + 2 * w9_bf16.size
                      + 2 * N * H * W * Cout          # bf16 output
                      + 2 * 4 * N * Cout)             # stats
    return pl.pallas_call(
        kernel,
        out_shape=(
            jax.ShapeDtypeStruct((N, H * W, Cout), jnp.bfloat16),   # feature map
            jax.ShapeDtypeStruct((N, 1, Cout), jnp.float32),        # per-image sum
            jax.ShapeDtypeStruct((N, 1, Cout), jnp.float32),        # per-image sum sq
        ),
        grid=(N,),
        in_specs=[
            pl.BlockSpec((1, H, W, Cin), lambda n: (n, 0, 0, 0)),
            pl.BlockSpec((9, Cin, Cout), lambda n: (0, 0, 0)),
            pl.BlockSpec((1, Cin), lambda n: (0, 0)),
            pl.BlockSpec((1, Cin), lambda n: (0, 0)),
        ],
        out_specs=(
            pl.BlockSpec((1, H * W, Cout), lambda n: (n, 0, 0)),
            pl.BlockSpec((1, 1, Cout), lambda n: (n, 0, 0)),
            pl.BlockSpec((1, 1, Cout), lambda n: (n, 0, 0)),
        ),
        scratch_shapes=[
            pltpu.VMEM((H + 2, W + 2, Cin), jnp.float32),   # zero-padded tile
        ],
        compiler_params=pltpu.CompilerParams(
            dimension_semantics=("parallel",),
            vmem_limit_bytes=32 * 1024 * 1024,
        ),
        cost_estimate=pl.CostEstimate(flops=int(flops), transcendentals=0,
                                      bytes_accessed=int(bytes_accessed)),
    )(x_nhwc, w9_bf16, in_scale, in_shift)


def _bn_scale_shift(psum, psq, gamma, beta, *, count, eps=1e-5):
    """Combine per-image partials -> per-channel affine (training-mode BN)."""
    mean = jnp.sum(psum, axis=(0, 1)) / count
    ex2 = jnp.sum(psq, axis=(0, 1)) / count
    var = jnp.maximum(ex2 - mean * mean, 0.0)   # clamp f32 cancellation
    scale = gamma * jax.lax.rsqrt(var + eps)
    shift = beta - mean * scale
    return scale.reshape(1, -1), shift.reshape(1, -1)


# ---------------------------------------------------------------------------
# K2: fused BN2 + channel attention + spatial attention + residual + ReLU
# ---------------------------------------------------------------------------

def _cbam_kernel(y_ref, res_ref, sc_ref, sh_ref, w1t_ref, w2_ref, wsa_ref,
                 o_ref, spad_ref, *, H, W, C, Ch, K):
    f32 = jnp.float32
    pad = K // 2

    # BN2 applied on the fly to the bf16-stored conv2 output; math in f32.
    y = y_ref[0].astype(f32) * sc_ref[...] + sh_ref[...]             # (H, W, C)

    # ---- channel attention: global avg/max pool + shared 1x1 MLP + sigmoid.
    # Pooled vectors stay in registers; the tiny MLP runs on the VPU/XLU.
    avg_v = jnp.mean(jnp.mean(y, axis=0), axis=0, keepdims=True)     # (1, C)
    max_v = jnp.max(jnp.max(y, axis=0), axis=0, keepdims=True)       # (1, C)

    def shared_mlp(v):                                               # (1,C)->(1,C)
        z = jnp.zeros((1, C), f32)
        for j in range(Ch):                                          # static, tiny
            hj = jnp.maximum(
                jnp.sum(v * w1t_ref[j:j + 1, :], axis=-1, keepdims=True), 0.0)
            z = z + hj * w2_ref[j:j + 1, :]
        return z

    ca = jax.nn.sigmoid(shared_mlp(avg_v) + shared_mlp(max_v))       # (1, C)
    y = y * ca                                                       # channel attn

    # ---- spatial attention: channel mean/max -> 7x7 conv -> sigmoid
    avg_m = jnp.mean(y, axis=-1)                                     # (H, W)
    max_m = jnp.max(y, axis=-1)                                      # (H, W)
    # Tiny (~4 KiB) buffer; zeroed per step because program_id gating is
    # unsafe under a megacore split of the "parallel" batch axis.
    spad_ref[...] = jnp.zeros_like(spad_ref)
    spad_ref[0, pad:pad + H, pad:pad + W] = avg_m
    spad_ref[1, pad:pad + H, pad:pad + W] = max_m

    acc = jnp.zeros((H, W), f32)
    # TODO(synk): this 2*K*K shifted-window FMA loop could be one MXU matmul
    # against a banded weight; kept as proven VPU code (not the bottleneck).
    for c in range(2):                                               # 0=avg, 1=max
        for ky in range(K):
            for kx in range(K):
                wv = wsa_ref[c * K * K + ky * K + kx]
                acc = acc + wv * spad_ref[c, ky:ky + H, kx:kx + W]
    sa = jax.nn.sigmoid(acc)                                         # (H, W)

    out = y * sa[:, :, None] + res_ref[0]                            # residual add
    o_ref[0] = jnp.maximum(out, 0.0)                                 # final ReLU


def cbam_residual_relu(out2_nhwc, residual_nhwc, scale, shift, ca_w1t, ca_w2,
                       sa_w_flat, *, K=7):
    N, H, W, C = out2_nhwc.shape
    Ch = ca_w1t.shape[0]
    pad = K // 2
    kernel = functools.partial(_cbam_kernel, H=H, W=W, C=C, Ch=Ch, K=K)
    flops = N * (12 * H * W * C + 2 * 2 * K * K * H * W + 4 * C * Ch)
    transcendentals = N * (H * W + 2 * C)
    bytes_accessed = N * H * W * C * (2 + 4 + 4)   # out2 bf16 + x f32 + out f32
    return pl.pallas_call(
        kernel,
        out_shape=jax.ShapeDtypeStruct((N, H, W, C), jnp.float32),
        grid=(N,),
        in_specs=[
            pl.BlockSpec((1, H, W, C), lambda n: (n, 0, 0, 0)),
            pl.BlockSpec((1, H, W, C), lambda n: (n, 0, 0, 0)),
            pl.BlockSpec((1, C), lambda n: (0, 0)),
            pl.BlockSpec((1, C), lambda n: (0, 0)),
            pl.BlockSpec((Ch, C), lambda n: (0, 0)),
            pl.BlockSpec((Ch, C), lambda n: (0, 0)),
            pl.BlockSpec(memory_space=pltpu.MemorySpace.SMEM),
        ],
        out_specs=pl.BlockSpec((1, H, W, C), lambda n: (n, 0, 0, 0)),
        scratch_shapes=[
            pltpu.VMEM((2, H + 2 * pad, W + 2 * pad), jnp.float32),
        ],
        compiler_params=pltpu.CompilerParams(
            dimension_semantics=("parallel",),
            vmem_limit_bytes=32 * 1024 * 1024,
        ),
        cost_estimate=pl.CostEstimate(flops=int(flops),
                                      transcendentals=int(transcendentals),
                                      bytes_accessed=int(bytes_accessed)),
    )(out2_nhwc, residual_nhwc, scale, shift, ca_w1t, ca_w2, sa_w_flat)


# ---------------------------------------------------------------------------
# Forward wrapper (layout conversion, weight prep, kernel orchestration)
# ---------------------------------------------------------------------------

def _prep_conv_w(w_oihw):
    """PyTorch (Cout, Cin, 3, 3) -> tap-major (9, Cin, Cout) bf16 for the MXU."""
    cout, cin = w_oihw.shape[0], w_oihw.shape[1]
    return jnp.transpose(w_oihw, (2, 3, 1, 0)).reshape(9, cin, cout).astype(
        jnp.bfloat16)


def basic_block_forward(x_nchw, params, *, eps=1e-5):
    """BasicBlock.forward with stride=1, downsample=None (CBAM variant)."""
    x = jnp.transpose(x_nchw, (0, 2, 3, 1)).astype(jnp.float32)       # NHWC
    N, H, W, C = x.shape
    count = float(N * H * W)

    w1_9 = _prep_conv_w(params["conv1_w"])
    w2_9 = _prep_conv_w(params["conv2_w"])
    ones = jnp.ones((1, C), jnp.float32)
    zeros = jnp.zeros((1, C), jnp.float32)

    # conv1 (+ fused bn1 partial stats; out1 stored bf16)
    out1_flat, s1, q1 = conv3x3_bn_partials(x, w1_9, ones, zeros,
                                            fuse_bn_relu=False)
    sc1, sh1 = _bn_scale_shift(s1, q1, params["bn1_gamma"], params["bn1_beta"],
                               count=count, eps=eps)
    out1 = out1_flat.reshape(N, H, W, C)        # free HBM re-view

    # conv2 with bn1+ReLU fused into its input load (+ fused bn2 partial stats)
    out2_flat, s2, q2 = conv3x3_bn_partials(out1, w2_9, sc1, sh1,
                                            fuse_bn_relu=True)
    sc2, sh2 = _bn_scale_shift(s2, q2, params["bn2_gamma"], params["bn2_beta"],
                               count=count, eps=eps)
    out2 = out2_flat.reshape(N, H, W, C)

    # bn2 + CBAM + residual + ReLU fused in one kernel
    out = cbam_residual_relu(out2, x, sc2, sh2,
                             jnp.transpose(params["ca_w1"]), params["ca_w2"],
                             params["sa_w"])
    return jnp.transpose(out, (0, 3, 1, 2))                           # NCHW
    # TODO(synk): nn.BatchNorm2d running-stat buffer updates (training side
    # effect) are not materialized; only the forward output is produced.


# ---------------------------------------------------------------------------
# Deterministic parameter init + demo
# ---------------------------------------------------------------------------

def init_params(key, inplanes, planes, ratio=16, sa_kernel=7):
    ks = jax.random.split(key, 8)
    hidden = max(planes // ratio, 1)
    return {
        "conv1_w": 0.1 * jax.random.normal(ks[0], (planes, inplanes, 3, 3), jnp.float32),
        "conv2_w": 0.1 * jax.random.normal(ks[1], (planes, planes, 3, 3), jnp.float32),
        "bn1_gamma": 1.0 + 0.1 * jax.random.normal(ks[2], (planes,), jnp.float32),
        "bn1_beta": 0.1 * jax.random.normal(ks[3], (planes,), jnp.float32),
        "bn2_gamma": 1.0 + 0.1 * jax.random.normal(ks[4], (planes,), jnp.float32),
        "bn2_beta": 0.1 * jax.random.normal(ks[5], (planes,), jnp.float32),
        # channel-attention shared MLP, stored pre-transposed: (C, C/r), (C/r, C)
        "ca_w1": 0.1 * jax.random.normal(ks[6], (planes, hidden), jnp.float32),
        "ca_w2": 0.1 * jax.random.normal(ks[7], (hidden, planes), jnp.float32),
        # spatial-attention 7x7 conv weight, (2, K, K) flattened; ch0=avg, ch1=max
        "sa_w": 0.1 * jax.random.normal(jax.random.fold_in(key, 99),
                                        (2, sa_kernel, sa_kernel),
                                        jnp.float32).reshape(-1),
    }


if __name__ == "__main__":
    key = jax.random.PRNGKey(0)
    N, C, H, W = 2, 16, 16, 16        # inplanes = planes = 16 (ratio 16 -> hidden 1)
    x = jax.random.normal(jax.random.fold_in(key, 1), (N, C, H, W), jnp.float32)
    params = init_params(jax.random.fold_in(key, 2), inplanes=C, planes=C)

    fwd = jax.jit(basic_block_forward)
    out = jax.block_until_ready(fwd(x, params))
    assert out.shape == (N, C, H, W)
    assert bool(jnp.all(jnp.isfinite(out)))
    print("KERNEL_OK")
</pallas_src>

<mosaic_0001>
module attributes {stable_mosaic.version = 11 : i64} {
  func.func @_conv3x3_kernel(%arg0: i32, %arg1: memref<1x16x16x16xf32, #tpu.memory_space<vmem>>, %arg2: memref<9x16x16xbf16, #tpu.memory_space<vmem>>, %arg3: memref<1x16xf32, #tpu.memory_space<vmem>>, %arg4: memref<1x16xf32, #tpu.memory_space<vmem>>, %arg5: memref<1x256x16xbf16, #tpu.memory_space<vmem>>, %arg6: memref<1x1x16xf32, #tpu.memory_space<vmem>>, %arg7: memref<1x1x16xf32, #tpu.memory_space<vmem>>, %arg8: memref<18x18x16xf32, #tpu.memory_space<vmem>>) attributes {dimension_semantics = [#tpu.dimension_semantics<parallel>], iteration_bounds = array<i64: 2>, scalar_prefetch = 0 : i64, scratch_operands = 1 : i64, tpu.core_type = #tpu.core_type<tc>, window_params = [{transform_indices = @transform_0, window_bounds = array<i64: 1, 16, 16, 16>}, {pipeline_mode = #tpu.pipeline_mode<synchronous>, transform_indices = @transform_1, window_bounds = array<i64: 9, 16, 16>}, {pipeline_mode = #tpu.pipeline_mode<synchronous>, transform_indices = @transform_2, window_bounds = array<i64: 1, 16>}, {pipeline_mode = #tpu.pipeline_mode<synchronous>, transform_indices = @transform_3, window_bounds = array<i64: 1, 16>}, {transform_indices = @transform_4, window_bounds = array<i64: 1, 256, 16>}, {transform_indices = @transform_5, window_bounds = array<i64: 1, 1, 16>}, {transform_indices = @transform_6, window_bounds = array<i64: 1, 1, 16>}]} {
    %cst = arith.constant 0.000000e+00 : f32
    %0 = vector.broadcast %cst : f32 to vector<1x18x16xf32>
    %c0 = arith.constant 0 : index
    %c0_0 = arith.constant 0 : index
    %c0_1 = arith.constant 0 : index
    %1 = vector.load %arg8[%c0, %c0_0, %c0_1] : memref<18x18x16xf32, #tpu.memory_space<vmem>>, vector<1x18x16xf32>
    tpu.vector_store %arg8[%c0, %c0_0, %c0_1], %0 {strides = array<i32>} : memref<18x18x16xf32, #tpu.memory_space<vmem>>, vector<1x18x16xf32>,
    %cst_2 = arith.constant 0.000000e+00 : f32
    %2 = vector.broadcast %cst_2 : f32 to vector<1x18x16xf32>
    %c17 = arith.constant 17 : index
    %c0_3 = arith.constant 0 : index
    %c0_4 = arith.constant 0 : index
    %3 = vector.load %arg8[%c17, %c0_3, %c0_4] : memref<18x18x16xf32, #tpu.memory_space<vmem>>, vector<1x18x16xf32>
    tpu.vector_store %arg8[%c17, %c0_3, %c0_4], %2 {strides = array<i32>} : memref<18x18x16xf32, #tpu.memory_space<vmem>>, vector<1x18x16xf32>,
    %cst_5 = arith.constant 0.000000e+00 : f32
    %4 = vector.broadcast %cst_5 : f32 to vector<16x1x16xf32>
    %c1 = arith.constant 1 : index
    %c0_6 = arith.constant 0 : index
    %c0_7 = arith.constant 0 : index
    %5 = vector.load %arg8[%c1, %c0_6, %c0_7] : memref<18x18x16xf32, #tpu.memory_space<vmem>>, vector<16x1x16xf32>
    tpu.vector_store %arg8[%c1, %c0_6, %c0_7], %4 {strides = array<i32>} : memref<18x18x16xf32, #tpu.memory_space<vmem>>, vector<16x1x16xf32>,
    %cst_8 = arith.constant 0.000000e+00 : f32
    %6 = vector.broadcast %cst_8 : f32 to vector<16x1x16xf32>
    %c1_9 = arith.constant 1 : index
    %c17_10 = arith.constant 17 : index
    %c0_11 = arith.constant 0 : index
    %7 = vector.load %arg8[%c1_9, %c17_10, %c0_11] : memref<18x18x16xf32, #tpu.memory_space<vmem>>, vector<16x1x16xf32>
    tpu.vector_store %arg8[%c1_9, %c17_10, %c0_11], %6 {strides = array<i32>} : memref<18x18x16xf32, #tpu.memory_space<vmem>>, vector<16x1x16xf32>,
    %c0_12 = arith.constant 0 : index
    %c0_13 = arith.constant 0 : index
    %c0_14 = arith.constant 0 : index
    %c0_15 = arith.constant 0 : index
    %8 = vector.load %arg1[%c0_12, %c0_13, %c0_14, %c0_15] : memref<1x16x16x16xf32, #tpu.memory_space<vmem>>, vector<1x16x16x16xf32>
    %9 = vector.shape_cast %8 : vector<1x16x16x16xf32> to vector<16x16x16xf32>
    %c1_16 = arith.constant 1 : index
    %c1_17 = arith.constant 1 : index
    %c0_18 = arith.constant 0 : index
    %10 = vector.load %arg8[%c1_16, %c1_17, %c0_18] : memref<18x18x16xf32, #tpu.memory_space<vmem>>, vector<16x16x16xf32>
    tpu.vector_store %arg8[%c1_16, %c1_17, %c0_18], %9 {strides = array<i32>} : memref<18x18x16xf32, #tpu.memory_space<vmem>>, vector<16x16x16xf32>,
    %cst_19 = arith.constant 0.000000e+00 : f32
    %11 = vector.broadcast %cst_19 : f32 to vector<256x16xf32>
    %c0_20 = arith.constant 0 : index
    %c0_21 = arith.constant 0 : index
    %c0_22 = arith.constant 0 : index
    %12 = vector.load %arg8[%c0_20, %c0_21, %c0_22] : memref<18x18x16xf32, #tpu.memory_space<vmem>>, vector<16x16x16xf32>
    %13 = vector.shape_cast %12 : vector<16x16x16xf32> to vector<256x16xf32>
    %14 = arith.truncf %13 : vector<256x16xf32> to vector<256x16xbf16>
    %c0_23 = arith.constant 0 : index
    %c0_24 = arith.constant 0 : index
    %c0_25 = arith.constant 0 : index
    %15 = vector.load %arg2[%c0_23, %c0_24, %c0_25] : memref<9x16x16xbf16, #tpu.memory_space<vmem>>, vector<1x16x16xbf16>
    %16 = vector.shape_cast %15 : vector<1x16x16xbf16> to vector<16x16xbf16>
    %cst_26 = arith.constant dense<0.000000e+00> : vector<256x16xf32>
    %17 = tpu.matmul %14, %16, %cst_26 {dimension_numbers = #tpu.dot_dimension_numbers<[1], [0], [0], [1], [0, 0, 1, 1], [], []>} : vector<256x16xbf16>, vector<16x16xbf16>, vector<256x16xf32> -> vector<256x16xf32>
    %18 = arith.addf %11, %17 : vector<256x16xf32>
    %c0_27 = arith.constant 0 : index
    %c1_28 = arith.constant 1 : index
    %c0_29 = arith.constant 0 : index
    %19 = vector.load %arg8[%c0_27, %c1_28, %c0_29] : memref<18x18x16xf32, #tpu.memory_space<vmem>>, vector<16x16x16xf32>
    %20 = vector.shape_cast %19 : vector<16x16x16xf32> to vector<256x16xf32>
    %21 = arith.truncf %20 : vector<256x16xf32> to vector<256x16xbf16>
    %c1_30 = arith.constant 1 : index
    %c0_31 = arith.constant 0 : index
    %c0_32 = arith.constant 0 : index
    %22 = vector.load %arg2[%c1_30, %c0_31, %c0_32] : memref<9x16x16xbf16, #tpu.memory_space<vmem>>, vector<1x16x16xbf16>
    %23 = vector.shape_cast %22 : vector<1x16x16xbf16> to vector<16x16xbf16>
    %cst_33 = arith.constant dense<0.000000e+00> : vector<256x16xf32>
    %24 = tpu.matmul %21, %23, %cst_33 {dimension_numbers = #tpu.dot_dimension_numbers<[1], [0], [0], [1], [0, 0, 1, 1], [], []>} : vector<256x16xbf16>, vector<16x16xbf16>, vector<256x16xf32> -> vector<256x16xf32>
    %25 = arith.addf %18, %24 : vector<256x16xf32>
    %c0_34 = arith.constant 0 : index
    %c2 = arith.constant 2 : index
    %c0_35 = arith.constant 0 : index
    %26 = vector.load %arg8[%c0_34, %c2, %c0_35] : memref<18x18x16xf32, #tpu.memory_space<vmem>>, vector<16x16x16xf32>
    %27 = vector.shape_cast %26 : vector<16x16x16xf32> to vector<256x16xf32>
    %28 = arith.truncf %27 : vector<256x16xf32> to vector<256x16xbf16>
    %c2_36 = arith.constant 2 : index
    %c0_37 = arith.constant 0 : index
    %c0_38 = arith.constant 0 : index
    %29 = vector.load %arg2[%c2_36, %c0_37, %c0_38] : memref<9x16x16xbf16, #tpu.memory_space<vmem>>, vector<1x16x16xbf16>
    %30 = vector.shape_cast %29 : vector<1x16x16xbf16> to vector<16x16xbf16>
    %cst_39 = arith.constant dense<0.000000e+00> : vector<256x16xf32>
    %31 = tpu.matmul %28, %30, %cst_39 {dimension_numbers = #tpu.dot_dimension_numbers<[1], [0], [0], [1], [0, 0, 1, 1], [], []>} : vector<256x16xbf16>, vector<16x16xbf16>, vector<256x16xf32> -> vector<256x16xf32>
    %32 = arith.addf %25, %31 : vector<256x16xf32>
    %c1_40 = arith.constant 1 : index
    %c0_41 = arith.constant 0 : index
    %c0_42 = arith.constant 0 : index
    %33 = vector.load %arg8[%c1_40, %c0_41, %c0_42] : memref<18x18x16xf32, #tpu.memory_space<vmem>>, vector<16x16x16xf32>
    %34 = vector.shape_cast %33 : vector<16x16x16xf32> to vector<256x16xf32>
    %35 = arith.truncf %34 : vector<256x16xf32> to vector<256x16xbf16>
    %c3 = arith.constant 3 : index
    %c0_43 = arith.constant 0 : index
    %c0_44 = arith.constant 0 : index
    %36 = vector.load %arg2[%c3, %c0_43, %c0_44] : memref<9x16x16xbf16, #tpu.memory_space<vmem>>, vector<1x16x16xbf16>
    %37 = vector.shape_cast %36 : vector<1x16x16xbf16> to vector<16x16xbf16>
    %cst_45 = arith.constant dense<0.000000e+00> : vector<256x16xf32>
    %38 = tpu.matmul %35, %37, %cst_45 {dimension_numbers = #tpu.dot_dimension_numbers<[1], [0], [0], [1], [0, 0, 1, 1], [], []>} : vector<256x16xbf16>, vector<16x16xbf16>, vector<256x16xf32> -> vector<256x16xf32>
    %39 = arith.addf %32, %38 : vector<256x16xf32>
    %c1_46 = arith.constant 1 : index
    %c1_47 = arith.constant 1 : index
    %c0_48 = arith.constant 0 : index
    %40 = vector.load %arg8[%c1_46, %c1_47, %c0_48] : memref<18x18x16xf32, #tpu.memory_space<vmem>>, vector<16x16x16xf32>
    %41 = vector.shape_cast %40 : vector<16x16x16xf32> to vector<256x16xf32>
    %42 = arith.truncf %41 : vector<256x16xf32> to vector<256x16xbf16>
    %c4 = arith.constant 4 : index
    %c0_49 = arith.constant 0 : index
    %c0_50 = arith.constant 0 : index
    %43 = vector.load %arg2[%c4, %c0_49, %c0_50] : memref<9x16x16xbf16, #tpu.memory_space<vmem>>, vector<1x16x16xbf16>
    %44 = vector.shape_cast %43 : vector<1x16x16xbf16> to vector<16x16xbf16>
    %cst_51 = arith.constant dense<0.000000e+00> : vector<256x16xf32>
    %45 = tpu.matmul %42, %44, %cst_51 {dimension_numbers = #tpu.dot_dimension_numbers<[1], [0], [0], [1], [0, 0, 1, 1], [], []>} : vector<256x16xbf16>, vector<16x16xbf16>, vector<256x16xf32> -> vector<256x16xf32>
    %46 = arith.addf %39, %45 : vector<256x16xf32>
    %c1_52 = arith.constant 1 : index
    %c2_53 = arith.constant 2 : index
    %c0_54 = arith.constant 0 : index
    %47 = vector.load %arg8[%c1_52, %c2_53, %c0_54] : memref<18x18x16xf32, #tpu.memory_space<vmem>>, vector<16x16x16xf32>
    %48 = vector.shape_cast %47 : vector<16x16x16xf32> to vector<256x16xf32>
    %49 = arith.truncf %48 : vector<256x16xf32> to vector<256x16xbf16>
    %c5 = arith.constant 5 : index
    %c0_55 = arith.constant 0 : index
    %c0_56 = arith.constant 0 : index
    %50 = vector.load %arg2[%c5, %c0_55, %c0_56] : memref<9x16x16xbf16, #tpu.memory_space<vmem>>, vector<1x16x16xbf16>
    %51 = vector.shape_cast %50 : vector<1x16x16xbf16> to vector<16x16xbf16>
    %cst_57 = arith.constant dense<0.000000e+00> : vector<256x16xf32>
    %52 = tpu.matmul %49, %51, %cst_57 {dimension_numbers = #tpu.dot_dimension_numbers<[1], [0], [0], [1], [0, 0, 1, 1], [], []>} : vector<256x16xbf16>, vector<16x16xbf16>, vector<256x16xf32> -> vector<256x16xf32>
    %53 = arith.addf %46, %52 : vector<256x16xf32>
    %c2_58 = arith.constant 2 : index
    %c0_59 = arith.constant 0 : index
    %c0_60 = arith.constant 0 : index
    %54 = vector.load %arg8[%c2_58, %c0_59, %c0_60] : memref<18x18x16xf32, #tpu.memory_space<vmem>>, vector<16x16x16xf32>
    %55 = vector.shape_cast %54 : vector<16x16x16xf32> to vector<256x16xf32>
    %56 = arith.truncf %55 : vector<256x16xf32> to vector<256x16xbf16>
    %c6 = arith.constant 6 : index
    %c0_61 = arith.constant 0 : index
    %c0_62 = arith.constant 0 : index
    %57 = vector.load %arg2[%c6, %c0_61, %c0_62] : memref<9x16x16xbf16, #tpu.memory_space<vmem>>, vector<1x16x16xbf16>
    %58 = vector.shape_cast %57 : vector<1x16x16xbf16> to vector<16x16xbf16>
    %cst_63 = arith.constant dense<0.000000e+00> : vector<256x16xf32>
    %59 = tpu.matmul %56, %58, %cst_63 {dimension_numbers = #tpu.dot_dimension_numbers<[1], [0], [0], [1], [0, 0, 1, 1], [], []>} : vector<256x16xbf16>, vector<16x16xbf16>, vector<256x16xf32> -> vector<256x16xf32>
    %60 = arith.addf %53, %59 : vector<256x16xf32>
    %c2_64 = arith.constant 2 : index
    %c1_65 = arith.constant 1 : index
    %c0_66 = arith.constant 0 : index
    %61 = vector.load %arg8[%c2_64, %c1_65, %c0_66] : memref<18x18x16xf32, #tpu.memory_space<vmem>>, vector<16x16x16xf32>
    %62 = vector.shape_cast %61 : vector<16x16x16xf32> to vector<256x16xf32>
    %63 = arith.truncf %62 : vector<256x16xf32> to vector<256x16xbf16>
    %c7 = arith.constant 7 : index
    %c0_67 = arith.constant 0 : index
    %c0_68 = arith.constant 0 : index
    %64 = vector.load %arg2[%c7, %c0_67, %c0_68] : memref<9x16x16xbf16, #tpu.memory_space<vmem>>, vector<1x16x16xbf16>
    %65 = vector.shape_cast %64 : vector<1x16x16xbf16> to vector<16x16xbf16>
    %cst_69 = arith.constant dense<0.000000e+00> : vector<256x16xf32>
    %66 = tpu.matmul %63, %65, %cst_69 {dimension_numbers = #tpu.dot_dimension_numbers<[1], [0], [0], [1], [0, 0, 1, 1], [], []>} : vector<256x16xbf16>, vector<16x16xbf16>, vector<256x16xf32> -> vector<256x16xf32>
    %67 = arith.addf %60, %66 : vector<256x16xf32>
    %c2_70 = arith.constant 2 : index
    %c2_71 = arith.constant 2 : index
    %c0_72 = arith.constant 0 : index
    %68 = vector.load %arg8[%c2_70, %c2_71, %c0_72] : memref<18x18x16xf32, #tpu.memory_space<vmem>>, vector<16x16x16xf32>
    %69 = vector.shape_cast %68 : vector<16x16x16xf32> to vector<256x16xf32>
    %70 = arith.truncf %69 : vector<256x16xf32> to vector<256x16xbf16>
    %c8 = arith.constant 8 : index
    %c0_73 = arith.constant 0 : index
    %c0_74 = arith.constant 0 : index
    %71 = vector.load %arg2[%c8, %c0_73, %c0_74] : memref<9x16x16xbf16, #tpu.memory_space<vmem>>, vector<1x16x16xbf16>
    %72 = vector.shape_cast %71 : vector<1x16x16xbf16> to vector<16x16xbf16>
    %cst_75 = arith.constant dense<0.000000e+00> : vector<256x16xf32>
    %73 = tpu.matmul %70, %72, %cst_75 {dimension_numbers = #tpu.dot_dimension_numbers<[1], [0], [0], [1], [0, 0, 1, 1], [], []>} : vector<256x16xbf16>, vector<16x16xbf16>, vector<256x16xf32> -> vector<256x16xf32>
    %74 = arith.addf %67, %73 : vector<256x16xf32>
    %cst_76 = arith.constant dense<0.000000e+00> : vector<16xf32>
    %75 = vector.multi_reduction <add>, %74, %cst_76 [0] : vector<256x16xf32> to vector<16xf32>
    %76 = vector.shape_cast %75 : vector<16xf32> to vector<1x16xf32>
    %c0_77 = arith.constant 0 : index
    %c0_78 = arith.constant 0 : index
    %c0_79 = arith.constant 0 : index
    %77 = vector.load %arg6[%c0_77, %c0_78, %c0_79] : memref<1x1x16xf32, #tpu.memory_space<vmem>>, vector<1x1x16xf32>
    %78 = vector.shape_cast %77 : vector<1x1x16xf32> to vector<1x16xf32>
    %79 = vector.shape_cast %76 : vector<1x16xf32> to vector<1x1x16xf32>
    tpu.vector_store %arg6[%c0_77, %c0_78, %c0_79], %79 {strides = array<i32>} : memref<1x1x16xf32, #tpu.memory_space<vmem>>, vector<1x1x16xf32>,
    %80 = arith.mulf %74, %74 : vector<256x16xf32>
    %cst_80 = arith.constant dense<0.000000e+00> : vector<16xf32>
    %81 = vector.multi_reduction <add>, %80, %cst_80 [0] : vector<256x16xf32> to vector<16xf32>
    %82 = vector.shape_cast %81 : vector<16xf32> to vector<1x16xf32>
    %c0_81 = arith.constant 0 : index
    %c0_82 = arith.constant 0 : index
    %c0_83 = arith.constant 0 : index
    %83 = vector.load %arg7[%c0_81, %c0_82, %c0_83] : memref<1x1x16xf32, #tpu.memory_space<vmem>>, vector<1x1x16xf32>
    %84 = vector.shape_cast %83 : vector<1x1x16xf32> to vector<1x16xf32>
    %85 = vector.shape_cast %82 : vector<1x16xf32> to vector<1x1x16xf32>
    tpu.vector_store %arg7[%c0_81, %c0_82, %c0_83], %85 {strides = array<i32>} : memref<1x1x16xf32, #tpu.memory_space<vmem>>, vector<1x1x16xf32>,
    %86 = arith.truncf %74 : vector<256x16xf32> to vector<256x16xbf16>
    %c0_84 = arith.constant 0 : index
    %c0_85 = arith.constant 0 : index
    %c0_86 = arith.constant 0 : index
    %87 = vector.load %arg5[%c0_84, %c0_85, %c0_86] : memref<1x256x16xbf16, #tpu.memory_space<vmem>>, vector<1x256x16xbf16>
    %88 = vector.shape_cast %87 : vector<1x256x16xbf16> to vector<256x16xbf16>
    %89 = vector.shape_cast %86 : vector<256x16xbf16> to vector<1x256x16xbf16>
    tpu.vector_store %arg5[%c0_84, %c0_85, %c0_86], %89 {strides = array<i32>} : memref<1x256x16xbf16, #tpu.memory_space<vmem>>, vector<1x256x16xbf16>,
    return
  }
  func.func @transform_0(%arg0: i32) -> (i32, i32, i32, i32) {
    %c0_i32 = arith.constant 0 : i32
    %c0_i32_0 = arith.constant 0 : i32
    %c0_i32_1 = arith.constant 0 : i32
    %c0_i32_2 = arith.constant 0 : i32
    return %arg0, %c0_i32, %c0_i32_0, %c0_i32_1 : i32, i32, i32, i32
  }
  func.func @transform_1(%arg0: i32) -> (i32, i32, i32) {
    %c0_i32 = arith.constant 0 : i32
    %c0_i32_0 = arith.constant 0 : i32
    %c0_i32_1 = arith.constant 0 : i32
    %c0_i32_2 = arith.constant 0 : i32
    return %c0_i32, %c0_i32_0, %c0_i32_1 : i32, i32, i32
  }
  func.func @transform_2(%arg0: i32) -> (i32, i32) {
    %c0_i32 = arith.constant 0 : i32
    %c0_i32_0 = arith.constant 0 : i32
    %c0_i32_1 = arith.constant 0 : i32
    return %c0_i32, %c0_i32_0 : i32, i32
  }
  func.func @transform_3(%arg0: i32) -> (i32, i32) {
    %c0_i32 = arith.constant 0 : i32
    %c0_i32_0 = arith.constant 0 : i32
    %c0_i32_1 = arith.constant 0 : i32
    return %c0_i32, %c0_i32_0 : i32, i32
  }
  func.func @transform_4(%arg0: i32) -> (i32, i32, i32) {
    %c0_i32 = arith.constant 0 : i32
    %c0_i32_0 = arith.constant 0 : i32
    %c0_i32_1 = arith.constant 0 : i32
    return %arg0, %c0_i32, %c0_i32_0 : i32, i32, i32
  }
  func.func @transform_5(%arg0: i32) -> (i32, i32, i32) {
    %c0_i32 = arith.constant 0 : i32
    %c0_i32_0 = arith.constant 0 : i32
    %c0_i32_1 = arith.constant 0 : i32
    return %arg0, %c0_i32, %c0_i32_0 : i32, i32, i32
  }
  func.func @transform_6(%arg0: i32) -> (i32, i32, i32) {
    %c0_i32 = arith.constant 0 : i32
    %c0_i32_0 = arith.constant 0 : i32
    %c0_i32_1 = arith.constant 0 : i32
    return %arg0, %c0_i32, %c0_i32_0 : i32, i32, i32
  }
}

module attributes {stable_mosaic.version = 11 : i64} {
  func.func @_conv3x3_kernel(%arg0: i32, %arg1: memref<1x16x16x16xbf16, #tpu.memory_space<vmem>>, %arg2: memref<9x16x16xbf16, #tpu.memory_space<vmem>>, %arg3: memref<1x16xf32, #tpu.memory_space<vmem>>, %arg4: memref<1x16xf32, #tpu.memory_space<vmem>>, %arg5: memref<1x256x16xbf16, #tpu.memory_space<vmem>>, %arg6: memref<1x1x16xf32, #tpu.memory_space<vmem>>, %arg7: memref<1x1x16xf32, #tpu.memory_space<vmem>>, %arg8: memref<18x18x16xf32, #tpu.memory_space<vmem>>) attributes {dimension_semantics = [#tpu.dimension_semantics<parallel>], iteration_bounds = array<i64: 2>, scalar_prefetch = 0 : i64, scratch_operands = 1 : i64, tpu.core_type = #tpu.core_type<tc>, window_params = [{transform_indices = @transform_0, window_bounds = array<i64: 1, 16, 16, 16>}, {pipeline_mode = #tpu.pipeline_mode<synchronous>, transform_indices = @transform_1, window_bounds = array<i64: 9, 16, 16>}, {pipeline_mode = #tpu.pipeline_mode<synchronous>, transform_indices = @transform_2, window_bounds = array<i64: 1, 16>}, {pipeline_mode = #tpu.pipeline_mode<synchronous>, transform_indices = @transform_3, window_bounds = array<i64: 1, 16>}, {transform_indices = @transform_4, window_bounds = array<i64: 1, 256, 16>}, {transform_indices = @transform_5, window_bounds = array<i64: 1, 1, 16>}, {transform_indices = @transform_6, window_bounds = array<i64: 1, 1, 16>}]} {
    %cst = arith.constant 0.000000e+00 : f32
    %0 = vector.broadcast %cst : f32 to vector<1x18x16xf32>
    %c0 = arith.constant 0 : index
    %c0_0 = arith.constant 0 : index
    %c0_1 = arith.constant 0 : index
    %1 = vector.load %arg8[%c0, %c0_0, %c0_1] : memref<18x18x16xf32, #tpu.memory_space<vmem>>, vector<1x18x16xf32>
    tpu.vector_store %arg8[%c0, %c0_0, %c0_1], %0 {strides = array<i32>} : memref<18x18x16xf32, #tpu.memory_space<vmem>>, vector<1x18x16xf32>,
    %cst_2 = arith.constant 0.000000e+00 : f32
    %2 = vector.broadcast %cst_2 : f32 to vector<1x18x16xf32>
    %c17 = arith.constant 17 : index
    %c0_3 = arith.constant 0 : index
    %c0_4 = arith.constant 0 : index
    %3 = vector.load %arg8[%c17, %c0_3, %c0_4] : memref<18x18x16xf32, #tpu.memory_space<vmem>>, vector<1x18x16xf32>
    tpu.vector_store %arg8[%c17, %c0_3, %c0_4], %2 {strides = array<i32>} : memref<18x18x16xf32, #tpu.memory_space<vmem>>, vector<1x18x16xf32>,
    %cst_5 = arith.constant 0.000000e+00 : f32
    %4 = vector.broadcast %cst_5 : f32 to vector<16x1x16xf32>
    %c1 = arith.constant 1 : index
    %c0_6 = arith.constant 0 : index
    %c0_7 = arith.constant 0 : index
    %5 = vector.load %arg8[%c1, %c0_6, %c0_7] : memref<18x18x16xf32, #tpu.memory_space<vmem>>, vector<16x1x16xf32>
    tpu.vector_store %arg8[%c1, %c0_6, %c0_7], %4 {strides = array<i32>} : memref<18x18x16xf32, #tpu.memory_space<vmem>>, vector<16x1x16xf32>,
    %cst_8 = arith.constant 0.000000e+00 : f32
    %6 = vector.broadcast %cst_8 : f32 to vector<16x1x16xf32>
    %c1_9 = arith.constant 1 : index
    %c17_10 = arith.constant 17 : index
    %c0_11 = arith.constant 0 : index
    %7 = vector.load %arg8[%c1_9, %c17_10, %c0_11] : memref<18x18x16xf32, #tpu.memory_space<vmem>>, vector<16x1x16xf32>
    tpu.vector_store %arg8[%c1_9, %c17_10, %c0_11], %6 {strides = array<i32>} : memref<18x18x16xf32, #tpu.memory_space<vmem>>, vector<16x1x16xf32>,
    %c0_12 = arith.constant 0 : index
    %c0_13 = arith.constant 0 : index
    %c0_14 = arith.constant 0 : index
    %c0_15 = arith.constant 0 : index
    %8 = vector.load %arg1[%c0_12, %c0_13, %c0_14, %c0_15] : memref<1x16x16x16xbf16, #tpu.memory_space<vmem>>, vector<1x16x16x16xbf16>
    %9 = vector.shape_cast %8 : vector<1x16x16x16xbf16> to vector<16x16x16xbf16>
    %10 = arith.extf %9 : vector<16x16x16xbf16> to vector<16x16x16xf32>
    %c0_16 = arith.constant 0 : index
    %c0_17 = arith.constant 0 : index
    %11 = vector.load %arg3[%c0_16, %c0_17] : memref<1x16xf32, #tpu.memory_space<vmem>>, vector<1x16xf32>
    %12 = vector.shape_cast %11 : vector<1x16xf32> to vector<1x1x16xf32>
    %13 = vector.broadcast %12 : vector<1x1x16xf32> to vector<16x16x16xf32>
    %14 = arith.mulf %10, %13 : vector<16x16x16xf32>
    %c0_18 = arith.constant 0 : index
    %c0_19 = arith.constant 0 : index
    %15 = vector.load %arg4[%c0_18, %c0_19] : memref<1x16xf32, #tpu.memory_space<vmem>>, vector<1x16xf32>
    %16 = vector.shape_cast %15 : vector<1x16xf32> to vector<1x1x16xf32>
    %17 = vector.broadcast %16 : vector<1x1x16xf32> to vector<16x16x16xf32>
    %18 = arith.addf %14, %17 : vector<16x16x16xf32>
    %cst_20 = arith.constant 0.000000e+00 : f32
    %19 = vector.broadcast %cst_20 : f32 to vector<16x16x16xf32>
    %20 = arith.maximumf %18, %19 : vector<16x16x16xf32>
    %c1_21 = arith.constant 1 : index
    %c1_22 = arith.constant 1 : index
    %c0_23 = arith.constant 0 : index
    %21 = vector.load %arg8[%c1_21, %c1_22, %c0_23] : memref<18x18x16xf32, #tpu.memory_space<vmem>>, vector<16x16x16xf32>
    tpu.vector_store %arg8[%c1_21, %c1_22, %c0_23], %20 {strides = array<i32>} : memref<18x18x16xf32, #tpu.memory_space<vmem>>, vector<16x16x16xf32>,
    %cst_24 = arith.constant 0.000000e+00 : f32
    %22 = vector.broadcast %cst_24 : f32 to vector<256x16xf32>
    %c0_25 = arith.constant 0 : index
    %c0_26 = arith.constant 0 : index
    %c0_27 = arith.constant 0 : index
    %23 = vector.load %arg8[%c0_25, %c0_26, %c0_27] : memref<18x18x16xf32, #tpu.memory_space<vmem>>, vector<16x16x16xf32>
    %24 = vector.shape_cast %23 : vector<16x16x16xf32> to vector<256x16xf32>
    %25 = arith.truncf %24 : vector<256x16xf32> to vector<256x16xbf16>
    %c0_28 = arith.constant 0 : index
    %c0_29 = arith.constant 0 : index
    %c0_30 = arith.constant 0 : index
    %26 = vector.load %arg2[%c0_28, %c0_29, %c0_30] : memref<9x16x16xbf16, #tpu.memory_space<vmem>>, vector<1x16x16xbf16>
    %27 = vector.shape_cast %26 : vector<1x16x16xbf16> to vector<16x16xbf16>
    %cst_31 = arith.constant dense<0.000000e+00> : vector<256x16xf32>
    %28 = tpu.matmul %25, %27, %cst_31 {dimension_numbers = #tpu.dot_dimension_numbers<[1], [0], [0], [1], [0, 0, 1, 1], [], []>} : vector<256x16xbf16>, vector<16x16xbf16>, vector<256x16xf32> -> vector<256x16xf32>
    %29 = arith.addf %22, %28 : vector<256x16xf32>
    %c0_32 = arith.constant 0 : index
    %c1_33 = arith.constant 1 : index
    %c0_34 = arith.constant 0 : index
    %30 = vector.load %arg8[%c0_32, %c1_33, %c0_34] : memref<18x18x16xf32, #tpu.memory_space<vmem>>, vector<16x16x16xf32>
    %31 = vector.shape_cast %30 : vector<16x16x16xf32> to vector<256x16xf32>
    %32 = arith.truncf %31 : vector<256x16xf32> to vector<256x16xbf16>
    %c1_35 = arith.constant 1 : index
    %c0_36 = arith.constant 0 : index
    %c0_37 = arith.constant 0 : index
    %33 = vector.load %arg2[%c1_35, %c0_36, %c0_37] : memref<9x16x16xbf16, #tpu.memory_space<vmem>>, vector<1x16x16xbf16>
    %34 = vector.shape_cast %33 : vector<1x16x16xbf16> to vector<16x16xbf16>
    %cst_38 = arith.constant dense<0.000000e+00> : vector<256x16xf32>
    %35 = tpu.matmul %32, %34, %cst_38 {dimension_numbers = #tpu.dot_dimension_numbers<[1], [0], [0], [1], [0, 0, 1, 1], [], []>} : vector<256x16xbf16>, vector<16x16xbf16>, vector<256x16xf32> -> vector<256x16xf32>
    %36 = arith.addf %29, %35 : vector<256x16xf32>
    %c0_39 = arith.constant 0 : index
    %c2 = arith.constant 2 : index
    %c0_40 = arith.constant 0 : index
    %37 = vector.load %arg8[%c0_39, %c2, %c0_40] : memref<18x18x16xf32, #tpu.memory_space<vmem>>, vector<16x16x16xf32>
    %38 = vector.shape_cast %37 : vector<16x16x16xf32> to vector<256x16xf32>
    %39 = arith.truncf %38 : vector<256x16xf32> to vector<256x16xbf16>
    %c2_41 = arith.constant 2 : index
    %c0_42 = arith.constant 0 : index
    %c0_43 = arith.constant 0 : index
    %40 = vector.load %arg2[%c2_41, %c0_42, %c0_43] : memref<9x16x16xbf16, #tpu.memory_space<vmem>>, vector<1x16x16xbf16>
    %41 = vector.shape_cast %40 : vector<1x16x16xbf16> to vector<16x16xbf16>
    %cst_44 = arith.constant dense<0.000000e+00> : vector<256x16xf32>
    %42 = tpu.matmul %39, %41, %cst_44 {dimension_numbers = #tpu.dot_dimension_numbers<[1], [0], [0], [1], [0, 0, 1, 1], [], []>} : vector<256x16xbf16>, vector<16x16xbf16>, vector<256x16xf32> -> vector<256x16xf32>
    %43 = arith.addf %36, %42 : vector<256x16xf32>
    %c1_45 = arith.constant 1 : index
    %c0_46 = arith.constant 0 : index
    %c0_47 = arith.constant 0 : index
    %44 = vector.load %arg8[%c1_45, %c0_46, %c0_47] : memref<18x18x16xf32, #tpu.memory_space<vmem>>, vector<16x16x16xf32>
    %45 = vector.shape_cast %44 : vector<16x16x16xf32> to vector<256x16xf32>
    %46 = arith.truncf %45 : vector<256x16xf32> to vector<256x16xbf16>
    %c3 = arith.constant 3 : index
    %c0_48 = arith.constant 0 : index
    %c0_49 = arith.constant 0 : index
    %47 = vector.load %arg2[%c3, %c0_48, %c0_49] : memref<9x16x16xbf16, #tpu.memory_space<vmem>>, vector<1x16x16xbf16>
    %48 = vector.shape_cast %47 : vector<1x16x16xbf16> to vector<16x16xbf16>
    %cst_50 = arith.constant dense<0.000000e+00> : vector<256x16xf32>
    %49 = tpu.matmul %46, %48, %cst_50 {dimension_numbers = #tpu.dot_dimension_numbers<[1], [0], [0], [1], [0, 0, 1, 1], [], []>} : vector<256x16xbf16>, vector<16x16xbf16>, vector<256x16xf32> -> vector<256x16xf32>
    %50 = arith.addf %43, %49 : vector<256x16xf32>
    %c1_51 = arith.constant 1 : index
    %c1_52 = arith.constant 1 : index
    %c0_53 = arith.constant 0 : index
    %51 = vector.load %arg8[%c1_51, %c1_52, %c0_53] : memref<18x18x16xf32, #tpu.memory_space<vmem>>, vector<16x16x16xf32>
    %52 = vector.shape_cast %51 : vector<16x16x16xf32> to vector<256x16xf32>
    %53 = arith.truncf %52 : vector<256x16xf32> to vector<256x16xbf16>
    %c4 = arith.constant 4 : index
    %c0_54 = arith.constant 0 : index
    %c0_55 = arith.constant 0 : index
    %54 = vector.load %arg2[%c4, %c0_54, %c0_55] : memref<9x16x16xbf16, #tpu.memory_space<vmem>>, vector<1x16x16xbf16>
    %55 = vector.shape_cast %54 : vector<1x16x16xbf16> to vector<16x16xbf16>
    %cst_56 = arith.constant dense<0.000000e+00> : vector<256x16xf32>
    %56 = tpu.matmul %53, %55, %cst_56 {dimension_numbers = #tpu.dot_dimension_numbers<[1], [0], [0], [1], [0, 0, 1, 1], [], []>} : vector<256x16xbf16>, vector<16x16xbf16>, vector<256x16xf32> -> vector<256x16xf32>
    %57 = arith.addf %50, %56 : vector<256x16xf32>
    %c1_57 = arith.constant 1 : index
    %c2_58 = arith.constant 2 : index
    %c0_59 = arith.constant 0 : index
    %58 = vector.load %arg8[%c1_57, %c2_58, %c0_59] : memref<18x18x16xf32, #tpu.memory_space<vmem>>, vector<16x16x16xf32>
    %59 = vector.shape_cast %58 : vector<16x16x16xf32> to vector<256x16xf32>
    %60 = arith.truncf %59 : vector<256x16xf32> to vector<256x16xbf16>
    %c5 = arith.constant 5 : index
    %c0_60 = arith.constant 0 : index
    %c0_61 = arith.constant 0 : index
    %61 = vector.load %arg2[%c5, %c0_60, %c0_61] : memref<9x16x16xbf16, #tpu.memory_space<vmem>>, vector<1x16x16xbf16>
    %62 = vector.shape_cast %61 : vector<1x16x16xbf16> to vector<16x16xbf16>
    %cst_62 = arith.constant dense<0.000000e+00> : vector<256x16xf32>
    %63 = tpu.matmul %60, %62, %cst_62 {dimension_numbers = #tpu.dot_dimension_numbers<[1], [0], [0], [1], [0, 0, 1, 1], [], []>} : vector<256x16xbf16>, vector<16x16xbf16>, vector<256x16xf32> -> vector<256x16xf32>
    %64 = arith.addf %57, %63 : vector<256x16xf32>
    %c2_63 = arith.constant 2 : index
    %c0_64 = arith.constant 0 : index
    %c0_65 = arith.constant 0 : index
    %65 = vector.load %arg8[%c2_63, %c0_64, %c0_65] : memref<18x18x16xf32, #tpu.memory_space<vmem>>, vector<16x16x16xf32>
    %66 = vector.shape_cast %65 : vector<16x16x16xf32> to vector<256x16xf32>
    %67 = arith.truncf %66 : vector<256x16xf32> to vector<256x16xbf16>
    %c6 = arith.constant 6 : index
    %c0_66 = arith.constant 0 : index
    %c0_67 = arith.constant 0 : index
    %68 = vector.load %arg2[%c6, %c0_66, %c0_67] : memref<9x16x16xbf16, #tpu.memory_space<vmem>>, vector<1x16x16xbf16>
    %69 = vector.shape_cast %68 : vector<1x16x16xbf16> to vector<16x16xbf16>
    %cst_68 = arith.constant dense<0.000000e+00> : vector<256x16xf32>
    %70 = tpu.matmul %67, %69, %cst_68 {dimension_numbers = #tpu.dot_dimension_numbers<[1], [0], [0], [1], [0, 0, 1, 1], [], []>} : vector<256x16xbf16>, vector<16x16xbf16>, vector<256x16xf32> -> vector<256x16xf32>
    %71 = arith.addf %64, %70 : vector<256x16xf32>
    %c2_69 = arith.constant 2 : index
    %c1_70 = arith.constant 1 : index
    %c0_71 = arith.constant 0 : index
    %72 = vector.load %arg8[%c2_69, %c1_70, %c0_71] : memref<18x18x16xf32, #tpu.memory_space<vmem>>, vector<16x16x16xf32>
    %73 = vector.shape_cast %72 : vector<16x16x16xf32> to vector<256x16xf32>
    %74 = arith.truncf %73 : vector<256x16xf32> to vector<256x16xbf16>
    %c7 = arith.constant 7 : index
    %c0_72 = arith.constant 0 : index
    %c0_73 = arith.constant 0 : index
    %75 = vector.load %arg2[%c7, %c0_72, %c0_73] : memref<9x16x16xbf16, #tpu.memory_space<vmem>>, vector<1x16x16xbf16>
    %76 = vector.shape_cast %75 : vector<1x16x16xbf16> to vector<16x16xbf16>
    %cst_74 = arith.constant dense<0.000000e+00> : vector<256x16xf32>
    %77 = tpu.matmul %74, %76, %cst_74 {dimension_numbers = #tpu.dot_dimension_numbers<[1], [0], [0], [1], [0, 0, 1, 1], [], []>} : vector<256x16xbf16>, vector<16x16xbf16>, vector<256x16xf32> -> vector<256x16xf32>
    %78 = arith.addf %71, %77 : vector<256x16xf32>
    %c2_75 = arith.constant 2 : index
    %c2_76 = arith.constant 2 : index
    %c0_77 = arith.constant 0 : index
    %79 = vector.load %arg8[%c2_75, %c2_76, %c0_77] : memref<18x18x16xf32, #tpu.memory_space<vmem>>, vector<16x16x16xf32>
    %80 = vector.shape_cast %79 : vector<16x16x16xf32> to vector<256x16xf32>
    %81 = arith.truncf %80 : vector<256x16xf32> to vector<256x16xbf16>
    %c8 = arith.constant 8 : index
    %c0_78 = arith.constant 0 : index
    %c0_79 = arith.constant 0 : index
    %82 = vector.load %arg2[%c8, %c0_78, %c0_79] : memref<9x16x16xbf16, #tpu.memory_space<vmem>>, vector<1x16x16xbf16>
    %83 = vector.shape_cast %82 : vector<1x16x16xbf16> to vector<16x16xbf16>
    %cst_80 = arith.constant dense<0.000000e+00> : vector<256x16xf32>
    %84 = tpu.matmul %81, %83, %cst_80 {dimension_numbers = #tpu.dot_dimension_numbers<[1], [0], [0], [1], [0, 0, 1, 1], [], []>} : vector<256x16xbf16>, vector<16x16xbf16>, vector<256x16xf32> -> vector<256x16xf32>
    %85 = arith.addf %78, %84 : vector<256x16xf32>
    %cst_81 = arith.constant dense<0.000000e+00> : vector<16xf32>
    %86 = vector.multi_reduction <add>, %85, %cst_81 [0] : vector<256x16xf32> to vector<16xf32>
    %87 = vector.shape_cast %86 : vector<16xf32> to vector<1x16xf32>
    %c0_82 = arith.constant 0 : index
    %c0_83 = arith.constant 0 : index
    %c0_84 = arith.constant 0 : index
    %88 = vector.load %arg6[%c0_82, %c0_83, %c0_84] : memref<1x1x16xf32, #tpu.memory_space<vmem>>, vector<1x1x16xf32>
    %89 = vector.shape_cast %88 : vector<1x1x16xf32> to vector<1x16xf32>
    %90 = vector.shape_cast %87 : vector<1x16xf32> to vector<1x1x16xf32>
    tpu.vector_store %arg6[%c0_82, %c0_83, %c0_84], %90 {strides = array<i32>} : memref<1x1x16xf32, #tpu.memory_space<vmem>>, vector<1x1x16xf32>,
    %91 = arith.mulf %85, %85 : vector<256x16xf32>
    %cst_85 = arith.constant dense<0.000000e+00> : vector<16xf32>
    %92 = vector.multi_reduction <add>, %91, %cst_85 [0] : vector<256x16xf32> to vector<16xf32>
    %93 = vector.shape_cast %92 : vector<16xf32> to vector<1x16xf32>
    %c0_86 = arith.constant 0 : index
    %c0_87 = arith.constant 0 : index
    %c0_88 = arith.constant 0 : index
    %94 = vector.load %arg7[%c0_86, %c0_87, %c0_88] : memref<1x1x16xf32, #tpu.memory_space<vmem>>, vector<1x1x16xf32>
    %95 = vector.shape_cast %94 : vector<1x1x16xf32> to vector<1x16xf32>
    %96 = vector.shape_cast %93 : vector<1x16xf32> to vector<1x1x16xf32>
    tpu.vector_store %arg7[%c0_86, %c0_87, %c0_88], %96 {strides = array<i32>} : memref<1x1x16xf32, #tpu.memory_space<vmem>>, vector<1x1x16xf32>,
    %97 = arith.truncf %85 : vector<256x16xf32> to vector<256x16xbf16>
    %c0_89 = arith.constant 0 : index
    %c0_90 = arith.constant 0 : index
    %c0_91 = arith.constant 0 : index
    %98 = vector.load %arg5[%c0_89, %c0_90, %c0_91] : memref<1x256x16xbf16, #tpu.memory_space<vmem>>, vector<1x256x16xbf16>
    %99 = vector.shape_cast %98 : vector<1x256x16xbf16> to vector<256x16xbf16>
    %100 = vector.shape_cast %97 : vector<256x16xbf16> to vector<1x256x16xbf16>
    tpu.vector_store %arg5[%c0_89, %c0_90, %c0_91], %100 {strides = array<i32>} : memref<1x256x16xbf16, #tpu.memory_space<vmem>>, vector<1x256x16xbf16>,
    return
  }
  func.func @transform_0(%arg0: i32) -> (i32, i32, i32, i32) {
    %c0_i32 = arith.constant 0 : i32
    %c0_i32_0 = arith.constant 0 : i32
    %c0_i32_1 = arith.constant 0 : i32
    %c0_i32_2 = arith.constant 0 : i32
    return %arg0, %c0_i32, %c0_i32_0, %c0_i32_1 : i32, i32, i32, i32
  }
  func.func @transform_1(%arg0: i32) -> (i32, i32, i32) {
    %c0_i32 = arith.constant 0 : i32
    %c0_i32_0 = arith.constant 0 : i32
    %c0_i32_1 = arith.constant 0 : i32
    %c0_i32_2 = arith.constant 0 : i32
    return %c0_i32, %c0_i32_0, %c0_i32_1 : i32, i32, i32
  }
  func.func @transform_2(%arg0: i32) -> (i32, i32) {
    %c0_i32 = arith.constant 0 : i32
    %c0_i32_0 = arith.constant 0 : i32
    %c0_i32_1 = arith.constant 0 : i32
    return %c0_i32, %c0_i32_0 : i32, i32
  }
  func.func @transform_3(%arg0: i32) -> (i32, i32) {
    %c0_i32 = arith.constant 0 : i32
    %c0_i32_0 = arith.constant 0 : i32
    %c0_i32_1 = arith.constant 0 : i32
    return %c0_i32, %c0_i32_0 : i32, i32
  }
  func.func @transform_4(%arg0: i32) -> (i32, i32, i32) {
    %c0_i32 = arith.constant 0 : i32
    %c0_i32_0 = arith.constant 0 : i32
    %c0_i32_1 = arith.constant 0 : i32
    return %arg0, %c0_i32, %c0_i32_0 : i32, i32, i32
  }
  func.func @transform_5(%arg0: i32) -> (i32, i32, i32) {
    %c0_i32 = arith.constant 0 : i32
    %c0_i32_0 = arith.constant 0 : i32
    %c0_i32_1 = arith.constant 0 : i32
    return %arg0, %c0_i32, %c0_i32_0 : i32, i32, i32
  }
  func.func @transform_6(%arg0: i32) -> (i32, i32, i32) {
    %c0_i32 = arith.constant 0 : i32
    %c0_i32_0 = arith.constant 0 : i32
    %c0_i32_1 = arith.constant 0 : i32
    return %arg0, %c0_i32, %c0_i32_0 : i32, i32, i32
  }
}

module attributes {stable_mosaic.version = 11 : i64} {
  func.func @_cbam_kernel(%arg0: i32, %arg1: memref<1x16x16x16xbf16, #tpu.memory_space<vmem>>, %arg2: memref<1x16x16x16xf32, #tpu.memory_space<vmem>>, %arg3: memref<1x16xf32, #tpu.memory_space<vmem>>, %arg4: memref<1x16xf32, #tpu.memory_space<vmem>>, %arg5: memref<1x16xf32, #tpu.memory_space<vmem>>, %arg6: memref<1x16xf32, #tpu.memory_space<vmem>>, %arg7: memref<98xf32, #tpu.memory_space<smem>>, %arg8: memref<1x16x16x16xf32, #tpu.memory_space<vmem>>, %arg9: memref<2x22x22xf32, #tpu.memory_space<vmem>>) attributes {dimension_semantics = [#tpu.dimension_semantics<parallel>], iteration_bounds = array<i64: 2>, scalar_prefetch = 0 : i64, scratch_operands = 1 : i64, tpu.core_type = #tpu.core_type<tc>, window_params = [{transform_indices = @transform_0, window_bounds = array<i64: 1, 16, 16, 16>}, {transform_indices = @transform_1, window_bounds = array<i64: 1, 16, 16, 16>}, {pipeline_mode = #tpu.pipeline_mode<synchronous>, transform_indices = @transform_2, window_bounds = array<i64: 1, 16>}, {pipeline_mode = #tpu.pipeline_mode<synchronous>, transform_indices = @transform_3, window_bounds = array<i64: 1, 16>}, {pipeline_mode = #tpu.pipeline_mode<synchronous>, transform_indices = @transform_4, window_bounds = array<i64: 1, 16>}, {pipeline_mode = #tpu.pipeline_mode<synchronous>, transform_indices = @transform_5, window_bounds = array<i64: 1, 16>}, {transform_indices = @transform_6, window_bounds = array<i64: 98>}, {transform_indices = @transform_7, window_bounds = array<i64: 1, 16, 16, 16>}]} {
    %c0 = arith.constant 0 : index
    %c0_0 = arith.constant 0 : index
    %c0_1 = arith.constant 0 : index
    %c0_2 = arith.constant 0 : index
    %0 = vector.load %arg1[%c0, %c0_0, %c0_1, %c0_2] : memref<1x16x16x16xbf16, #tpu.memory_space<vmem>>, vector<1x16x16x16xbf16>
    %1 = vector.shape_cast %0 : vector<1x16x16x16xbf16> to vector<16x16x16xbf16>
    %2 = arith.extf %1 : vector<16x16x16xbf16> to vector<16x16x16xf32>
    %c0_3 = arith.constant 0 : index
    %c0_4 = arith.constant 0 : index
    %3 = vector.load %arg3[%c0_3, %c0_4] : memref<1x16xf32, #tpu.memory_space<vmem>>, vector<1x16xf32>
    %4 = vector.shape_cast %3 : vector<1x16xf32> to vector<1x1x16xf32>
    %5 = vector.broadcast %4 : vector<1x1x16xf32> to vector<16x16x16xf32>
    %6 = arith.mulf %2, %5 : vector<16x16x16xf32>
    %c0_5 = arith.constant 0 : index
    %c0_6 = arith.constant 0 : index
    %7 = vector.load %arg4[%c0_5, %c0_6] : memref<1x16xf32, #tpu.memory_space<vmem>>, vector<1x16xf32>
    %8 = vector.shape_cast %7 : vector<1x16xf32> to vector<1x1x16xf32>
    %9 = vector.broadcast %8 : vector<1x1x16xf32> to vector<16x16x16xf32>
    %10 = arith.addf %6, %9 : vector<16x16x16xf32>
    %cst = arith.constant dense<0.000000e+00> : vector<16x16xf32>
    %11 = vector.multi_reduction <add>, %10, %cst [0] : vector<16x16x16xf32> to vector<16x16xf32>
    %cst_7 = arith.constant 1.600000e+01 : f32
    %12 = vector.broadcast %cst_7 : f32 to vector<16x16xf32>
    %13 = arith.divf %11, %12 : vector<16x16xf32>
    %cst_8 = arith.constant dense<0.000000e+00> : vector<16xf32>
    %14 = vector.multi_reduction <add>, %13, %cst_8 [0] : vector<16x16xf32> to vector<16xf32>
    %15 = vector.shape_cast %14 : vector<16xf32> to vector<1x16xf32>
    %cst_9 = arith.constant 1.600000e+01 : f32
    %16 = vector.broadcast %cst_9 : f32 to vector<1x16xf32>
    %17 = arith.divf %15, %16 : vector<1x16xf32>
    %cst_10 = arith.constant dense<0xFF800000> : vector<16x16xf32>
    %18 = vector.multi_reduction <maximumf>, %10, %cst_10 [0] : vector<16x16x16xf32> to vector<16x16xf32>
    %cst_11 = arith.constant dense<0xFF800000> : vector<16xf32>
    %19 = vector.multi_reduction <maximumf>, %18, %cst_11 [0] : vector<16x16xf32> to vector<16xf32>
    %20 = vector.shape_cast %19 : vector<16xf32> to vector<1x16xf32>
    %cst_12 = arith.constant 0.000000e+00 : f32
    %21 = vector.broadcast %cst_12 : f32 to vector<1x16xf32>
    %c0_13 = arith.constant 0 : index
    %c0_14 = arith.constant 0 : index
    %22 = vector.load %arg5[%c0_13, %c0_14] : memref<1x16xf32, #tpu.memory_space<vmem>>, vector<1x16xf32>
    %23 = arith.mulf %17, %22 : vector<1x16xf32>
    %cst_15 = arith.constant dense<0.000000e+00> : vector<1xf32>
    %24 = vector.multi_reduction <add>, %23, %cst_15 [1] : vector<1x16xf32> to vector<1xf32>
    %25 = vector.shape_cast %24 : vector<1xf32> to vector<1x1xf32>
    %cst_16 = arith.constant 0.000000e+00 : f32
    %26 = vector.broadcast %cst_16 : f32 to vector<1x1xf32>
    %27 = arith.maximumf %25, %26 : vector<1x1xf32>
    %c0_17 = arith.constant 0 : index
    %c0_18 = arith.constant 0 : index
    %28 = vector.load %arg6[%c0_17, %c0_18] : memref<1x16xf32, #tpu.memory_space<vmem>>, vector<1x16xf32>
    %29 = vector.broadcast %27 : vector<1x1xf32> to vector<1x16xf32>
    %30 = arith.mulf %29, %28 : vector<1x16xf32>
    %31 = arith.addf %21, %30 : vector<1x16xf32>
    %cst_19 = arith.constant 0.000000e+00 : f32
    %32 = vector.broadcast %cst_19 : f32 to vector<1x16xf32>
    %c0_20 = arith.constant 0 : index
    %c0_21 = arith.constant 0 : index
    %33 = vector.load %arg5[%c0_20, %c0_21] : memref<1x16xf32, #tpu.memory_space<vmem>>, vector<1x16xf32>
    %34 = arith.mulf %20, %33 : vector<1x16xf32>
    %cst_22 = arith.constant dense<0.000000e+00> : vector<1xf32>
    %35 = vector.multi_reduction <add>, %34, %cst_22 [1] : vector<1x16xf32> to vector<1xf32>
    %36 = vector.shape_cast %35 : vector<1xf32> to vector<1x1xf32>
    %cst_23 = arith.constant 0.000000e+00 : f32
    %37 = vector.broadcast %cst_23 : f32 to vector<1x1xf32>
    %38 = arith.maximumf %36, %37 : vector<1x1xf32>
    %c0_24 = arith.constant 0 : index
    %c0_25 = arith.constant 0 : index
    %39 = vector.load %arg6[%c0_24, %c0_25] : memref<1x16xf32, #tpu.memory_space<vmem>>, vector<1x16xf32>
    %40 = vector.broadcast %38 : vector<1x1xf32> to vector<1x16xf32>
    %41 = arith.mulf %40, %39 : vector<1x16xf32>
    %42 = arith.addf %32, %41 : vector<1x16xf32>
    %43 = arith.addf %31, %42 : vector<1x16xf32>
    %44 = arith.negf %43 : vector<1x16xf32>
    %45 = math.exp %44 : vector<1x16xf32>
    %cst_26 = arith.constant 1.000000e+00 : f32
    %46 = vector.broadcast %cst_26 : f32 to vector<1x16xf32>
    %47 = arith.addf %46, %45 : vector<1x16xf32>
    %48 = arith.divf %46, %47 : vector<1x16xf32>
    %49 = vector.shape_cast %48 : vector<1x16xf32> to vector<1x1x16xf32>
    %50 = vector.broadcast %49 : vector<1x1x16xf32> to vector<16x16x16xf32>
    %51 = arith.mulf %10, %50 : vector<16x16x16xf32>
    %cst_27 = arith.constant dense<0.000000e+00> : vector<16x16xf32>
    %52 = vector.multi_reduction <add>, %51, %cst_27 [2] : vector<16x16x16xf32> to vector<16x16xf32>
    %cst_28 = arith.constant 1.600000e+01 : f32
    %53 = vector.broadcast %cst_28 : f32 to vector<16x16xf32>
    %54 = arith.divf %52, %53 : vector<16x16xf32>
    %cst_29 = arith.constant dense<0xFF800000> : vector<16x16xf32>
    %55 = vector.multi_reduction <maximumf>, %51, %cst_29 [2] : vector<16x16x16xf32> to vector<16x16xf32>
    %cst_30 = arith.constant 0.000000e+00 : f32
    %56 = vector.broadcast %cst_30 : f32 to vector<2x22x22xf32>
    %c0_31 = arith.constant 0 : index
    %c0_32 = arith.constant 0 : index
    %c0_33 = arith.constant 0 : index
    %57 = vector.load %arg9[%c0_31, %c0_32, %c0_33] : memref<2x22x22xf32, #tpu.memory_space<vmem>>, vector<2x22x22xf32>
    tpu.vector_store %arg9[%c0_31, %c0_32, %c0_33], %56 {strides = array<i32>} : memref<2x22x22xf32, #tpu.memory_space<vmem>>, vector<2x22x22xf32>,
    %c0_34 = arith.constant 0 : index
    %c3 = arith.constant 3 : index
    %c3_35 = arith.constant 3 : index
    %58 = vector.load %arg9[%c0_34, %c3, %c3_35] : memref<2x22x22xf32, #tpu.memory_space<vmem>>, vector<1x16x16xf32>
    %59 = vector.shape_cast %58 : vector<1x16x16xf32> to vector<16x16xf32>
    %60 = vector.shape_cast %54 : vector<16x16xf32> to vector<1x16x16xf32>
    tpu.vector_store %arg9[%c0_34, %c3, %c3_35], %60 {strides = array<i32>} : memref<2x22x22xf32, #tpu.memory_space<vmem>>, vector<1x16x16xf32>,
    %c1 = arith.constant 1 : index
    %c3_36 = arith.constant 3 : index
    %c3_37 = arith.constant 3 : index
    %61 = vector.load %arg9[%c1, %c3_36, %c3_37] : memref<2x22x22xf32, #tpu.memory_space<vmem>>, vector<1x16x16xf32>
    %62 = vector.shape_cast %61 : vector<1x16x16xf32> to vector<16x16xf32>
    %63 = vector.shape_cast %55 : vector<16x16xf32> to vector<1x16x16xf32>
    tpu.vector_store %arg9[%c1, %c3_36, %c3_37], %63 {strides = array<i32>} : memref<2x22x22xf32, #tpu.memory_space<vmem>>, vector<1x16x16xf32>,
    %cst_38 = arith.constant 0.000000e+00 : f32
    %64 = vector.broadcast %cst_38 : f32 to vector<16x16xf32>
    %c0_39 = arith.constant 0 : index
    %65 = memref.load %arg7[%c0_39] : memref<98xf32, #tpu.memory_space<smem>>
    %c0_40 = arith.constant 0 : index
    %c0_41 = arith.constant 0 : index
    %c0_42 = arith.constant 0 : index
    %66 = vector.load %arg9[%c0_40, %c0_41, %c0_42] : memref<2x22x22xf32, #tpu.memory_space<vmem>>, vector<1x16x16xf32>
    %67 = vector.shape_cast %66 : vector<1x16x16xf32> to vector<16x16xf32>
    %68 = vector.broadcast %65 : f32 to vector<16x16xf32>
    %69 = arith.mulf %68, %67 : vector<16x16xf32>
    %70 = arith.addf %64, %69 : vector<16x16xf32>
    %c1_43 = arith.constant 1 : index
    %71 = memref.load %arg7[%c1_43] : memref<98xf32, #tpu.memory_space<smem>>
    %c0_44 = arith.constant 0 : index
    %c0_45 = arith.constant 0 : index
    %c1_46 = arith.constant 1 : index
    %72 = vector.load %arg9[%c0_44, %c0_45, %c1_46] : memref<2x22x22xf32, #tpu.memory_space<vmem>>, vector<1x16x16xf32>
    %73 = vector.shape_cast %72 : vector<1x16x16xf32> to vector<16x16xf32>
    %74 = vector.broadcast %71 : f32 to vector<16x16xf32>
    %75 = arith.mulf %74, %73 : vector<16x16xf32>
    %76 = arith.addf %70, %75 : vector<16x16xf32>
    %c2 = arith.constant 2 : index
    %77 = memref.load %arg7[%c2] : memref<98xf32, #tpu.memory_space<smem>>
    %c0_47 = arith.constant 0 : index
    %c0_48 = arith.constant 0 : index
    %c2_49 = arith.constant 2 : index
    %78 = vector.load %arg9[%c0_47, %c0_48, %c2_49] : memref<2x22x22xf32, #tpu.memory_space<vmem>>, vector<1x16x16xf32>
    %79 = vector.shape_cast %78 : vector<1x16x16xf32> to vector<16x16xf32>
    %80 = vector.broadcast %77 : f32 to vector<16x16xf32>
    %81 = arith.mulf %80, %79 : vector<16x16xf32>
    %82 = arith.addf %76, %81 : vector<16x16xf32>
    %c3_50 = arith.constant 3 : index
    %83 = memref.load %arg7[%c3_50] : memref<98xf32, #tpu.memory_space<smem>>
    %c0_51 = arith.constant 0 : index
    %c0_52 = arith.constant 0 : index
    %c3_53 = arith.constant 3 : index
    %84 = vector.load %arg9[%c0_51, %c0_52, %c3_53] : memref<2x22x22xf32, #tpu.memory_space<vmem>>, vector<1x16x16xf32>
    %85 = vector.shape_cast %84 : vector<1x16x16xf32> to vector<16x16xf32>
    %86 = vector.broadcast %83 : f32 to vector<16x16xf32>
    %87 = arith.mulf %86, %85 : vector<16x16xf32>
    %88 = arith.addf %82, %87 : vector<16x16xf32>
    %c4 = arith.constant 4 : index
    %89 = memref.load %arg7[%c4] : memref<98xf32, #tpu.memory_space<smem>>
    %c0_54 = arith.constant 0 : index
    %c0_55 = arith.constant 0 : index
    %c4_56 = arith.constant 4 : index
    %90 = vector.load %arg9[%c0_54, %c0_55, %c4_56] : memref<2x22x22xf32, #tpu.memory_space<vmem>>, vector<1x16x16xf32>
    %91 = vector.shape_cast %90 : vector<1x16x16xf32> to vector<16x16xf32>
    %92 = vector.broadcast %89 : f32 to vector<16x16xf32>
    %93 = arith.mulf %92, %91 : vector<16x16xf32>
    %94 = arith.addf %88, %93 : vector<16x16xf32>
    %c5 = arith.constant 5 : index
    %95 = memref.load %arg7[%c5] : memref<98xf32, #tpu.memory_space<smem>>
    %c0_57 = arith.constant 0 : index
    %c0_58 = arith.constant 0 : index
    %c5_59 = arith.constant 5 : index
    %96 = vector.load %arg9[%c0_57, %c0_58, %c5_59] : memref<2x22x22xf32, #tpu.memory_space<vmem>>, vector<1x16x16xf32>
    %97 = vector.shape_cast %96 : vector<1x16x16xf32> to vector<16x16xf32>
    %98 = vector.broadcast %95 : f32 to vector<16x16xf32>
    %99 = arith.mulf %98, %97 : vector<16x16xf32>
    %100 = arith.addf %94, %99 : vector<16x16xf32>
    %c6 = arith.constant 6 : index
    %101 = memref.load %arg7[%c6] : memref<98xf32, #tpu.memory_space<smem>>
    %c0_60 = arith.constant 0 : index
    %c0_61 = arith.constant 0 : index
    %c6_62 = arith.constant 6 : index
    %102 = vector.load %arg9[%c0_60, %c0_61, %c6_62] : memref<2x22x22xf32, #tpu.memory_space<vmem>>, vector<1x16x16xf32>
    %103 = vector.shape_cast %102 : vector<1x16x16xf32> to vector<16x16xf32>
    %104 = vector.broadcast %101 : f32 to vector<16x16xf32>
    %105 = arith.mulf %104, %103 : vector<16x16xf32>
    %106 = arith.addf %100, %105 : vector<16x16xf32>
    %c7 = arith.constant 7 : index
    %107 = memref.load %arg7[%c7] : memref<98xf32, #tpu.memory_space<smem>>
    %c0_63 = arith.constant 0 : index
    %c1_64 = arith.constant 1 : index
    %c0_65 = arith.constant 0 : index
    %108 = vector.load %arg9[%c0_63, %c1_64, %c0_65] : memref<2x22x22xf32, #tpu.memory_space<vmem>>, vector<1x16x16xf32>
    %109 = vector.shape_cast %108 : vector<1x16x16xf32> to vector<16x16xf32>
    %110 = vector.broadcast %107 : f32 to vector<16x16xf32>
    %111 = arith.mulf %110, %109 : vector<16x16xf32>
    %112 = arith.addf %106, %111 : vector<16x16xf32>
    %c8 = arith.constant 8 : index
    %113 = memref.load %arg7[%c8] : memref<98xf32, #tpu.memory_space<smem>>
    %c0_66 = arith.constant 0 : index
    %c1_67 = arith.constant 1 : index
    %c1_68 = arith.constant 1 : index
    %114 = vector.load %arg9[%c0_66, %c1_67, %c1_68] : memref<2x22x22xf32, #tpu.memory_space<vmem>>, vector<1x16x16xf32>
    %115 = vector.shape_cast %114 : vector<1x16x16xf32> to vector<16x16xf32>
    %116 = vector.broadcast %113 : f32 to vector<16x16xf32>
    %117 = arith.mulf %116, %115 : vector<16x16xf32>
    %118 = arith.addf %112, %117 : vector<16x16xf32>
    %c9 = arith.constant 9 : index
    %119 = memref.load %arg7[%c9] : memref<98xf32, #tpu.memory_space<smem>>
    %c0_69 = arith.constant 0 : index
    %c1_70 = arith.constant 1 : index
    %c2_71 = arith.constant 2 : index
    %120 = vector.load %arg9[%c0_69, %c1_70, %c2_71] : memref<2x22x22xf32, #tpu.memory_space<vmem>>, vector<1x16x16xf32>
    %121 = vector.shape_cast %120 : vector<1x16x16xf32> to vector<16x16xf32>
    %122 = vector.broadcast %119 : f32 to vector<16x16xf32>
    %123 = arith.mulf %122, %121 : vector<16x16xf32>
    %124 = arith.addf %118, %123 : vector<16x16xf32>
    %c10 = arith.constant 10 : index
    %125 = memref.load %arg7[%c10] : memref<98xf32, #tpu.memory_space<smem>>
    %c0_72 = arith.constant 0 : index
    %c1_73 = arith.constant 1 : index
    %c3_74 = arith.constant 3 : index
    %126 = vector.load %arg9[%c0_72, %c1_73, %c3_74] : memref<2x22x22xf32, #tpu.memory_space<vmem>>, vector<1x16x16xf32>
    %127 = vector.shape_cast %126 : vector<1x16x16xf32> to vector<16x16xf32>
    %128 = vector.broadcast %125 : f32 to vector<16x16xf32>
    %129 = arith.mulf %128, %127 : vector<16x16xf32>
    %130 = arith.addf %124, %129 : vector<16x16xf32>
    %c11 = arith.constant 11 : index
    %131 = memref.load %arg7[%c11] : memref<98xf32, #tpu.memory_space<smem>>
    %c0_75 = arith.constant 0 : index
    %c1_76 = arith.constant 1 : index
    %c4_77 = arith.constant 4 : index
    %132 = vector.load %arg9[%c0_75, %c1_76, %c4_77] : memref<2x22x22xf32, #tpu.memory_space<vmem>>, vector<1x16x16xf32>
    %133 = vector.shape_cast %132 : vector<1x16x16xf32> to vector<16x16xf32>
    %134 = vector.broadcast %131 : f32 to vector<16x16xf32>
    %135 = arith.mulf %134, %133 : vector<16x16xf32>
    %136 = arith.addf %130, %135 : vector<16x16xf32>
    %c12 = arith.constant 12 : index
    %137 = memref.load %arg7[%c12] : memref<98xf32, #tpu.memory_space<smem>>
    %c0_78 = arith.constant 0 : index
    %c1_79 = arith.constant 1 : index
    %c5_80 = arith.constant 5 : index
    %138 = vector.load %arg9[%c0_78, %c1_79, %c5_80] : memref<2x22x22xf32, #tpu.memory_space<vmem>>, vector<1x16x16xf32>
    %139 = vector.shape_cast %138 : vector<1x16x16xf32> to vector<16x16xf32>
    %140 = vector.broadcast %137 : f32 to vector<16x16xf32>
    %141 = arith.mulf %140, %139 : vector<16x16xf32>
    %142 = arith.addf %136, %141 : vector<16x16xf32>
    %c13 = arith.constant 13 : index
    %143 = memref.load %arg7[%c13] : memref<98xf32, #tpu.memory_space<smem>>
    %c0_81 = arith.constant 0 : index
    %c1_82 = arith.constant 1 : index
    %c6_83 = arith.constant 6 : index
    %144 = vector.load %arg9[%c0_81, %c1_82, %c6_83] : memref<2x22x22xf32, #tpu.memory_space<vmem>>, vector<1x16x16xf32>
    %145 = vector.shape_cast %144 : vector<1x16x16xf32> to vector<16x16xf32>
    %146 = vector.broadcast %143 : f32 to vector<16x16xf32>
    %147 = arith.mulf %146, %145 : vector<16x16xf32>
    %148 = arith.addf %142, %147 : vector<16x16xf32>
    %c14 = arith.constant 14 : index
    %149 = memref.load %arg7[%c14] : memref<98xf32, #tpu.memory_space<smem>>
    %c0_84 = arith.constant 0 : index
    %c2_85 = arith.constant 2 : index
    %c0_86 = arith.constant 0 : index
    %150 = vector.load %arg9[%c0_84, %c2_85, %c0_86] : memref<2x22x22xf32, #tpu.memory_space<vmem>>, vector<1x16x16xf32>
    %151 = vector.shape_cast %150 : vector<1x16x16xf32> to vector<16x16xf32>
    %152 = vector.broadcast %149 : f32 to vector<16x16xf32>
    %153 = arith.mulf %152, %151 : vector<16x16xf32>
    %154 = arith.addf %148, %153 : vector<16x16xf32>
    %c15 = arith.constant 15 : index
    %155 = memref.load %arg7[%c15] : memref<98xf32, #tpu.memory_space<smem>>
    %c0_87 = arith.constant 0 : index
    %c2_88 = arith.constant 2 : index
    %c1_89 = arith.constant 1 : index
    %156 = vector.load %arg9[%c0_87, %c2_88, %c1_89] : memref<2x22x22xf32, #tpu.memory_space<vmem>>, vector<1x16x16xf32>
    %157 = vector.shape_cast %156 : vector<1x16x16xf32> to vector<16x16xf32>
    %158 = vector.broadcast %155 : f32 to vector<16x16xf32>
    %159 = arith.mulf %158, %157 : vector<16x16xf32>
    %160 = arith.addf %154, %159 : vector<16x16xf32>
    %c16 = arith.constant 16 : index
    %161 = memref.load %arg7[%c16] : memref<98xf32, #tpu.memory_space<smem>>
    %c0_90 = arith.constant 0 : index
    %c2_91 = arith.constant 2 : index
    %c2_92 = arith.constant 2 : index
    %162 = vector.load %arg9[%c0_90, %c2_91, %c2_92] : memref<2x22x22xf32, #tpu.memory_space<vmem>>, vector<1x16x16xf32>
    %163 = vector.shape_cast %162 : vector<1x16x16xf32> to vector<16x16xf32>
    %164 = vector.broadcast %161 : f32 to vector<16x16xf32>
    %165 = arith.mulf %164, %163 : vector<16x16xf32>
    %166 = arith.addf %160, %165 : vector<16x16xf32>
    %c17 = arith.constant 17 : index
    %167 = memref.load %arg7[%c17] : memref<98xf32, #tpu.memory_space<smem>>
    %c0_93 = arith.constant 0 : index
    %c2_94 = arith.constant 2 : index
    %c3_95 = arith.constant 3 : index
    %168 = vector.load %arg9[%c0_93, %c2_94, %c3_95] : memref<2x22x22xf32, #tpu.memory_space<vmem>>, vector<1x16x16xf32>
    %169 = vector.shape_cast %168 : vector<1x16x16xf32> to vector<16x16xf32>
    %170 = vector.broadcast %167 : f32 to vector<16x16xf32>
    %171 = arith.mulf %170, %169 : vector<16x16xf32>
    %172 = arith.addf %166, %171 : vector<16x16xf32>
    %c18 = arith.constant 18 : index
    %173 = memref.load %arg7[%c18] : memref<98xf32, #tpu.memory_space<smem>>
    %c0_96 = arith.constant 0 : index
    %c2_97 = arith.constant 2 : index
    %c4_98 = arith.constant 4 : index
    %174 = vector.load %arg9[%c0_96, %c2_97, %c4_98] : memref<2x22x22xf32, #tpu.memory_space<vmem>>, vector<1x16x16xf32>
    %175 = vector.shape_cast %174 : vector<1x16x16xf32> to vector<16x16xf32>
    %176 = vector.broadcast %173 : f32 to vector<16x16xf32>
    %177 = arith.mulf %176, %175 : vector<16x16xf32>
    %178 = arith.addf %172, %177 : vector<16x16xf32>
    %c19 = arith.constant 19 : index
    %179 = memref.load %arg7[%c19] : memref<98xf32, #tpu.memory_space<smem>>
    %c0_99 = arith.constant 0 : index
    %c2_100 = arith.constant 2 : index
    %c5_101 = arith.constant 5 : index
    %180 = vector.load %arg9[%c0_99, %c2_100, %c5_101] : memref<2x22x22xf32, #tpu.memory_space<vmem>>, vector<1x16x16xf32>
    %181 = vector.shape_cast %180 : vector<1x16x16xf32> to vector<16x16xf32>
    %182 = vector.broadcast %179 : f32 to vector<16x16xf32>
    %183 = arith.mulf %182, %181 : vector<16x16xf32>
    %184 = arith.addf %178, %183 : vector<16x16xf32>
    %c20 = arith.constant 20 : index
    %185 = memref.load %arg7[%c20] : memref<98xf32, #tpu.memory_space<smem>>
    %c0_102 = arith.constant 0 : index
    %c2_103 = arith.constant 2 : index
    %c6_104 = arith.constant 6 : index
    %186 = vector.load %arg9[%c0_102, %c2_103, %c6_104] : memref<2x22x22xf32, #tpu.memory_space<vmem>>, vector<1x16x16xf32>
    %187 = vector.shape_cast %186 : vector<1x16x16xf32> to vector<16x16xf32>
    %188 = vector.broadcast %185 : f32 to vector<16x16xf32>
    %189 = arith.mulf %188, %187 : vector<16x16xf32>
    %190 = arith.addf %184, %189 : vector<16x16xf32>
    %c21 = arith.constant 21 : index
    %191 = memref.load %arg7[%c21] : memref<98xf32, #tpu.memory_space<smem>>
    %c0_105 = arith.constant 0 : index
    %c3_106 = arith.constant 3 : index
    %c0_107 = arith.constant 0 : index
    %192 = vector.load %arg9[%c0_105, %c3_106, %c0_107] : memref<2x22x22xf32, #tpu.memory_space<vmem>>, vector<1x16x16xf32>
    %193 = vector.shape_cast %192 : vector<1x16x16xf32> to vector<16x16xf32>
    %194 = vector.broadcast %191 : f32 to vector<16x16xf32>
    %195 = arith.mulf %194, %193 : vector<16x16xf32>
    %196 = arith.addf %190, %195 : vector<16x16xf32>
    %c22 = arith.constant 22 : index
    %197 = memref.load %arg7[%c22] : memref<98xf32, #tpu.memory_space<smem>>
    %c0_108 = arith.constant 0 : index
    %c3_109 = arith.constant 3 : index
    %c1_110 = arith.constant 1 : index
    %198 = vector.load %arg9[%c0_108, %c3_109, %c1_110] : memref<2x22x22xf32, #tpu.memory_space<vmem>>, vector<1x16x16xf32>
    %199 = vector.shape_cast %198 : vector<1x16x16xf32> to vector<16x16xf32>
    %200 = vector.broadcast %197 : f32 to vector<16x16xf32>
    %201 = arith.mulf %200, %199 : vector<16x16xf32>
    %202 = arith.addf %196, %201 : vector<16x16xf32>
    %c23 = arith.constant 23 : index
    %203 = memref.load %arg7[%c23] : memref<98xf32, #tpu.memory_space<smem>>
    %c0_111 = arith.constant 0 : index
    %c3_112 = arith.constant 3 : index
    %c2_113 = arith.constant 2 : index
    %204 = vector.load %arg9[%c0_111, %c3_112, %c2_113] : memref<2x22x22xf32, #tpu.memory_space<vmem>>, vector<1x16x16xf32>
    %205 = vector.shape_cast %204 : vector<1x16x16xf32> to vector<16x16xf32>
    %206 = vector.broadcast %203 : f32 to vector<16x16xf32>
    %207 = arith.mulf %206, %205 : vector<16x16xf32>
    %208 = arith.addf %202, %207 : vector<16x16xf32>
    %c24 = arith.constant 24 : index
    %209 = memref.load %arg7[%c24] : memref<98xf32, #tpu.memory_space<smem>>
    %c0_114 = arith.constant 0 : index
    %c3_115 = arith.constant 3 : index
    %c3_116 = arith.constant 3 : index
    %210 = vector.load %arg9[%c0_114, %c3_115, %c3_116] : memref<2x22x22xf32, #tpu.memory_space<vmem>>, vector<1x16x16xf32>
    %211 = vector.shape_cast %210 : vector<1x16x16xf32> to vector<16x16xf32>
    %212 = vector.broadcast %209 : f32 to vector<16x16xf32>
    %213 = arith.mulf %212, %211 : vector<16x16xf32>
    %214 = arith.addf %208, %213 : vector<16x16xf32>
    %c25 = arith.constant 25 : index
    %215 = memref.load %arg7[%c25] : memref<98xf32, #tpu.memory_space<smem>>
    %c0_117 = arith.constant 0 : index
    %c3_118 = arith.constant 3 : index
    %c4_119 = arith.constant 4 : index
    %216 = vector.load %arg9[%c0_117, %c3_118, %c4_119] : memref<2x22x22xf32, #tpu.memory_space<vmem>>, vector<1x16x16xf32>
    %217 = vector.shape_cast %216 : vector<1x16x16xf32> to vector<16x16xf32>
    %218 = vector.broadcast %215 : f32 to vector<16x16xf32>
    %219 = arith.mulf %218, %217 : vector<16x16xf32>
    %220 = arith.addf %214, %219 : vector<16x16xf32>
    %c26 = arith.constant 26 : index
    %221 = memref.load %arg7[%c26] : memref<98xf32, #tpu.memory_space<smem>>
    %c0_120 = arith.constant 0 : index
    %c3_121 = arith.constant 3 : index
    %c5_122 = arith.constant 5 : index
    %222 = vector.load %arg9[%c0_120, %c3_121, %c5_122] : memref<2x22x22xf32, #tpu.memory_space<vmem>>, vector<1x16x16xf32>
    %223 = vector.shape_cast %222 : vector<1x16x16xf32> to vector<16x16xf32>
    %224 = vector.broadcast %221 : f32 to vector<16x16xf32>
    %225 = arith.mulf %224, %223 : vector<16x16xf32>
    %226 = arith.addf %220, %225 : vector<16x16xf32>
    %c27 = arith.constant 27 : index
    %227 = memref.load %arg7[%c27] : memref<98xf32, #tpu.memory_space<smem>>
    %c0_123 = arith.constant 0 : index
    %c3_124 = arith.constant 3 : index
    %c6_125 = arith.constant 6 : index
    %228 = vector.load %arg9[%c0_123, %c3_124, %c6_125] : memref<2x22x22xf32, #tpu.memory_space<vmem>>, vector<1x16x16xf32>
    %229 = vector.shape_cast %228 : vector<1x16x16xf32> to vector<16x16xf32>
    %230 = vector.broadcast %227 : f32 to vector<16x16xf32>
    %231 = arith.mulf %230, %229 : vector<16x16xf32>
    %232 = arith.addf %226, %231 : vector<16x16xf32>
    %c28 = arith.constant 28 : index
    %233 = memref.load %arg7[%c28] : memref<98xf32, #tpu.memory_space<smem>>
    %c0_126 = arith.constant 0 : index
    %c4_127 = arith.constant 4 : index
    %c0_128 = arith.constant 0 : index
    %234 = vector.load %arg9[%c0_126, %c4_127, %c0_128] : memref<2x22x22xf32, #tpu.memory_space<vmem>>, vector<1x16x16xf32>
    %235 = vector.shape_cast %234 : vector<1x16x16xf32> to vector<16x16xf32>
    %236 = vector.broadcast %233 : f32 to vector<16x16xf32>
    %237 = arith.mulf %236, %235 : vector<16x16xf32>
    %238 = arith.addf %232, %237 : vector<16x16xf32>
    %c29 = arith.constant 29 : index
    %239 = memref.load %arg7[%c29] : memref<98xf32, #tpu.memory_space<smem>>
    %c0_129 = arith.constant 0 : index
    %c4_130 = arith.constant 4 : index
    %c1_131 = arith.constant 1 : index
    %240 = vector.load %arg9[%c0_129, %c4_130, %c1_131] : memref<2x22x22xf32, #tpu.memory_space<vmem>>, vector<1x16x16xf32>
    %241 = vector.shape_cast %240 : vector<1x16x16xf32> to vector<16x16xf32>
    %242 = vector.broadcast %239 : f32 to vector<16x16xf32>
    %243 = arith.mulf %242, %241 : vector<16x16xf32>
    %244 = arith.addf %238, %243 : vector<16x16xf32>
    %c30 = arith.constant 30 : index
    %245 = memref.load %arg7[%c30] : memref<98xf32, #tpu.memory_space<smem>>
    %c0_132 = arith.constant 0 : index
    %c4_133 = arith.constant 4 : index
    %c2_134 = arith.constant 2 : index
    %246 = vector.load %arg9[%c0_132, %c4_133, %c2_134] : memref<2x22x22xf32, #tpu.memory_space<vmem>>, vector<1x16x16xf32>
    %247 = vector.shape_cast %246 : vector<1x16x16xf32> to vector<16x16xf32>
    %248 = vector.broadcast %245 : f32 to vector<16x16xf32>
    %249 = arith.mulf %248, %247 : vector<16x16xf32>
    %250 = arith.addf %244, %249 : vector<16x16xf32>
    %c31 = arith.constant 31 : index
    %251 = memref.load %arg7[%c31] : memref<98xf32, #tpu.memory_space<smem>>
    %c0_135 = arith.constant 0 : index
    %c4_136 = arith.constant 4 : index
    %c3_137 = arith.constant 3 : index
    %252 = vector.load %arg9[%c0_135, %c4_136, %c3_137] : memref<2x22x22xf32, #tpu.memory_space<vmem>>, vector<1x16x16xf32>
    %253 = vector.shape_cast %252 : vector<1x16x16xf32> to vector<16x16xf32>
    %254 = vector.broadcast %251 : f32 to vector<16x16xf32>
    %255 = arith.mulf %254, %253 : vector<16x16xf32>
    %256 = arith.addf %250, %255 : vector<16x16xf32>
    %c32 = arith.constant 32 : index
    %257 = memref.load %arg7[%c32] : memref<98xf32, #tpu.memory_space<smem>>
    %c0_138 = arith.constant 0 : index
    %c4_139 = arith.constant 4 : index
    %c4_140 = arith.constant 4 : index
    %258 = vector.load %arg9[%c0_138, %c4_139, %c4_140] : memref<2x22x22xf32, #tpu.memory_space<vmem>>, vector<1x16x16xf32>
    %259 = vector.shape_cast %258 : vector<1x16x16xf32> to vector<16x16xf32>
    %260 = vector.broadcast %257 : f32 to vector<16x16xf32>
    %261 = arith.mulf %260, %259 : vector<16x16xf32>
    %262 = arith.addf %256, %261 : vector<16x16xf32>
    %c33 = arith.constant 33 : index
    %263 = memref.load %arg7[%c33] : memref<98xf32, #tpu.memory_space<smem>>
    %c0_141 = arith.constant 0 : index
    %c4_142 = arith.constant 4 : index
    %c5_143 = arith.constant 5 : index
    %264 = vector.load %arg9[%c0_141, %c4_142, %c5_143] : memref<2x22x22xf32, #tpu.memory_space<vmem>>, vector<1x16x16xf32>
    %265 = vector.shape_cast %264 : vector<1x16x16xf32> to vector<16x16xf32>
    %266 = vector.broadcast %263 : f32 to vector<16x16xf32>
    %267 = arith.mulf %266, %265 : vector<16x16xf32>
    %268 = arith.addf %262, %267 : vector<16x16xf32>
    %c34 = arith.constant 34 : index
    %269 = memref.load %arg7[%c34] : memref<98xf32, #tpu.memory_space<smem>>
    %c0_144 = arith.constant 0 : index
    %c4_145 = arith.constant 4 : index
    %c6_146 = arith.constant 6 : index
    %270 = vector.load %arg9[%c0_144, %c4_145, %c6_146] : memref<2x22x22xf32, #tpu.memory_space<vmem>>, vector<1x16x16xf32>
    %271 = vector.shape_cast %270 : vector<1x16x16xf32> to vector<16x16xf32>
    %272 = vector.broadcast %269 : f32 to vector<16x16xf32>
    %273 = arith.mulf %272, %271 : vector<16x16xf32>
    %274 = arith.addf %268, %273 : vector<16x16xf32>
    %c35 = arith.constant 35 : index
    %275 = memref.load %arg7[%c35] : memref<98xf32, #tpu.memory_space<smem>>
    %c0_147 = arith.constant 0 : index
    %c5_148 = arith.constant 5 : index
    %c0_149 = arith.constant 0 : index
    %276 = vector.load %arg9[%c0_147, %c5_148, %c0_149] : memref<2x22x22xf32, #tpu.memory_space<vmem>>, vector<1x16x16xf32>
    %277 = vector.shape_cast %276 : vector<1x16x16xf32> to vector<16x16xf32>
    %278 = vector.broadcast %275 : f32 to vector<16x16xf32>
    %279 = arith.mulf %278, %277 : vector<16x16xf32>
    %280 = arith.addf %274, %279 : vector<16x16xf32>
    %c36 = arith.constant 36 : index
    %281 = memref.load %arg7[%c36] : memref<98xf32, #tpu.memory_space<smem>>
    %c0_150 = arith.constant 0 : index
    %c5_151 = arith.constant 5 : index
    %c1_152 = arith.constant 1 : index
    %282 = vector.load %arg9[%c0_150, %c5_151, %c1_152] : memref<2x22x22xf32, #tpu.memory_space<vmem>>, vector<1x16x16xf32>
    %283 = vector.shape_cast %282 : vector<1x16x16xf32> to vector<16x16xf32>
    %284 = vector.broadcast %281 : f32 to vector<16x16xf32>
    %285 = arith.mulf %284, %283 : vector<16x16xf32>
    %286 = arith.addf %280, %285 : vector<16x16xf32>
    %c37 = arith.constant 37 : index
    %287 = memref.load %arg7[%c37] : memref<98xf32, #tpu.memory_space<smem>>
    %c0_153 = arith.constant 0 : index
    %c5_154 = arith.constant 5 : index
    %c2_155 = arith.constant 2 : index
    %288 = vector.load %arg9[%c0_153, %c5_154, %c2_155] : memref<2x22x22xf32, #tpu.memory_space<vmem>>, vector<1x16x16xf32>
    %289 = vector.shape_cast %288 : vector<1x16x16xf32> to vector<16x16xf32>
    %290 = vector.broadcast %287 : f32 to vector<16x16xf32>
    %291 = arith.mulf %290, %289 : vector<16x16xf32>
    %292 = arith.addf %286, %291 : vector<16x16xf32>
    %c38 = arith.constant 38 : index
    %293 = memref.load %arg7[%c38] : memref<98xf32, #tpu.memory_space<smem>>
    %c0_156 = arith.constant 0 : index
    %c5_157 = arith.constant 5 : index
    %c3_158 = arith.constant 3 : index
    %294 = vector.load %arg9[%c0_156, %c5_157, %c3_158] : memref<2x22x22xf32, #tpu.memory_space<vmem>>, vector<1x16x16xf32>
    %295 = vector.shape_cast %294 : vector<1x16x16xf32> to vector<16x16xf32>
    %296 = vector.broadcast %293 : f32 to vector<16x16xf32>
    %297 = arith.mulf %296, %295 : vector<16x16xf32>
    %298 = arith.addf %292, %297 : vector<16x16xf32>
    %c39 = arith.constant 39 : index
    %299 = memref.load %arg7[%c39] : memref<98xf32, #tpu.memory_space<smem>>
    %c0_159 = arith.constant 0 : index
    %c5_160 = arith.constant 5 : index
    %c4_161 = arith.constant 4 : index
    %300 = vector.load %arg9[%c0_159, %c5_160, %c4_161] : memref<2x22x22xf32, #tpu.memory_space<vmem>>, vector<1x16x16xf32>
    %301 = vector.shape_cast %300 : vector<1x16x16xf32> to vector<16x16xf32>
    %302 = vector.broadcast %299 : f32 to vector<16x16xf32>
    %303 = arith.mulf %302, %301 : vector<16x16xf32>
    %304 = arith.addf %298, %303 : vector<16x16xf32>
    %c40 = arith.constant 40 : index
    %305 = memref.load %arg7[%c40] : memref<98xf32, #tpu.memory_space<smem>>
    %c0_162 = arith.constant 0 : index
    %c5_163 = arith.constant 5 : index
    %c5_164 = arith.constant 5 : index
    %306 = vector.load %arg9[%c0_162, %c5_163, %c5_164] : memref<2x22x22xf32, #tpu.memory_space<vmem>>, vector<1x16x16xf32>
    %307 = vector.shape_cast %306 : vector<1x16x16xf32> to vector<16x16xf32>
    %308 = vector.broadcast %305 : f32 to vector<16x16xf32>
    %309 = arith.mulf %308, %307 : vector<16x16xf32>
    %310 = arith.addf %304, %309 : vector<16x16xf32>
    %c41 = arith.constant 41 : index
    %311 = memref.load %arg7[%c41] : memref<98xf32, #tpu.memory_space<smem>>
    %c0_165 = arith.constant 0 : index
    %c5_166 = arith.constant 5 : index
    %c6_167 = arith.constant 6 : index
    %312 = vector.load %arg9[%c0_165, %c5_166, %c6_167] : memref<2x22x22xf32, #tpu.memory_space<vmem>>, vector<1x16x16xf32>
    %313 = vector.shape_cast %312 : vector<1x16x16xf32> to vector<16x16xf32>
    %314 = vector.broadcast %311 : f32 to vector<16x16xf32>
    %315 = arith.mulf %314, %313 : vector<16x16xf32>
    %316 = arith.addf %310, %315 : vector<16x16xf32>
    %c42 = arith.constant 42 : index
    %317 = memref.load %arg7[%c42] : memref<98xf32, #tpu.memory_space<smem>>
    %c0_168 = arith.constant 0 : index
    %c6_169 = arith.constant 6 : index
    %c0_170 = arith.constant 0 : index
    %318 = vector.load %arg9[%c0_168, %c6_169, %c0_170] : memref<2x22x22xf32, #tpu.memory_space<vmem>>, vector<1x16x16xf32>
    %319 = vector.shape_cast %318 : vector<1x16x16xf32> to vector<16x16xf32>
    %320 = vector.broadcast %317 : f32 to vector<16x16xf32>
    %321 = arith.mulf %320, %319 : vector<16x16xf32>
    %322 = arith.addf %316, %321 : vector<16x16xf32>
    %c43 = arith.constant 43 : index
    %323 = memref.load %arg7[%c43] : memref<98xf32, #tpu.memory_space<smem>>
    %c0_171 = arith.constant 0 : index
    %c6_172 = arith.constant 6 : index
    %c1_173 = arith.constant 1 : index
    %324 = vector.load %arg9[%c0_171, %c6_172, %c1_173] : memref<2x22x22xf32, #tpu.memory_space<vmem>>, vector<1x16x16xf32>
    %325 = vector.shape_cast %324 : vector<1x16x16xf32> to vector<16x16xf32>
    %326 = vector.broadcast %323 : f32 to vector<16x16xf32>
    %327 = arith.mulf %326, %325 : vector<16x16xf32>
    %328 = arith.addf %322, %327 : vector<16x16xf32>
    %c44 = arith.constant 44 : index
    %329 = memref.load %arg7[%c44] : memref<98xf32, #tpu.memory_space<smem>>
    %c0_174 = arith.constant 0 : index
    %c6_175 = arith.constant 6 : index
    %c2_176 = arith.constant 2 : index
    %330 = vector.load %arg9[%c0_174, %c6_175, %c2_176] : memref<2x22x22xf32, #tpu.memory_space<vmem>>, vector<1x16x16xf32>
    %331 = vector.shape_cast %330 : vector<1x16x16xf32> to vector<16x16xf32>
    %332 = vector.broadcast %329 : f32 to vector<16x16xf32>
    %333 = arith.mulf %332, %331 : vector<16x16xf32>
    %334 = arith.addf %328, %333 : vector<16x16xf32>
    %c45 = arith.constant 45 : index
    %335 = memref.load %arg7[%c45] : memref<98xf32, #tpu.memory_space<smem>>
    %c0_177 = arith.constant 0 : index
    %c6_178 = arith.constant 6 : index
    %c3_179 = arith.constant 3 : index
    %336 = vector.load %arg9[%c0_177, %c6_178, %c3_179] : memref<2x22x22xf32, #tpu.memory_space<vmem>>, vector<1x16x16xf32>
    %337 = vector.shape_cast %336 : vector<1x16x16xf32> to vector<16x16xf32>
    %338 = vector.broadcast %335 : f32 to vector<16x16xf32>
    %339 = arith.mulf %338, %337 : vector<16x16xf32>
    %340 = arith.addf %334, %339 : vector<16x16xf32>
    %c46 = arith.constant 46 : index
    %341 = memref.load %arg7[%c46] : memref<98xf32, #tpu.memory_space<smem>>
    %c0_180 = arith.constant 0 : index
    %c6_181 = arith.constant 6 : index
    %c4_182 = arith.constant 4 : index
    %342 = vector.load %arg9[%c0_180, %c6_181, %c4_182] : memref<2x22x22xf32, #tpu.memory_space<vmem>>, vector<1x16x16xf32>
    %343 = vector.shape_cast %342 : vector<1x16x16xf32> to vector<16x16xf32>
    %344 = vector.broadcast %341 : f32 to vector<16x16xf32>
    %345 = arith.mulf %344, %343 : vector<16x16xf32>
    %346 = arith.addf %340, %345 : vector<16x16xf32>
    %c47 = arith.constant 47 : index
    %347 = memref.load %arg7[%c47] : memref<98xf32, #tpu.memory_space<smem>>
    %c0_183 = arith.constant 0 : index
    %c6_184 = arith.constant 6 : index
    %c5_185 = arith.constant 5 : index
    %348 = vector.load %arg9[%c0_183, %c6_184, %c5_185] : memref<2x22x22xf32, #tpu.memory_space<vmem>>, vector<1x16x16xf32>
    %349 = vector.shape_cast %348 : vector<1x16x16xf32> to vector<16x16xf32>
    %350 = vector.broadcast %347 : f32 to vector<16x16xf32>
    %351 = arith.mulf %350, %349 : vector<16x16xf32>
    %352 = arith.addf %346, %351 : vector<16x16xf32>
    %c48 = arith.constant 48 : index
    %353 = memref.load %arg7[%c48] : memref<98xf32, #tpu.memory_space<smem>>
    %c0_186 = arith.constant 0 : index
    %c6_187 = arith.constant 6 : index
    %c6_188 = arith.constant 6 : index
    %354 = vector.load %arg9[%c0_186, %c6_187, %c6_188] : memref<2x22x22xf32, #tpu.memory_space<vmem>>, vector<1x16x16xf32>
    %355 = vector.shape_cast %354 : vector<1x16x16xf32> to vector<16x16xf32>
    %356 = vector.broadcast %353 : f32 to vector<16x16xf32>
    %357 = arith.mulf %356, %355 : vector<16x16xf32>
    %358 = arith.addf %352, %357 : vector<16x16xf32>
    %c49 = arith.constant 49 : index
    %359 = memref.load %arg7[%c49] : memref<98xf32, #tpu.memory_space<smem>>
    %c1_189 = arith.constant 1 : index
    %c0_190 = arith.constant 0 : index
    %c0_191 = arith.constant 0 : index
    %360 = vector.load %arg9[%c1_189, %c0_190, %c0_191] : memref<2x22x22xf32, #tpu.memory_space<vmem>>, vector<1x16x16xf32>
    %361 = vector.shape_cast %360 : vector<1x16x16xf32> to vector<16x16xf32>
    %362 = vector.broadcast %359 : f32 to vector<16x16xf32>
    %363 = arith.mulf %362, %361 : vector<16x16xf32>
    %364 = arith.addf %358, %363 : vector<16x16xf32>
    %c50 = arith.constant 50 : index
    %365 = memref.load %arg7[%c50] : memref<98xf32, #tpu.memory_space<smem>>
    %c1_192 = arith.constant 1 : index
    %c0_193 = arith.constant 0 : index
    %c1_194 = arith.constant 1 : index
    %366 = vector.load %arg9[%c1_192, %c0_193, %c1_194] : memref<2x22x22xf32, #tpu.memory_space<vmem>>, vector<1x16x16xf32>
    %367 = vector.shape_cast %366 : vector<1x16x16xf32> to vector<16x16xf32>
    %368 = vector.broadcast %365 : f32 to vector<16x16xf32>
    %369 = arith.mulf %368, %367 : vector<16x16xf32>
    %370 = arith.addf %364, %369 : vector<16x16xf32>
    %c51 = arith.constant 51 : index
    %371 = memref.load %arg7[%c51] : memref<98xf32, #tpu.memory_space<smem>>
    %c1_195 = arith.constant 1 : index
    %c0_196 = arith.constant 0 : index
    %c2_197 = arith.constant 2 : index
    %372 = vector.load %arg9[%c1_195, %c0_196, %c2_197] : memref<2x22x22xf32, #tpu.memory_space<vmem>>, vector<1x16x16xf32>
    %373 = vector.shape_cast %372 : vector<1x16x16xf32> to vector<16x16xf32>
    %374 = vector.broadcast %371 : f32 to vector<16x16xf32>
    %375 = arith.mulf %374, %373 : vector<16x16xf32>
    %376 = arith.addf %370, %375 : vector<16x16xf32>
    %c52 = arith.constant 52 : index
    %377 = memref.load %arg7[%c52] : memref<98xf32, #tpu.memory_space<smem>>
    %c1_198 = arith.constant 1 : index
    %c0_199 = arith.constant 0 : index
    %c3_200 = arith.constant 3 : index
    %378 = vector.load %arg9[%c1_198, %c0_199, %c3_200] : memref<2x22x22xf32, #tpu.memory_space<vmem>>, vector<1x16x16xf32>
    %379 = vector.shape_cast %378 : vector<1x16x16xf32> to vector<16x16xf32>
    %380 = vector.broadcast %377 : f32 to vector<16x16xf32>
    %381 = arith.mulf %380, %379 : vector<16x16xf32>
    %382 = arith.addf %376, %381 : vector<16x16xf32>
    %c53 = arith.constant 53 : index
    %383 = memref.load %arg7[%c53] : memref<98xf32, #tpu.memory_space<smem>>
    %c1_201 = arith.constant 1 : index
    %c0_202 = arith.constant 0 : index
    %c4_203 = arith.constant 4 : index
    %384 = vector.load %arg9[%c1_201, %c0_202, %c4_203] : memref<2x22x22xf32, #tpu.memory_space<vmem>>, vector<1x16x16xf32>
    %385 = vector.shape_cast %384 : vector<1x16x16xf32> to vector<16x16xf32>
    %386 = vector.broadcast %383 : f32 to vector<16x16xf32>
    %387 = arith.mulf %386, %385 : vector<16x16xf32>
    %388 = arith.addf %382, %387 : vector<16x16xf32>
    %c54 = arith.constant 54 : index
    %389 = memref.load %arg7[%c54] : memref<98xf32, #tpu.memory_space<smem>>
    %c1_204 = arith.constant 1 : index
    %c0_205 = arith.constant 0 : index
    %c5_206 = arith.constant 5 : index
    %390 = vector.load %arg9[%c1_204, %c0_205, %c5_206] : memref<2x22x22xf32, #tpu.memory_space<vmem>>, vector<1x16x16xf32>
    %391 = vector.shape_cast %390 : vector<1x16x16xf32> to vector<16x16xf32>
    %392 = vector.broadcast %389 : f32 to vector<16x16xf32>
    %393 = arith.mulf %392, %391 : vector<16x16xf32>
    %394 = arith.addf %388, %393 : vector<16x16xf32>
    %c55 = arith.constant 55 : index
    %395 = memref.load %arg7[%c55] : memref<98xf32, #tpu.memory_space<smem>>
    %c1_207 = arith.constant 1 : index
    %c0_208 = arith.constant 0 : index
    %c6_209 = arith.constant 6 : index
    %396 = vector.load %arg9[%c1_207, %c0_208, %c6_209] : memref<2x22x22xf32, #tpu.memory_space<vmem>>, vector<1x16x16xf32>
    %397 = vector.shape_cast %396 : vector<1x16x16xf32> to vector<16x16xf32>
    %398 = vector.broadcast %395 : f32 to vector<16x16xf32>
    %399 = arith.mulf %398, %397 : vector<16x16xf32>
    %400 = arith.addf %394, %399 : vector<16x16xf32>
    %c56 = arith.constant 56 : index
    %401 = memref.load %arg7[%c56] : memref<98xf32, #tpu.memory_space<smem>>
    %c1_210 = arith.constant 1 : index
    %c1_211 = arith.constant 1 : index
    %c0_212 = arith.constant 0 : index
    %402 = vector.load %arg9[%c1_210, %c1_211, %c0_212] : memref<2x22x22xf32, #tpu.memory_space<vmem>>, vector<1x16x16xf32>
    %403 = vector.shape_cast %402 : vector<1x16x16xf32> to vector<16x16xf32>
    %404 = vector.broadcast %401 : f32 to vector<16x16xf32>
    %405 = arith.mulf %404, %403 : vector<16x16xf32>
    %406 = arith.addf %400, %405 : vector<16x16xf32>
    %c57 = arith.constant 57 : index
    %407 = memref.load %arg7[%c57] : memref<98xf32, #tpu.memory_space<smem>>
    %c1_213 = arith.constant 1 : index
    %c1_214 = arith.constant 1 : index
    %c1_215 = arith.constant 1 : index
    %408 = vector.load %arg9[%c1_213, %c1_214, %c1_215] : memref<2x22x22xf32, #tpu.memory_space<vmem>>, vector<1x16x16xf32>
    %409 = vector.shape_cast %408 : vector<1x16x16xf32> to vector<16x16xf32>
    %410 = vector.broadcast %407 : f32 to vector<16x16xf32>
    %411 = arith.mulf %410, %409 : vector<16x16xf32>
    %412 = arith.addf %406, %411 : vector<16x16xf32>
    %c58 = arith.constant 58 : index
    %413 = memref.load %arg7[%c58] : memref<98xf32, #tpu.memory_space<smem>>
    %c1_216 = arith.constant 1 : index
    %c1_217 = arith.constant 1 : index
    %c2_218 = arith.constant 2 : index
    %414 = vector.load %arg9[%c1_216, %c1_217, %c2_218] : memref<2x22x22xf32, #tpu.memory_space<vmem>>, vector<1x16x16xf32>
    %415 = vector.shape_cast %414 : vector<1x16x16xf32> to vector<16x16xf32>
    %416 = vector.broadcast %413 : f32 to vector<16x16xf32>
    %417 = arith.mulf %416, %415 : vector<16x16xf32>
    %418 = arith.addf %412, %417 : vector<16x16xf32>
    %c59 = arith.constant 59 : index
    %419 = memref.load %arg7[%c59] : memref<98xf32, #tpu.memory_space<smem>>
    %c1_219 = arith.constant 1 : index
    %c1_220 = arith.constant 1 : index
    %c3_221 = arith.constant 3 : index
    %420 = vector.load %arg9[%c1_219, %c1_220, %c3_221] : memref<2x22x22xf32, #tpu.memory_space<vmem>>, vector<1x16x16xf32>
    %421 = vector.shape_cast %420 : vector<1x16x16xf32> to vector<16x16xf32>
    %422 = vector.broadcast %419 : f32 to vector<16x16xf32>
    %423 = arith.mulf %422, %421 : vector<16x16xf32>
    %424 = arith.addf %418, %423 : vector<16x16xf32>
    %c60 = arith.constant 60 : index
    %425 = memref.load %arg7[%c60] : memref<98xf32, #tpu.memory_space<smem>>
    %c1_222 = arith.constant 1 : index
    %c1_223 = arith.constant 1 : index
    %c4_224 = arith.constant 4 : index
    %426 = vector.load %arg9[%c1_222, %c1_223, %c4_224] : memref<2x22x22xf32, #tpu.memory_space<vmem>>, vector<1x16x16xf32>
    %427 = vector.shape_cast %426 : vector<1x16x16xf32> to vector<16x16xf32>
    %428 = vector.broadcast %425 : f32 to vector<16x16xf32>
    %429 = arith.mulf %428, %427 : vector<16x16xf32>
    %430 = arith.addf %424, %429 : vector<16x16xf32>
    %c61 = arith.constant 61 : index
    %431 = memref.load %arg7[%c61] : memref<98xf32, #tpu.memory_space<smem>>
    %c1_225 = arith.constant 1 : index
    %c1_226 = arith.constant 1 : index
    %c5_227 = arith.constant 5 : index
    %432 = vector.load %arg9[%c1_225, %c1_226, %c5_227] : memref<2x22x22xf32, #tpu.memory_space<vmem>>, vector<1x16x16xf32>
    %433 = vector.shape_cast %432 : vector<1x16x16xf32> to vector<16x16xf32>
    %434 = vector.broadcast %431 : f32 to vector<16x16xf32>
    %435 = arith.mulf %434, %433 : vector<16x16xf32>
    %436 = arith.addf %430, %435 : vector<16x16xf32>
    %c62 = arith.constant 62 : index
    %437 = memref.load %arg7[%c62] : memref<98xf32, #tpu.memory_space<smem>>
    %c1_228 = arith.constant 1 : index
    %c1_229 = arith.constant 1 : index
    %c6_230 = arith.constant 6 : index
    %438 = vector.load %arg9[%c1_228, %c1_229, %c6_230] : memref<2x22x22xf32, #tpu.memory_space<vmem>>, vector<1x16x16xf32>
    %439 = vector.shape_cast %438 : vector<1x16x16xf32> to vector<16x16xf32>
    %440 = vector.broadcast %437 : f32 to vector<16x16xf32>
    %441 = arith.mulf %440, %439 : vector<16x16xf32>
    %442 = arith.addf %436, %441 : vector<16x16xf32>
    %c63 = arith.constant 63 : index
    %443 = memref.load %arg7[%c63] : memref<98xf32, #tpu.memory_space<smem>>
    %c1_231 = arith.constant 1 : index
    %c2_232 = arith.constant 2 : index
    %c0_233 = arith.constant 0 : index
    %444 = vector.load %arg9[%c1_231, %c2_232, %c0_233] : memref<2x22x22xf32, #tpu.memory_space<vmem>>, vector<1x16x16xf32>
    %445 = vector.shape_cast %444 : vector<1x16x16xf32> to vector<16x16xf32>
    %446 = vector.broadcast %443 : f32 to vector<16x16xf32>
    %447 = arith.mulf %446, %445 : vector<16x16xf32>
    %448 = arith.addf %442, %447 : vector<16x16xf32>
    %c64 = arith.constant 64 : index
    %449 = memref.load %arg7[%c64] : memref<98xf32, #tpu.memory_space<smem>>
    %c1_234 = arith.constant 1 : index
    %c2_235 = arith.constant 2 : index
    %c1_236 = arith.constant 1 : index
    %450 = vector.load %arg9[%c1_234, %c2_235, %c1_236] : memref<2x22x22xf32, #tpu.memory_space<vmem>>, vector<1x16x16xf32>
    %451 = vector.shape_cast %450 : vector<1x16x16xf32> to vector<16x16xf32>
    %452 = vector.broadcast %449 : f32 to vector<16x16xf32>
    %453 = arith.mulf %452, %451 : vector<16x16xf32>
    %454 = arith.addf %448, %453 : vector<16x16xf32>
    %c65 = arith.constant 65 : index
    %455 = memref.load %arg7[%c65] : memref<98xf32, #tpu.memory_space<smem>>
    %c1_237 = arith.constant 1 : index
    %c2_238 = arith.constant 2 : index
    %c2_239 = arith.constant 2 : index
    %456 = vector.load %arg9[%c1_237, %c2_238, %c2_239] : memref<2x22x22xf32, #tpu.memory_space<vmem>>, vector<1x16x16xf32>
    %457 = vector.shape_cast %456 : vector<1x16x16xf32> to vector<16x16xf32>
    %458 = vector.broadcast %455 : f32 to vector<16x16xf32>
    %459 = arith.mulf %458, %457 : vector<16x16xf32>
    %460 = arith.addf %454, %459 : vector<16x16xf32>
    %c66 = arith.constant 66 : index
    %461 = memref.load %arg7[%c66] : memref<98xf32, #tpu.memory_space<smem>>
    %c1_240 = arith.constant 1 : index
    %c2_241 = arith.constant 2 : index
    %c3_242 = arith.constant 3 : index
    %462 = vector.load %arg9[%c1_240, %c2_241, %c3_242] : memref<2x22x22xf32, #tpu.memory_space<vmem>>, vector<1x16x16xf32>
    %463 = vector.shape_cast %462 : vector<1x16x16xf32> to vector<16x16xf32>
    %464 = vector.broadcast %461 : f32 to vector<16x16xf32>
    %465 = arith.mulf %464, %463 : vector<16x16xf32>
    %466 = arith.addf %460, %465 : vector<16x16xf32>
    %c67 = arith.constant 67 : index
    %467 = memref.load %arg7[%c67] : memref<98xf32, #tpu.memory_space<smem>>
    %c1_243 = arith.constant 1 : index
    %c2_244 = arith.constant 2 : index
    %c4_245 = arith.constant 4 : index
    %468 = vector.load %arg9[%c1_243, %c2_244, %c4_245] : memref<2x22x22xf32, #tpu.memory_space<vmem>>, vector<1x16x16xf32>
    %469 = vector.shape_cast %468 : vector<1x16x16xf32> to vector<16x16xf32>
    %470 = vector.broadcast %467 : f32 to vector<16x16xf32>
    %471 = arith.mulf %470, %469 : vector<16x16xf32>
    %472 = arith.addf %466, %471 : vector<16x16xf32>
    %c68 = arith.constant 68 : index
    %473 = memref.load %arg7[%c68] : memref<98xf32, #tpu.memory_space<smem>>
    %c1_246 = arith.constant 1 : index
    %c2_247 = arith.constant 2 : index
    %c5_248 = arith.constant 5 : index
    %474 = vector.load %arg9[%c1_246, %c2_247, %c5_248] : memref<2x22x22xf32, #tpu.memory_space<vmem>>, vector<1x16x16xf32>
    %475 = vector.shape_cast %474 : vector<1x16x16xf32> to vector<16x16xf32>
    %476 = vector.broadcast %473 : f32 to vector<16x16xf32>
    %477 = arith.mulf %476, %475 : vector<16x16xf32>
    %478 = arith.addf %472, %477 : vector<16x16xf32>
    %c69 = arith.constant 69 : index
    %479 = memref.load %arg7[%c69] : memref<98xf32, #tpu.memory_space<smem>>
    %c1_249 = arith.constant 1 : index
    %c2_250 = arith.constant 2 : index
    %c6_251 = arith.constant 6 : index
    %480 = vector.load %arg9[%c1_249, %c2_250, %c6_251] : memref<2x22x22xf32, #tpu.memory_space<vmem>>, vector<1x16x16xf32>
    %481 = vector.shape_cast %480 : vector<1x16x16xf32> to vector<16x16xf32>
    %482 = vector.broadcast %479 : f32 to vector<16x16xf32>
    %483 = arith.mulf %482, %481 : vector<16x16xf32>
    %484 = arith.addf %478, %483 : vector<16x16xf32>
    %c70 = arith.constant 70 : index
    %485 = memref.load %arg7[%c70] : memref<98xf32, #tpu.memory_space<smem>>
    %c1_252 = arith.constant 1 : index
    %c3_253 = arith.constant 3 : index
    %c0_254 = arith.constant 0 : index
    %486 = vector.load %arg9[%c1_252, %c3_253, %c0_254] : memref<2x22x22xf32, #tpu.memory_space<vmem>>, vector<1x16x16xf32>
    %487 = vector.shape_cast %486 : vector<1x16x16xf32> to vector<16x16xf32>
    %488 = vector.broadcast %485 : f32 to vector<16x16xf32>
    %489 = arith.mulf %488, %487 : vector<16x16xf32>
    %490 = arith.addf %484, %489 : vector<16x16xf32>
    %c71 = arith.constant 71 : index
    %491 = memref.load %arg7[%c71] : memref<98xf32, #tpu.memory_space<smem>>
    %c1_255 = arith.constant 1 : index
    %c3_256 = arith.constant 3 : index
    %c1_257 = arith.constant 1 : index
    %492 = vector.load %arg9[%c1_255, %c3_256, %c1_257] : memref<2x22x22xf32, #tpu.memory_space<vmem>>, vector<1x16x16xf32>
    %493 = vector.shape_cast %492 : vector<1x16x16xf32> to vector<16x16xf32>
    %494 = vector.broadcast %491 : f32 to vector<16x16xf32>
    %495 = arith.mulf %494, %493 : vector<16x16xf32>
    %496 = arith.addf %490, %495 : vector<16x16xf32>
    %c72 = arith.constant 72 : index
    %497 = memref.load %arg7[%c72] : memref<98xf32, #tpu.memory_space<smem>>
    %c1_258 = arith.constant 1 : index
    %c3_259 = arith.constant 3 : index
    %c2_260 = arith.constant 2 : index
    %498 = vector.load %arg9[%c1_258, %c3_259, %c2_260] : memref<2x22x22xf32, #tpu.memory_space<vmem>>, vector<1x16x16xf32>
    %499 = vector.shape_cast %498 : vector<1x16x16xf32> to vector<16x16xf32>
    %500 = vector.broadcast %497 : f32 to vector<16x16xf32>
    %501 = arith.mulf %500, %499 : vector<16x16xf32>
    %502 = arith.addf %496, %501 : vector<16x16xf32>
    %c73 = arith.constant 73 : index
    %503 = memref.load %arg7[%c73] : memref<98xf32, #tpu.memory_space<smem>>
    %c1_261 = arith.constant 1 : index
    %c3_262 = arith.constant 3 : index
    %c3_263 = arith.constant 3 : index
    %504 = vector.load %arg9[%c1_261, %c3_262, %c3_263] : memref<2x22x22xf32, #tpu.memory_space<vmem>>, vector<1x16x16xf32>
    %505 = vector.shape_cast %504 : vector<1x16x16xf32> to vector<16x16xf32>
    %506 = vector.broadcast %503 : f32 to vector<16x16xf32>
    %507 = arith.mulf %506, %505 : vector<16x16xf32>
    %508 = arith.addf %502, %507 : vector<16x16xf32>
    %c74 = arith.constant 74 : index
    %509 = memref.load %arg7[%c74] : memref<98xf32, #tpu.memory_space<smem>>
    %c1_264 = arith.constant 1 : index
    %c3_265 = arith.constant 3 : index
    %c4_266 = arith.constant 4 : index
    %510 = vector.load %arg9[%c1_264, %c3_265, %c4_266] : memref<2x22x22xf32, #tpu.memory_space<vmem>>, vector<1x16x16xf32>
    %511 = vector.shape_cast %510 : vector<1x16x16xf32> to vector<16x16xf32>
    %512 = vector.broadcast %509 : f32 to vector<16x16xf32>
    %513 = arith.mulf %512, %511 : vector<16x16xf32>
    %514 = arith.addf %508, %513 : vector<16x16xf32>
    %c75 = arith.constant 75 : index
    %515 = memref.load %arg7[%c75] : memref<98xf32, #tpu.memory_space<smem>>
    %c1_267 = arith.constant 1 : index
    %c3_268 = arith.constant 3 : index
    %c5_269 = arith.constant 5 : index
    %516 = vector.load %arg9[%c1_267, %c3_268, %c5_269] : memref<2x22x22xf32, #tpu.memory_space<vmem>>, vector<1x16x16xf32>
    %517 = vector.shape_cast %516 : vector<1x16x16xf32> to vector<16x16xf32>
    %518 = vector.broadcast %515 : f32 to vector<16x16xf32>
    %519 = arith.mulf %518, %517 : vector<16x16xf32>
    %520 = arith.addf %514, %519 : vector<16x16xf32>
    %c76 = arith.constant 76 : index
    %521 = memref.load %arg7[%c76] : memref<98xf32, #tpu.memory_space<smem>>
    %c1_270 = arith.constant 1 : index
    %c3_271 = arith.constant 3 : index
    %c6_272 = arith.constant 6 : index
    %522 = vector.load %arg9[%c1_270, %c3_271, %c6_272] : memref<2x22x22xf32, #tpu.memory_space<vmem>>, vector<1x16x16xf32>
    %523 = vector.shape_cast %522 : vector<1x16x16xf32> to vector<16x16xf32>
    %524 = vector.broadcast %521 : f32 to vector<16x16xf32>
    %525 = arith.mulf %524, %523 : vector<16x16xf32>
    %526 = arith.addf %520, %525 : vector<16x16xf32>
    %c77 = arith.constant 77 : index
    %527 = memref.load %arg7[%c77] : memref<98xf32, #tpu.memory_space<smem>>
    %c1_273 = arith.constant 1 : index
    %c4_274 = arith.constant 4 : index
    %c0_275 = arith.constant 0 : index
    %528 = vector.load %arg9[%c1_273, %c4_274, %c0_275] : memref<2x22x22xf32, #tpu.memory_space<vmem>>, vector<1x16x16xf32>
    %529 = vector.shape_cast %528 : vector<1x16x16xf32> to vector<16x16xf32>
    %530 = vector.broadcast %527 : f32 to vector<16x16xf32>
    %531 = arith.mulf %530, %529 : vector<16x16xf32>
    %532 = arith.addf %526, %531 : vector<16x16xf32>
    %c78 = arith.constant 78 : index
    %533 = memref.load %arg7[%c78] : memref<98xf32, #tpu.memory_space<smem>>
    %c1_276 = arith.constant 1 : index
    %c4_277 = arith.constant 4 : index
    %c1_278 = arith.constant 1 : index
    %534 = vector.load %arg9[%c1_276, %c4_277, %c1_278] : memref<2x22x22xf32, #tpu.memory_space<vmem>>, vector<1x16x16xf32>
    %535 = vector.shape_cast %534 : vector<1x16x16xf32> to vector<16x16xf32>
    %536 = vector.broadcast %533 : f32 to vector<16x16xf32>
    %537 = arith.mulf %536, %535 : vector<16x16xf32>
    %538 = arith.addf %532, %537 : vector<16x16xf32>
    %c79 = arith.constant 79 : index
    %539 = memref.load %arg7[%c79] : memref<98xf32, #tpu.memory_space<smem>>
    %c1_279 = arith.constant 1 : index
    %c4_280 = arith.constant 4 : index
    %c2_281 = arith.constant 2 : index
    %540 = vector.load %arg9[%c1_279, %c4_280, %c2_281] : memref<2x22x22xf32, #tpu.memory_space<vmem>>, vector<1x16x16xf32>
    %541 = vector.shape_cast %540 : vector<1x16x16xf32> to vector<16x16xf32>
    %542 = vector.broadcast %539 : f32 to vector<16x16xf32>
    %543 = arith.mulf %542, %541 : vector<16x16xf32>
    %544 = arith.addf %538, %543 : vector<16x16xf32>
    %c80 = arith.constant 80 : index
    %545 = memref.load %arg7[%c80] : memref<98xf32, #tpu.memory_space<smem>>
    %c1_282 = arith.constant 1 : index
    %c4_283 = arith.constant 4 : index
    %c3_284 = arith.constant 3 : index
    %546 = vector.load %arg9[%c1_282, %c4_283, %c3_284] : memref<2x22x22xf32, #tpu.memory_space<vmem>>, vector<1x16x16xf32>
    %547 = vector.shape_cast %546 : vector<1x16x16xf32> to vector<16x16xf32>
    %548 = vector.broadcast %545 : f32 to vector<16x16xf32>
    %549 = arith.mulf %548, %547 : vector<16x16xf32>
    %550 = arith.addf %544, %549 : vector<16x16xf32>
    %c81 = arith.constant 81 : index
    %551 = memref.load %arg7[%c81] : memref<98xf32, #tpu.memory_space<smem>>
    %c1_285 = arith.constant 1 : index
    %c4_286 = arith.constant 4 : index
    %c4_287 = arith.constant 4 : index
    %552 = vector.load %arg9[%c1_285, %c4_286, %c4_287] : memref<2x22x22xf32, #tpu.memory_space<vmem>>, vector<1x16x16xf32>
    %553 = vector.shape_cast %552 : vector<1x16x16xf32> to vector<16x16xf32>
    %554 = vector.broadcast %551 : f32 to vector<16x16xf32>
    %555 = arith.mulf %554, %553 : vector<16x16xf32>
    %556 = arith.addf %550, %555 : vector<16x16xf32>
    %c82 = arith.constant 82 : index
    %557 = memref.load %arg7[%c82] : memref<98xf32, #tpu.memory_space<smem>>
    %c1_288 = arith.constant 1 : index
    %c4_289 = arith.constant 4 : index
    %c5_290 = arith.constant 5 : index
    %558 = vector.load %arg9[%c1_288, %c4_289, %c5_290] : memref<2x22x22xf32, #tpu.memory_space<vmem>>, vector<1x16x16xf32>
    %559 = vector.shape_cast %558 : vector<1x16x16xf32> to vector<16x16xf32>
    %560 = vector.broadcast %557 : f32 to vector<16x16xf32>
    %561 = arith.mulf %560, %559 : vector<16x16xf32>
    %562 = arith.addf %556, %561 : vector<16x16xf32>
    %c83 = arith.constant 83 : index
    %563 = memref.load %arg7[%c83] : memref<98xf32, #tpu.memory_space<smem>>
    %c1_291 = arith.constant 1 : index
    %c4_292 = arith.constant 4 : index
    %c6_293 = arith.constant 6 : index
    %564 = vector.load %arg9[%c1_291, %c4_292, %c6_293] : memref<2x22x22xf32, #tpu.memory_space<vmem>>, vector<1x16x16xf32>
    %565 = vector.shape_cast %564 : vector<1x16x16xf32> to vector<16x16xf32>
    %566 = vector.broadcast %563 : f32 to vector<16x16xf32>
    %567 = arith.mulf %566, %565 : vector<16x16xf32>
    %568 = arith.addf %562, %567 : vector<16x16xf32>
    %c84 = arith.constant 84 : index
    %569 = memref.load %arg7[%c84] : memref<98xf32, #tpu.memory_space<smem>>
    %c1_294 = arith.constant 1 : index
    %c5_295 = arith.constant 5 : index
    %c0_296 = arith.constant 0 : index
    %570 = vector.load %arg9[%c1_294, %c5_295, %c0_296] : memref<2x22x22xf32, #tpu.memory_space<vmem>>, vector<1x16x16xf32>
    %571 = vector.shape_cast %570 : vector<1x16x16xf32> to vector<16x16xf32>
    %572 = vector.broadcast %569 : f32 to vector<16x16xf32>
    %573 = arith.mulf %572, %571 : vector<16x16xf32>
    %574 = arith.addf %568, %573 : vector<16x16xf32>
    %c85 = arith.constant 85 : index
    %575 = memref.load %arg7[%c85] : memref<98xf32, #tpu.memory_space<smem>>
    %c1_297 = arith.constant 1 : index
    %c5_298 = arith.constant 5 : index
    %c1_299 = arith.constant 1 : index
    %576 = vector.load %arg9[%c1_297, %c5_298, %c1_299] : memref<2x22x22xf32, #tpu.memory_space<vmem>>, vector<1x16x16xf32>
    %577 = vector.shape_cast %576 : vector<1x16x16xf32> to vector<16x16xf32>
    %578 = vector.broadcast %575 : f32 to vector<16x16xf32>
    %579 = arith.mulf %578, %577 : vector<16x16xf32>
    %580 = arith.addf %574, %579 : vector<16x16xf32>
    %c86 = arith.constant 86 : index
    %581 = memref.load %arg7[%c86] : memref<98xf32, #tpu.memory_space<smem>>
    %c1_300 = arith.constant 1 : index
    %c5_301 = arith.constant 5 : index
    %c2_302 = arith.constant 2 : index
    %582 = vector.load %arg9[%c1_300, %c5_301, %c2_302] : memref<2x22x22xf32, #tpu.memory_space<vmem>>, vector<1x16x16xf32>
    %583 = vector.shape_cast %582 : vector<1x16x16xf32> to vector<16x16xf32>
    %584 = vector.broadcast %581 : f32 to vector<16x16xf32>
    %585 = arith.mulf %584, %583 : vector<16x16xf32>
    %586 = arith.addf %580, %585 : vector<16x16xf32>
    %c87 = arith.constant 87 : index
    %587 = memref.load %arg7[%c87] : memref<98xf32, #tpu.memory_space<smem>>
    %c1_303 = arith.constant 1 : index
    %c5_304 = arith.constant 5 : index
    %c3_305 = arith.constant 3 : index
    %588 = vector.load %arg9[%c1_303, %c5_304, %c3_305] : memref<2x22x22xf32, #tpu.memory_space<vmem>>, vector<1x16x16xf32>
    %589 = vector.shape_cast %588 : vector<1x16x16xf32> to vector<16x16xf32>
    %590 = vector.broadcast %587 : f32 to vector<16x16xf32>
    %591 = arith.mulf %590, %589 : vector<16x16xf32>
    %592 = arith.addf %586, %591 : vector<16x16xf32>
    %c88 = arith.constant 88 : index
    %593 = memref.load %arg7[%c88] : memref<98xf32, #tpu.memory_space<smem>>
    %c1_306 = arith.constant 1 : index
    %c5_307 = arith.constant 5 : index
    %c4_308 = arith.constant 4 : index
    %594 = vector.load %arg9[%c1_306, %c5_307, %c4_308] : memref<2x22x22xf32, #tpu.memory_space<vmem>>, vector<1x16x16xf32>
    %595 = vector.shape_cast %594 : vector<1x16x16xf32> to vector<16x16xf32>
    %596 = vector.broadcast %593 : f32 to vector<16x16xf32>
    %597 = arith.mulf %596, %595 : vector<16x16xf32>
    %598 = arith.addf %592, %597 : vector<16x16xf32>
    %c89 = arith.constant 89 : index
    %599 = memref.load %arg7[%c89] : memref<98xf32, #tpu.memory_space<smem>>
    %c1_309 = arith.constant 1 : index
    %c5_310 = arith.constant 5 : index
    %c5_311 = arith.constant 5 : index
    %600 = vector.load %arg9[%c1_309, %c5_310, %c5_311] : memref<2x22x22xf32, #tpu.memory_space<vmem>>, vector<1x16x16xf32>
    %601 = vector.shape_cast %600 : vector<1x16x16xf32> to vector<16x16xf32>
    %602 = vector.broadcast %599 : f32 to vector<16x16xf32>
    %603 = arith.mulf %602, %601 : vector<16x16xf32>
    %604 = arith.addf %598, %603 : vector<16x16xf32>
    %c90 = arith.constant 90 : index
    %605 = memref.load %arg7[%c90] : memref<98xf32, #tpu.memory_space<smem>>
    %c1_312 = arith.constant 1 : index
    %c5_313 = arith.constant 5 : index
    %c6_314 = arith.constant 6 : index
    %606 = vector.load %arg9[%c1_312, %c5_313, %c6_314] : memref<2x22x22xf32, #tpu.memory_space<vmem>>, vector<1x16x16xf32>
    %607 = vector.shape_cast %606 : vector<1x16x16xf32> to vector<16x16xf32>
    %608 = vector.broadcast %605 : f32 to vector<16x16xf32>
    %609 = arith.mulf %608, %607 : vector<16x16xf32>
    %610 = arith.addf %604, %609 : vector<16x16xf32>
    %c91 = arith.constant 91 : index
    %611 = memref.load %arg7[%c91] : memref<98xf32, #tpu.memory_space<smem>>
    %c1_315 = arith.constant 1 : index
    %c6_316 = arith.constant 6 : index
    %c0_317 = arith.constant 0 : index
    %612 = vector.load %arg9[%c1_315, %c6_316, %c0_317] : memref<2x22x22xf32, #tpu.memory_space<vmem>>, vector<1x16x16xf32>
    %613 = vector.shape_cast %612 : vector<1x16x16xf32> to vector<16x16xf32>
    %614 = vector.broadcast %611 : f32 to vector<16x16xf32>
    %615 = arith.mulf %614, %613 : vector<16x16xf32>
    %616 = arith.addf %610, %615 : vector<16x16xf32>
    %c92 = arith.constant 92 : index
    %617 = memref.load %arg7[%c92] : memref<98xf32, #tpu.memory_space<smem>>
    %c1_318 = arith.constant 1 : index
    %c6_319 = arith.constant 6 : index
    %c1_320 = arith.constant 1 : index
    %618 = vector.load %arg9[%c1_318, %c6_319, %c1_320] : memref<2x22x22xf32, #tpu.memory_space<vmem>>, vector<1x16x16xf32>
    %619 = vector.shape_cast %618 : vector<1x16x16xf32> to vector<16x16xf32>
    %620 = vector.broadcast %617 : f32 to vector<16x16xf32>
    %621 = arith.mulf %620, %619 : vector<16x16xf32>
    %622 = arith.addf %616, %621 : vector<16x16xf32>
    %c93 = arith.constant 93 : index
    %623 = memref.load %arg7[%c93] : memref<98xf32, #tpu.memory_space<smem>>
    %c1_321 = arith.constant 1 : index
    %c6_322 = arith.constant 6 : index
    %c2_323 = arith.constant 2 : index
    %624 = vector.load %arg9[%c1_321, %c6_322, %c2_323] : memref<2x22x22xf32, #tpu.memory_space<vmem>>, vector<1x16x16xf32>
    %625 = vector.shape_cast %624 : vector<1x16x16xf32> to vector<16x16xf32>
    %626 = vector.broadcast %623 : f32 to vector<16x16xf32>
    %627 = arith.mulf %626, %625 : vector<16x16xf32>
    %628 = arith.addf %622, %627 : vector<16x16xf32>
    %c94 = arith.constant 94 : index
    %629 = memref.load %arg7[%c94] : memref<98xf32, #tpu.memory_space<smem>>
    %c1_324 = arith.constant 1 : index
    %c6_325 = arith.constant 6 : index
    %c3_326 = arith.constant 3 : index
    %630 = vector.load %arg9[%c1_324, %c6_325, %c3_326] : memref<2x22x22xf32, #tpu.memory_space<vmem>>, vector<1x16x16xf32>
    %631 = vector.shape_cast %630 : vector<1x16x16xf32> to vector<16x16xf32>
    %632 = vector.broadcast %629 : f32 to vector<16x16xf32>
    %633 = arith.mulf %632, %631 : vector<16x16xf32>
    %634 = arith.addf %628, %633 : vector<16x16xf32>
    %c95 = arith.constant 95 : index
    %635 = memref.load %arg7[%c95] : memref<98xf32, #tpu.memory_space<smem>>
    %c1_327 = arith.constant 1 : index
    %c6_328 = arith.constant 6 : index
    %c4_329 = arith.constant 4 : index
    %636 = vector.load %arg9[%c1_327, %c6_328, %c4_329] : memref<2x22x22xf32, #tpu.memory_space<vmem>>, vector<1x16x16xf32>
    %637 = vector.shape_cast %636 : vector<1x16x16xf32> to vector<16x16xf32>
    %638 = vector.broadcast %635 : f32 to vector<16x16xf32>
    %639 = arith.mulf %638, %637 : vector<16x16xf32>
    %640 = arith.addf %634, %639 : vector<16x16xf32>
    %c96 = arith.constant 96 : index
    %641 = memref.load %arg7[%c96] : memref<98xf32, #tpu.memory_space<smem>>
    %c1_330 = arith.constant 1 : index
    %c6_331 = arith.constant 6 : index
    %c5_332 = arith.constant 5 : index
    %642 = vector.load %arg9[%c1_330, %c6_331, %c5_332] : memref<2x22x22xf32, #tpu.memory_space<vmem>>, vector<1x16x16xf32>
    %643 = vector.shape_cast %642 : vector<1x16x16xf32> to vector<16x16xf32>
    %644 = vector.broadcast %641 : f32 to vector<16x16xf32>
    %645 = arith.mulf %644, %643 : vector<16x16xf32>
    %646 = arith.addf %640, %645 : vector<16x16xf32>
    %c97 = arith.constant 97 : index
    %647 = memref.load %arg7[%c97] : memref<98xf32, #tpu.memory_space<smem>>
    %c1_333 = arith.constant 1 : index
    %c6_334 = arith.constant 6 : index
    %c6_335 = arith.constant 6 : index
    %648 = vector.load %arg9[%c1_333, %c6_334, %c6_335] : memref<2x22x22xf32, #tpu.memory_space<vmem>>, vector<1x16x16xf32>
    %649 = vector.shape_cast %648 : vector<1x16x16xf32> to vector<16x16xf32>
    %650 = vector.broadcast %647 : f32 to vector<16x16xf32>
    %651 = arith.mulf %650, %649 : vector<16x16xf32>
    %652 = arith.addf %646, %651 : vector<16x16xf32>
    %653 = arith.negf %652 : vector<16x16xf32>
    %654 = math.exp %653 : vector<16x16xf32>
    %cst_336 = arith.constant 1.000000e+00 : f32
    %655 = vector.broadcast %cst_336 : f32 to vector<16x16xf32>
    %656 = arith.addf %655, %654 : vector<16x16xf32>
    %657 = arith.divf %655, %656 : vector<16x16xf32>
    %658 = vector.shape_cast %657 : vector<16x16xf32> to vector<16x16x1xf32>
    %659 = vector.broadcast %658 : vector<16x16x1xf32> to vector<16x16x16xf32>
    %660 = arith.mulf %51, %659 : vector<16x16x16xf32>
    %c0_337 = arith.constant 0 : index
    %c0_338 = arith.constant 0 : index
    %c0_339 = arith.constant 0 : index
    %c0_340 = arith.constant 0 : index
    %661 = vector.load %arg2[%c0_337, %c0_338, %c0_339, %c0_340] : memref<1x16x16x16xf32, #tpu.memory_space<vmem>>, vector<1x16x16x16xf32>
    %662 = vector.shape_cast %661 : vector<1x16x16x16xf32> to vector<16x16x16xf32>
    %663 = arith.addf %660, %662 : vector<16x16x16xf32>
    %cst_341 = arith.constant 0.000000e+00 : f32
    %664 = vector.broadcast %cst_341 : f32 to vector<16x16x16xf32>
    %665 = arith.maximumf %663, %664 : vector<16x16x16xf32>
    %c0_342 = arith.constant 0 : index
    %c0_343 = arith.constant 0 : index
    %c0_344 = arith.constant 0 : index
    %c0_345 = arith.constant 0 : index
    %666 = vector.load %arg8[%c0_342, %c0_343, %c0_344, %c0_345] : memref<1x16x16x16xf32, #tpu.memory_space<vmem>>, vector<1x16x16x16xf32>
    %667 = vector.shape_cast %666 : vector<1x16x16x16xf32> to vector<16x16x16xf32>
    %668 = vector.shape_cast %665 : vector<16x16x16xf32> to vector<1x16x16x16xf32>
    tpu.vector_store %arg8[%c0_342, %c0_343, %c0_344, %c0_345], %668 {strides = array<i32>} : memref<1x16x16x16xf32, #tpu.memory_space<vmem>>, vector<1x16x16x16xf32>,
    return
  }
  func.func @transform_0(%arg0: i32) -> (i32, i32, i32, i32) {
    %c0_i32 = arith.constant 0 : i32
    %c0_i32_0 = arith.constant 0 : i32
    %c0_i32_1 = arith.constant 0 : i32
    %c0_i32_2 = arith.constant 0 : i32
    return %arg0, %c0_i32, %c0_i32_0, %c0_i32_1 : i32, i32, i32, i32
  }
  func.func @transform_1(%arg0: i32) -> (i32, i32, i32, i32) {
    %c0_i32 = arith.constant 0 : i32
    %c0_i32_0 = arith.constant 0 : i32
    %c0_i32_1 = arith.constant 0 : i32
    %c0_i32_2 = arith.constant 0 : i32
    return %arg0, %c0_i32, %c0_i32_0, %c0_i32_1 : i32, i32, i32, i32
  }
  func.func @transform_2(%arg0: i32) -> (i32, i32) {
    %c0_i32 = arith.constant 0 : i32
    %c0_i32_0 = arith.constant 0 : i32
    %c0_i32_1 = arith.constant 0 : i32
    return %c0_i32, %c0_i32_0 : i32, i32
  }
  func.func @transform_3(%arg0: i32) -> (i32, i32) {
    %c0_i32 = arith.constant 0 : i32
    %c0_i32_0 = arith.constant 0 : i32
    %c0_i32_1 = arith.constant 0 : i32
    return %c0_i32, %c0_i32_0 : i32, i32
  }
  func.func @transform_4(%arg0: i32) -> (i32, i32) {
    %c0_i32 = arith.constant 0 : i32
    %c0_i32_0 = arith.constant 0 : i32
    %c0_i32_1 = arith.constant 0 : i32
    return %c0_i32, %c0_i32_0 : i32, i32
  }
  func.func @transform_5(%arg0: i32) -> (i32, i32) {
    %c0_i32 = arith.constant 0 : i32
    %c0_i32_0 = arith.constant 0 : i32
    %c0_i32_1 = arith.constant 0 : i32
    return %c0_i32, %c0_i32_0 : i32, i32
  }
  func.func @transform_6(%arg0: i32) -> i32 {
    %c0_i32 = arith.constant 0 : i32
    %c0_i32_0 = arith.constant 0 : i32
    return %c0_i32 : i32
  }
  func.func @transform_7(%arg0: i32) -> (i32, i32, i32, i32) {
    %c0_i32 = arith.constant 0 : i32
    %c0_i32_0 = arith.constant 0 : i32
    %c0_i32_1 = arith.constant 0 : i32
    %c0_i32_2 = arith.constant 0 : i32
    return %arg0, %c0_i32, %c0_i32_0, %c0_i32_1 : i32, i32, i32, i32
  }
}

</mosaic_0001>

<llo_original>
// kernel: basic_block_forward.4
$region0: #{basic_block_forward.4}
  #allocation0 [shape = 'u32[]', space=smem, size = 0x4, offset = 0x4, fixed_abs, tag = 'smem constant byte address 0x4 - core index']
  #allocation1 [shape = 'u32[144,128]{1,0:T(1,128)}', space=vmem, size = 0x12000, scoped, tag = 'internal scratch']
  #allocation2 [shape = 'f32[18,18,16]{2,1,0:T(8,128)}', space=vmem, size = 0x36000, scoped, tag = 'scratch operand']
  %s0 = inlined_call_operand.vmem [shape: bf16[2,16,16,16], index: 0, kind: input, shape index: {}]
  %s1 = inlined_call_operand.vmem [shape: bf16[9,16,16], index: 1, kind: input, shape index: {}]
  %s2 = inlined_call_operand.vmem [shape: f32[1,16], index: 2, kind: input, shape index: {}]
  %s3 = inlined_call_operand.vmem [shape: f32[1,16], index: 3, kind: input, shape index: {}]
  %s4 = inlined_call_operand.vmem [shape: bf16[2,256,16], index: 4, kind: output, shape index: {0}]
  %s5 = inlined_call_operand.vmem [shape: f32[2,1,16], index: 5, kind: output, shape index: {1}]
  %s6 = inlined_call_operand.vmem [shape: f32[2,1,16], index: 6, kind: output, shape index: {2}]
  %7 = xla_tuple %s4, %s5, %s6
  %s8 = sld [smem:[#allocation0]]
  $region65: #{basic_block_forward.4} parent=0
    _
  %s10 = ssub.s32 1, %s8
  %s11 = scalar_select 0, %s10, %s8
  loop: start=0, step=1, limit=4
  $region2: #{basic_block_forward.4} parent=0 // loop_pre_header
    _
  $region3: #{basic_block_forward.4} parent=0 // loop_header
    %s13 = sphi 0, %s17
    %p14 = scmp.ge.s32.totalorder %s13, 4
    %s23 = sphi 0, %s25
    %s26 = sphi 0, %s23
    %s27 = sphi 0, %s26
    %s43 = sphi 0, %s27
    %s47 = sphi 0, %s47
    %s49 = sphi 0, %s47
    %s50 = sphi 0, %s49
    %s64 = sphi 0, %s50
    %s68 = sphi 0, %s68
    %s70 = sphi 0, %s68
    %s71 = sphi 0, %s70
    %s85 = sphi 0, %s71
    %s89 = sphi 0, %s89
    %s91 = sphi 0, %s89
    %s92 = sphi 0, %s91
    %s106 = sphi 0, %s92
    %s112 = sphi 0, %s114
    %s115 = sphi 0, %s112
    %s116 = sphi 0, %s115
    %s132 = sphi 0, %s116
    %s138 = sphi 0, %s140
    %s141 = sphi 0, %s138
    %s142 = sphi 0, %s141
    %s158 = sphi 0, %s142
    %s164 = sphi 0, %s166
    %s167 = sphi 0, %s164
    %s168 = sphi 0, %s167
    %s184 = sphi 0, %s168
  $region4: #{basic_block_forward.4} parent=0 // loop_header_branch
    %16 = sbr.rel (%p14) target = $region8
  $region5: #{basic_block_forward.4} parent=0 // loop_body
    %s18 = ssub.s32 %s13, 1
    %s19 = ssub.s32 %s13, 2
    %s20 = sadd.s32 %s13, 1
    %s21 = ssub.s32 %s13, %s20
    %p22 = scmp.eq.s32.totalorder %s21, 0
    %s24 = sadd.s32 %s23, 1
    %s25 = scalar_select %p22, %s23, %s24
    %p28 = pneg %p22
    %p29 = scmp.eq.s32.totalorder %s13, 1
    %p30 = por %p28, %p29
    %p31 = scmp.ne.s32.totalorder %s23, %s26
    %p32 = scmp.eq.s32.totalorder %s13, 0
    %p33 = por %p31, %p32
    %p34 = scmp.ne.s32.totalorder %s23, %s26
    %p35 = scmp.eq.s32.totalorder %s18, 1
    %p36 = por %p34, %p35
    %p37 = scmp.ne.s32.totalorder %s26, %s27
    %p38 = scmp.eq.s32.totalorder %s18, 0
    %p39 = por %p37, %p38
    %p40 = scmp.ne.s32.totalorder %s26, %s27
    %p41 = scmp.eq.s32.totalorder %s19, 1
    %p42 = por %p40, %p41
    %p44 = scmp.ne.s32.totalorder %s27, %s43
    %p45 = scmp.eq.s32.totalorder %s19, 0
    %p46 = por %p44, %p45
    %s48 = sadd.s32 %s47, 1
    %p51 = scmp.eq.s32.totalorder %s13, 1
    %p52 = scmp.ne.s32.totalorder %s47, %s49
    %p53 = scmp.eq.s32.totalorder %s13, 0
    %p54 = por %p52, %p53
    %p55 = scmp.ne.s32.totalorder %s47, %s49
    %p56 = scmp.eq.s32.totalorder %s18, 1
    %p57 = por %p55, %p56
    %p58 = scmp.ne.s32.totalorder %s49, %s50
    %p59 = scmp.eq.s32.totalorder %s18, 0
    %p60 = por %p58, %p59
    %p61 = scmp.ne.s32.totalorder %s49, %s50
    %p62 = scmp.eq.s32.totalorder %s19, 1
    %p63 = por %p61, %p62
    %p65 = scmp.ne.s32.totalorder %s50, %s64
    %p66 = scmp.eq.s32.totalorder %s19, 0
    %p67 = por %p65, %p66
    %s69 = sadd.s32 %s68, 1
    %p72 = scmp.eq.s32.totalorder %s13, 1
    %p73 = scmp.ne.s32.totalorder %s68, %s70
    %p74 = scmp.eq.s32.totalorder %s13, 0
    %p75 = por %p73, %p74
    %p76 = scmp.ne.s32.totalorder %s68, %s70
    %p77 = scmp.eq.s32.totalorder %s18, 1
    %p78 = por %p76, %p77
    %p79 = scmp.ne.s32.totalorder %s70, %s71
    %p80 = scmp.eq.s32.totalorder %s18, 0
    %p81 = por %p79, %p80
    %p82 = scmp.ne.s32.totalorder %s70, %s71
    %p83 = scmp.eq.s32.totalorder %s19, 1
    %p84 = por %p82, %p83
    %p86 = scmp.ne.s32.totalorder %s71, %s85
    %p87 = scmp.eq.s32.totalorder %s19, 0
    %p88 = por %p86, %p87
    %s90 = sadd.s32 %s89, 1
    %p93 = scmp.eq.s32.totalorder %s13, 1
    %p94 = scmp.ne.s32.totalorder %s89, %s91
    %p95 = scmp.eq.s32.totalorder %s13, 0
    %p96 = por %p94, %p95
    %p97 = scmp.ne.s32.totalorder %s89, %s91
    %p98 = scmp.eq.s32.totalorder %s18, 1
    %p99 = por %p97, %p98
    %p100 = scmp.ne.s32.totalorder %s91, %s92
    %p101 = scmp.eq.s32.totalorder %s18, 0
    %p102 = por %p100, %p101
    %p103 = scmp.ne.s32.totalorder %s91, %s92
    %p104 = scmp.eq.s32.totalorder %s19, 1
    %p105 = por %p103, %p104
    %p107 = scmp.ne.s32.totalorder %s92, %s106
    %p108 = scmp.eq.s32.totalorder %s19, 0
    %p109 = por %p107, %p108
    %s110 = ssub.s32 %s13, %s20
    %p111 = scmp.eq.s32.totalorder %s110, 0
    %s113 = sadd.s32 %s112, 1
    %s114 = scalar_select %p111, %s112, %s113
    %p117 = pneg %p111
    %p118 = scmp.eq.s32.totalorder %s13, 1
    %p119 = por %p117, %p118
    %p120 = scmp.ne.s32.totalorder %s112, %s115
    %p121 = scmp.eq.s32.totalorder %s13, 0
    %p122 = por %p120, %p121
    %p123 = scmp.ne.s32.totalorder %s112, %s115
    %p124 = scmp.eq.s32.totalorder %s18, 1
    %p125 = por %p123, %p124
    %p126 = scmp.ne.s32.totalorder %s115, %s116
    %p127 = scmp.eq.s32.totalorder %s18, 0
    %p128 = por %p126, %p127
    %p129 = scmp.ne.s32.totalorder %s115, %s116
    %p130 = scmp.eq.s32.totalorder %s19, 1
    %p131 = por %p129, %p130
    %p133 = scmp.ne.s32.totalorder %s116, %s132
    %p134 = scmp.eq.s32.totalorder %s19, 0
    %p135 = por %p133, %p134
    %s136 = ssub.s32 %s13, %s20
    %p137 = scmp.eq.s32.totalorder %s136, 0
    %s139 = sadd.s32 %s138, 1
    %s140 = scalar_select %p137, %s138, %s139
    %p143 = pneg %p137
    %p144 = scmp.eq.s32.totalorder %s13, 1
    %p145 = por %p143, %p144
    %p146 = scmp.ne.s32.totalorder %s138, %s141
    %p147 = scmp.eq.s32.totalorder %s13, 0
    %p148 = por %p146, %p147
    %p149 = scmp.ne.s32.totalorder %s138, %s141
    %p150 = scmp.eq.s32.totalorder %s18, 1
    %p151 = por %p149, %p150
    %p152 = scmp.ne.s32.totalorder %s141, %s142
    %p153 = scmp.eq.s32.totalorder %s18, 0
    %p154 = por %p152, %p153
    %p155 = scmp.ne.s32.totalorder %s141, %s142
    %p156 = scmp.eq.s32.totalorder %s19, 1
    %p157 = por %p155, %p156
    %p159 = scmp.ne.s32.totalorder %s142, %s158
    %p160 = scmp.eq.s32.totalorder %s19, 0
    %p161 = por %p159, %p160
    %s162 = ssub.s32 %s13, %s20
    %p163 = scmp.eq.s32.totalorder %s162, 0
    %s165 = sadd.s32 %s164, 1
    %s166 = scalar_select %p163, %s164, %s165
    %p169 = pneg %p163
    %p170 = scmp.eq.s32.totalorder %s13, 1
    %p171 = por %p169, %p170
    %p172 = scmp.ne.s32.totalorder %s164, %s167
    %p173 = scmp.eq.s32.totalorder %s13, 0
    %p174 = por %p172, %p173
    %p175 = scmp.ne.s32.totalorder %s164, %s167
    %p176 = scmp.eq.s32.totalorder %s18, 1
    %p177 = por %p175, %p176
    %p178 = scmp.ne.s32.totalorder %s167, %s168
    %p179 = scmp.eq.s32.totalorder %s18, 0
    %p180 = por %p178, %p179
    %p181 = scmp.ne.s32.totalorder %s167, %s168
    %p182 = scmp.eq.s32.totalorder %s19, 1
    %p183 = por %p181, %p182
    %p185 = scmp.ne.s32.totalorder %s168, %s184
    %p186 = scmp.eq.s32.totalorder %s19, 0
    %p187 = por %p185, %p186
    %p188 = scmp.le.s32.totalorder 1, %s13
    %p189 = scmp.lt.s32.totalorder %s13, 3
    %p190 = pnand %p188, %p189
    %p191 = pneg %p190
    // Predicated region
    $region9: #{basic_block_forward.4} parent=5 // pred_check
      _
    $region10: #{basic_block_forward.4} parent=5 // pred_check_branch
      %193 = sbr.rel (%p190) target = $region12
    $region11: #{basic_block_forward.4} parent=5 // pred_region
      %s194 = ssub.s32 %s13, 1
      // Predicated region
      $region13: #{basic_block_forward.4} parent=11 // pred_check
        %p195 = pneg %p60
      $region14: #{basic_block_forward.4} parent=11 // pred_check_branch
        %197 = sbr.rel (%p195) target = $region16
      $region15: #{basic_block_forward.4} parent=11 // pred_region
        _
      $region16: #{basic_block_forward.4} parent=11 // pred_fallthru
        _
      // Predicated region
      $region17: #{basic_block_forward.4} parent=11 // pred_check
        %p198 = pneg %p81
      $region18: #{basic_block_forward.4} parent=11 // pred_check_branch
        %200 = sbr.rel (%p198) target = $region20
      $region19: #{basic_block_forward.4} parent=11 // pred_region
        _
      $region20: #{basic_block_forward.4} parent=11 // pred_fallthru
        _
      // Predicated region
      $region21: #{basic_block_forward.4} parent=11 // pred_check
        %p201 = pneg %p102
      $region22: #{basic_block_forward.4} parent=11 // pred_check_branch
        %203 = sbr.rel (%p201) target = $region24
      $region23: #{basic_block_forward.4} parent=11 // pred_region
        _
      $region24: #{basic_block_forward.4} parent=11 // pred_fallthru
        _
    $region12: #{basic_block_forward.4} parent=5 // pred_fallthru
      _
    %p204 = scmp.lt.s32.totalorder %s13, 2
    // Predicated region
    $region25: #{basic_block_forward.4} parent=5 // pred_check
      %p205 = pneg %p204
    $region26: #{basic_block_forward.4} parent=5 // pred_check_branch
      %207 = sbr.rel (%p205) target = $region28
    $region27: #{basic_block_forward.4} parent=5 // pred_region
      // Predicated region
      $region29: #{basic_block_forward.4} parent=27 // pred_check
        %p208 = pneg %p33
      $region30: #{basic_block_forward.4} parent=27 // pred_check_branch
        %210 = sbr.rel (%p208) target = $region32
      $region31: #{basic_block_forward.4} parent=27 // pred_region
        %p211 = scmp.lt.s32.totalorder %s13, 1
        %s212 = scalar_select %p211, %s13, 1
        %s213 = smul.addr %s212, 32
        %s214 = smul.addr %s213, 4
        %s215 = scalar_lea.vmem %s0, %s214
      $region32: #{basic_block_forward.4} parent=27 // pred_fallthru
        _
    $region28: #{basic_block_forward.4} parent=5 // pred_fallthru
      _
    %p216 = scmp.le.s32.totalorder 1, %s13
    %p217 = scmp.lt.s32.totalorder %s13, 3
    %p218 = pnand %p216, %p217
    %p219 = pneg %p218
    // Predicated region
    $region33: #{basic_block_forward.4} parent=5 // pred_check
      _
    $region34: #{basic_block_forward.4} parent=5 // pred_check_branch
      %221 = sbr.rel (%p218) target = $region36
    $region35: #{basic_block_forward.4} parent=5 // pred_region
      %s222 = ssub.s32 %s13, 1
      %p223 = scmp.lt.s32.totalorder %s18, 1
      %s224 = scalar_select %p223, %s18, 1
      %s225 = smul.addr %s224, 32
      %s226 = smul.addr %s225, 4
      %s227 = scalar_lea.vmem %s0, %s226
      %p228 = pneg %p39
      %p229 = pneg %p36
      %p230 = pneg %p60
      %p231 = pneg %p57
      %p232 = pneg %p81
      %p233 = pneg %p78
      %p234 = pneg %p102
      %p235 = pneg %p99
      %p236 = pneg %p128
      %p237 = pneg %p125
      %p238 = scmp.lt.s32.totalorder %s18, 1
      %s239 = scalar_select %p238, %s18, 1
      %s240 = smul.addr %s239, 32
      %s241 = smul.addr %s240, 4
      %s242 = scalar_lea.vmem %s4, %s241
      %p243 = pneg %p154
      %p244 = pneg %p151
      %p245 = scmp.lt.s32.totalorder %s18, 1
      %s246 = scalar_select %p245, %s18, 1
      %s247 = scalar_lea.vmem %s5, %s246
      %p248 = pneg %p180
      %p249 = pneg %p177
      %p250 = scmp.lt.s32.totalorder %s18, 1
      %s251 = scalar_select %p250, %s18, 1
      %s252 = scalar_lea.vmem %s6, %s251
      %p253 = scmp.lt.s32.totalorder %s18, 1
      %s254 = scalar_select %p253, %s18, 1
      %s255 = smul.addr %s254, 32
      %s256 = smul.addr %s255, 4
      %s257 = scalar_lea.vmem %s0, %s256
      %p258 = scmp.lt.s32.totalorder %s18, 1
      %s259 = scalar_select %p258, %s18, 1
      %s260 = smul.addr %s259, 32
      %s261 = smul.addr %s260, 4
      %s262 = scalar_lea.vmem %s4, %s261
      %p263 = scmp.lt.s32.totalorder %s18, 1
      %s264 = scalar_select %p263, %s18, 1
      %s265 = scalar_lea.vmem %s5, %s264
      %p266 = scmp.lt.s32.totalorder %s18, 1
      %s267 = scalar_select %p266, %s18, 1
      %s268 = scalar_lea.vmem %s6, %s267
      %vm270 = vcmask 130048
      %271 = vst.msk [vmem:[#allocation2] sm:$0xff] %vm270, 0.0
      %272 = vst.msk [vmem:[#allocation2 + $0x8] sm:$0xff] %vm270, 0.0
      %vm273 = vcmask 123904
      %274 = vst.msk [vmem:[#allocation2 + $0x10] sm:$0x3] %vm273, 0.0
      %s275 = scalar_lea.vmem [#allocation2], 408
      %276 = vst.msk [vmem:[%s275] sm:$0xff] %vm270, 0.0
      %277 = vst.msk [vmem:[%s275 + $0x8] sm:$0xff] %vm270, 0.0
      %278 = vst.msk [vmem:[%s275 + $0x10] sm:$0x3] %vm273, 0.0
      %s279 = scalar_lea.vmem [#allocation2], 24
      %vm280 = vcmask 122880
      %281 = vst.msk [vmem:[%s279] sm:$0x1] %vm280, 0.0
      %282 = vst.msk [vmem:[%s279 + $0x18] sm:$0x1] %vm280, 0.0
      %283 = vst.msk [vmem:[%s279 + $0x30] sm:$0x1] %vm280, 0.0
      %284 = vst.msk [vmem:[%s279 + $0x48] sm:$0x1] %vm280, 0.0
      %285 = vst.msk [vmem:[%s279 + $0x60] sm:$0x1] %vm280, 0.0
      %286 = vst.msk [vmem:[%s279 + $0x78] sm:$0x1] %vm280, 0.0
      %287 = vst.msk [vmem:[%s279 + $0x90] sm:$0x1] %vm280, 0.0
      %288 = vst.msk [vmem:[%s279 + $0xa8] sm:$0x1] %vm280, 0.0
      %289 = vst.msk [vmem:[%s279 + $0xc0] sm:$0x1] %vm280, 0.0
      %290 = vst.msk [vmem:[%s279 + $0xd8] sm:$0x1] %vm280, 0.0
      %291 = vst.msk [vmem:[%s279 + $0xf0] sm:$0x1] %vm280, 0.0
      %292 = vst.msk [vmem:[%s279 + $0x108] sm:$0x1] %vm280, 0.0
      %293 = vst.msk [vmem:[%s279 + $0x120] sm:$0x1] %vm280, 0.0
      %294 = vst.msk [vmem:[%s279 + $0x138] sm:$0x1] %vm280, 0.0
      %295 = vst.msk [vmem:[%s279 + $0x150] sm:$0x1] %vm280, 0.0
      %296 = vst.msk [vmem:[%s279 + $0x168] sm:$0x1] %vm280, 0.0
      %297 = vst.msk [vmem:[%s279 + $0x11] sm:$0x1] %vm280, 0.0
      %298 = vst.msk [vmem:[%s279 + $0x29] sm:$0x1] %vm280, 0.0
      %299 = vst.msk [vmem:[%s279 + $0x41] sm:$0x1] %vm280, 0.0
      %300 = vst.msk [vmem:[%s279 + $0x59] sm:$0x1] %vm280, 0.0
      %301 = vst.msk [vmem:[%s279 + $0x71] sm:$0x1] %vm280, 0.0
      %302 = vst.msk [vmem:[%s279 + $0x89] sm:$0x1] %vm280, 0.0
      %303 = vst.msk [vmem:[%s279 + $0xa1] sm:$0x1] %vm280, 0.0
      %304 = vst.msk [vmem:[%s279 + $0xb9] sm:$0x1] %vm280, 0.0
      %305 = vst.msk [vmem:[%s279 + $0xd1] sm:$0x1] %vm280, 0.0
      %306 = vst.msk [vmem:[%s279 + $0xe9] sm:$0x1] %vm280, 0.0
      %307 = vst.msk [vmem:[%s279 + $0x101] sm:$0x1] %vm280, 0.0
      %308 = vst.msk [vmem:[%s279 + $0x119] sm:$0x1] %vm280, 0.0
      %309 = vst.msk [vmem:[%s279 + $0x131] sm:$0x1] %vm280, 0.0
      %310 = vst.msk [vmem:[%s279 + $0x149] sm:$0x1] %vm280, 0.0
      %311 = vst.msk [vmem:[%s279 + $0x161] sm:$0x1] %vm280, 0.0
      %312 = vst.msk [vmem:[%s279 + $0x179] sm:$0x1] %vm280, 0.0
      %v313 = vld [vmem:[%s257] sm:$0xf]
      %v314 = vld [vmem:[%s257 + $0x4] sm:$0xf]
      %v315 = vld [vmem:[%s257 + $0x8] sm:$0xf]
      %v316 = vld [vmem:[%s257 + $0xc] sm:$0xf]
      %v317 = vld [vmem:[%s257 + $0x10] sm:$0xf]
      %v318 = vld [vmem:[%s257 + $0x14] sm:$0xf]
      %v319 = vld [vmem:[%s257 + $0x18] sm:$0xf]
      %v320 = vld [vmem:[%s257 + $0x1c] sm:$0xf]
      %v321 = vld [vmem:[%s257 + $0x20] sm:$0xf]
      %v322 = vld [vmem:[%s257 + $0x24] sm:$0xf]
      %v323 = vld [vmem:[%s257 + $0x28] sm:$0xf]
      %v324 = vld [vmem:[%s257 + $0x2c] sm:$0xf]
      %v325 = vld [vmem:[%s257 + $0x30] sm:$0xf]
      %v326 = vld [vmem:[%s257 + $0x34] sm:$0xf]
      %v327 = vld [vmem:[%s257 + $0x38] sm:$0xf]
      %v328 = vld [vmem:[%s257 + $0x3c] sm:$0xf]
      %v329 = vld [vmem:[%s257 + $0x40] sm:$0xf]
      %v330 = vld [vmem:[%s257 + $0x44] sm:$0xf]
      %v331 = vld [vmem:[%s257 + $0x48] sm:$0xf]
      %v332 = vld [vmem:[%s257 + $0x4c] sm:$0xf]
      %v333 = vld [vmem:[%s257 + $0x50] sm:$0xf]
      %v334 = vld [vmem:[%s257 + $0x54] sm:$0xf]
      %v335 = vld [vmem:[%s257 + $0x58] sm:$0xf]
      %v336 = vld [vmem:[%s257 + $0x5c] sm:$0xf]
      %v337 = vld [vmem:[%s257 + $0x60] sm:$0xf]
      %v338 = vld [vmem:[%s257 + $0x64] sm:$0xf]
      %v339 = vld [vmem:[%s257 + $0x68] sm:$0xf]
      %v340 = vld [vmem:[%s257 + $0x6c] sm:$0xf]
      %v341 = vld [vmem:[%s257 + $0x70] sm:$0xf]
      %v342 = vld [vmem:[%s257 + $0x74] sm:$0xf]
      %v343 = vld [vmem:[%s257 + $0x78] sm:$0xf]
      %v344 = vld [vmem:[%s257 + $0x7c] sm:$0xf]
      %v345 = vunpack.c.l.bf16 %v313
      %v346 = vunpack.c.l.bf16 %v314
      %v347 = vunpack.c.l.bf16 %v315
      %v348 = vunpack.c.l.bf16 %v316
      %v349 = vunpack.c.l.bf16 %v317
      %v350 = vunpack.c.l.bf16 %v318
      %v351 = vunpack.c.l.bf16 %v319
      %v352 = vunpack.c.l.bf16 %v320
      %v353 = vunpack.c.l.bf16 %v321
      %v354 = vunpack.c.l.bf16 %v322
      %v355 = vunpack.c.l.bf16 %v323
      %v356 = vunpack.c.l.bf16 %v324
      %v357 = vunpack.c.l.bf16 %v325
      %v358 = vunpack.c.l.bf16 %v326
      %v359 = vunpack.c.l.bf16 %v327
      %v360 = vunpack.c.l.bf16 %v328
      %v361 = vunpack.c.l.bf16 %v329
      %v362 = vunpack.c.l.bf16 %v330
      %v363 = vunpack.c.l.bf16 %v331
      %v364 = vunpack.c.l.bf16 %v332
      %v365 = vunpack.c.l.bf16 %v333
      %v366 = vunpack.c.l.bf16 %v334
      %v367 = vunpack.c.l.bf16 %v335
      %v368 = vunpack.c.l.bf16 %v336
      %v369 = vunpack.c.l.bf16 %v337
      %v370 = vunpack.c.l.bf16 %v338
      %v371 = vunpack.c.l.bf16 %v339
      %v372 = vunpack.c.l.bf16 %v340
      %v373 = vunpack.c.l.bf16 %v341
      %v374 = vunpack.c.l.bf16 %v342
      %v375 = vunpack.c.l.bf16 %v343
      %v376 = vunpack.c.l.bf16 %v344
      %v377 = vld [vmem:[%s2] sm:$0x1]
      %v379 = vlaneseq
      %v380 = vshrl.u32 %v379, 7
      %v381 = vsub.s32 0, %v380
      %v382 = vrot.slane %v377, %v381
      %v384 = vmul.f32 %v345, %v382
      %v385 = vmul.f32 %v346, %v382
      %v386 = vmul.f32 %v347, %v382
      %v387 = vmul.f32 %v348, %v382
      %v388 = vmul.f32 %v349, %v382
      %v389 = vmul.f32 %v350, %v382
      %v390 = vmul.f32 %v351, %v382
      %v391 = vmul.f32 %v352, %v382
      %v392 = vmul.f32 %v353, %v382
      %v393 = vmul.f32 %v354, %v382
      %v394 = vmul.f32 %v355, %v382
      %v395 = vmul.f32 %v356, %v382
      %v396 = vmul.f32 %v357, %v382
      %v397 = vmul.f32 %v358, %v382
      %v398 = vmul.f32 %v359, %v382
      %v399 = vmul.f32 %v360, %v382
      %v400 = vmul.f32 %v361, %v382
      %v401 = vmul.f32 %v362, %v382
      %v402 = vmul.f32 %v363, %v382
      %v403 = vmul.f32 %v364, %v382
      %v404 = vmul.f32 %v365, %v382
      %v405 = vmul.f32 %v366, %v382
      %v406 = vmul.f32 %v367, %v382
      %v407 = vmul.f32 %v368, %v382
      %v408 = vmul.f32 %v369, %v382
      %v409 = vmul.f32 %v370, %v382
      %v410 = vmul.f32 %v371, %v382
      %v411 = vmul.f32 %v372, %v382
      %v412 = vmul.f32 %v373, %v382
      %v413 = vmul.f32 %v374, %v382
      %v414 = vmul.f32 %v375, %v382
      %v415 = vmul.f32 %v376, %v382
      %v416 = vld [vmem:[%s3] sm:$0x1]
      %v418 = vlaneseq
      %v419 = vshrl.u32 %v418, 7
      %v420 = vsub.s32 0, %v419
      %v421 = vrot.slane %v416, %v420
      %v423 = vadd.f32 %v384, %v421
      %v424 = vadd.f32 %v385, %v421
      %v425 = vadd.f32 %v386, %v421
      %v426 = vadd.f32 %v387, %v421
      %v427 = vadd.f32 %v388, %v421
      %v428 = vadd.f32 %v389, %v421
      %v429 = vadd.f32 %v390, %v421
      %v430 = vadd.f32 %v391, %v421
      %v431 = vadd.f32 %v392, %v421
      %v432 = vadd.f32 %v393, %v421
      %v433 = vadd.f32 %v394, %v421
      %v434 = vadd.f32 %v395, %v421
      %v435 = vadd.f32 %v396, %v421
      %v436 = vadd.f32 %v397, %v421
      %v437 = vadd.f32 %v398, %v421
      %v438 = vadd.f32 %v399, %v421
      %v439 = vadd.f32 %v400, %v421
      %v440 = vadd.f32 %v401, %v421
      %v441 = vadd.f32 %v402, %v421
      %v442 = vadd.f32 %v403, %v421
      %v443 = vadd.f32 %v404, %v421
      %v444 = vadd.f32 %v405, %v421
      %v445 = vadd.f32 %v406, %v421
      %v446 = vadd.f32 %v407, %v421
      %v447 = vadd.f32 %v408, %v421
      %v448 = vadd.f32 %v409, %v421
      %v449 = vadd.f32 %v410, %v421
      %v450 = vadd.f32 %v411, %v421
      %v451 = vadd.f32 %v412, %v421
      %v452 = vadd.f32 %v413, %v421
      %v453 = vadd.f32 %v414, %v421
      %v454 = vadd.f32 %v415, %v421
      %v455 = vmax.f32 %v423, 0.0
      %v456 = vmax.f32 %v424, 0.0
      %v457 = vmax.f32 %v425, 0.0
      %v458 = vmax.f32 %v426, 0.0
      %v459 = vmax.f32 %v427, 0.0
      %v460 = vmax.f32 %v428, 0.0
      %v461 = vmax.f32 %v429, 0.0
      %v462 = vmax.f32 %v430, 0.0
      %v463 = vmax.f32 %v431, 0.0
      %v464 = vmax.f32 %v432, 0.0
      %v465 = vmax.f32 %v433, 0.0
      %v466 = vmax.f32 %v434, 0.0
      %v467 = vmax.f32 %v435, 0.0
      %v468 = vmax.f32 %v436, 0.0
      %v469 = vmax.f32 %v437, 0.0
      %v470 = vmax.f32 %v438, 0.0
      %v471 = vmax.f32 %v439, 0.0
      %v472 = vmax.f32 %v440, 0.0
      %v473 = vmax.f32 %v441, 0.0
      %v474 = vmax.f32 %v442, 0.0
      %v475 = vmax.f32 %v443, 0.0
      %v476 = vmax.f32 %v444, 0.0
      %v477 = vmax.f32 %v445, 0.0
      %v478 = vmax.f32 %v446, 0.0
      %v479 = vmax.f32 %v447, 0.0
      %v480 = vmax.f32 %v448, 0.0
      %v481 = vmax.f32 %v449, 0.0
      %v482 = vmax.f32 %v450, 0.0
      %v483 = vmax.f32 %v451, 0.0
      %v484 = vmax.f32 %v452, 0.0
      %v485 = vmax.f32 %v453, 0.0
      %v486 = vmax.f32 %v454, 0.0
      %487 = vst.msk [vmem:[%s279 + $0x1] sm:$0xff] %vm270, %v455
      %488 = vst.msk [vmem:[%s279 + $0x9] sm:$0xff] %vm270, %v456
      %489 = vst.msk [vmem:[%s279 + $0x19] sm:$0xff] %vm270, %v457
      %490 = vst.msk [vmem:[%s279 + $0x21] sm:$0xff] %vm270, %v458
      %491 = vst.msk [vmem:[%s279 + $0x31] sm:$0xff] %vm270, %v459
      %492 = vst.msk [vmem:[%s279 + $0x39] sm:$0xff] %vm270, %v460
      %493 = vst.msk [vmem:[%s279 + $0x49] sm:$0xff] %vm270, %v461
      %494 = vst.msk [vmem:[%s279 + $0x51] sm:$0xff] %vm270, %v462
      %495 = vst.msk [vmem:[%s279 + $0x61] sm:$0xff] %vm270, %v463
      %496 = vst.msk [vmem:[%s279 + $0x69] sm:$0xff] %vm270, %v464
      %497 = vst.msk [vmem:[%s279 + $0x79] sm:$0xff] %vm270, %v465
      %498 = vst.msk [vmem:[%s279 + $0x81] sm:$0xff] %vm270, %v466
      %499 = vst.msk [vmem:[%s279 + $0x91] sm:$0xff] %vm270, %v467
      %500 = vst.msk [vmem:[%s279 + $0x99] sm:$0xff] %vm270, %v468
      %501 = vst.msk [vmem:[%s279 + $0xa9] sm:$0xff] %vm270, %v469
      %502 = vst.msk [vmem:[%s279 + $0xb1] sm:$0xff] %vm270, %v470
      %503 = vst.msk [vmem:[%s279 + $0xc1] sm:$0xff] %vm270, %v471
      %504 = vst.msk [vmem:[%s279 + $0xc9] sm:$0xff] %vm270, %v472
      %505 = vst.msk [vmem:[%s279 + $0xd9] sm:$0xff] %vm270, %v473
      %506 = vst.msk [vmem:[%s279 + $0xe1] sm:$0xff] %vm270, %v474
      %507 = vst.msk [vmem:[%s279 + $0xf1] sm:$0xff] %vm270, %v475
      %508 = vst.msk [vmem:[%s279 + $0xf9] sm:$0xff] %vm270, %v476
      %509 = vst.msk [vmem:[%s279 + $0x109] sm:$0xff] %vm270, %v477
      %510 = vst.msk [vmem:[%s279 + $0x111] sm:$0xff] %vm270, %v478
      %511 = vst.msk [vmem:[%s279 + $0x121] sm:$0xff] %vm270, %v479
      %512 = vst.msk [vmem:[%s279 + $0x129] sm:$0xff] %vm270, %v480
      %513 = vst.msk [vmem:[%s279 + $0x139] sm:$0xff] %vm270, %v481
      %514 = vst.msk [vmem:[%s279 + $0x141] sm:$0xff] %vm270, %v482
      %515 = vst.msk [vmem:[%s279 + $0x151] sm:$0xff] %vm270, %v483
      %516 = vst.msk [vmem:[%s279 + $0x159] sm:$0xff] %vm270, %v484
      %517 = vst.msk [vmem:[%s279 + $0x169] sm:$0xff] %vm270, %v485
      %518 = vst.msk [vmem:[%s279 + $0x171] sm:$0xff] %vm270, %v486
      %v519 = vld [vmem:[#allocation2] sm:$0xff]
      %v520 = vld [vmem:[#allocation2 + $0x8] sm:$0xff]
      %v521 = vld [vmem:[#allocation2 + $0x18] sm:$0xff]
      %v522 = vld [vmem:[#allocation2 + $0x20] sm:$0xff]
      %v523 = vld [vmem:[#allocation2 + $0x30] sm:$0xff]
      %v524 = vld [vmem:[#allocation2 + $0x38] sm:$0xff]
      %v525 = vld [vmem:[#allocation2 + $0x48] sm:$0xff]
      %v526 = vld [vmem:[#allocation2 + $0x50] sm:$0xff]
      %v527 = vld [vmem:[#allocation2 + $0x60] sm:$0xff]
      %v528 = vld [vmem:[#allocation2 + $0x68] sm:$0xff]
      %v529 = vld [vmem:[#allocation2 + $0x78] sm:$0xff]
      %v530 = vld [vmem:[#allocation2 + $0x80] sm:$0xff]
      %v531 = vld [vmem:[#allocation2 + $0x90] sm:$0xff]
      %v532 = vld [vmem:[#allocation2 + $0x98] sm:$0xff]
      %v533 = vld [vmem:[#allocation2 + $0xa8] sm:$0xff]
      %v534 = vld [vmem:[#allocation2 + $0xb0] sm:$0xff]
      %v535 = vld [vmem:[#allocation2 + $0xc0] sm:$0xff]
      %v536 = vld [vmem:[#allocation2 + $0xc8] sm:$0xff]
      %v537 = vld [vmem:[#allocation2 + $0xd8] sm:$0xff]
      %v538 = vld [vmem:[#allocation2 + $0xe0] sm:$0xff]
      %v539 = vld [vmem:[#allocation2 + $0xf0] sm:$0xff]
      %v540 = vld [vmem:[#allocation2 + $0xf8] sm:$0xff]
      %v541 = vld [vmem:[#allocation2 + $0x108] sm:$0xff]
      %v542 = vld [vmem:[#allocation2 + $0x110] sm:$0xff]
      %v543 = vld [vmem:[#allocation2 + $0x120] sm:$0xff]
      %v544 = vld [vmem:[#allocation2 + $0x128] sm:$0xff]
      %v545 = vld [vmem:[#allocation2 + $0x138] sm:$0xff]
      %v546 = vld [vmem:[#allocation2 + $0x140] sm:$0xff]
      %v547 = vld [vmem:[#allocation2 + $0x150] sm:$0xff]
      %v548 = vld [vmem:[#allocation2 + $0x158] sm:$0xff]
      %v549 = vld [vmem:[#allocation2 + $0x168] sm:$0xff]
      %v550 = vld [vmem:[#allocation2 + $0x170] sm:$0xff]
      %v551 = vpack.c.bf16 %v520, %v519
      %v552 = vpack.c.bf16 %v522, %v521
      %v553 = vpack.c.bf16 %v524, %v523
      %v554 = vpack.c.bf16 %v526, %v525
      %v555 = vpack.c.bf16 %v528, %v527
      %v556 = vpack.c.bf16 %v530, %v529
      %v557 = vpack.c.bf16 %v532, %v531
      %v558 = vpack.c.bf16 %v534, %v533
      %v559 = vpack.c.bf16 %v536, %v535
      %v560 = vpack.c.bf16 %v538, %v537
      %v561 = vpack.c.bf16 %v540, %v539
      %v562 = vpack.c.bf16 %v542, %v541
      %v563 = vpack.c.bf16 %v544, %v543
      %v564 = vpack.c.bf16 %v546, %v545
      %v565 = vpack.c.bf16 %v548, %v547
      %v566 = vpack.c.bf16 %v550, %v549
      %v567 = vld [vmem:[%s1] sm:$0xf]
      %v568 = vld [vmem:[%s1 + $0x4] sm:$0xf]
      %v569 = vld [vmem:[#allocation2 + $0x1] sm:$0xff]
      %v570 = vld [vmem:[#allocation2 + $0x9] sm:$0xff]
      %v571 = vld [vmem:[#allocation2 + $0x19] sm:$0xff]
      %v572 = vld [vmem:[#allocation2 + $0x21] sm:$0xff]
      %v573 = vld [vmem:[#allocation2 + $0x31] sm:$0xff]
      %v574 = vld [vmem:[#allocation2 + $0x39] sm:$0xff]
      %v575 = vld [vmem:[#allocation2 + $0x49] sm:$0xff]
      %v576 = vld [vmem:[#allocation2 + $0x51] sm:$0xff]
      %v577 = vld [vmem:[#allocation2 + $0x61] sm:$0xff]
      %v578 = vld [vmem:[#allocation2 + $0x69] sm:$0xff]
      %v579 = vld [vmem:[#allocation2 + $0x79] sm:$0xff]
      %v580 = vld [vmem:[#allocation2 + $0x81] sm:$0xff]
      %v581 = vld [vmem:[#allocation2 + $0x91] sm:$0xff]
      %v582 = vld [vmem:[#allocation2 + $0x99] sm:$0xff]
      %v583 = vld [vmem:[#allocation2 + $0xa9] sm:$0xff]
      %v584 = vld [vmem:[#allocation2 + $0xb1] sm:$0xff]
      %v585 = vld [vmem:[#allocation2 + $0xc1] sm:$0xff]
      %v586 = vld [vmem:[#allocation2 + $0xc9] sm:$0xff]
      %v587 = vld [vmem:[#allocation2 + $0xd9] sm:$0xff]
      %v588 = vld [vmem:[#allocation2 + $0xe1] sm:$0xff]
      %v589 = vld [vmem:[#allocation2 + $0xf1] sm:$0xff]
      %v590 = vld [vmem:[#allocation2 + $0xf9] sm:$0xff]
      %v591 = vld [vmem:[#allocation2 + $0x109] sm:$0xff]
      %v592 = vld [vmem:[#allocation2 + $0x111] sm:$0xff]
      %v593 = vld [vmem:[#allocation2 + $0x121] sm:$0xff]
      %v594 = vld [vmem:[#allocation2 + $0x129] sm:$0xff]
      %v595 = vld [vmem:[#allocation2 + $0x139] sm:$0xff]
      %v596 = vld [vmem:[#allocation2 + $0x141] sm:$0xff]
      %v597 = vld [vmem:[#allocation2 + $0x151] sm:$0xff]
      %v598 = vld [vmem:[#allocation2 + $0x159] sm:$0xff]
      %v599 = vld [vmem:[#allocation2 + $0x169] sm:$0xff]
      %v600 = vld [vmem:[#allocation2 + $0x171] sm:$0xff]
      %v601 = vpack.c.bf16 %v570, %v569
      %v602 = vpack.c.bf16 %v572, %v571
      %v603 = vpack.c.bf16 %v574, %v573
      %v604 = vpack.c.bf16 %v576, %v575
      %v605 = vpack.c.bf16 %v578, %v577
      %v606 = vpack.c.bf16 %v580, %v579
      %v607 = vpack.c.bf16 %v582, %v581
      %v608 = vpack.c.bf16 %v584, %v583
      %v609 = vpack.c.bf16 %v586, %v585
      %v610 = vpack.c.bf16 %v588, %v587
      %v611 = vpack.c.bf16 %v590, %v589
      %v612 = vpack.c.bf16 %v592, %v591
      %v613 = vpack.c.bf16 %v594, %v593
      %v614 = vpack.c.bf16 %v596, %v595
      %v615 = vpack.c.bf16 %v598, %v597
      %v616 = vpack.c.bf16 %v600, %v599
      %s617 = scalar_lea.vmem %s1, 8
      %v618 = vld [vmem:[%s617] sm:$0xf]
      %v619 = vld [vmem:[%s617 + $0x4] sm:$0xf]
      %v622 = vunpack.c.l.b16 %v618
      %v623 = vunpack.c.l.b16 %v619
      %v624 = vpack.c.b16 %v623, %v622
      %v627 = vsel %vm270, %v601, 0
      %v630 = vsel %vm270, %v602, 0
      %v633 = vsel %vm270, %v603, 0
      %v636 = vsel %vm270, %v604, 0
      %v639 = vsel %vm270, %v605, 0
      %v642 = vsel %vm270, %v606, 0
      %v645 = vsel %vm270, %v607, 0
      %v648 = vsel %vm270, %v608, 0
      %v651 = vsel %vm270, %v609, 0
      %v654 = vsel %vm270, %v610, 0
      %v657 = vsel %vm270, %v611, 0
      %v660 = vsel %vm270, %v612, 0
      %v663 = vsel %vm270, %v613, 0
      %v666 = vsel %vm270, %v614, 0
      %v669 = vsel %vm270, %v615, 0
      %v672 = vsel %vm270, %v616, 0
      %674 = vmatprep.subr.bf16.mxu0 0
      %675 = vmatpush1.bf16.msra.mxu0 %v624
      %676 = vmatprep.subr.bf16.mxu0 0
      %677 = vmatpush1.bf16.msra.mxu0 0
      %678 = vmatprep.subr.bf16.mxu0 0
      %679 = vmatpush1.bf16.msra.mxu0 0
      %680 = vmatprep.subr.bf16.mxu0 0
      %681 = vmatpush1.bf16.msra.mxu0 0
      %682 = vmatprep.subr.bf16.mxu0 0
      %683 = vmatpush1.bf16.msra.mxu0 0
      %684 = vmatprep.subr.bf16.mxu0 0
      %685 = vmatpush1.bf16.msra.mxu0 0
      %686 = vmatprep.subr.bf16.mxu0 0
      %687 = vmatpush1.bf16.msra.mxu0 0
      %688 = vmatprep.subr.bf16.mxu0 0
      %689 = vmatpush1.bf16.msra.mxu0 0
      %690 = vmatprep.subr.bf16.mxu0 0
      %691 = vmatpush1.bf16.msra.mxu0 0
      %692 = vmatprep.subr.bf16.mxu0 0
      %693 = vmatpush1.bf16.msra.mxu0 0
      %694 = vmatprep.subr.bf16.mxu0 0
      %695 = vmatpush1.bf16.msra.mxu0 0
      %696 = vmatprep.subr.bf16.mxu0 0
      %697 = vmatpush1.bf16.msra.mxu0 0
      %698 = vmatprep.subr.bf16.mxu0 0
      %699 = vmatpush1.bf16.msra.mxu0 0
      %700 = vmatprep.subr.bf16.mxu0 0
      %701 = vmatpush1.bf16.msra.mxu0 0
      %702 = vmatprep.subr.bf16.mxu0 0
      %703 = vmatpush1.bf16.msra.mxu0 0
      %704 = vmatprep.subr.bf16.mxu0 0
      %705 = vmatpush1.bf16.msra.mxu0 0
      %706 = vmatprep.mubr.bf16.mxu0 0
      %707 = vmatmul.mubr.bf16.gmra.mrb[0].mxu0 %v627
      %v708 = vpop.f32.mrb[0].mxu0
      %v709 = vadd.f32 0.0, %v708
      %v710 = vpop.f32.mrb[0].mxu0
      %v711 = vpop.f32.mrb[0].mxu0
      %v712 = vadd.f32 0.0, %v711
      %v713 = vpop.f32.mrb[0].mxu0
      %714 = vmatprep.mubr.bf16.mxu0 0
      %715 = vmatmul.mubr.bf16.gmra.mrb[0].mxu0 %v630
      %v716 = vpop.f32.mrb[0].mxu0
      %v717 = vadd.f32 0.0, %v716
      %v718 = vpop.f32.mrb[0].mxu0
      %v719 = vpop.f32.mrb[0].mxu0
      %v720 = vadd.f32 0.0, %v719
      %v721 = vpop.f32.mrb[0].mxu0
      %722 = vmatprep.mubr.bf16.mxu0 0
      %723 = vmatmul.mubr.bf16.gmra.mrb[0].mxu0 %v633
      %v724 = vpop.f32.mrb[0].mxu0
      %v725 = vadd.f32 0.0, %v724
      %v726 = vpop.f32.mrb[0].mxu0
      %v727 = vpop.f32.mrb[0].mxu0
      %v728 = vadd.f32 0.0, %v727
      %v729 = vpop.f32.mrb[0].mxu0
      %730 = vmatprep.mubr.bf16.mxu0 0
      %731 = vmatmul.mubr.bf16.gmra.mrb[0].mxu0 %v636
      %v732 = vpop.f32.mrb[0].mxu0
      %v733 = vadd.f32 0.0, %v732
      %v734 = vpop.f32.mrb[0].mxu0
      %v735 = vpop.f32.mrb[0].mxu0
      %v736 = vadd.f32 0.0, %v735
      %v737 = vpop.f32.mrb[0].mxu0
      %738 = vmatprep.mubr.bf16.mxu0 0
      %739 = vmatmul.mubr.bf16.gmra.mrb[0].mxu0 %v639
      %v740 = vpop.f32.mrb[0].mxu0
      %v741 = vadd.f32 0.0, %v740
      %v742 = vpop.f32.mrb[0].mxu0
      %v743 = vpop.f32.mrb[0].mxu0
      %v744 = vadd.f32 0.0, %v743
      %v745 = vpop.f32.mrb[0].mxu0
      %746 = vmatprep.mubr.bf16.mxu0 0
      %747 = vmatmul.mubr.bf16.gmra.mrb[0].mxu0 %v642
      %v748 = vpop.f32.mrb[0].mxu0
      %v749 = vadd.f32 0.0, %v748
      %v750 = vpop.f32.mrb[0].mxu0
      %v751 = vpop.f32.mrb[0].mxu0
      %v752 = vadd.f32 0.0, %v751
      %v753 = vpop.f32.mrb[0].mxu0
      %754 = vmatprep.mubr.bf16.mxu0 0
      %755 = vmatmul.mubr.bf16.gmra.mrb[0].mxu0 %v645
      %v756 = vpop.f32.mrb[0].mxu0
      %v757 = vadd.f32 0.0, %v756
      %v758 = vpop.f32.mrb[0].mxu0
      %v759 = vpop.f32.mrb[0].mxu0
      %v760 = vadd.f32 0.0, %v759
      %v761 = vpop.f32.mrb[0].mxu0
      %762 = vmatprep.mubr.bf16.mxu0 0
      %763 = vmatmul.mubr.bf16.gmra.mrb[0].mxu0 %v648
      %v764 = vpop.f32.mrb[0].mxu0
      %v765 = vadd.f32 0.0, %v764
      %v766 = vpop.f32.mrb[0].mxu0
      %v767 = vpop.f32.mrb[0].mxu0
      %v768 = vadd.f32 0.0, %v767
      %v769 = vpop.f32.mrb[0].mxu0
      %770 = vmatprep.mubr.bf16.mxu0 0
      %771 = vmatmul.mubr.bf16.gmra.mrb[0].mxu0 %v651
      %v772 = vpop.f32.mrb[0].mxu0
      %v773 = vadd.f32 0.0, %v772
      %v774 = vpop.f32.mrb[0].mxu0
      %v775 = vpop.f32.mrb[0].mxu0
      %v776 = vadd.f32 0.0, %v775
      %v777 = vpop.f32.mrb[0].mxu0
      %778 = vmatprep.mubr.bf16.mxu0 0
      %779 = vmatmul.mubr.bf16.gmra.mrb[0].mxu0 %v654
      %v780 = vpop.f32.mrb[0].mxu0
      %v781 = vadd.f32 0.0, %v780
      %v782 = vpop.f32.mrb[0].mxu0
      %v783 = vpop.f32.mrb[0].mxu0
      %v784 = vadd.f32 0.0, %v783
      %v785 = vpop.f32.mrb[0].mxu0
      %786 = vmatprep.mubr.bf16.mxu0 0
      %787 = vmatmul.mubr.bf16.gmra.mrb[0].mxu0 %v657
      %v788 = vpop.f32.mrb[0].mxu0
      %v789 = vadd.f32 0.0, %v788
      %v790 = vpop.f32.mrb[0].mxu0
      %v791 = vpop.f32.mrb[0].mxu0
      %v792 = vadd.f32 0.0, %v791
      %v793 = vpop.f32.mrb[0].mxu0
      %794 = vmatprep.mubr.bf16.mxu0 0
      %795 = vmatmul.mubr.bf16.gmra.mrb[0].mxu0 %v660
      %v796 = vpop.f32.mrb[0].mxu0
      %v797 = vadd.f32 0.0, %v796
      %v798 = vpop.f32.mrb[0].mxu0
      %v799 = vpop.f32.mrb[0].mxu0
      %v800 = vadd.f32 0.0, %v799
      %v801 = vpop.f32.mrb[0].mxu0
      %802 = vmatprep.mubr.bf16.mxu0 0
      %803 = vmatmul.mubr.bf16.gmra.mrb[0].mxu0 %v663
      %v804 = vpop.f32.mrb[0].mxu0
      %v805 = vadd.f32 0.0, %v804
      %v806 = vpop.f32.mrb[0].mxu0
      %v807 = vpop.f32.mrb[0].mxu0
      %v808 = vadd.f32 0.0, %v807
      %v809 = vpop.f32.mrb[0].mxu0
      %810 = vmatprep.mubr.bf16.mxu0 0
      %811 = vmatmul.mubr.bf16.gmra.mrb[0].mxu0 %v666
      %v812 = vpop.f32.mrb[0].mxu0
      %v813 = vadd.f32 0.0, %v812
      %v814 = vpop.f32.mrb[0].mxu0
      %v815 = vpop.f32.mrb[0].mxu0
      %v816 = vadd.f32 0.0, %v815
      %v817 = vpop.f32.mrb[0].mxu0
      %818 = vmatprep.mubr.bf16.mxu0 0
      %819 = vmatmul.mubr.bf16.gmra.mrb[0].mxu0 %v669
      %v820 = vpop.f32.mrb[0].mxu0
      %v821 = vadd.f32 0.0, %v820
      %v822 = vpop.f32.mrb[0].mxu0
      %v823 = vpop.f32.mrb[0].mxu0
      %v824 = vadd.f32 0.0, %v823
      %v825 = vpop.f32.mrb[0].mxu0
      %826 = vmatprep.mubr.bf16.mxu0 0
      %827 = vmatmul.mubr.bf16.gmra.mrb[0].mxu0 %v672
      %v828 = vpop.f32.mrb[0].mxu0
      %v829 = vadd.f32 0.0, %v828
      %v830 = vpop.f32.mrb[0].mxu0
      %v831 = vpop.f32.mrb[0].mxu0
      %v832 = vadd.f32 0.0, %v831
      %v833 = vpop.f32.mrb[0].mxu0
      %834 = vdwg.mxu0
      %v837 = vunpack.c.l.b16 %v567
      %v838 = vunpack.c.l.b16 %v568
      %v839 = vpack.c.b16 %v838, %v837
      %v842 = vsel %vm270, %v551, 0
      %v845 = vsel %vm270, %v552, 0
      %v848 = vsel %vm270, %v553, 0
      %v851 = vsel %vm270, %v554, 0
      %v854 = vsel %vm270, %v555, 0
      %v857 = vsel %vm270, %v556, 0
      %v860 = vsel %vm270, %v557, 0
      %v863 = vsel %vm270, %v558, 0
      %v866 = vsel %vm270, %v559, 0
      %v869 = vsel %vm270, %v560, 0
      %v872 = vsel %vm270, %v561, 0
      %v875 = vsel %vm270, %v562, 0
      %v878 = vsel %vm270, %v563, 0
      %v881 = vsel %vm270, %v564, 0
      %v884 = vsel %vm270, %v565, 0
      %v887 = vsel %vm270, %v566, 0
      %889 = vmatprep.subr.bf16.mxu0 0
      %890 = vmatpush1.bf16.msra.mxu0 %v839
      %891 = vmatprep.subr.bf16.mxu0 0
      %892 = vmatpush1.bf16.msra.mxu0 0
      %893 = vmatprep.subr.bf16.mxu0 0
      %894 = vmatpush1.bf16.msra.mxu0 0
      %895 = vmatprep.subr.bf16.mxu0 0
      %896 = vmatpush1.bf16.msra.mxu0 0
      %897 = vmatprep.subr.bf16.mxu0 0
      %898 = vmatpush1.bf16.msra.mxu0 0
      %899 = vmatprep.subr.bf16.mxu0 0
      %900 = vmatpush1.bf16.msra.mxu0 0
      %901 = vmatprep.subr.bf16.mxu0 0
      %902 = vmatpush1.bf16.msra.mxu0 0
      %903 = vmatprep.subr.bf16.mxu0 0
      %904 = vmatpush1.bf16.msra.mxu0 0
      %905 = vmatprep.subr.bf16.mxu0 0
      %906 = vmatpush1.bf16.msra.mxu0 0
      %907 = vmatprep.subr.bf16.mxu0 0
      %908 = vmatpush1.bf16.msra.mxu0 0
      %909 = vmatprep.subr.bf16.mxu0 0
      %910 = vmatpush1.bf16.msra.mxu0 0
      %911 = vmatprep.subr.bf16.mxu0 0
      %912 = vmatpush1.bf16.msra.mxu0 0
      %913 = vmatprep.subr.bf16.mxu0 0
      %914 = vmatpush1.bf16.msra.mxu0 0
      %915 = vmatprep.subr.bf16.mxu0 0
      %916 = vmatpush1.bf16.msra.mxu0 0
      %917 = vmatprep.subr.bf16.mxu0 0
      %918 = vmatpush1.bf16.msra.mxu0 0
      %919 = vmatprep.subr.bf16.mxu0 0
      %920 = vmatpush1.bf16.msra.mxu0 0
      %921 = vmatprep.mubr.bf16.mxu0 0
      %922 = vmatmul.mubr.bf16.gmra.mrb[0].mxu0 %v842
      %v923 = vpop.f32.mrb[0].mxu0
      %v924 = vadd.f32 %v709, %v923
      %v925 = vpop.f32.mrb[0].mxu0
      %v926 = vpop.f32.mrb[0].mxu0
      %v927 = vadd.f32 %v712, %v926
      %v928 = vpop.f32.mrb[0].mxu0
      %929 = vmatprep.mubr.bf16.mxu0 0
      %930 = vmatmul.mubr.bf16.gmra.mrb[0].mxu0 %v845
      %v931 = vpop.f32.mrb[0].mxu0
      %v932 = vadd.f32 %v717, %v931
      %v933 = vpop.f32.mrb[0].mxu0
      %v934 = vpop.f32.mrb[0].mxu0
      %v935 = vadd.f32 %v720, %v934
      %v936 = vpop.f32.mrb[0].mxu0
      %937 = vmatprep.mubr.bf16.mxu0 0
      %938 = vmatmul.mubr.bf16.gmra.mrb[0].mxu0 %v848
      %v939 = vpop.f32.mrb[0].mxu0
      %v940 = vadd.f32 %v725, %v939
      %v941 = vpop.f32.mrb[0].mxu0
      %v942 = vpop.f32.mrb[0].mxu0
      %v943 = vadd.f32 %v728, %v942
      %v944 = vpop.f32.mrb[0].mxu0
      %945 = vmatprep.mubr.bf16.mxu0 0
      %946 = vmatmul.mubr.bf16.gmra.mrb[0].mxu0 %v851
      %v947 = vpop.f32.mrb[0].mxu0
      %v948 = vadd.f32 %v733, %v947
      %v949 = vpop.f32.mrb[0].mxu0
      %v950 = vpop.f32.mrb[0].mxu0
      %v951 = vadd.f32 %v736, %v950
      %v952 = vpop.f32.mrb[0].mxu0
      %953 = vmatprep.mubr.bf16.mxu0 0
      %954 = vmatmul.mubr.bf16.gmra.mrb[0].mxu0 %v854
      %v955 = vpop.f32.mrb[0].mxu0
      %v956 = vadd.f32 %v741, %v955
      %v957 = vpop.f32.mrb[0].mxu0
      %v958 = vpop.f32.mrb[0].mxu0
      %v959 = vadd.f32 %v744, %v958
      %v960 = vpop.f32.mrb[0].mxu0
      %961 = vmatprep.mubr.bf16.mxu0 0
      %962 = vmatmul.mubr.bf16.gmra.mrb[0].mxu0 %v857
      %v963 = vpop.f32.mrb[0].mxu0
      %v964 = vadd.f32 %v749, %v963
      %v965 = vpop.f32.mrb[0].mxu0
      %v966 = vpop.f32.mrb[0].mxu0
      %v967 = vadd.f32 %v752, %v966
      %v968 = vpop.f32.mrb[0].mxu0
      %969 = vmatprep.mubr.bf16.mxu0 0
      %970 = vmatmul.mubr.bf16.gmra.mrb[0].mxu0 %v860
      %v971 = vpop.f32.mrb[0].mxu0
      %v972 = vadd.f32 %v757, %v971
      %v973 = vpop.f32.mrb[0].mxu0
      %v974 = vpop.f32.mrb[0].mxu0
      %v975 = vadd.f32 %v760, %v974
      %v976 = vpop.f32.mrb[0].mxu0
      %977 = vmatprep.mubr.bf16.mxu0 0
      %978 = vmatmul.mubr.bf16.gmra.mrb[0].mxu0 %v863
      %v979 = vpop.f32.mrb[0].mxu0
      %v980 = vadd.f32 %v765, %v979
      %v981 = vpop.f32.mrb[0].mxu0
      %v982 = vpop.f32.mrb[0].mxu0
      %v983 = vadd.f32 %v768, %v982
      %v984 = vpop.f32.mrb[0].mxu0
      %985 = vmatprep.mubr.bf16.mxu0 0
      %986 = vmatmul.mubr.bf16.gmra.mrb[0].mxu0 %v866
      %v987 = vpop.f32.mrb[0].mxu0
      %v988 = vadd.f32 %v773, %v987
      %v989 = vpop.f32.mrb[0].mxu0
      %v990 = vpop.f32.mrb[0].mxu0
      %v991 = vadd.f32 %v776, %v990
      %v992 = vpop.f32.mrb[0].mxu0
      %993 = vmatprep.mubr.bf16.mxu0 0
      %994 = vmatmul.mubr.bf16.gmra.mrb[0].mxu0 %v869
      %v995 = vpop.f32.mrb[0].mxu0
      %v996 = vadd.f32 %v781, %v995
      %v997 = vpop.f32.mrb[0].mxu0
      %v998 = vpop.f32.mrb[0].mxu0
      %v999 = vadd.f32 %v784, %v998
      %v1000 = vpop.f32.mrb[0].mxu0
      %1001 = vmatprep.mubr.bf16.mxu0 0
      %1002 = vmatmul.mubr.bf16.gmra.mrb[0].mxu0 %v872
      %v1003 = vpop.f32.mrb[0].mxu0
      %v1004 = vadd.f32 %v789, %v1003
      %v1005 = vpop.f32.mrb[0].mxu0
      %v1006 = vpop.f32.mrb[0].mxu0
      %v1007 = vadd.f32 %v792, %v1006
      %v1008 = vpop.f32.mrb[0].mxu0
      %1009 = vmatprep.mubr.bf16.mxu0 0
      %1010 = vmatmul.mubr.bf16.gmra.mrb[0].mxu0 %v875
      %v1011 = vpop.f32.mrb[0].mxu0
      %v1012 = vadd.f32 %v797, %v1011
      %v1013 = vpop.f32.mrb[0].mxu0
      %v1014 = vpop.f32.mrb[0].mxu0
      %v1015 = vadd.f32 %v800, %v1014
      %v1016 = vpop.f32.mrb[0].mxu0
      %1017 = vmatprep.mubr.bf16.mxu0 0
      %1018 = vmatmul.mubr.bf16.gmra.mrb[0].mxu0 %v878
      %v1019 = vpop.f32.mrb[0].mxu0
      %v1020 = vadd.f32 %v805, %v1019
      %v1021 = vpop.f32.mrb[0].mxu0
      %v1022 = vpop.f32.mrb[0].mxu0
      %v1023 = vadd.f32 %v808, %v1022
      %v1024 = vpop.f32.mrb[0].mxu0
      %1025 = vmatprep.mubr.bf16.mxu0 0
      %1026 = vmatmul.mubr.bf16.gmra.mrb[0].mxu0 %v881
      %v1027 = vpop.f32.mrb[0].mxu0
      %v1028 = vadd.f32 %v813, %v1027
      %v1029 = vpop.f32.mrb[0].mxu0
      %v1030 = vpop.f32.mrb[0].mxu0
      %v1031 = vadd.f32 %v816, %v1030
      %v1032 = vpop.f32.mrb[0].mxu0
      %1033 = vmatprep.mubr.bf16.mxu0 0
      %1034 = vmatmul.mubr.bf16.gmra.mrb[0].mxu0 %v884
      %v1035 = vpop.f32.mrb[0].mxu0
      %v1036 = vadd.f32 %v821, %v1035
      %v1037 = vpop.f32.mrb[0].mxu0
      %v1038 = vpop.f32.mrb[0].mxu0
      %v1039 = vadd.f32 %v824, %v1038
      %v1040 = vpop.f32.mrb[0].mxu0
      %1041 = vmatprep.mubr.bf16.mxu0 0
      %1042 = vmatmul.mubr.bf16.gmra.mrb[0].mxu0 %v887
      %v1043 = vpop.f32.mrb[0].mxu0
      %v1044 = vadd.f32 %v829, %v1043
      %v1045 = vpop.f32.mrb[0].mxu0
      %v1046 = vpop.f32.mrb[0].mxu0
      %v1047 = vadd.f32 %v832, %v1046
      %v1048 = vpop.f32.mrb[0].mxu0
      %1049 = vdwg.mxu0
      %v1050 = vld [vmem:[#allocation2 + $0x2] sm:$0xff]
      %v1051 = vld [vmem:[#allocation2 + $0xa] sm:$0xff]
      %v1052 = vld [vmem:[#allocation2 + $0x1a] sm:$0xff]
      %v1053 = vld [vmem:[#allocation2 + $0x22] sm:$0xff]
      %v1054 = vld [vmem:[#allocation2 + $0x32] sm:$0xff]
      %v1055 = vld [vmem:[#allocation2 + $0x3a] sm:$0xff]
      %v1056 = vld [vmem:[#allocation2 + $0x4a] sm:$0xff]
      %v1057 = vld [vmem:[#allocation2 + $0x52] sm:$0xff]
      %v1058 = vld [vmem:[#allocation2 + $0x62] sm:$0xff]
      %v1059 = vld [vmem:[#allocation2 + $0x6a] sm:$0xff]
      %v1060 = vld [vmem:[#allocation2 + $0x7a] sm:$0xff]
      %v1061 = vld [vmem:[#allocation2 + $0x82] sm:$0xff]
      %v1062 = vld [vmem:[#allocation2 + $0x92] sm:$0xff]
      %v1063 = vld [vmem:[#allocation2 + $0x9a] sm:$0xff]
      %v1064 = vld [vmem:[#allocation2 + $0xaa] sm:$0xff]
      %v1065 = vld [vmem:[#allocation2 + $0xb2] sm:$0xff]
      %v1066 = vld [vmem:[#allocation2 + $0xc2] sm:$0xff]
      %v1067 = vld [vmem:[#allocation2 + $0xca] sm:$0xff]
      %v1068 = vld [vmem:[#allocation2 + $0xda] sm:$0xff]
      %v1069 = vld [vmem:[#allocation2 + $0xe2] sm:$0xff]
      %v1070 = vld [vmem:[#allocation2 + $0xf2] sm:$0xff]
      %v1071 = vld [vmem:[#allocation2 + $0xfa] sm:$0xff]
      %v1072 = vld [vmem:[#allocation2 + $0x10a] sm:$0xff]
      %v1073 = vld [vmem:[#allocation2 + $0x112] sm:$0xff]
      %v1074 = vld [vmem:[#allocation2 + $0x122] sm:$0xff]
      %v1075 = vld [vmem:[#allocation2 + $0x12a] sm:$0xff]
      %v1076 = vld [vmem:[#allocation2 + $0x13a] sm:$0xff]
      %v1077 = vld [vmem:[#allocation2 + $0x142] sm:$0xff]
      %v1078 = vld [vmem:[#allocation2 + $0x152] sm:$0xff]
      %v1079 = vld [vmem:[#allocation2 + $0x15a] sm:$0xff]
      %v1080 = vld [vmem:[#allocation2 + $0x16a] sm:$0xff]
      %v1081 = vld [vmem:[#allocation2 + $0x172] sm:$0xff]
      %v1082 = vpack.c.bf16 %v1051, %v1050
      %v1083 = vpack.c.bf16 %v1053, %v1052
      %v1084 = vpack.c.bf16 %v1055, %v1054
      %v1085 = vpack.c.bf16 %v1057, %v1056
      %v1086 = vpack.c.bf16 %v1059, %v1058
      %v1087 = vpack.c.bf16 %v1061, %v1060
      %v1088 = vpack.c.bf16 %v1063, %v1062
      %v1089 = vpack.c.bf16 %v1065, %v1064
      %v1090 = vpack.c.bf16 %v1067, %v1066
      %v1091 = vpack.c.bf16 %v1069, %v1068
      %v1092 = vpack.c.bf16 %v1071, %v1070
      %v1093 = vpack.c.bf16 %v1073, %v1072
      %v1094 = vpack.c.bf16 %v1075, %v1074
      %v1095 = vpack.c.bf16 %v1077, %v1076
      %v1096 = vpack.c.bf16 %v1079, %v1078
      %v1097 = vpack.c.bf16 %v1081, %v1080
      %s1098 = scalar_lea.vmem %s1, 16
      %v1099 = vld [vmem:[%s1098] sm:$0xf]
      %v1100 = vld [vmem:[%s1098 + $0x4] sm:$0xf]
      %v1103 = vunpack.c.l.b16 %v1099
      %v1104 = vunpack.c.l.b16 %v1100
      %v1105 = vpack.c.b16 %v1104, %v1103
      %v1108 = vsel %vm270, %v1082, 0
      %v1111 = vsel %vm270, %v1083, 0
      %v1114 = vsel %vm270, %v1084, 0
      %v1117 = vsel %vm270, %v1085, 0
      %v1120 = vsel %vm270, %v1086, 0
      %v1123 = vsel %vm270, %v1087, 0
      %v1126 = vsel %vm270, %v1088, 0
      %v1129 = vsel %vm270, %v1089, 0
      %v1132 = vsel %vm270, %v1090, 0
      %v1135 = vsel %vm270, %v1091, 0
      %v1138 = vsel %vm270, %v1092, 0
      %v1141 = vsel %vm270, %v1093, 0
      %v1144 = vsel %vm270, %v1094, 0
      %v1147 = vsel %vm270, %v1095, 0
      %v1150 = vsel %vm270, %v1096, 0
      %v1153 = vsel %vm270, %v1097, 0
      %1155 = vmatprep.subr.bf16.mxu0 0
      %1156 = vmatpush1.bf16.msra.mxu0 %v1105
      %1157 = vmatprep.subr.bf16.mxu0 0
      %1158 = vmatpush1.bf16.msra.mxu0 0
      %1159 = vmatprep.subr.bf16.mxu0 0
      %1160 = vmatpush1.bf16.msra.mxu0 0
      %1161 = vmatprep.subr.bf16.mxu0 0
      %1162 = vmatpush1.bf16.msra.mxu0 0
      %1163 = vmatprep.subr.bf16.mxu0 0
      %1164 = vmatpush1.bf16.msra.mxu0 0
      %1165 = vmatprep.subr.bf16.mxu0 0
      %1166 = vmatpush1.bf16.msra.mxu0 0
      %1167 = vmatprep.subr.bf16.mxu0 0
      %1168 = vmatpush1.bf16.msra.mxu0 0
      %1169 = vmatprep.subr.bf16.mxu0 0
      %1170 = vmatpush1.bf16.msra.mxu0 0
      %1171 = vmatprep.subr.bf16.mxu0 0
      %1172 = vmatpush1.bf16.msra.mxu0 0
      %1173 = vmatprep.subr.bf16.mxu0 0
      %1174 = vmatpush1.bf16.msra.mxu0 0
      %1175 = vmatprep.subr.bf16.mxu0 0
      %1176 = vmatpush1.bf16.msra.mxu0 0
      %1177 = vmatprep.subr.bf16.mxu0 0
      %1178 = vmatpush1.bf16.msra.mxu0 0
      %1179 = vmatprep.subr.bf16.mxu0 0
      %1180 = vmatpush1.bf16.msra.mxu0 0
      %1181 = vmatprep.subr.bf16.mxu0 0
      %1182 = vmatpush1.bf16.msra.mxu0 0
      %1183 = vmatprep.subr.bf16.mxu0 0
      %1184 = vmatpush1.bf16.msra.mxu0 0
      %1185 = vmatprep.subr.bf16.mxu0 0
      %1186 = vmatpush1.bf16.msra.mxu0 0
      %1187 = vmatprep.mubr.bf16.mxu0 0
      %1188 = vmatmul.mubr.bf16.gmra.mrb[0].mxu0 %v1108
      %v1189 = vpop.f32.mrb[0].mxu0
      %v1190 = vadd.f32 0.0, %v1189
      %v1191 = vpop.f32.mrb[0].mxu0
      %v1192 = vpop.f32.mrb[0].mxu0
      %v1193 = vadd.f32 0.0, %v1192
      %v1194 = vpop.f32.mrb[0].mxu0
      %1195 = vmatprep.mubr.bf16.mxu0 0
      %1196 = vmatmul.mubr.bf16.gmra.mrb[0].mxu0 %v1111
      %v1197 = vpop.f32.mrb[0].mxu0
      %v1198 = vadd.f32 0.0, %v1197
      %v1199 = vpop.f32.mrb[0].mxu0
      %v1200 = vpop.f32.mrb[0].mxu0
      %v1201 = vadd.f32 0.0, %v1200
      %v1202 = vpop.f32.mrb[0].mxu0
      %1203 = vmatprep.mubr.bf16.mxu0 0
      %1204 = vmatmul.mubr.bf16.gmra.mrb[0].mxu0 %v1114
      %v1205 = vpop.f32.mrb[0].mxu0
      %v1206 = vadd.f32 0.0, %v1205
      %v1207 = vpop.f32.mrb[0].mxu0
      %v1208 = vpop.f32.mrb[0].mxu0
      %v1209 = vadd.f32 0.0, %v1208
      %v1210 = vpop.f32.mrb[0].mxu0
      %1211 = vmatprep.mubr.bf16.mxu0 0
      %1212 = vmatmul.mubr.bf16.gmra.mrb[0].mxu0 %v1117
      %v1213 = vpop.f32.mrb[0].mxu0
      %v1214 = vadd.f32 0.0, %v1213
      %v1215 = vpop.f32.mrb[0].mxu0
      %v1216 = vpop.f32.mrb[0].mxu0
      %v1217 = vadd.f32 0.0, %v1216
      %v1218 = vpop.f32.mrb[0].mxu0
      %1219 = vmatprep.mubr.bf16.mxu0 0
      %1220 = vmatmul.mubr.bf16.gmra.mrb[0].mxu0 %v1120
      %v1221 = vpop.f32.mrb[0].mxu0
      %v1222 = vadd.f32 0.0, %v1221
      %v1223 = vpop.f32.mrb[0].mxu0
      %v1224 = vpop.f32.mrb[0].mxu0
      %v1225 = vadd.f32 0.0, %v1224
      %v1226 = vpop.f32.mrb[0].mxu0
      %1227 = vmatprep.mubr.bf16.mxu0 0
      %1228 = vmatmul.mubr.bf16.gmra.mrb[0].mxu0 %v1123
      %v1229 = vpop.f32.mrb[0].mxu0
      %v1230 = vadd.f32 0.0, %v1229
      %v1231 = vpop.f32.mrb[0].mxu0
      %v1232 = vpop.f32.mrb[0].mxu0
      %v1233 = vadd.f32 0.0, %v1232
      %v1234 = vpop.f32.mrb[0].mxu0
      %1235 = vmatprep.mubr.bf16.mxu0 0
      %1236 = vmatmul.mubr.bf16.gmra.mrb[0].mxu0 %v1126
      %v1237 = vpop.f32.mrb[0].mxu0
      %v1238 = vadd.f32 0.0, %v1237
      %v1239 = vpop.f32.mrb[0].mxu0
      %v1240 = vpop.f32.mrb[0].mxu0
      %v1241 = vadd.f32 0.0, %v1240
      %v1242 = vpop.f32.mrb[0].mxu0
      %1243 = vmatprep.mubr.bf16.mxu0 0
      %1244 = vmatmul.mubr.bf16.gmra.mrb[0].mxu0 %v1129
      %v1245 = vpop.f32.mrb[0].mxu0
      %v1246 = vadd.f32 0.0, %v1245
      %v1247 = vpop.f32.mrb[0].mxu0
      %v1248 = vpop.f32.mrb[0].mxu0
      %v1249 = vadd.f32 0.0, %v1248
      %v1250 = vpop.f32.mrb[0].mxu0
      %1251 = vmatprep.mubr.bf16.mxu0 0
      %1252 = vmatmul.mubr.bf16.gmra.mrb[0].mxu0 %v1132
      %v1253 = vpop.f32.mrb[0].mxu0
      %v1254 = vadd.f32 0.0, %v1253
      %v1255 = vpop.f32.mrb[0].mxu0
      %v1256 = vpop.f32.mrb[0].mxu0
      %v1257 = vadd.f32 0.0, %v1256
      %v1258 = vpop.f32.mrb[0].mxu0
      %1259 = vmatprep.mubr.bf16.mxu0 0
      %1260 = vmatmul.mubr.bf16.gmra.mrb[0].mxu0 %v1135
      %v1261 = vpop.f32.mrb[0].mxu0
      %v1262 = vadd.f32 0.0, %v1261
      %v1263 = vpop.f32.mrb[0].mxu0
      %v1264 = vpop.f32.mrb[0].mxu0
      %v1265 = vadd.f32 0.0, %v1264
      %v1266 = vpop.f32.mrb[0].mxu0
      %1267 = vmatprep.mubr.bf16.mxu0 0
      %1268 = vmatmul.mubr.bf16.gmra.mrb[0].mxu0 %v1138
      %v1269 = vpop.f32.mrb[0].mxu0
      %v1270 = vadd.f32 0.0, %v1269
      %v1271 = vpop.f32.mrb[0].mxu0
      %v1272 = vpop.f32.mrb[0].mxu0
      %v1273 = vadd.f32 0.0, %v1272
      %v1274 = vpop.f32.mrb[0].mxu0
      %1275 = vmatprep.mubr.bf16.mxu0 0
      %1276 = vmatmul.mubr.bf16.gmra.mrb[0].mxu0 %v1141
      %v1277 = vpop.f32.mrb[0].mxu0
      %v1278 = vadd.f32 0.0, %v1277
      %v1279 = vpop.f32.mrb[0].mxu0
      %v1280 = vpop.f32.mrb[0].mxu0
      %v1281 = vadd.f32 0.0, %v1280
      %v1282 = vpop.f32.mrb[0].mxu0
      %1283 = vmatprep.mubr.bf16.mxu0 0
      %1284 = vmatmul.mubr.bf16.gmra.mrb[0].mxu0 %v1144
      %v1285 = vpop.f32.mrb[0].mxu0
      %v1286 = vadd.f32 0.0, %v1285
      %v1287 = vpop.f32.mrb[0].mxu0
      %v1288 = vpop.f32.mrb[0].mxu0
      %v1289 = vadd.f32 0.0, %v1288
      %v1290 = vpop.f32.mrb[0].mxu0
      %1291 = vmatprep.mubr.bf16.mxu0 0
      %1292 = vmatmul.mubr.bf16.gmra.mrb[0].mxu0 %v1147
      %v1293 = vpop.f32.mrb[0].mxu0
      %v1294 = vadd.f32 0.0, %v1293
      %v1295 = vpop.f32.mrb[0].mxu0
      %v1296 = vpop.f32.mrb[0].mxu0
      %v1297 = vadd.f32 0.0, %v1296
      %v1298 = vpop.f32.mrb[0].mxu0
      %1299 = vmatprep.mubr.bf16.mxu0 0
      %1300 = vmatmul.mubr.bf16.gmra.mrb[0].mxu0 %v1150
      %v1301 = vpop.f32.mrb[0].mxu0
      %v1302 = vadd.f32 0.0, %v1301
      %v1303 = vpop.f32.mrb[0].mxu0
      %v1304 = vpop.f32.mrb[0].mxu0
      %v1305 = vadd.f32 0.0, %v1304
      %v1306 = vpop.f32.mrb[0].mxu0
      %1307 = vmatprep.mubr.bf16.mxu0 0
      %1308 = vmatmul.mubr.bf16.gmra.mrb[0].mxu0 %v1153
      %v1309 = vpop.f32.mrb[0].mxu0
      %v1310 = vadd.f32 0.0, %v1309
      %v1311 = vpop.f32.mrb[0].mxu0
      %v1312 = vpop.f32.mrb[0].mxu0
      %v1313 = vadd.f32 0.0, %v1312
      %v1314 = vpop.f32.mrb[0].mxu0
      %1315 = vdwg.mxu0
      %v1316 = vadd.f32 %v924, %v1190
      %v1317 = vadd.f32 %v927, %v1193
      %v1318 = vadd.f32 %v932, %v1198
      %v1319 = vadd.f32 %v935, %v1201
      %v1320 = vadd.f32 %v940, %v1206
      %v1321 = vadd.f32 %v943, %v1209
      %v1322 = vadd.f32 %v948, %v1214
      %v1323 = vadd.f32 %v951, %v1217
      %v1324 = vadd.f32 %v956, %v1222
      %v1325 = vadd.f32 %v959, %v1225
      %v1326 = vadd.f32 %v964, %v1230
      %v1327 = vadd.f32 %v967, %v1233
      %v1328 = vadd.f32 %v972, %v1238
      %v1329 = vadd.f32 %v975, %v1241
      %v1330 = vadd.f32 %v980, %v1246
      %v1331 = vadd.f32 %v983, %v1249
      %v1332 = vadd.f32 %v988, %v1254
      %v1333 = vadd.f32 %v991, %v1257
      %v1334 = vadd.f32 %v996, %v1262
      %v1335 = vadd.f32 %v999, %v1265
      %v1336 = vadd.f32 %v1004, %v1270
      %v1337 = vadd.f32 %v1007, %v1273
      %v1338 = vadd.f32 %v1012, %v1278
      %v1339 = vadd.f32 %v1015, %v1281
      %v1340 = vadd.f32 %v1020, %v1286
      %v1341 = vadd.f32 %v1023, %v1289
      %v1342 = vadd.f32 %v1028, %v1294
      %v1343 = vadd.f32 %v1031, %v1297
      %v1344 = vadd.f32 %v1036, %v1302
      %v1345 = vadd.f32 %v1039, %v1305
      %v1346 = vadd.f32 %v1044, %v1310
      %v1347 = vadd.f32 %v1047, %v1313
      %v1348 = vld [vmem:[%s279] sm:$0xff]
      %v1349 = vld [vmem:[%s279 + $0x8] sm:$0xff]
      %v1350 = vld [vmem:[%s279 + $0x18] sm:$0xff]
      %v1351 = vld [vmem:[%s279 + $0x20] sm:$0xff]
      %v1352 = vld [vmem:[%s279 + $0x30] sm:$0xff]
      %v1353 = vld [vmem:[%s279 + $0x38] sm:$0xff]
      %v1354 = vld [vmem:[%s279 + $0x48] sm:$0xff]
      %v1355 = vld [vmem:[%s279 + $0x50] sm:$0xff]
      %v1356 = vld [vmem:[%s279 + $0x60] sm:$0xff]
      %v1357 = vld [vmem:[%s279 + $0x68] sm:$0xff]
      %v1358 = vld [vmem:[%s279 + $0x78] sm:$0xff]
      %v1359 = vld [vmem:[%s279 + $0x80] sm:$0xff]
      %v1360 = vld [vmem:[%s279 + $0x90] sm:$0xff]
      %v1361 = vld [vmem:[%s279 + $0x98] sm:$0xff]
      %v1362 = vld [vmem:[%s279 + $0xa8] sm:$0xff]
      %v1363 = vld [vmem:[%s279 + $0xb0] sm:$0xff]
      %v1364 = vld [vmem:[%s279 + $0xc0] sm:$0xff]
      %v1365 = vld [vmem:[%s279 + $0xc8] sm:$0xff]
      %v1366 = vld [vmem:[%s279 + $0xd8] sm:$0xff]
      %v1367 = vld [vmem:[%s279 + $0xe0] sm:$0xff]
      %v1368 = vld [vmem:[%s279 + $0xf0] sm:$0xff]
      %v1369 = vld [vmem:[%s279 + $0xf8] sm:$0xff]
      %v1370 = vld [vmem:[%s279 + $0x108] sm:$0xff]
      %v1371 = vld [vmem:[%s279 + $0x110] sm:$0xff]
      %v1372 = vld [vmem:[%s279 + $0x120] sm:$0xff]
      %v1373 = vld [vmem:[%s279 + $0x128] sm:$0xff]
      %v1374 = vld [vmem:[%s279 + $0x138] sm:$0xff]
      %v1375 = vld [vmem:[%s279 + $0x140] sm:$0xff]
      %v1376 = vld [vmem:[%s279 + $0x150] sm:$0xff]
      %v1377 = vld [vmem:[%s279 + $0x158] sm:$0xff]
      %v1378 = vld [vmem:[%s279 + $0x168] sm:$0xff]
      %v1379 = vld [vmem:[%s279 + $0x170] sm:$0xff]
      %v1380 = vpack.c.bf16 %v1349, %v1348
      %v1381 = vpack.c.bf16 %v1351, %v1350
      %v1382 = vpack.c.bf16 %v1353, %v1352
      %v1383 = vpack.c.bf16 %v1355, %v1354
      %v1384 = vpack.c.bf16 %v1357, %v1356
      %v1385 = vpack.c.bf16 %v1359, %v1358
      %v1386 = vpack.c.bf16 %v1361, %v1360
      %v1387 = vpack.c.bf16 %v1363, %v1362
      %v1388 = vpack.c.bf16 %v1365, %v1364
      %v1389 = vpack.c.bf16 %v1367, %v1366
      %v1390 = vpack.c.bf16 %v1369, %v1368
      %v1391 = vpack.c.bf16 %v1371, %v1370
      %v1392 = vpack.c.bf16 %v1373, %v1372
      %v1393 = vpack.c.bf16 %v1375, %v1374
      %v1394 = vpack.c.bf16 %v1377, %v1376
      %v1395 = vpack.c.bf16 %v1379, %v1378
      %s1396 = scalar_lea.vmem %s1, 24
      %v1397 = vld [vmem:[%s1396] sm:$0xf]
      %v1398 = vld [vmem:[%s1396 + $0x4] sm:$0xf]
      %v1401 = vunpack.c.l.b16 %v1397
      %v1402 = vunpack.c.l.b16 %v1398
      %v1403 = vpack.c.b16 %v1402, %v1401
      %v1406 = vsel %vm270, %v1380, 0
      %v1409 = vsel %vm270, %v1381, 0
      %v1412 = vsel %vm270, %v1382, 0
      %v1415 = vsel %vm270, %v1383, 0
      %v1418 = vsel %vm270, %v1384, 0
      %v1421 = vsel %vm270, %v1385, 0
      %v1424 = vsel %vm270, %v1386, 0
      %v1427 = vsel %vm270, %v1387, 0
      %v1430 = vsel %vm270, %v1388, 0
      %v1433 = vsel %vm270, %v1389, 0
      %v1436 = vsel %vm270, %v1390, 0
      %v1439 = vsel %vm270, %v1391, 0
      %v1442 = vsel %vm270, %v1392, 0
      %v1445 = vsel %vm270, %v1393, 0
      %v1448 = vsel %vm270, %v1394, 0
      %v1451 = vsel %vm270, %v1395, 0
      %1453 = vmatprep.subr.bf16.mxu0 0
      %1454 = vmatpush1.bf16.msra.mxu0 %v1403
      %1455 = vmatprep.subr.bf16.mxu0 0
      %1456 = vmatpush1.bf16.msra.mxu0 0
      %1457 = vmatprep.subr.bf16.mxu0 0
      %1458 = vmatpush1.bf16.msra.mxu0 0
      %1459 = vmatprep.subr.bf16.mxu0 0
      %1460 = vmatpush1.bf16.msra.mxu0 0
      %1461 = vmatprep.subr.bf16.mxu0 0
      %1462 = vmatpush1.bf16.msra.mxu0 0
      %1463 = vmatprep.subr.bf16.mxu0 0
      %1464 = vmatpush1.bf16.msra.mxu0 0
      %1465 = vmatprep.subr.bf16.mxu0 0
      %1466 = vmatpush1.bf16.msra.mxu0 0
      %1467 = vmatprep.subr.bf16.mxu0 0
      %1468 = vmatpush1.bf16.msra.mxu0 0
      %1469 = vmatprep.subr.bf16.mxu0 0
      %1470 = vmatpush1.bf16.msra.mxu0 0
      %1471 = vmatprep.subr.bf16.mxu0 0
      %1472 = vmatpush1.bf16.msra.mxu0 0
      %1473 = vmatprep.subr.bf16.mxu0 0
      %1474 = vmatpush1.bf16.msra.mxu0 0
      %1475 = vmatprep.subr.bf16.mxu0 0
      %1476 = vmatpush1.bf16.msra.mxu0 0
      %1477 = vmatprep.subr.bf16.mxu0 0
      %1478 = vmatpush1.bf16.msra.mxu0 0
      %1479 = vmatprep.subr.bf16.mxu0 0
      %1480 = vmatpush1.bf16.msra.mxu0 0
      %1481 = vmatprep.subr.bf16.mxu0 0
      %1482 = vmatpush1.bf16.msra.mxu0 0
      %1483 = vmatprep.subr.bf16.mxu0 0
      %1484 = vmatpush1.bf16.msra.mxu0 0
      %1485 = vmatprep.mubr.bf16.mxu0 0
      %1486 = vmatmul.mubr.bf16.gmra.mrb[0].mxu0 %v1406
      %v1487 = vpop.f32.mrb[0].mxu0
      %v1488 = vadd.f32 0.0, %v1487
      %v1489 = vpop.f32.mrb[0].mxu0
      %v1490 = vpop.f32.mrb[0].mxu0
      %v1491 = vadd.f32 0.0, %v1490
      %v1492 = vpop.f32.mrb[0].mxu0
      %1493 = vmatprep.mubr.bf16.mxu0 0
      %1494 = vmatmul.mubr.bf16.gmra.mrb[0].mxu0 %v1409
      %v1495 = vpop.f32.mrb[0].mxu0
      %v1496 = vadd.f32 0.0, %v1495
      %v1497 = vpop.f32.mrb[0].mxu0
      %v1498 = vpop.f32.mrb[0].mxu0
      %v1499 = vadd.f32 0.0, %v1498
      %v1500 = vpop.f32.mrb[0].mxu0
      %1501 = vmatprep.mubr.bf16.mxu0 0
      %1502 = vmatmul.mubr.bf16.gmra.mrb[0].mxu0 %v1412
      %v1503 = vpop.f32.mrb[0].mxu0
      %v1504 = vadd.f32 0.0, %v1503
      %v1505 = vpop.f32.mrb[0].mxu0
      %v1506 = vpop.f32.mrb[0].mxu0
      %v1507 = vadd.f32 0.0, %v1506
      %v1508 = vpop.f32.mrb[0].mxu0
      %1509 = vmatprep.mubr.bf16.mxu0 0
      %1510 = vmatmul.mubr.bf16.gmra.mrb[0].mxu0 %v1415
      %v1511 = vpop.f32.mrb[0].mxu0
      %v1512 = vadd.f32 0.0, %v1511
      %v1513 = vpop.f32.mrb[0].mxu0
      %v1514 = vpop.f32.mrb[0].mxu0
      %v1515 = vadd.f32 0.0, %v1514
      %v1516 = vpop.f32.mrb[0].mxu0
      %1517 = vmatprep.mubr.bf16.mxu0 0
      %1518 = vmatmul.mubr.bf16.gmra.mrb[0].mxu0 %v1418
      %v1519 = vpop.f32.mrb[0].mxu0
      %v1520 = vadd.f32 0.0, %v1519
      %v1521 = vpop.f32.mrb[0].mxu0
      %v1522 = vpop.f32.mrb[0].mxu0
      %v1523 = vadd.f32 0.0, %v1522
      %v1524 = vpop.f32.mrb[0].mxu0
      %1525 = vmatprep.mubr.bf16.mxu0 0
      %1526 = vmatmul.mubr.bf16.gmra.mrb[0].mxu0 %v1421
      %v1527 = vpop.f32.mrb[0].mxu0
      %v1528 = vadd.f32 0.0, %v1527
      %v1529 = vpop.f32.mrb[0].mxu0
      %v1530 = vpop.f32.mrb[0].mxu0
      %v1531 = vadd.f32 0.0, %v1530
      %v1532 = vpop.f32.mrb[0].mxu0
      %1533 = vmatprep.mubr.bf16.mxu0 0
      %1534 = vmatmul.mubr.bf16.gmra.mrb[0].mxu0 %v1424
      %v1535 = vpop.f32.mrb[0].mxu0
      %v1536 = vadd.f32 0.0, %v1535
      %v1537 = vpop.f32.mrb[0].mxu0
      %v1538 = vpop.f32.mrb[0].mxu0
      %v1539 = vadd.f32 0.0, %v1538
      %v1540 = vpop.f32.mrb[0].mxu0
      %1541 = vmatprep.mubr.bf16.mxu0 0
      %1542 = vmatmul.mubr.bf16.gmra.mrb[0].mxu0 %v1427
      %v1543 = vpop.f32.mrb[0].mxu0
      %v1544 = vadd.f32 0.0, %v1543
      %v1545 = vpop.f32.mrb[0].mxu0
      %v1546 = vpop.f32.mrb[0].mxu0
      %v1547 = vadd.f32 0.0, %v1546
      %v1548 = vpop.f32.mrb[0].mxu0
      %1549 = vmatprep.mubr.bf16.mxu0 0
      %1550 = vmatmul.mubr.bf16.gmra.mrb[0].mxu0 %v1430
      %v1551 = vpop.f32.mrb[0].mxu0
      %v1552 = vadd.f32 0.0, %v1551
      %v1553 = vpop.f32.mrb[0].mxu0
      %v1554 = vpop.f32.mrb[0].mxu0
      %v1555 = vadd.f32 0.0, %v1554
      %v1556 = vpop.f32.mrb[0].mxu0
      %1557 = vmatprep.mubr.bf16.mxu0 0
      %1558 = vmatmul.mubr.bf16.gmra.mrb[0].mxu0 %v1433
      %v1559 = vpop.f32.mrb[0].mxu0
      %v1560 = vadd.f32 0.0, %v1559
      %v1561 = vpop.f32.mrb[0].mxu0
      %v1562 = vpop.f32.mrb[0].mxu0
      %v1563 = vadd.f32 0.0, %v1562
      %v1564 = vpop.f32.mrb[0].mxu0
      %1565 = vmatprep.mubr.bf16.mxu0 0
      %1566 = vmatmul.mubr.bf16.gmra.mrb[0].mxu0 %v1436
      %v1567 = vpop.f32.mrb[0].mxu0
      %v1568 = vadd.f32 0.0, %v1567
      %v1569 = vpop.f32.mrb[0].mxu0
      %v1570 = vpop.f32.mrb[0].mxu0
      %v1571 = vadd.f32 0.0, %v1570
      %v1572 = vpop.f32.mrb[0].mxu0
      %1573 = vmatprep.mubr.bf16.mxu0 0
      %1574 = vmatmul.mubr.bf16.gmra.mrb[0].mxu0 %v1439
      %v1575 = vpop.f32.mrb[0].mxu0
      %v1576 = vadd.f32 0.0, %v1575
      %v1577 = vpop.f32.mrb[0].mxu0
      %v1578 = vpop.f32.mrb[0].mxu0
      %v1579 = vadd.f32 0.0, %v1578
      %v1580 = vpop.f32.mrb[0].mxu0
      %1581 = vmatprep.mubr.bf16.mxu0 0
      %1582 = vmatmul.mubr.bf16.gmra.mrb[0].mxu0 %v1442
      %v1583 = vpop.f32.mrb[0].mxu0
      %v1584 = vadd.f32 0.0, %v1583
      %v1585 = vpop.f32.mrb[0].mxu0
      %v1586 = vpop.f32.mrb[0].mxu0
      %v1587 = vadd.f32 0.0, %v1586
      %v1588 = vpop.f32.mrb[0].mxu0
      %1589 = vmatprep.mubr.bf16.mxu0 0
      %1590 = vmatmul.mubr.bf16.gmra.mrb[0].mxu0 %v1445
      %v1591 = vpop.f32.mrb[0].mxu0
      %v1592 = vadd.f32 0.0, %v1591
      %v1593 = vpop.f32.mrb[0].mxu0
      %v1594 = vpop.f32.mrb[0].mxu0
      %v1595 = vadd.f32 0.0, %v1594
      %v1596 = vpop.f32.mrb[0].mxu0
      %1597 = vmatprep.mubr.bf16.mxu0 0
      %1598 = vmatmul.mubr.bf16.gmra.mrb[0].mxu0 %v1448
      %v1599 = vpop.f32.mrb[0].mxu0
      %v1600 = vadd.f32 0.0, %v1599
      %v1601 = vpop.f32.mrb[0].mxu0
      %v1602 = vpop.f32.mrb[0].mxu0
      %v1603 = vadd.f32 0.0, %v1602
      %v1604 = vpop.f32.mrb[0].mxu0
      %1605 = vmatprep.mubr.bf16.mxu0 0
      %1606 = vmatmul.mubr.bf16.gmra.mrb[0].mxu0 %v1451
      %v1607 = vpop.f32.mrb[0].mxu0
      %v1608 = vadd.f32 0.0, %v1607
      %v1609 = vpop.f32.mrb[0].mxu0
      %v1610 = vpop.f32.mrb[0].mxu0
      %v1611 = vadd.f32 0.0, %v1610
      %v1612 = vpop.f32.mrb[0].mxu0
      %1613 = vdwg.mxu0
      %v1614 = vadd.f32 %v1316, %v1488
      %v1615 = vadd.f32 %v1317, %v1491
      %v1616 = vadd.f32 %v1318, %v1496
      %v1617 = vadd.f32 %v1319, %v1499
      %v1618 = vadd.f32 %v1320, %v1504
      %v1619 = vadd.f32 %v1321, %v1507
      %v1620 = vadd.f32 %v1322, %v1512
      %v1621 = vadd.f32 %v1323, %v1515
      %v1622 = vadd.f32 %v1324, %v1520
      %v1623 = vadd.f32 %v1325, %v1523
      %v1624 = vadd.f32 %v1326, %v1528
      %v1625 = vadd.f32 %v1327, %v1531
      %v1626 = vadd.f32 %v1328, %v1536
      %v1627 = vadd.f32 %v1329, %v1539
      %v1628 = vadd.f32 %v1330, %v1544
      %v1629 = vadd.f32 %v1331, %v1547
      %v1630 = vadd.f32 %v1332, %v1552
      %v1631 = vadd.f32 %v1333, %v1555
      %v1632 = vadd.f32 %v1334, %v1560
      %v1633 = vadd.f32 %v1335, %v1563
      %v1634 = vadd.f32 %v1336, %v1568
      %v1635 = vadd.f32 %v1337, %v1571
      %v1636 = vadd.f32 %v1338, %v1576
      %v1637 = vadd.f32 %v1339, %v1579
      %v1638 = vadd.f32 %v1340, %v1584
      %v1639 = vadd.f32 %v1341, %v1587
      %v1640 = vadd.f32 %v1342, %v1592
      %v1641 = vadd.f32 %v1343, %v1595
      %v1642 = vadd.f32 %v1344, %v1600
      %v1643 = vadd.f32 %v1345, %v1603
      %v1644 = vadd.f32 %v1346, %v1608
      %v1645 = vadd.f32 %v1347, %v1611
      %v1646 = vld [vmem:[%s279 + $0x1] sm:$0xff]
      %v1647 = vld [vmem:[%s279 + $0x9] sm:$0xff]
      %v1648 = vld [vmem:[%s279 + $0x19] sm:$0xff]
      %v1649 = vld [vmem:[%s279 + $0x21] sm:$0xff]
      %v1650 = vld [vmem:[%s279 + $0x31] sm:$0xff]
      %v1651 = vld [vmem:[%s279 + $0x39] sm:$0xff]
      %v1652 = vld [vmem:[%s279 + $0x49] sm:$0xff]
      %v1653 = vld [vmem:[%s279 + $0x51] sm:$0xff]
      %v1654 = vld [vmem:[%s279 + $0x61] sm:$0xff]
      %v1655 = vld [vmem:[%s279 + $0x69] sm:$0xff]
      %v1656 = vld [vmem:[%s279 + $0x79] sm:$0xff]
      %v1657 = vld [vmem:[%s279 + $0x81] sm:$0xff]
      %v1658 = vld [vmem:[%s279 + $0x91] sm:$0xff]
      %v1659 = vld [vmem:[%s279 + $0x99] sm:$0xff]
      %v1660 = vld [vmem:[%s279 + $0xa9] sm:$0xff]
      %v1661 = vld [vmem:[%s279 + $0xb1] sm:$0xff]
      %v1662 = vld [vmem:[%s279 + $0xc1] sm:$0xff]
      %v1663 = vld [vmem:[%s279 + $0xc9] sm:$0xff]
      %v1664 = vld [vmem:[%s279 + $0xd9] sm:$0xff]
      %v1665 = vld [vmem:[%s279 + $0xe1] sm:$0xff]
      %v1666 = vld [vmem:[%s279 + $0xf1] sm:$0xff]
      %v1667 = vld [vmem:[%s279 + $0xf9] sm:$0xff]
      %v1668 = vld [vmem:[%s279 + $0x109] sm:$0xff]
      %v1669 = vld [vmem:[%s279 + $0x111] sm:$0xff]
      %v1670 = vld [vmem:[%s279 + $0x121] sm:$0xff]
      %v1671 = vld [vmem:[%s279 + $0x129] sm:$0xff]
      %v1672 = vld [vmem:[%s279 + $0x139] sm:$0xff]
      %v1673 = vld [vmem:[%s279 + $0x141] sm:$0xff]
      %v1674 = vld [vmem:[%s279 + $0x151] sm:$0xff]
      %v1675 = vld [vmem:[%s279 + $0x159] sm:$0xff]
      %v1676 = vld [vmem:[%s279 + $0x169] sm:$0xff]
      %v1677 = vld [vmem:[%s279 + $0x171] sm:$0xff]
      %v1678 = vpack.c.bf16 %v1647, %v1646
      %v1679 = vpack.c.bf16 %v1649, %v1648
      %v1680 = vpack.c.bf16 %v1651, %v1650
      %v1681 = vpack.c.bf16 %v1653, %v1652
      %v1682 = vpack.c.bf16 %v1655, %v1654
      %v1683 = vpack.c.bf16 %v1657, %v1656
      %v1684 = vpack.c.bf16 %v1659, %v1658
      %v1685 = vpack.c.bf16 %v1661, %v1660
      %v1686 = vpack.c.bf16 %v1663, %v1662
      %v1687 = vpack.c.bf16 %v1665, %v1664
      %v1688 = vpack.c.bf16 %v1667, %v1666
      %v1689 = vpack.c.bf16 %v1669, %v1668
      %v1690 = vpack.c.bf16 %v1671, %v1670
      %v1691 = vpack.c.bf16 %v1673, %v1672
      %v1692 = vpack.c.bf16 %v1675, %v1674
      %v1693 = vpack.c.bf16 %v1677, %v1676
      %s1694 = scalar_lea.vmem %s1, 32
      %v1695 = vld [vmem:[%s1694] sm:$0xf]
      %v1696 = vld [vmem:[%s1694 + $0x4] sm:$0xf]
      %v1699 = vunpack.c.l.b16 %v1695
      %v1700 = vunpack.c.l.b16 %v1696
      %v1701 = vpack.c.b16 %v1700, %v1699
      %v1704 = vsel %vm270, %v1678, 0
      %v1707 = vsel %vm270, %v1679, 0
      %v1710 = vsel %vm270, %v1680, 0
      %v1713 = vsel %vm270, %v1681, 0
      %v1716 = vsel %vm270, %v1682, 0
      %v1719 = vsel %vm270, %v1683, 0
      %v1722 = vsel %vm270, %v1684, 0
      %v1725 = vsel %vm270, %v1685, 0
      %v1728 = vsel %vm270, %v1686, 0
      %v1731 = vsel %vm270, %v1687, 0
      %v1734 = vsel %vm270, %v1688, 0
      %v1737 = vsel %vm270, %v1689, 0
      %v1740 = vsel %vm270, %v1690, 0
      %v1743 = vsel %vm270, %v1691, 0
      %v1746 = vsel %vm270, %v1692, 0
      %v1749 = vsel %vm270, %v1693, 0
      %1751 = vmatprep.subr.bf16.mxu0 0
      %1752 = vmatpush1.bf16.msra.mxu0 %v1701
      %1753 = vmatprep.subr.bf16.mxu0 0
      %1754 = vmatpush1.bf16.msra.mxu0 0
      %1755 = vmatprep.subr.bf16.mxu0 0
      %1756 = vmatpush1.bf16.msra.mxu0 0
      %1757 = vmatprep.subr.bf16.mxu0 0
      %1758 = vmatpush1.bf16.msra.mxu0 0
      %1759 = vmatprep.subr.bf16.mxu0 0
      %1760 = vmatpush1.bf16.msra.mxu0 0
      %1761 = vmatprep.subr.bf16.mxu0 0
      %1762 = vmatpush1.bf16.msra.mxu0 0
      %1763 = vmatprep.subr.bf16.mxu0 0
      %1764 = vmatpush1.bf16.msra.mxu0 0
      %1765 = vmatprep.subr.bf16.mxu0 0
      %1766 = vmatpush1.bf16.msra.mxu0 0
      %1767 = vmatprep.subr.bf16.mxu0 0
      %1768 = vmatpush1.bf16.msra.mxu0 0
      %1769 = vmatprep.subr.bf16.mxu0 0
      %1770 = vmatpush1.bf16.msra.mxu0 0
      %1771 = vmatprep.subr.bf16.mxu0 0
      %1772 = vmatpush1.bf16.msra.mxu0 0
      %1773 = vmatprep.subr.bf16.mxu0 0
      %1774 = vmatpush1.bf16.msra.mxu0 0
      %1775 = vmatprep.subr.bf16.mxu0 0
      %1776 = vmatpush1.bf16.msra.mxu0 0
      %1777 = vmatprep.subr.bf16.mxu0 0
      %1778 = vmatpush1.bf16.msra.mxu0 0
      %1779 = vmatprep.subr.bf16.mxu0 0
      %1780 = vmatpush1.bf16.msra.mxu0 0
      %1781 = vmatprep.subr.bf16.mxu0 0
      %1782 = vmatpush1.bf16.msra.mxu0 0
      %1783 = vmatprep.mubr.bf16.mxu0 0
      %1784 = vmatmul.mubr.bf16.gmra.mrb[0].mxu0 %v1704
      %v1785 = vpop.f32.mrb[0].mxu0
      %v1786 = vadd.f32 0.0, %v1785
      %v1787 = vpop.f32.mrb[0].mxu0
      %v1788 = vpop.f32.mrb[0].mxu0
      %v1789 = vadd.f32 0.0, %v1788
      %v1790 = vpop.f32.mrb[0].mxu0
      %1791 = vmatprep.mubr.bf16.mxu0 0
      %1792 = vmatmul.mubr.bf16.gmra.mrb[0].mxu0 %v1707
      %v1793 = vpop.f32.mrb[0].mxu0
      %v1794 = vadd.f32 0.0, %v1793
      %v1795 = vpop.f32.mrb[0].mxu0
      %v1796 = vpop.f32.mrb[0].mxu0
      %v1797 = vadd.f32 0.0, %v1796
      %v1798 = vpop.f32.mrb[0].mxu0
      %1799 = vmatprep.mubr.bf16.mxu0 0
      %1800 = vmatmul.mubr.bf16.gmra.mrb[0].mxu0 %v1710
      %v1801 = vpop.f32.mrb[0].mxu0
      %v1802 = vadd.f32 0.0, %v1801
      %v1803 = vpop.f32.mrb[0].mxu0
      %v1804 = vpop.f32.mrb[0].mxu0
      %v1805 = vadd.f32 0.0, %v1804
      %v1806 = vpop.f32.mrb[0].mxu0
      %1807 = vmatprep.mubr.bf16.mxu0 0
      %1808 = vmatmul.mubr.bf16.gmra.mrb[0].mxu0 %v1713
      %v1809 = vpop.f32.mrb[0].mxu0
      %v1810 = vadd.f32 0.0, %v1809
      %v1811 = vpop.f32.mrb[0].mxu0
      %v1812 = vpop.f32.mrb[0].mxu0
      %v1813 = vadd.f32 0.0, %v1812
      %v1814 = vpop.f32.mrb[0].mxu0
      %1815 = vmatprep.mubr.bf16.mxu0 0
      %1816 = vmatmul.mubr.bf16.gmra.mrb[0].mxu0 %v1716
      %v1817 = vpop.f32.mrb[0].mxu0
      %v1818 = vadd.f32 0.0, %v1817
      %v1819 = vpop.f32.mrb[0].mxu0
      %v1820 = vpop.f32.mrb[0].mxu0
      %v1821 = vadd.f32 0.0, %v1820
      %v1822 = vpop.f32.mrb[0].mxu0
      %1823 = vmatprep.mubr.bf16.mxu0 0
      %1824 = vmatmul.mubr.bf16.gmra.mrb[0].mxu0 %v1719
      %v1825 = vpop.f32.mrb[0].mxu0
      %v1826 = vadd.f32 0.0, %v1825
      %v1827 = vpop.f32.mrb[0].mxu0
      %v1828 = vpop.f32.mrb[0].mxu0
      %v1829 = vadd.f32 0.0, %v1828
      %v1830 = vpop.f32.mrb[0].mxu0
      %1831 = vmatprep.mubr.bf16.mxu0 0
      %1832 = vmatmul.mubr.bf16.gmra.mrb[0].mxu0 %v1722
      %v1833 = vpop.f32.mrb[0].mxu0
      %v1834 = vadd.f32 0.0, %v1833
      %v1835 = vpop.f32.mrb[0].mxu0
      %v1836 = vpop.f32.mrb[0].mxu0
      %v1837 = vadd.f32 0.0, %v1836
      %v1838 = vpop.f32.mrb[0].mxu0
      %1839 = vmatprep.mubr.bf16.mxu0 0
      %1840 = vmatmul.mubr.bf16.gmra.mrb[0].mxu0 %v1725
      %v1841 = vpop.f32.mrb[0].mxu0
      %v1842 = vadd.f32 0.0, %v1841
      %v1843 = vpop.f32.mrb[0].mxu0
      %v1844 = vpop.f32.mrb[0].mxu0
      %v1845 = vadd.f32 0.0, %v1844
      %v1846 = vpop.f32.mrb[0].mxu0
      %1847 = vmatprep.mubr.bf16.mxu0 0
      %1848 = vmatmul.mubr.bf16.gmra.mrb[0].mxu0 %v1728
      %v1849 = vpop.f32.mrb[0].mxu0
      %v1850 = vadd.f32 0.0, %v1849
      %v1851 = vpop.f32.mrb[0].mxu0
      %v1852 = vpop.f32.mrb[0].mxu0
      %v1853 = vadd.f32 0.0, %v1852
      %v1854 = vpop.f32.mrb[0].mxu0
      %1855 = vmatprep.mubr.bf16.mxu0 0
      %1856 = vmatmul.mubr.bf16.gmra.mrb[0].mxu0 %v1731
      %v1857 = vpop.f32.mrb[0].mxu0
      %v1858 = vadd.f32 0.0, %v1857
      %v1859 = vpop.f32.mrb[0].mxu0
      %v1860 = vpop.f32.mrb[0].mxu0
      %v1861 = vadd.f32 0.0, %v1860
      %v1862 = vpop.f32.mrb[0].mxu0
      %1863 = vmatprep.mubr.bf16.mxu0 0
      %1864 = vmatmul.mubr.bf16.gmra.mrb[0].mxu0 %v1734
      %v1865 = vpop.f32.mrb[0].mxu0
      %v1866 = vadd.f32 0.0, %v1865
      %v1867 = vpop.f32.mrb[0].mxu0
      %v1868 = vpop.f32.mrb[0].mxu0
      %v1869 = vadd.f32 0.0, %v1868
      %v1870 = vpop.f32.mrb[0].mxu0
      %1871 = vmatprep.mubr.bf16.mxu0 0
      %1872 = vmatmul.mubr.bf16.gmra.mrb[0].mxu0 %v1737
      %v1873 = vpop.f32.mrb[0].mxu0
      %v1874 = vadd.f32 0.0, %v1873
      %v1875 = vpop.f32.mrb[0].mxu0
      %v1876 = vpop.f32.mrb[0].mxu0
      %v1877 = vadd.f32 0.0, %v1876
      %v1878 = vpop.f32.mrb[0].mxu0
      %1879 = vmatprep.mubr.bf16.mxu0 0
      %1880 = vmatmul.mubr.bf16.gmra.mrb[0].mxu0 %v1740
      %v1881 = vpop.f32.mrb[0].mxu0
      %v1882 = vadd.f32 0.0, %v1881
      %v1883 = vpop.f32.mrb[0].mxu0
      %v1884 = vpop.f32.mrb[0].mxu0
      %v1885 = vadd.f32 0.0, %v1884
      %v1886 = vpop.f32.mrb[0].mxu0
      %1887 = vmatprep.mubr.bf16.mxu0 0
      %1888 = vmatmul.mubr.bf16.gmra.mrb[0].mxu0 %v1743
      %v1889 = vpop.f32.mrb[0].mxu0
      %v1890 = vadd.f32 0.0, %v1889
      %v1891 = vpop.f32.mrb[0].mxu0
      %v1892 = vpop.f32.mrb[0].mxu0
      %v1893 = vadd.f32 0.0, %v1892
      %v1894 = vpop.f32.mrb[0].mxu0
      %1895 = vmatprep.mubr.bf16.mxu0 0
      %1896 = vmatmul.mubr.bf16.gmra.mrb[0].mxu0 %v1746
      %v1897 = vpop.f32.mrb[0].mxu0
      %v1898 = vadd.f32 0.0, %v1897
      %v1899 = vpop.f32.mrb[0].mxu0
      %v1900 = vpop.f32.mrb[0].mxu0
      %v1901 = vadd.f32 0.0, %v1900
      %v1902 = vpop.f32.mrb[0].mxu0
      %1903 = vmatprep.mubr.bf16.mxu0 0
      %1904 = vmatmul.mubr.bf16.gmra.mrb[0].mxu0 %v1749
      %v1905 = vpop.f32.mrb[0].mxu0
      %v1906 = vadd.f32 0.0, %v1905
      %v1907 = vpop.f32.mrb[0].mxu0
      %v1908 = vpop.f32.mrb[0].mxu0
      %v1909 = vadd.f32 0.0, %v1908
      %v1910 = vpop.f32.mrb[0].mxu0
      %1911 = vdwg.mxu0
      %v1912 = vadd.f32 %v1614, %v1786
      %v1913 = vadd.f32 %v1615, %v1789
      %v1914 = vadd.f32 %v1616, %v1794
      %v1915 = vadd.f32 %v1617, %v1797
      %v1916 = vadd.f32 %v1618, %v1802
      %v1917 = vadd.f32 %v1619, %v1805
      %v1918 = vadd.f32 %v1620, %v1810
      %v1919 = vadd.f32 %v1621, %v1813
      %v1920 = vadd.f32 %v1622, %v1818
      %v1921 = vadd.f32 %v1623, %v1821
      %v1922 = vadd.f32 %v1624, %v1826
      %v1923 = vadd.f32 %v1625, %v1829
      %v1924 = vadd.f32 %v1626, %v1834
      %v1925 = vadd.f32 %v1627, %v1837
      %v1926 = vadd.f32 %v1628, %v1842
      %v1927 = vadd.f32 %v1629, %v1845
      %v1928 = vadd.f32 %v1630, %v1850
      %v1929 = vadd.f32 %v1631, %v1853
      %v1930 = vadd.f32 %v1632, %v1858
      %v1931 = vadd.f32 %v1633, %v1861
      %v1932 = vadd.f32 %v1634, %v1866
      %v1933 = vadd.f32 %v1635, %v1869
      %v1934 = vadd.f32 %v1636, %v1874
      %v1935 = vadd.f32 %v1637, %v1877
      %v1936 = vadd.f32 %v1638, %v1882
      %v1937 = vadd.f32 %v1639, %v1885
      %v1938 = vadd.f32 %v1640, %v1890
      %v1939 = vadd.f32 %v1641, %v1893
      %v1940 = vadd.f32 %v1642, %v1898
      %v1941 = vadd.f32 %v1643, %v1901
      %v1942 = vadd.f32 %v1644, %v1906
      %v1943 = vadd.f32 %v1645, %v1909
      %v1944 = vld [vmem:[%s279 + $0x2] sm:$0xff]
      %v1945 = vld [vmem:[%s279 + $0xa] sm:$0xff]
      %v1946 = vld [vmem:[%s279 + $0x1a] sm:$0xff]
      %v1947 = vld [vmem:[%s279 + $0x22] sm:$0xff]
      %v1948 = vld [vmem:[%s279 + $0x32] sm:$0xff]
      %v1949 = vld [vmem:[%s279 + $0x3a] sm:$0xff]
      %v1950 = vld [vmem:[%s279 + $0x4a] sm:$0xff]
      %v1951 = vld [vmem:[%s279 + $0x52] sm:$0xff]
      %v1952 = vld [vmem:[%s279 + $0x62] sm:$0xff]
      %v1953 = vld [vmem:[%s279 + $0x6a] sm:$0xff]
      %v1954 = vld [vmem:[%s279 + $0x7a] sm:$0xff]
      %v1955 = vld [vmem:[%s279 + $0x82] sm:$0xff]
      %v1956 = vld [vmem:[%s279 + $0x92] sm:$0xff]
      %v1957 = vld [vmem:[%s279 + $0x9a] sm:$0xff]
      %v1958 = vld [vmem:[%s279 + $0xaa] sm:$0xff]
      %v1959 = vld [vmem:[%s279 + $0xb2] sm:$0xff]
      %v1960 = vld [vmem:[%s279 + $0xc2] sm:$0xff]
      %v1961 = vld [vmem:[%s279 + $0xca] sm:$0xff]
      %v1962 = vld [vmem:[%s279 + $0xda] sm:$0xff]
      %v1963 = vld [vmem:[%s279 + $0xe2] sm:$0xff]
      %v1964 = vld [vmem:[%s279 + $0xf2] sm:$0xff]
      %v1965 = vld [vmem:[%s279 + $0xfa] sm:$0xff]
      %v1966 = vld [vmem:[%s279 + $0x10a] sm:$0xff]
      %v1967 = vld [vmem:[%s279 + $0x112] sm:$0xff]
      %v1968 = vld [vmem:[%s279 + $0x122] sm:$0xff]
      %v1969 = vld [vmem:[%s279 + $0x12a] sm:$0xff]
      %v1970 = vld [vmem:[%s279 + $0x13a] sm:$0xff]
      %v1971 = vld [vmem:[%s279 + $0x142] sm:$0xff]
      %v1972 = vld [vmem:[%s279 + $0x152] sm:$0xff]
      %v1973 = vld [vmem:[%s279 + $0x15a] sm:$0xff]
      %v1974 = vld [vmem:[%s279 + $0x16a] sm:$0xff]
      %v1975 = vld [vmem:[%s279 + $0x172] sm:$0xff]
      %v1976 = vpack.c.bf16 %v1945, %v1944
      %v1977 = vpack.c.bf16 %v1947, %v1946
      %v1978 = vpack.c.bf16 %v1949, %v1948
      %v1979 = vpack.c.bf16 %v1951, %v1950
      %v1980 = vpack.c.bf16 %v1953, %v1952
      %v1981 = vpack.c.bf16 %v1955, %v1954
      %v1982 = vpack.c.bf16 %v1957, %v1956
      %v1983 = vpack.c.bf16 %v1959, %v1958
      %v1984 = vpack.c.bf16 %v1961, %v1960
      %v1985 = vpack.c.bf16 %v1963, %v1962
      %v1986 = vpack.c.bf16 %v1965, %v1964
      %v1987 = vpack.c.bf16 %v1967, %v1966
      %v1988 = vpack.c.bf16 %v1969, %v1968
      %v1989 = vpack.c.bf16 %v1971, %v1970
      %v1990 = vpack.c.bf16 %v1973, %v1972
      %v1991 = vpack.c.bf16 %v1975, %v1974
      %s1992 = scalar_lea.vmem %s1, 40
      %v1993 = vld [vmem:[%s1992] sm:$0xf]
      %v1994 = vld [vmem:[%s1992 + $0x4] sm:$0xf]
      %v1997 = vunpack.c.l.b16 %v1993
      %v1998 = vunpack.c.l.b16 %v1994
      %v1999 = vpack.c.b16 %v1998, %v1997
      %v2002 = vsel %vm270, %v1976, 0
      %v2005 = vsel %vm270, %v1977, 0
      %v2008 = vsel %vm270, %v1978, 0
      %v2011 = vsel %vm270, %v1979, 0
      %v2014 = vsel %vm270, %v1980, 0
      %v2017 = vsel %vm270, %v1981, 0
      %v2020 = vsel %vm270, %v1982, 0
      %v2023 = vsel %vm270, %v1983, 0
      %v2026 = vsel %vm270, %v1984, 0
      %v2029 = vsel %vm270, %v1985, 0
      %v2032 = vsel %vm270, %v1986, 0
      %v2035 = vsel %vm270, %v1987, 0
      %v2038 = vsel %vm270, %v1988, 0
      %v2041 = vsel %vm270, %v1989, 0
      %v2044 = vsel %vm270, %v1990, 0
      %v2047 = vsel %vm270, %v1991, 0
      %2049 = vmatprep.subr.bf16.mxu0 0
      %2050 = vmatpush1.bf16.msra.mxu0 %v1999
      %2051 = vmatprep.subr.bf16.mxu0 0
      %2052 = vmatpush1.bf16.msra.mxu0 0
      %2053 = vmatprep.subr.bf16.mxu0 0
      %2054 = vmatpush1.bf16.msra.mxu0 0
      %2055 = vmatprep.subr.bf16.mxu0 0
      %2056 = vmatpush1.bf16.msra.mxu0 0
      %2057 = vmatprep.subr.bf16.mxu0 0
      %2058 = vmatpush1.bf16.msra.mxu0 0
      %2059 = vmatprep.subr.bf16.mxu0 0
      %2060 = vmatpush1.bf16.msra.mxu0 0
      %2061 = vmatprep.subr.bf16.mxu0 0
      %2062 = vmatpush1.bf16.msra.mxu0 0
      %2063 = vmatprep.subr.bf16.mxu0 0
      %2064 = vmatpush1.bf16.msra.mxu0 0
      %2065 = vmatprep.subr.bf16.mxu0 0
      %2066 = vmatpush1.bf16.msra.mxu0 0
      %2067 = vmatprep.subr.bf16.mxu0 0
      %2068 = vmatpush1.bf16.msra.mxu0 0
      %2069 = vmatprep.subr.bf16.mxu0 0
      %2070 = vmatpush1.bf16.msra.mxu0 0
      %2071 = vmatprep.subr.bf16.mxu0 0
      %2072 = vmatpush1.bf16.msra.mxu0 0
      %2073 = vmatprep.subr.bf16.mxu0 0
      %2074 = vmatpush1.bf16.msra.mxu0 0
      %2075 = vmatprep.subr.bf16.mxu0 0
      %2076 = vmatpush1.bf16.msra.mxu0 0
      %2077 = vmatprep.subr.bf16.mxu0 0
      %2078 = vmatpush1.bf16.msra.mxu0 0
      %2079 = vmatprep.subr.bf16.mxu0 0
      %2080 = vmatpush1.bf16.msra.mxu0 0
      %2081 = vmatprep.mubr.bf16.mxu0 0
      %2082 = vmatmul.mubr.bf16.gmra.mrb[0].mxu0 %v2002
      %v2083 = vpop.f32.mrb[0].mxu0
      %v2084 = vadd.f32 0.0, %v2083
      %v2085 = vpop.f32.mrb[0].mxu0
      %v2086 = vpop.f32.mrb[0].mxu0
      %v2087 = vadd.f32 0.0, %v2086
      %v2088 = vpop.f32.mrb[0].mxu0
      %2089 = vmatprep.mubr.bf16.mxu0 0
      %2090 = vmatmul.mubr.bf16.gmra.mrb[0].mxu0 %v2005
      %v2091 = vpop.f32.mrb[0].mxu0
      %v2092 = vadd.f32 0.0, %v2091
      %v2093 = vpop.f32.mrb[0].mxu0
      %v2094 = vpop.f32.mrb[0].mxu0
      %v2095 = vadd.f32 0.0, %v2094
      %v2096 = vpop.f32.mrb[0].mxu0
      %2097 = vmatprep.mubr.bf16.mxu0 0
      %2098 = vmatmul.mubr.bf16.gmra.mrb[0].mxu0 %v2008
      %v2099 = vpop.f32.mrb[0].mxu0
      %v2100 = vadd.f32 0.0, %v2099
      %v2101 = vpop.f32.mrb[0].mxu0
      %v2102 = vpop.f32.mrb[0].mxu0
      %v2103 = vadd.f32 0.0, %v2102
      %v2104 = vpop.f32.mrb[0].mxu0
      %2105 = vmatprep.mubr.bf16.mxu0 0
      %2106 = vmatmul.mubr.bf16.gmra.mrb[0].mxu0 %v2011
      %v2107 = vpop.f32.mrb[0].mxu0
      %v2108 = vadd.f32 0.0, %v2107
      %v2109 = vpop.f32.mrb[0].mxu0
      %v2110 = vpop.f32.mrb[0].mxu0
      %v2111 = vadd.f32 0.0, %v2110
      %v2112 = vpop.f32.mrb[0].mxu0
      %2113 = vmatprep.mubr.bf16.mxu0 0
      %2114 = vmatmul.mubr.bf16.gmra.mrb[0].mxu0 %v2014
      %v2115 = vpop.f32.mrb[0].mxu0
      %v2116 = vadd.f32 0.0, %v2115
      %v2117 = vpop.f32.mrb[0].mxu0
      %v2118 = vpop.f32.mrb[0].mxu0
      %v2119 = vadd.f32 0.0, %v2118
      %v2120 = vpop.f32.mrb[0].mxu0
      %2121 = vmatprep.mubr.bf16.mxu0 0
      %2122 = vmatmul.mubr.bf16.gmra.mrb[0].mxu0 %v2017
      %v2123 = vpop.f32.mrb[0].mxu0
      %v2124 = vadd.f32 0.0, %v2123
      %v2125 = vpop.f32.mrb[0].mxu0
      %v2126 = vpop.f32.mrb[0].mxu0
      %v2127 = vadd.f32 0.0, %v2126
      %v2128 = vpop.f32.mrb[0].mxu0
      %2129 = vmatprep.mubr.bf16.mxu0 0
      %2130 = vmatmul.mubr.bf16.gmra.mrb[0].mxu0 %v2020
      %v2131 = vpop.f32.mrb[0].mxu0
      %v2132 = vadd.f32 0.0, %v2131
      %v2133 = vpop.f32.mrb[0].mxu0
      %v2134 = vpop.f32.mrb[0].mxu0
      %v2135 = vadd.f32 0.0, %v2134
      %v2136 = vpop.f32.mrb[0].mxu0
      %2137 = vmatprep.mubr.bf16.mxu0 0
      %2138 = vmatmul.mubr.bf16.gmra.mrb[0].mxu0 %v2023
      %v2139 = vpop.f32.mrb[0].mxu0
      %v2140 = vadd.f32 0.0, %v2139
      %v2141 = vpop.f32.mrb[0].mxu0
      %v2142 = vpop.f32.mrb[0].mxu0
      %v2143 = vadd.f32 0.0, %v2142
      %v2144 = vpop.f32.mrb[0].mxu0
      %2145 = vmatprep.mubr.bf16.mxu0 0
      %2146 = vmatmul.mubr.bf16.gmra.mrb[0].mxu0 %v2026
      %v2147 = vpop.f32.mrb[0].mxu0
      %v2148 = vadd.f32 0.0, %v2147
      %v2149 = vpop.f32.mrb[0].mxu0
      %v2150 = vpop.f32.mrb[0].mxu0
      %v2151 = vadd.f32 0.0, %v2150
      %v2152 = vpop.f32.mrb[0].mxu0
      %2153 = vmatprep.mubr.bf16.mxu0 0
      %2154 = vmatmul.mubr.bf16.gmra.mrb[0].mxu0 %v2029
      %v2155 = vpop.f32.mrb[0].mxu0
      %v2156 = vadd.f32 0.0, %v2155
      %v2157 = vpop.f32.mrb[0].mxu0
      %v2158 = vpop.f32.mrb[0].mxu0
      %v2159 = vadd.f32 0.0, %v2158
      %v2160 = vpop.f32.mrb[0].mxu0
      %2161 = vmatprep.mubr.bf16.mxu0 0
      %2162 = vmatmul.mubr.bf16.gmra.mrb[0].mxu0 %v2032
      %v2163 = vpop.f32.mrb[0].mxu0
      %v2164 = vadd.f32 0.0, %v2163
      %v2165 = vpop.f32.mrb[0].mxu0
      %v2166 = vpop.f32.mrb[0].mxu0
      %v2167 = vadd.f32 0.0, %v2166
      %v2168 = vpop.f32.mrb[0].mxu0
      %2169 = vmatprep.mubr.bf16.mxu0 0
      %2170 = vmatmul.mubr.bf16.gmra.mrb[0].mxu0 %v2035
      %v2171 = vpop.f32.mrb[0].mxu0
      %v2172 = vadd.f32 0.0, %v2171
      %v2173 = vpop.f32.mrb[0].mxu0
      %v2174 = vpop.f32.mrb[0].mxu0
      %v2175 = vadd.f32 0.0, %v2174
      %v2176 = vpop.f32.mrb[0].mxu0
      %2177 = vmatprep.mubr.bf16.mxu0 0
      %2178 = vmatmul.mubr.bf16.gmra.mrb[0].mxu0 %v2038
      %v2179 = vpop.f32.mrb[0].mxu0
      %v2180 = vadd.f32 0.0, %v2179
      %v2181 = vpop.f32.mrb[0].mxu0
      %v2182 = vpop.f32.mrb[0].mxu0
      %v2183 = vadd.f32 0.0, %v2182
      %v2184 = vpop.f32.mrb[0].mxu0
      %2185 = vmatprep.mubr.bf16.mxu0 0
      %2186 = vmatmul.mubr.bf16.gmra.mrb[0].mxu0 %v2041
      %v2187 = vpop.f32.mrb[0].mxu0
      %v2188 = vadd.f32 0.0, %v2187
      %v2189 = vpop.f32.mrb[0].mxu0
      %v2190 = vpop.f32.mrb[0].mxu0
      %v2191 = vadd.f32 0.0, %v2190
      %v2192 = vpop.f32.mrb[0].mxu0
      %2193 = vmatprep.mubr.bf16.mxu0 0
      %2194 = vmatmul.mubr.bf16.gmra.mrb[0].mxu0 %v2044
      %v2195 = vpop.f32.mrb[0].mxu0
      %v2196 = vadd.f32 0.0, %v2195
      %v2197 = vpop.f32.mrb[0].mxu0
      %v2198 = vpop.f32.mrb[0].mxu0
      %v2199 = vadd.f32 0.0, %v2198
      %v2200 = vpop.f32.mrb[0].mxu0
      %2201 = vmatprep.mubr.bf16.mxu0 0
      %2202 = vmatmul.mubr.bf16.gmra.mrb[0].mxu0 %v2047
      %v2203 = vpop.f32.mrb[0].mxu0
      %v2204 = vadd.f32 0.0, %v2203
      %v2205 = vpop.f32.mrb[0].mxu0
      %v2206 = vpop.f32.mrb[0].mxu0
      %v2207 = vadd.f32 0.0, %v2206
      %v2208 = vpop.f32.mrb[0].mxu0
      %2209 = vdwg.mxu0
      %v2210 = vadd.f32 %v1912, %v2084
      %v2211 = vadd.f32 %v1913, %v2087
      %v2212 = vadd.f32 %v1914, %v2092
      %v2213 = vadd.f32 %v1915, %v2095
      %v2214 = vadd.f32 %v1916, %v2100
      %v2215 = vadd.f32 %v1917, %v2103
      %v2216 = vadd.f32 %v1918, %v2108
      %v2217 = vadd.f32 %v1919, %v2111
      %v2218 = vadd.f32 %v1920, %v2116
      %v2219 = vadd.f32 %v1921, %v2119
      %v2220 = vadd.f32 %v1922, %v2124
      %v2221 = vadd.f32 %v1923, %v2127
      %v2222 = vadd.f32 %v1924, %v2132
      %v2223 = vadd.f32 %v1925, %v2135
      %v2224 = vadd.f32 %v1926, %v2140
      %v2225 = vadd.f32 %v1927, %v2143
      %v2226 = vadd.f32 %v1928, %v2148
      %v2227 = vadd.f32 %v1929, %v2151
      %v2228 = vadd.f32 %v1930, %v2156
      %v2229 = vadd.f32 %v1931, %v2159
      %v2230 = vadd.f32 %v1932, %v2164
      %v2231 = vadd.f32 %v1933, %v2167
      %v2232 = vadd.f32 %v1934, %v2172
      %v2233 = vadd.f32 %v1935, %v2175
      %v2234 = vadd.f32 %v1936, %v2180
      %v2235 = vadd.f32 %v1937, %v2183
      %v2236 = vadd.f32 %v1938, %v2188
      %v2237 = vadd.f32 %v1939, %v2191
      %v2238 = vadd.f32 %v1940, %v2196
      %v2239 = vadd.f32 %v1941, %v2199
      %v2240 = vadd.f32 %v1942, %v2204
      %v2241 = vadd.f32 %v1943, %v2207
      %s2242 = scalar_lea.vmem [#allocation2], 48
      %v2243 = vld [vmem:[%s2242] sm:$0xff]
      %v2244 = vld [vmem:[%s2242 + $0x8] sm:$0xff]
      %v2245 = vld [vmem:[%s2242 + $0x18] sm:$0xff]
      %v2246 = vld [vmem:[%s2242 + $0x20] sm:$0xff]
      %v2247 = vld [vmem:[%s2242 + $0x30] sm:$0xff]
      %v2248 = vld [vmem:[%s2242 + $0x38] sm:$0xff]
      %v2249 = vld [vmem:[%s2242 + $0x48] sm:$0xff]
      %v2250 = vld [vmem:[%s2242 + $0x50] sm:$0xff]
      %v2251 = vld [vmem:[%s2242 + $0x60] sm:$0xff]
      %v2252 = vld [vmem:[%s2242 + $0x68] sm:$0xff]
      %v2253 = vld [vmem:[%s2242 + $0x78] sm:$0xff]
      %v2254 = vld [vmem:[%s2242 + $0x80] sm:$0xff]
      %v2255 = vld [vmem:[%s2242 + $0x90] sm:$0xff]
      %v2256 = vld [vmem:[%s2242 + $0x98] sm:$0xff]
      %v2257 = vld [vmem:[%s2242 + $0xa8] sm:$0xff]
      %v2258 = vld [vmem:[%s2242 + $0xb0] sm:$0xff]
      %v2259 = vld [vmem:[%s2242 + $0xc0] sm:$0xff]
      %v2260 = vld [vmem:[%s2242 + $0xc8] sm:$0xff]
      %v2261 = vld [vmem:[%s2242 + $0xd8] sm:$0xff]
      %v2262 = vld [vmem:[%s2242 + $0xe0] sm:$0xff]
      %v2263 = vld [vmem:[%s2242 + $0xf0] sm:$0xff]
      %v2264 = vld [vmem:[%s2242 + $0xf8] sm:$0xff]
      %v2265 = vld [vmem:[%s2242 + $0x108] sm:$0xff]
      %v2266 = vld [vmem:[%s2242 + $0x110] sm:$0xff]
      %v2267 = vld [vmem:[%s2242 + $0x120] sm:$0xff]
      %v2268 = vld [vmem:[%s2242 + $0x128] sm:$0xff]
      %v2269 = vld [vmem:[%s2242 + $0x138] sm:$0xff]
      %v2270 = vld [vmem:[%s2242 + $0x140] sm:$0xff]
      %v2271 = vld [vmem:[%s2242 + $0x150] sm:$0xff]
      %v2272 = vld [vmem:[%s2242 + $0x158] sm:$0xff]
      %v2273 = vld [vmem:[%s2242 + $0x168] sm:$0xff]
      %v2274 = vld [vmem:[%s2242 + $0x170] sm:$0xff]
      %v2275 = vpack.c.bf16 %v2244, %v2243
      %v2276 = vpack.c.bf16 %v2246, %v2245
      %v2277 = vpack.c.bf16 %v2248, %v2247
      %v2278 = vpack.c.bf16 %v2250, %v2249
      %v2279 = vpack.c.bf16 %v2252, %v2251
      %v2280 = vpack.c.bf16 %v2254, %v2253
      %v2281 = vpack.c.bf16 %v2256, %v2255
      %v2282 = vpack.c.bf16 %v2258, %v2257
      %v2283 = vpack.c.bf16 %v2260, %v2259
      %v2284 = vpack.c.bf16 %v2262, %v2261
      %v2285 = vpack.c.bf16 %v2264, %v2263
      %v2286 = vpack.c.bf16 %v2266, %v2265
      %v2287 = vpack.c.bf16 %v2268, %v2267
      %v2288 = vpack.c.bf16 %v2270, %v2269
      %v2289 = vpack.c.bf16 %v2272, %v2271
      %v2290 = vpack.c.bf16 %v2274, %v2273
      %s2291 = scalar_lea.vmem %s1, 48
      %v2292 = vld [vmem:[%s2291] sm:$0xf]
      %v2293 = vld [vmem:[%s2291 + $0x4] sm:$0xf]
      %v2296 = vunpack.c.l.b16 %v2292
      %v2297 = vunpack.c.l.b16 %v2293
      %v2298 = vpack.c.b16 %v2297, %v2296
      %v2301 = vsel %vm270, %v2275, 0
      %v2304 = vsel %vm270, %v2276, 0
      %v2307 = vsel %vm270, %v2277, 0
      %v2310 = vsel %vm270, %v2278, 0
      %v2313 = vsel %vm270, %v2279, 0
      %v2316 = vsel %vm270, %v2280, 0
      %v2319 = vsel %vm270, %v2281, 0
      %v2322 = vsel %vm270, %v2282, 0
      %v2325 = vsel %vm270, %v2283, 0
      %v2328 = vsel %vm270, %v2284, 0
      %v2331 = vsel %vm270, %v2285, 0
      %v2334 = vsel %vm270, %v2286, 0
      %v2337 = vsel %vm270, %v2287, 0
      %v2340 = vsel %vm270, %v2288, 0
      %v2343 = vsel %vm270, %v2289, 0
      %v2346 = vsel %vm270, %v2290, 0
      %2348 = vmatprep.subr.bf16.mxu0 0
      %2349 = vmatpush1.bf16.msra.mxu0 %v2298
      %2350 = vmatprep.subr.bf16.mxu0 0
      %2351 = vmatpush1.bf16.msra.mxu0 0
      %2352 = vmatprep.subr.bf16.mxu0 0
      %2353 = vmatpush1.bf16.msra.mxu0 0
      %2354 = vmatprep.subr.bf16.mxu0 0
      %2355 = vmatpush1.bf16.msra.mxu0 0
      %2356 = vmatprep.subr.bf16.mxu0 0
      %2357 = vmatpush1.bf16.msra.mxu0 0
      %2358 = vmatprep.subr.bf16.mxu0 0
      %2359 = vmatpush1.bf16.msra.mxu0 0
      %2360 = vmatprep.subr.bf16.mxu0 0
      %2361 = vmatpush1.bf16.msra.mxu0 0
      %2362 = vmatprep.subr.bf16.mxu0 0
      %2363 = vmatpush1.bf16.msra.mxu0 0
      %2364 = vmatprep.subr.bf16.mxu0 0
      %2365 = vmatpush1.bf16.msra.mxu0 0
      %2366 = vmatprep.subr.bf16.mxu0 0
      %2367 = vmatpush1.bf16.msra.mxu0 0
      %2368 = vmatprep.subr.bf16.mxu0 0
      %2369 = vmatpush1.bf16.msra.mxu0 0
      %2370 = vmatprep.subr.bf16.mxu0 0
      %2371 = vmatpush1.bf16.msra.mxu0 0
      %2372 = vmatprep.subr.bf16.mxu0 0
      %2373 = vmatpush1.bf16.msra.mxu0 0
      %2374 = vmatprep.subr.bf16.mxu0 0
      %2375 = vmatpush1.bf16.msra.mxu0 0
      %2376 = vmatprep.subr.bf16.mxu0 0
      %2377 = vmatpush1.bf16.msra.mxu0 0
      %2378 = vmatprep.subr.bf16.mxu0 0
      %2379 = vmatpush1.bf16.msra.mxu0 0
      %2380 = vmatprep.mubr.bf16.mxu0 0
      %2381 = vmatmul.mubr.bf16.gmra.mrb[0].mxu0 %v2301
      %v2382 = vpop.f32.mrb[0].mxu0
      %v2383 = vadd.f32 0.0, %v2382
      %v2384 = vpop.f32.mrb[0].mxu0
      %v2385 = vpop.f32.mrb[0].mxu0
      %v2386 = vadd.f32 0.0, %v2385
      %v2387 = vpop.f32.mrb[0].mxu0
      %2388 = vmatprep.mubr.bf16.mxu0 0
      %2389 = vmatmul.mubr.bf16.gmra.mrb[0].mxu0 %v2304
      %v2390 = vpop.f32.mrb[0].mxu0
      %v2391 = vadd.f32 0.0, %v2390
      %v2392 = vpop.f32.mrb[0].mxu0
      %v2393 = vpop.f32.mrb[0].mxu0
      %v2394 = vadd.f32 0.0, %v2393
      %v2395 = vpop.f32.mrb[0].mxu0
      %2396 = vmatprep.mubr.bf16.mxu0 0
      %2397 = vmatmul.mubr.bf16.gmra.mrb[0].mxu0 %v2307
      %v2398 = vpop.f32.mrb[0].mxu0
      %v2399 = vadd.f32 0.0, %v2398
      %v2400 = vpop.f32.mrb[0].mxu0
      %v2401 = vpop.f32.mrb[0].mxu0
      %v2402 = vadd.f32 0.0, %v2401
      %v2403 = vpop.f32.mrb[0].mxu0
      %2404 = vmatprep.mubr.bf16.mxu0 0
      %2405 = vmatmul.mubr.bf16.gmra.mrb[0].mxu0 %v2310
      %v2406 = vpop.f32.mrb[0].mxu0
      %v2407 = vadd.f32 0.0, %v2406
      %v2408 = vpop.f32.mrb[0].mxu0
      %v2409 = vpop.f32.mrb[0].mxu0
      %v2410 = vadd.f32 0.0, %v2409
      %v2411 = vpop.f32.mrb[0].mxu0
      %2412 = vmatprep.mubr.bf16.mxu0 0
      %2413 = vmatmul.mubr.bf16.gmra.mrb[0].mxu0 %v2313
      %v2414 = vpop.f32.mrb[0].mxu0
      %v2415 = vadd.f32 0.0, %v2414
      %v2416 = vpop.f32.mrb[0].mxu0
      %v2417 = vpop.f32.mrb[0].mxu0
      %v2418 = vadd.f32 0.0, %v2417
      %v2419 = vpop.f32.mrb[0].mxu0
      %2420 = vmatprep.mubr.bf16.mxu0 0
      %2421 = vmatmul.mubr.bf16.gmra.mrb[0].mxu0 %v2316
      %v2422 = vpop.f32.mrb[0].mxu0
      %v2423 = vadd.f32 0.0, %v2422
      %v2424 = vpop.f32.mrb[0].mxu0
      %v2425 = vpop.f32.mrb[0].mxu0
      %v2426 = vadd.f32 0.0, %v2425
      %v2427 = vpop.f32.mrb[0].mxu0
      %2428 = vmatprep.mubr.bf16.mxu0 0
      %2429 = vmatmul.mubr.bf16.gmra.mrb[0].mxu0 %v2319
      %v2430 = vpop.f32.mrb[0].mxu0
      %v2431 = vadd.f32 0.0, %v2430
      %v2432 = vpop.f32.mrb[0].mxu0
      %v2433 = vpop.f32.mrb[0].mxu0
      %v2434 = vadd.f32 0.0, %v2433
      %v2435 = vpop.f32.mrb[0].mxu0
      %2436 = vmatprep.mubr.bf16.mxu0 0
      %2437 = vmatmul.mubr.bf16.gmra.mrb[0].mxu0 %v2322
      %v2438 = vpop.f32.mrb[0].mxu0
      %v2439 = vadd.f32 0.0, %v2438
      %v2440 = vpop.f32.mrb[0].mxu0
      %v2441 = vpop.f32.mrb[0].mxu0
      %v2442 = vadd.f32 0.0, %v2441
      %v2443 = vpop.f32.mrb[0].mxu0
      %2444 = vmatprep.mubr.bf16.mxu0 0
      %2445 = vmatmul.mubr.bf16.gmra.mrb[0].mxu0 %v2325
      %v2446 = vpop.f32.mrb[0].mxu0
      %v2447 = vadd.f32 0.0, %v2446
      %v2448 = vpop.f32.mrb[0].mxu0
      %v2449 = vpop.f32.mrb[0].mxu0
      %v2450 = vadd.f32 0.0, %v2449
      %v2451 = vpop.f32.mrb[0].mxu0
      %2452 = vmatprep.mubr.bf16.mxu0 0
      %2453 = vmatmul.mubr.bf16.gmra.mrb[0].mxu0 %v2328
      %v2454 = vpop.f32.mrb[0].mxu0
      %v2455 = vadd.f32 0.0, %v2454
      %v2456 = vpop.f32.mrb[0].mxu0
      %v2457 = vpop.f32.mrb[0].mxu0
      %v2458 = vadd.f32 0.0, %v2457
      %v2459 = vpop.f32.mrb[0].mxu0
      %2460 = vmatprep.mubr.bf16.mxu0 0
      %2461 = vmatmul.mubr.bf16.gmra.mrb[0].mxu0 %v2331
      %v2462 = vpop.f32.mrb[0].mxu0
      %v2463 = vadd.f32 0.0, %v2462
      %v2464 = vpop.f32.mrb[0].mxu0
      %v2465 = vpop.f32.mrb[0].mxu0
      %v2466 = vadd.f32 0.0, %v2465
      %v2467 = vpop.f32.mrb[0].mxu0
      %2468 = vmatprep.mubr.bf16.mxu0 0
      %2469 = vmatmul.mubr.bf16.gmra.mrb[0].mxu0 %v2334
      %v2470 = vpop.f32.mrb[0].mxu0
      %v2471 = vadd.f32 0.0, %v2470
      %v2472 = vpop.f32.mrb[0].mxu0
      %v2473 = vpop.f32.mrb[0].mxu0
      %v2474 = vadd.f32 0.0, %v2473
      %v2475 = vpop.f32.mrb[0].mxu0
      %2476 = vmatprep.mubr.bf16.mxu0 0
      %2477 = vmatmul.mubr.bf16.gmra.mrb[0].mxu0 %v2337
      %v2478 = vpop.f32.mrb[0].mxu0
      %v2479 = vadd.f32 0.0, %v2478
      %v2480 = vpop.f32.mrb[0].mxu0
      %v2481 = vpop.f32.mrb[0].mxu0
      %v2482 = vadd.f32 0.0, %v2481
      %v2483 = vpop.f32.mrb[0].mxu0
      %2484 = vmatprep.mubr.bf16.mxu0 0
      %2485 = vmatmul.mubr.bf16.gmra.mrb[0].mxu0 %v2340
      %v2486 = vpop.f32.mrb[0].mxu0
      %v2487 = vadd.f32 0.0, %v2486
      %v2488 = vpop.f32.mrb[0].mxu0
      %v2489 = vpop.f32.mrb[0].mxu0
      %v2490 = vadd.f32 0.0, %v2489
      %v2491 = vpop.f32.mrb[0].mxu0
      %2492 = vmatprep.mubr.bf16.mxu0 0
      %2493 = vmatmul.mubr.bf16.gmra.mrb[0].mxu0 %v2343
      %v2494 = vpop.f32.mrb[0].mxu0
      %v2495 = vadd.f32 0.0, %v2494
      %v2496 = vpop.f32.mrb[0].mxu0
      %v2497 = vpop.f32.mrb[0].mxu0
      %v2498 = vadd.f32 0.0, %v2497
      %v2499 = vpop.f32.mrb[0].mxu0
      %2500 = vmatprep.mubr.bf16.mxu0 0
      %2501 = vmatmul.mubr.bf16.gmra.mrb[0].mxu0 %v2346
      %v2502 = vpop.f32.mrb[0].mxu0
      %v2503 = vadd.f32 0.0, %v2502
      %v2504 = vpop.f32.mrb[0].mxu0
      %v2505 = vpop.f32.mrb[0].mxu0
      %v2506 = vadd.f32 0.0, %v2505
      %v2507 = vpop.f32.mrb[0].mxu0
      %2508 = vdwg.mxu0
      %v2509 = vadd.f32 %v2210, %v2383
      %v2510 = vadd.f32 %v2211, %v2386
      %v2511 = vadd.f32 %v2212, %v2391
      %v2512 = vadd.f32 %v2213, %v2394
      %v2513 = vadd.f32 %v2214, %v2399
      %v2514 = vadd.f32 %v2215, %v2402
      %v2515 = vadd.f32 %v2216, %v2407
      %v2516 = vadd.f32 %v2217, %v2410
      %v2517 = vadd.f32 %v2218, %v2415
      %v2518 = vadd.f32 %v2219, %v2418
      %v2519 = vadd.f32 %v2220, %v2423
      %v2520 = vadd.f32 %v2221, %v2426
      %v2521 = vadd.f32 %v2222, %v2431
      %v2522 = vadd.f32 %v2223, %v2434
      %v2523 = vadd.f32 %v2224, %v2439
      %v2524 = vadd.f32 %v2225, %v2442
      %v2525 = vadd.f32 %v2226, %v2447
      %v2526 = vadd.f32 %v2227, %v2450
      %v2527 = vadd.f32 %v2228, %v2455
      %v2528 = vadd.f32 %v2229, %v2458
      %v2529 = vadd.f32 %v2230, %v2463
      %v2530 = vadd.f32 %v2231, %v2466
      %v2531 = vadd.f32 %v2232, %v2471
      %v2532 = vadd.f32 %v2233, %v2474
      %v2533 = vadd.f32 %v2234, %v2479
      %v2534 = vadd.f32 %v2235, %v2482
      %v2535 = vadd.f32 %v2236, %v2487
      %v2536 = vadd.f32 %v2237, %v2490
      %v2537 = vadd.f32 %v2238, %v2495
      %v2538 = vadd.f32 %v2239, %v2498
      %v2539 = vadd.f32 %v2240, %v2503
      %v2540 = vadd.f32 %v2241, %v2506
      %v2541 = vld [vmem:[%s2242 + $0x1] sm:$0xff]
      %v2542 = vld [vmem:[%s2242 + $0x9] sm:$0xff]
      %v2543 = vld [vmem:[%s2242 + $0x19] sm:$0xff]
      %v2544 = vld [vmem:[%s2242 + $0x21] sm:$0xff]
      %v2545 = vld [vmem:[%s2242 + $0x31] sm:$0xff]
      %v2546 = vld [vmem:[%s2242 + $0x39] sm:$0xff]
      %v2547 = vld [vmem:[%s2242 + $0x49] sm:$0xff]
      %v2548 = vld [vmem:[%s2242 + $0x51] sm:$0xff]
      %v2549 = vld [vmem:[%s2242 + $0x61] sm:$0xff]
      %v2550 = vld [vmem:[%s2242 + $0x69] sm:$0xff]
      %v2551 = vld [vmem:[%s2242 + $0x79] sm:$0xff]
      %v2552 = vld [vmem:[%s2242 + $0x81] sm:$0xff]
      %v2553 = vld [vmem:[%s2242 + $0x91] sm:$0xff]
      %v2554 = vld [vmem:[%s2242 + $0x99] sm:$0xff]
      %v2555 = vld [vmem:[%s2242 + $0xa9] sm:$0xff]
      %v2556 = vld [vmem:[%s2242 + $0xb1] sm:$0xff]
      %v2557 = vld [vmem:[%s2242 + $0xc1] sm:$0xff]
      %v2558 = vld [vmem:[%s2242 + $0xc9] sm:$0xff]
      %v2559 = vld [vmem:[%s2242 + $0xd9] sm:$0xff]
      %v2560 = vld [vmem:[%s2242 + $0xe1] sm:$0xff]
      %v2561 = vld [vmem:[%s2242 + $0xf1] sm:$0xff]
      %v2562 = vld [vmem:[%s2242 + $0xf9] sm:$0xff]
      %v2563 = vld [vmem:[%s2242 + $0x109] sm:$0xff]
      %v2564 = vld [vmem:[%s2242 + $0x111] sm:$0xff]
      %v2565 = vld [vmem:[%s2242 + $0x121] sm:$0xff]
      %v2566 = vld [vmem:[%s2242 + $0x129] sm:$0xff]
      %v2567 = vld [vmem:[%s2242 + $0x139] sm:$0xff]
      %v2568 = vld [vmem:[%s2242 + $0x141] sm:$0xff]
      %v2569 = vld [vmem:[%s2242 + $0x151] sm:$0xff]
      %v2570 = vld [vmem:[%s2242 + $0x159] sm:$0xff]
      %v2571 = vld [vmem:[%s2242 + $0x169] sm:$0xff]
      %v2572 = vld [vmem:[%s2242 + $0x171] sm:$0xff]
      %v2573 = vpack.c.bf16 %v2542, %v2541
      %v2574 = vpack.c.bf16 %v2544, %v2543
      %v2575 = vpack.c.bf16 %v2546, %v2545
      %v2576 = vpack.c.bf16 %v2548, %v2547
      %v2577 = vpack.c.bf16 %v2550, %v2549
      %v2578 = vpack.c.bf16 %v2552, %v2551
      %v2579 = vpack.c.bf16 %v2554, %v2553
      %v2580 = vpack.c.bf16 %v2556, %v2555
      %v2581 = vpack.c.bf16 %v2558, %v2557
      %v2582 = vpack.c.bf16 %v2560, %v2559
      %v2583 = vpack.c.bf16 %v2562, %v2561
      %v2584 = vpack.c.bf16 %v2564, %v2563
      %v2585 = vpack.c.bf16 %v2566, %v2565
      %v2586 = vpack.c.bf16 %v2568, %v2567
      %v2587 = vpack.c.bf16 %v2570, %v2569
      %v2588 = vpack.c.bf16 %v2572, %v2571
      %s2589 = scalar_lea.vmem %s1, 56
      %v2590 = vld [vmem:[%s2589] sm:$0xf]
      %v2591 = vld [vmem:[%s2589 + $0x4] sm:$0xf]
      %v2594 = vunpack.c.l.b16 %v2590
      %v2595 = vunpack.c.l.b16 %v2591
      %v2596 = vpack.c.b16 %v2595, %v2594
      %v2599 = vsel %vm270, %v2573, 0
      %v2602 = vsel %vm270, %v2574, 0
      %v2605 = vsel %vm270, %v2575, 0
      %v2608 = vsel %vm270, %v2576, 0
      %v2611 = vsel %vm270, %v2577, 0
      %v2614 = vsel %vm270, %v2578, 0
      %v2617 = vsel %vm270, %v2579, 0
      %v2620 = vsel %vm270, %v2580, 0
      %v2623 = vsel %vm270, %v2581, 0
      %v2626 = vsel %vm270, %v2582, 0
      %v2629 = vsel %vm270, %v2583, 0
      %v2632 = vsel %vm270, %v2584, 0
      %v2635 = vsel %vm270, %v2585, 0
      %v2638 = vsel %vm270, %v2586, 0
      %v2641 = vsel %vm270, %v2587, 0
      %v2644 = vsel %vm270, %v2588, 0
      %2646 = vmatprep.subr.bf16.mxu0 0
      %2647 = vmatpush1.bf16.msra.mxu0 %v2596
      %2648 = vmatprep.subr.bf16.mxu0 0
      %2649 = vmatpush1.bf16.msra.mxu0 0
      %2650 = vmatprep.subr.bf16.mxu0 0
      %2651 = vmatpush1.bf16.msra.mxu0 0
      %2652 = vmatprep.subr.bf16.mxu0 0
      %2653 = vmatpush1.bf16.msra.mxu0 0
      %2654 = vmatprep.subr.bf16.mxu0 0
      %2655 = vmatpush1.bf16.msra.mxu0 0
      %2656 = vmatprep.subr.bf16.mxu0 0
      %2657 = vmatpush1.bf16.msra.mxu0 0
      %2658 = vmatprep.subr.bf16.mxu0 0
      %2659 = vmatpush1.bf16.msra.mxu0 0
      %2660 = vmatprep.subr.bf16.mxu0 0
      %2661 = vmatpush1.bf16.msra.mxu0 0
      %2662 = vmatprep.subr.bf16.mxu0 0
      %2663 = vmatpush1.bf16.msra.mxu0 0
      %2664 = vmatprep.subr.bf16.mxu0 0
      %2665 = vmatpush1.bf16.msra.mxu0 0
      %2666 = vmatprep.subr.bf16.mxu0 0
      %2667 = vmatpush1.bf16.msra.mxu0 0
      %2668 = vmatprep.subr.bf16.mxu0 0
      %2669 = vmatpush1.bf16.msra.mxu0 0
      %2670 = vmatprep.subr.bf16.mxu0 0
      %2671 = vmatpush1.bf16.msra.mxu0 0
      %2672 = vmatprep.subr.bf16.mxu0 0
      %2673 = vmatpush1.bf16.msra.mxu0 0
      %2674 = vmatprep.subr.bf16.mxu0 0
      %2675 = vmatpush1.bf16.msra.mxu0 0
      %2676 = vmatprep.subr.bf16.mxu0 0
      %2677 = vmatpush1.bf16.msra.mxu0 0
      %2678 = vmatprep.mubr.bf16.mxu0 0
      %2679 = vmatmul.mubr.bf16.gmra.mrb[0].mxu0 %v2599
      %v2680 = vpop.f32.mrb[0].mxu0
      %v2681 = vadd.f32 0.0, %v2680
      %v2682 = vpop.f32.mrb[0].mxu0
      %v2683 = vpop.f32.mrb[0].mxu0
      %v2684 = vadd.f32 0.0, %v2683
      %v2685 = vpop.f32.mrb[0].mxu0
      %2686 = vmatprep.mubr.bf16.mxu0 0
      %2687 = vmatmul.mubr.bf16.gmra.mrb[0].mxu0 %v2602
      %v2688 = vpop.f32.mrb[0].mxu0
      %v2689 = vadd.f32 0.0, %v2688
      %v2690 = vpop.f32.mrb[0].mxu0
      %v2691 = vpop.f32.mrb[0].mxu0
      %v2692 = vadd.f32 0.0, %v2691
      %v2693 = vpop.f32.mrb[0].mxu0
      %2694 = vmatprep.mubr.bf16.mxu0 0
      %2695 = vmatmul.mubr.bf16.gmra.mrb[0].mxu0 %v2605
      %v2696 = vpop.f32.mrb[0].mxu0
      %v2697 = vadd.f32 0.0, %v2696
      %v2698 = vpop.f32.mrb[0].mxu0
      %v2699 = vpop.f32.mrb[0].mxu0
      %v2700 = vadd.f32 0.0, %v2699
      %v2701 = vpop.f32.mrb[0].mxu0
      %2702 = vmatprep.mubr.bf16.mxu0 0
      %2703 = vmatmul.mubr.bf16.gmra.mrb[0].mxu0 %v2608
      %v2704 = vpop.f32.mrb[0].mxu0
      %v2705 = vadd.f32 0.0, %v2704
      %v2706 = vpop.f32.mrb[0].mxu0
      %v2707 = vpop.f32.mrb[0].mxu0
      %v2708 = vadd.f32 0.0, %v2707
      %v2709 = vpop.f32.mrb[0].mxu0
      %2710 = vmatprep.mubr.bf16.mxu0 0
      %2711 = vmatmul.mubr.bf16.gmra.mrb[0].mxu0 %v2611
      %v2712 = vpop.f32.mrb[0].mxu0
      %v2713 = vadd.f32 0.0, %v2712
      %v2714 = vpop.f32.mrb[0].mxu0
      %v2715 = vpop.f32.mrb[0].mxu0
      %v2716 = vadd.f32 0.0, %v2715
      %v2717 = vpop.f32.mrb[0].mxu0
      %2718 = vmatprep.mubr.bf16.mxu0 0
      %2719 = vmatmul.mubr.bf16.gmra.mrb[0].mxu0 %v2614
      %v2720 = vpop.f32.mrb[0].mxu0
      %v2721 = vadd.f32 0.0, %v2720
      %v2722 = vpop.f32.mrb[0].mxu0
      %v2723 = vpop.f32.mrb[0].mxu0
      %v2724 = vadd.f32 0.0, %v2723
      %v2725 = vpop.f32.mrb[0].mxu0
      %2726 = vmatprep.mubr.bf16.mxu0 0
      %2727 = vmatmul.mubr.bf16.gmra.mrb[0].mxu0 %v2617
      %v2728 = vpop.f32.mrb[0].mxu0
      %v2729 = vadd.f32 0.0, %v2728
      %v2730 = vpop.f32.mrb[0].mxu0
      %v2731 = vpop.f32.mrb[0].mxu0
      %v2732 = vadd.f32 0.0, %v2731
      %v2733 = vpop.f32.mrb[0].mxu0
      %2734 = vmatprep.mubr.bf16.mxu0 0
      %2735 = vmatmul.mubr.bf16.gmra.mrb[0].mxu0 %v2620
      %v2736 = vpop.f32.mrb[0].mxu0
      %v2737 = vadd.f32 0.0, %v2736
      %v2738 = vpop.f32.mrb[0].mxu0
      %v2739 = vpop.f32.mrb[0].mxu0
      %v2740 = vadd.f32 0.0, %v2739
      %v2741 = vpop.f32.mrb[0].mxu0
      %2742 = vmatprep.mubr.bf16.mxu0 0
      %2743 = vmatmul.mubr.bf16.gmra.mrb[0].mxu0 %v2623
      %v2744 = vpop.f32.mrb[0].mxu0
      %v2745 = vadd.f32 0.0, %v2744
      %v2746 = vpop.f32.mrb[0].mxu0
      %v2747 = vpop.f32.mrb[0].mxu0
      %v2748 = vadd.f32 0.0, %v2747
      %v2749 = vpop.f32.mrb[0].mxu0
      %2750 = vmatprep.mubr.bf16.mxu0 0
      %2751 = vmatmul.mubr.bf16.gmra.mrb[0].mxu0 %v2626
      %v2752 = vpop.f32.mrb[0].mxu0
      %v2753 = vadd.f32 0.0, %v2752
      %v2754 = vpop.f32.mrb[0].mxu0
      %v2755 = vpop.f32.mrb[0].mxu0
      %v2756 = vadd.f32 0.0, %v2755
      %v2757 = vpop.f32.mrb[0].mxu0
      %2758 = vmatprep.mubr.bf16.mxu0 0
      %2759 = vmatmul.mubr.bf16.gmra.mrb[0].mxu0 %v2629
      %v2760 = vpop.f32.mrb[0].mxu0
      %v2761 = vadd.f32 0.0, %v2760
      %v2762 = vpop.f32.mrb[0].mxu0
      %v2763 = vpop.f32.mrb[0].mxu0
      %v2764 = vadd.f32 0.0, %v2763
      %v2765 = vpop.f32.mrb[0].mxu0
      %2766 = vmatprep.mubr.bf16.mxu0 0
      %2767 = vmatmul.mubr.bf16.gmra.mrb[0].mxu0 %v2632
      %v2768 = vpop.f32.mrb[0].mxu0
      %v2769 = vadd.f32 0.0, %v2768
      %v2770 = vpop.f32.mrb[0].mxu0
      %v2771 = vpop.f32.mrb[0].mxu0
      %v2772 = vadd.f32 0.0, %v2771
      %v2773 = vpop.f32.mrb[0].mxu0
      %2774 = vmatprep.mubr.bf16.mxu0 0
      %2775 = vmatmul.mubr.bf16.gmra.mrb[0].mxu0 %v2635
      %v2776 = vpop.f32.mrb[0].mxu0
      %v2777 = vadd.f32 0.0, %v2776
      %v2778 = vpop.f32.mrb[0].mxu0
      %v2779 = vpop.f32.mrb[0].mxu0
      %v2780 = vadd.f32 0.0, %v2779
      %v2781 = vpop.f32.mrb[0].mxu0
      %2782 = vmatprep.mubr.bf16.mxu0 0
      %2783 = vmatmul.mubr.bf16.gmra.mrb[0].mxu0 %v2638
      %v2784 = vpop.f32.mrb[0].mxu0
      %v2785 = vadd.f32 0.0, %v2784
      %v2786 = vpop.f32.mrb[0].mxu0
      %v2787 = vpop.f32.mrb[0].mxu0
      %v2788 = vadd.f32 0.0, %v2787
      %v2789 = vpop.f32.mrb[0].mxu0
      %2790 = vmatprep.mubr.bf16.mxu0 0
      %2791 = vmatmul.mubr.bf16.gmra.mrb[0].mxu0 %v2641
      %v2792 = vpop.f32.mrb[0].mxu0
      %v2793 = vadd.f32 0.0, %v2792
      %v2794 = vpop.f32.mrb[0].mxu0
      %v2795 = vpop.f32.mrb[0].mxu0
      %v2796 = vadd.f32 0.0, %v2795
      %v2797 = vpop.f32.mrb[0].mxu0
      %2798 = vmatprep.mubr.bf16.mxu0 0
      %2799 = vmatmul.mubr.bf16.gmra.mrb[0].mxu0 %v2644
      %v2800 = vpop.f32.mrb[0].mxu0
      %v2801 = vadd.f32 0.0, %v2800
      %v2802 = vpop.f32.mrb[0].mxu0
      %v2803 = vpop.f32.mrb[0].mxu0
      %v2804 = vadd.f32 0.0, %v2803
      %v2805 = vpop.f32.mrb[0].mxu0
      %2806 = vdwg.mxu0
      %v2807 = vadd.f32 %v2509, %v2681
      %v2808 = vadd.f32 %v2510, %v2684
      %v2809 = vadd.f32 %v2511, %v2689
      %v2810 = vadd.f32 %v2512, %v2692
      %v2811 = vadd.f32 %v2513, %v2697
      %v2812 = vadd.f32 %v2514, %v2700
      %v2813 = vadd.f32 %v2515, %v2705
      %v2814 = vadd.f32 %v2516, %v2708
      %v2815 = vadd.f32 %v2517, %v2713
      %v2816 = vadd.f32 %v2518, %v2716
      %v2817 = vadd.f32 %v2519, %v2721
      %v2818 = vadd.f32 %v2520, %v2724
      %v2819 = vadd.f32 %v2521, %v2729
      %v2820 = vadd.f32 %v2522, %v2732
      %v2821 = vadd.f32 %v2523, %v2737
      %v2822 = vadd.f32 %v2524, %v2740
      %v2823 = vadd.f32 %v2525, %v2745
      %v2824 = vadd.f32 %v2526, %v2748
      %v2825 = vadd.f32 %v2527, %v2753
      %v2826 = vadd.f32 %v2528, %v2756
      %v2827 = vadd.f32 %v2529, %v2761
      %v2828 = vadd.f32 %v2530, %v2764
      %v2829 = vadd.f32 %v2531, %v2769
      %v2830 = vadd.f32 %v2532, %v2772
      %v2831 = vadd.f32 %v2533, %v2777
      %v2832 = vadd.f32 %v2534, %v2780
      %v2833 = vadd.f32 %v2535, %v2785
      %v2834 = vadd.f32 %v2536, %v2788
      %v2835 = vadd.f32 %v2537, %v2793
      %v2836 = vadd.f32 %v2538, %v2796
      %v2837 = vadd.f32 %v2539, %v2801
      %v2838 = vadd.f32 %v2540, %v2804
      %v2839 = vld [vmem:[%s2242 + $0x2] sm:$0xff]
      %v2840 = vld [vmem:[%s2242 + $0xa] sm:$0xff]
      %v2841 = vld [vmem:[%s2242 + $0x1a] sm:$0xff]
      %v2842 = vld [vmem:[%s2242 + $0x22] sm:$0xff]
      %v2843 = vld [vmem:[%s2242 + $0x32] sm:$0xff]
      %v2844 = vld [vmem:[%s2242 + $0x3a] sm:$0xff]
      %v2845 = vld [vmem:[%s2242 + $0x4a] sm:$0xff]
      %v2846 = vld [vmem:[%s2242 + $0x52] sm:$0xff]
      %v2847 = vld [vmem:[%s2242 + $0x62] sm:$0xff]
      %v2848 = vld [vmem:[%s2242 + $0x6a] sm:$0xff]
      %v2849 = vld [vmem:[%s2242 + $0x7a] sm:$0xff]
      %v2850 = vld [vmem:[%s2242 + $0x82] sm:$0xff]
      %v2851 = vld [vmem:[%s2242 + $0x92] sm:$0xff]
      %v2852 = vld [vmem:[%s2242 + $0x9a] sm:$0xff]
      %v2853 = vld [vmem:[%s2242 + $0xaa] sm:$0xff]
      %v2854 = vld [vmem:[%s2242 + $0xb2] sm:$0xff]
      %v2855 = vld [vmem:[%s2242 + $0xc2] sm:$0xff]
      %v2856 = vld [vmem:[%s2242 + $0xca] sm:$0xff]
      %v2857 = vld [vmem:[%s2242 + $0xda] sm:$0xff]
      %v2858 = vld [vmem:[%s2242 + $0xe2] sm:$0xff]
      %v2859 = vld [vmem:[%s2242 + $0xf2] sm:$0xff]
      %v2860 = vld [vmem:[%s2242 + $0xfa] sm:$0xff]
      %v2861 = vld [vmem:[%s2242 + $0x10a] sm:$0xff]
      %v2862 = vld [vmem:[%s2242 + $0x112] sm:$0xff]
      %v2863 = vld [vmem:[%s2242 + $0x122] sm:$0xff]
      %v2864 = vld [vmem:[%s2242 + $0x12a] sm:$0xff]
      %v2865 = vld [vmem:[%s2242 + $0x13a] sm:$0xff]
      %v2866 = vld [vmem:[%s2242 + $0x142] sm:$0xff]
      %v2867 = vld [vmem:[%s2242 + $0x152] sm:$0xff]
      %v2868 = vld [vmem:[%s2242 + $0x15a] sm:$0xff]
      %v2869 = vld [vmem:[%s2242 + $0x16a] sm:$0xff]
      %v2870 = vld [vmem:[%s2242 + $0x172] sm:$0xff]
      %v2871 = vpack.c.bf16 %v2840, %v2839
      %v2872 = vpack.c.bf16 %v2842, %v2841
      %v2873 = vpack.c.bf16 %v2844, %v2843
      %v2874 = vpack.c.bf16 %v2846, %v2845
      %v2875 = vpack.c.bf16 %v2848, %v2847
      %v2876 = vpack.c.bf16 %v2850, %v2849
      %v2877 = vpack.c.bf16 %v2852, %v2851
      %v2878 = vpack.c.bf16 %v2854, %v2853
      %v2879 = vpack.c.bf16 %v2856, %v2855
      %v2880 = vpack.c.bf16 %v2858, %v2857
      %v2881 = vpack.c.bf16 %v2860, %v2859
      %v2882 = vpack.c.bf16 %v2862, %v2861
      %v2883 = vpack.c.bf16 %v2864, %v2863
      %v2884 = vpack.c.bf16 %v2866, %v2865
      %v2885 = vpack.c.bf16 %v2868, %v2867
      %v2886 = vpack.c.bf16 %v2870, %v2869
      %s2887 = scalar_lea.vmem %s1, 64
      %v2888 = vld [vmem:[%s2887] sm:$0xf]
      %v2889 = vld [vmem:[%s2887 + $0x4] sm:$0xf]
      %v2892 = vunpack.c.l.b16 %v2888
      %v2893 = vunpack.c.l.b16 %v2889
      %v2894 = vpack.c.b16 %v2893, %v2892
      %v2897 = vsel %vm270, %v2871, 0
      %v2900 = vsel %vm270, %v2872, 0
      %v2903 = vsel %vm270, %v2873, 0
      %v2906 = vsel %vm270, %v2874, 0
      %v2909 = vsel %vm270, %v2875, 0
      %v2912 = vsel %vm270, %v2876, 0
      %v2915 = vsel %vm270, %v2877, 0
      %v2918 = vsel %vm270, %v2878, 0
      %v2921 = vsel %vm270, %v2879, 0
      %v2924 = vsel %vm270, %v2880, 0
      %v2927 = vsel %vm270, %v2881, 0
      %v2930 = vsel %vm270, %v2882, 0
      %v2933 = vsel %vm270, %v2883, 0
      %v2936 = vsel %vm270, %v2884, 0
      %v2939 = vsel %vm270, %v2885, 0
      %v2942 = vsel %vm270, %v2886, 0
      %2944 = vmatprep.subr.bf16.mxu0 0
      %2945 = vmatpush1.bf16.msra.mxu0 %v2894
      %2946 = vmatprep.subr.bf16.mxu0 0
      %2947 = vmatpush1.bf16.msra.mxu0 0
      %2948 = vmatprep.subr.bf16.mxu0 0
      %2949 = vmatpush1.bf16.msra.mxu0 0
      %2950 = vmatprep.subr.bf16.mxu0 0
      %2951 = vmatpush1.bf16.msra.mxu0 0
      %2952 = vmatprep.subr.bf16.mxu0 0
      %2953 = vmatpush1.bf16.msra.mxu0 0
      %2954 = vmatprep.subr.bf16.mxu0 0
      %2955 = vmatpush1.bf16.msra.mxu0 0
      %2956 = vmatprep.subr.bf16.mxu0 0
      %2957 = vmatpush1.bf16.msra.mxu0 0
      %2958 = vmatprep.subr.bf16.mxu0 0
      %2959 = vmatpush1.bf16.msra.mxu0 0
      %2960 = vmatprep.subr.bf16.mxu0 0
      %2961 = vmatpush1.bf16.msra.mxu0 0
      %2962 = vmatprep.subr.bf16.mxu0 0
      %2963 = vmatpush1.bf16.msra.mxu0 0
      %2964 = vmatprep.subr.bf16.mxu0 0
      %2965 = vmatpush1.bf16.msra.mxu0 0
      %2966 = vmatprep.subr.bf16.mxu0 0
      %2967 = vmatpush1.bf16.msra.mxu0 0
      %2968 = vmatprep.subr.bf16.mxu0 0
      %2969 = vmatpush1.bf16.msra.mxu0 0
      %2970 = vmatprep.subr.bf16.mxu0 0
      %2971 = vmatpush1.bf16.msra.mxu0 0
      %2972 = vmatprep.subr.bf16.mxu0 0
      %2973 = vmatpush1.bf16.msra.mxu0 0
      %2974 = vmatprep.subr.bf16.mxu0 0
      %2975 = vmatpush1.bf16.msra.mxu0 0
      %2976 = vmatprep.mubr.bf16.mxu0 0
      %2977 = vmatmul.mubr.bf16.gmra.mrb[0].mxu0 %v2897
      %v2978 = vpop.f32.mrb[0].mxu0
      %v2979 = vadd.f32 0.0, %v2978
      %v2980 = vpop.f32.mrb[0].mxu0
      %v2981 = vpop.f32.mrb[0].mxu0
      %v2982 = vadd.f32 0.0, %v2981
      %v2983 = vpop.f32.mrb[0].mxu0
      %2984 = vmatprep.mubr.bf16.mxu0 0
      %2985 = vmatmul.mubr.bf16.gmra.mrb[0].mxu0 %v2900
      %v2986 = vpop.f32.mrb[0].mxu0
      %v2987 = vadd.f32 0.0, %v2986
      %v2988 = vpop.f32.mrb[0].mxu0
      %v2989 = vpop.f32.mrb[0].mxu0
      %v2990 = vadd.f32 0.0, %v2989
      %v2991 = vpop.f32.mrb[0].mxu0
      %2992 = vmatprep.mubr.bf16.mxu0 0
      %2993 = vmatmul.mubr.bf16.gmra.mrb[0].mxu0 %v2903
      %v2994 = vpop.f32.mrb[0].mxu0
      %v2995 = vadd.f32 0.0, %v2994
      %v2996 = vpop.f32.mrb[0].mxu0
      %v2997 = vpop.f32.mrb[0].mxu0
      %v2998 = vadd.f32 0.0, %v2997
      %v2999 = vpop.f32.mrb[0].mxu0
      %3000 = vmatprep.mubr.bf16.mxu0 0
      %3001 = vmatmul.mubr.bf16.gmra.mrb[0].mxu0 %v2906
      %v3002 = vpop.f32.mrb[0].mxu0
      %v3003 = vadd.f32 0.0, %v3002
      %v3004 = vpop.f32.mrb[0].mxu0
      %v3005 = vpop.f32.mrb[0].mxu0
      %v3006 = vadd.f32 0.0, %v3005
      %v3007 = vpop.f32.mrb[0].mxu0
      %3008 = vmatprep.mubr.bf16.mxu0 0
      %3009 = vmatmul.mubr.bf16.gmra.mrb[0].mxu0 %v2909
      %v3010 = vpop.f32.mrb[0].mxu0
      %v3011 = vadd.f32 0.0, %v3010
      %v3012 = vpop.f32.mrb[0].mxu0
      %v3013 = vpop.f32.mrb[0].mxu0
      %v3014 = vadd.f32 0.0, %v3013
      %v3015 = vpop.f32.mrb[0].mxu0
      %3016 = vmatprep.mubr.bf16.mxu0 0
      %3017 = vmatmul.mubr.bf16.gmra.mrb[0].mxu0 %v2912
      %v3018 = vpop.f32.mrb[0].mxu0
      %v3019 = vadd.f32 0.0, %v3018
      %v3020 = vpop.f32.mrb[0].mxu0
      %v3021 = vpop.f32.mrb[0].mxu0
      %v3022 = vadd.f32 0.0, %v3021
      %v3023 = vpop.f32.mrb[0].mxu0
      %3024 = vmatprep.mubr.bf16.mxu0 0
      %3025 = vmatmul.mubr.bf16.gmra.mrb[0].mxu0 %v2915
      %v3026 = vpop.f32.mrb[0].mxu0
      %v3027 = vadd.f32 0.0, %v3026
      %v3028 = vpop.f32.mrb[0].mxu0
      %v3029 = vpop.f32.mrb[0].mxu0
      %v3030 = vadd.f32 0.0, %v3029
      %v3031 = vpop.f32.mrb[0].mxu0
      %3032 = vmatprep.mubr.bf16.mxu0 0
      %3033 = vmatmul.mubr.bf16.gmra.mrb[0].mxu0 %v2918
      %v3034 = vpop.f32.mrb[0].mxu0
      %v3035 = vadd.f32 0.0, %v3034
      %v3036 = vpop.f32.mrb[0].mxu0
      %v3037 = vpop.f32.mrb[0].mxu0
      %v3038 = vadd.f32 0.0, %v3037
      %v3039 = vpop.f32.mrb[0].mxu0
      %3040 = vmatprep.mubr.bf16.mxu0 0
      %3041 = vmatmul.mubr.bf16.gmra.mrb[0].mxu0 %v2921
      %v3042 = vpop.f32.mrb[0].mxu0
      %v3043 = vadd.f32 0.0, %v3042
      %v3044 = vpop.f32.mrb[0].mxu0
      %v3045 = vpop.f32.mrb[0].mxu0
      %v3046 = vadd.f32 0.0, %v3045
      %v3047 = vpop.f32.mrb[0].mxu0
      %3048 = vmatprep.mubr.bf16.mxu0 0
      %3049 = vmatmul.mubr.bf16.gmra.mrb[0].mxu0 %v2924
      %v3050 = vpop.f32.mrb[0].mxu0
      %v3051 = vadd.f32 0.0, %v3050
      %v3052 = vpop.f32.mrb[0].mxu0
      %v3053 = vpop.f32.mrb[0].mxu0
      %v3054 = vadd.f32 0.0, %v3053
      %v3055 = vpop.f32.mrb[0].mxu0
      %3056 = vmatprep.mubr.bf16.mxu0 0
      %3057 = vmatmul.mubr.bf16.gmra.mrb[0].mxu0 %v2927
      %v3058 = vpop.f32.mrb[0].mxu0
      %v3059 = vadd.f32 0.0, %v3058
      %v3060 = vpop.f32.mrb[0].mxu0
      %v3061 = vpop.f32.mrb[0].mxu0
      %v3062 = vadd.f32 0.0, %v3061
      %v3063 = vpop.f32.mrb[0].mxu0
      %3064 = vmatprep.mubr.bf16.mxu0 0
      %3065 = vmatmul.mubr.bf16.gmra.mrb[0].mxu0 %v2930
      %v3066 = vpop.f32.mrb[0].mxu0
      %v3067 = vadd.f32 0.0, %v3066
      %v3068 = vpop.f32.mrb[0].mxu0
      %v3069 = vpop.f32.mrb[0].mxu0
      %v3070 = vadd.f32 0.0, %v3069
      %v3071 = vpop.f32.mrb[0].mxu0
      %3072 = vmatprep.mubr.bf16.mxu0 0
      %3073 = vmatmul.mubr.bf16.gmra.mrb[0].mxu0 %v2933
      %v3074 = vpop.f32.mrb[0].mxu0
      %v3075 = vadd.f32 0.0, %v3074
      %v3076 = vpop.f32.mrb[0].mxu0
      %v3077 = vpop.f32.mrb[0].mxu0
      %v3078 = vadd.f32 0.0, %v3077
      %v3079 = vpop.f32.mrb[0].mxu0
      %3080 = vmatprep.mubr.bf16.mxu0 0
      %3081 = vmatmul.mubr.bf16.gmra.mrb[0].mxu0 %v2936
      %v3082 = vpop.f32.mrb[0].mxu0
      %v3083 = vadd.f32 0.0, %v3082
      %v3084 = vpop.f32.mrb[0].mxu0
      %v3085 = vpop.f32.mrb[0].mxu0
      %v3086 = vadd.f32 0.0, %v3085
      %v3087 = vpop.f32.mrb[0].mxu0
      %3088 = vmatprep.mubr.bf16.mxu0 0
      %3089 = vmatmul.mubr.bf16.gmra.mrb[0].mxu0 %v2939
      %v3090 = vpop.f32.mrb[0].mxu0
      %v3091 = vadd.f32 0.0, %v3090
      %v3092 = vpop.f32.mrb[0].mxu0
      %v3093 = vpop.f32.mrb[0].mxu0
      %v3094 = vadd.f32 0.0, %v3093
      %v3095 = vpop.f32.mrb[0].mxu0
      %3096 = vmatprep.mubr.bf16.mxu0 0
      %3097 = vmatmul.mubr.bf16.gmra.mrb[0].mxu0 %v2942
      %v3098 = vpop.f32.mrb[0].mxu0
      %v3099 = vadd.f32 0.0, %v3098
      %v3100 = vpop.f32.mrb[0].mxu0
      %v3101 = vpop.f32.mrb[0].mxu0
      %v3102 = vadd.f32 0.0, %v3101
      %v3103 = vpop.f32.mrb[0].mxu0
      %3104 = vdwg.mxu0
      %v3105 = vadd.f32 %v2807, %v2979
      %v3106 = vadd.f32 %v2808, %v2982
      %v3107 = vadd.f32 %v2809, %v2987
      %v3108 = vadd.f32 %v2810, %v2990
      %v3109 = vadd.f32 %v2811, %v2995
      %v3110 = vadd.f32 %v2812, %v2998
      %v3111 = vadd.f32 %v2813, %v3003
      %v3112 = vadd.f32 %v2814, %v3006
      %v3113 = vadd.f32 %v2815, %v3011
      %v3114 = vadd.f32 %v2816, %v3014
      %v3115 = vadd.f32 %v2817, %v3019
      %v3116 = vadd.f32 %v2818, %v3022
      %v3117 = vadd.f32 %v2819, %v3027
      %v3118 = vadd.f32 %v2820, %v3030
      %v3119 = vadd.f32 %v2821, %v3035
      %v3120 = vadd.f32 %v2822, %v3038
      %v3121 = vadd.f32 %v2823, %v3043
      %v3122 = vadd.f32 %v2824, %v3046
      %v3123 = vadd.f32 %v2825, %v3051
      %v3124 = vadd.f32 %v2826, %v3054
      %v3125 = vadd.f32 %v2827, %v3059
      %v3126 = vadd.f32 %v2828, %v3062
      %v3127 = vadd.f32 %v2829, %v3067
      %v3128 = vadd.f32 %v2830, %v3070
      %v3129 = vadd.f32 %v2831, %v3075
      %v3130 = vadd.f32 %v2832, %v3078
      %v3131 = vadd.f32 %v2833, %v3083
      %v3132 = vadd.f32 %v2834, %v3086
      %v3133 = vadd.f32 %v2835, %v3091
      %v3134 = vadd.f32 %v2836, %v3094
      %v3135 = vadd.f32 %v2837, %v3099
      %v3136 = vadd.f32 %v2838, %v3102
      %v3137 = vsel %vm270, %v3105, 0.0
      %v3138 = vsel %vm270, %v3106, 0.0
      %v3139 = vadd.f32 %v3137, %v3138
      %v3140 = vsel %vm270, %v3107, 0.0
      %v3141 = vadd.f32 %v3139, %v3140
      %v3142 = vsel %vm270, %v3108, 0.0
      %v3143 = vadd.f32 %v3141, %v3142
      %v3144 = vsel %vm270, %v3109, 0.0
      %v3145 = vadd.f32 %v3143, %v3144
      %v3146 = vsel %vm270, %v3110, 0.0
      %v3147 = vadd.f32 %v3145, %v3146
      %v3148 = vsel %vm270, %v3111, 0.0
      %v3149 = vadd.f32 %v3147, %v3148
      %v3150 = vsel %vm270, %v3112, 0.0
      %v3151 = vadd.f32 %v3149, %v3150
      %v3152 = vsel %vm270, %v3113, 0.0
      %v3153 = vadd.f32 %v3151, %v3152
      %v3154 = vsel %vm270, %v3114, 0.0
      %v3155 = vadd.f32 %v3153, %v3154
      %v3156 = vsel %vm270, %v3115, 0.0
      %v3157 = vadd.f32 %v3155, %v3156
      %v3158 = vsel %vm270, %v3116, 0.0
      %v3159 = vadd.f32 %v3157, %v3158
      %v3160 = vsel %vm270, %v3117, 0.0
      %v3161 = vadd.f32 %v3159, %v3160
      %v3162 = vsel %vm270, %v3118, 0.0
      %v3163 = vadd.f32 %v3161, %v3162
      %v3164 = vsel %vm270, %v3119, 0.0
      %v3165 = vadd.f32 %v3163, %v3164
      %v3166 = vsel %vm270, %v3120, 0.0
      %v3167 = vadd.f32 %v3165, %v3166
      %v3168 = vsel %vm270, %v3121, 0.0
      %v3169 = vadd.f32 %v3167, %v3168
      %v3170 = vsel %vm270, %v3122, 0.0
      %v3171 = vadd.f32 %v3169, %v3170
      %v3172 = vsel %vm270, %v3123, 0.0
      %v3173 = vadd.f32 %v3171, %v3172
      %v3174 = vsel %vm270, %v3124, 0.0
      %v3175 = vadd.f32 %v3173, %v3174
      %v3176 = vsel %vm270, %v3125, 0.0
      %v3177 = vadd.f32 %v3175, %v3176
      %v3178 = vsel %vm270, %v3126, 0.0
      %v3179 = vadd.f32 %v3177, %v3178
      %v3180 = vsel %vm270, %v3127, 0.0
      %v3181 = vadd.f32 %v3179, %v3180
      %v3182 = vsel %vm270, %v3128, 0.0
      %v3183 = vadd.f32 %v3181, %v3182
      %v3184 = vsel %vm270, %v3129, 0.0
      %v3185 = vadd.f32 %v3183, %v3184
      %v3186 = vsel %vm270, %v3130, 0.0
      %v3187 = vadd.f32 %v3185, %v3186
      %v3188 = vsel %vm270, %v3131, 0.0
      %v3189 = vadd.f32 %v3187, %v3188
      %v3190 = vsel %vm270, %v3132, 0.0
      %v3191 = vadd.f32 %v3189, %v3190
      %v3192 = vsel %vm270, %v3133, 0.0
      %v3193 = vadd.f32 %v3191, %v3192
      %v3194 = vsel %vm270, %v3134, 0.0
      %v3195 = vadd.f32 %v3193, %v3194
      %v3196 = vsel %vm270, %v3135, 0.0
      %v3197 = vadd.f32 %v3195, %v3196
      %v3198 = vsel %vm270, %v3136, 0.0
      %v3199 = vadd.f32 %v3197, %v3198
      %v3200 = vrot.slane %v3199, 4
      %v3201 = vadd.f32 %v3199, %v3200
      %v3202 = vrot.slane %v3201, 2
      %v3203 = vadd.f32 %v3201, %v3202
      %v3204 = vrot.slane %v3203, 1
      %v3205 = vadd.f32 %v3203, %v3204
      %3206 = vst.msk [vmem:[%s265] sm:$0x1] %vm280, %v3205
      %v3207 = vmul.f32 %v3105, %v3105
      %v3208 = vmul.f32 %v3106, %v3106
      %v3209 = vmul.f32 %v3107, %v3107
      %v3210 = vmul.f32 %v3108, %v3108
      %v3211 = vmul.f32 %v3109, %v3109
      %v3212 = vmul.f32 %v3110, %v3110
      %v3213 = vmul.f32 %v3111, %v3111
      %v3214 = vmul.f32 %v3112, %v3112
      %v3215 = vmul.f32 %v3113, %v3113
      %v3216 = vmul.f32 %v3114, %v3114
      %v3217 = vmul.f32 %v3115, %v3115
      %v3218 = vmul.f32 %v3116, %v3116
      %v3219 = vmul.f32 %v3117, %v3117
      %v3220 = vmul.f32 %v3118, %v3118
      %v3221 = vmul.f32 %v3119, %v3119
      %v3222 = vmul.f32 %v3120, %v3120
      %v3223 = vmul.f32 %v3121, %v3121
      %v3224 = vmul.f32 %v3122, %v3122
      %v3225 = vmul.f32 %v3123, %v3123
      %v3226 = vmul.f32 %v3124, %v3124
      %v3227 = vmul.f32 %v3125, %v3125
      %v3228 = vmul.f32 %v3126, %v3126
      %v3229 = vmul.f32 %v3127, %v3127
      %v3230 = vmul.f32 %v3128, %v3128
      %v3231 = vmul.f32 %v3129, %v3129
      %v3232 = vmul.f32 %v3130, %v3130
      %v3233 = vmul.f32 %v3131, %v3131
      %v3234 = vmul.f32 %v3132, %v3132
      %v3235 = vmul.f32 %v3133, %v3133
      %v3236 = vmul.f32 %v3134, %v3134
      %v3237 = vmul.f32 %v3135, %v3135
      %v3238 = vmul.f32 %v3136, %v3136
      %v3239 = vsel %vm270, %v3207, 0.0
      %v3240 = vsel %vm270, %v3208, 0.0
      %v3241 = vadd.f32 %v3239, %v3240
      %v3242 = vsel %vm270, %v3209, 0.0
      %v3243 = vadd.f32 %v3241, %v3242
      %v3244 = vsel %vm270, %v3210, 0.0
      %v3245 = vadd.f32 %v3243, %v3244
      %v3246 = vsel %vm270, %v3211, 0.0
      %v3247 = vadd.f32 %v3245, %v3246
      %v3248 = vsel %vm270, %v3212, 0.0
      %v3249 = vadd.f32 %v3247, %v3248
      %v3250 = vsel %vm270, %v3213, 0.0
      %v3251 = vadd.f32 %v3249, %v3250
      %v3252 = vsel %vm270, %v3214, 0.0
      %v3253 = vadd.f32 %v3251, %v3252
      %v3254 = vsel %vm270, %v3215, 0.0
      %v3255 = vadd.f32 %v3253, %v3254
      %v3256 = vsel %vm270, %v3216, 0.0
      %v3257 = vadd.f32 %v3255, %v3256
      %v3258 = vsel %vm270, %v3217, 0.0
      %v3259 = vadd.f32 %v3257, %v3258
      %v3260 = vsel %vm270, %v3218, 0.0
      %v3261 = vadd.f32 %v3259, %v3260
      %v3262 = vsel %vm270, %v3219, 0.0
      %v3263 = vadd.f32 %v3261, %v3262
      %v3264 = vsel %vm270, %v3220, 0.0
      %v3265 = vadd.f32 %v3263, %v3264
      %v3266 = vsel %vm270, %v3221, 0.0
      %v3267 = vadd.f32 %v3265, %v3266
      %v3268 = vsel %vm270, %v3222, 0.0
      %v3269 = vadd.f32 %v3267, %v3268
      %v3270 = vsel %vm270, %v3223, 0.0
      %v3271 = vadd.f32 %v3269, %v3270
      %v3272 = vsel %vm270, %v3224, 0.0
      %v3273 = vadd.f32 %v3271, %v3272
      %v3274 = vsel %vm270, %v3225, 0.0
      %v3275 = vadd.f32 %v3273, %v3274
      %v3276 = vsel %vm270, %v3226, 0.0
      %v3277 = vadd.f32 %v3275, %v3276
      %v3278 = vsel %vm270, %v3227, 0.0
      %v3279 = vadd.f32 %v3277, %v3278
      %v3280 = vsel %vm270, %v3228, 0.0
      %v3281 = vadd.f32 %v3279, %v3280
      %v3282 = vsel %vm270, %v3229, 0.0
      %v3283 = vadd.f32 %v3281, %v3282
      %v3284 = vsel %vm270, %v3230, 0.0
      %v3285 = vadd.f32 %v3283, %v3284
      %v3286 = vsel %vm270, %v3231, 0.0
      %v3287 = vadd.f32 %v3285, %v3286
      %v3288 = vsel %vm270, %v3232, 0.0
      %v3289 = vadd.f32 %v3287, %v3288
      %v3290 = vsel %vm270, %v3233, 0.0
      %v3291 = vadd.f32 %v3289, %v3290
      %v3292 = vsel %vm270, %v3234, 0.0
      %v3293 = vadd.f32 %v3291, %v3292
      %v3294 = vsel %vm270, %v3235, 0.0
      %v3295 = vadd.f32 %v3293, %v3294
      %v3296 = vsel %vm270, %v3236, 0.0
      %v3297 = vadd.f32 %v3295, %v3296
      %v3298 = vsel %vm270, %v3237, 0.0
      %v3299 = vadd.f32 %v3297, %v3298
      %v3300 = vsel %vm270, %v3238, 0.0
      %v3301 = vadd.f32 %v3299, %v3300
      %v3302 = vrot.slane %v3301, 4
      %v3303 = vadd.f32 %v3301, %v3302
      %v3304 = vrot.slane %v3303, 2
      %v3305 = vadd.f32 %v3303, %v3304
      %v3306 = vrot.slane %v3305, 1
      %v3307 = vadd.f32 %v3305, %v3306
      %3308 = vst.msk [vmem:[%s268] sm:$0x1] %vm280, %v3307
      %v3309 = vpack.c.bf16 %v3106, %v3105
      %v3310 = vpack.c.bf16 %v3108, %v3107
      %v3311 = vpack.c.bf16 %v3110, %v3109
      %v3312 = vpack.c.bf16 %v3112, %v3111
      %v3313 = vpack.c.bf16 %v3114, %v3113
      %v3314 = vpack.c.bf16 %v3116, %v3115
      %v3315 = vpack.c.bf16 %v3118, %v3117
      %v3316 = vpack.c.bf16 %v3120, %v3119
      %v3317 = vpack.c.bf16 %v3122, %v3121
      %v3318 = vpack.c.bf16 %v3124, %v3123
      %v3319 = vpack.c.bf16 %v3126, %v3125
      %v3320 = vpack.c.bf16 %v3128, %v3127
      %v3321 = vpack.c.bf16 %v3130, %v3129
      %v3322 = vpack.c.bf16 %v3132, %v3131
      %v3323 = vpack.c.bf16 %v3134, %v3133
      %v3324 = vpack.c.bf16 %v3136, %v3135
      %v3341 = vunpack.c.l.b16 %v3309
      %v3342 = vunpack.c.h.b16 %v3309
      %v3343 = vunpack.c.l.b16 %v3310
      %v3344 = vunpack.c.h.b16 %v3310
      %v3345 = vunpack.c.l.b16 %v3311
      %v3346 = vunpack.c.h.b16 %v3311
      %v3347 = vunpack.c.l.b16 %v3312
      %v3348 = vunpack.c.h.b16 %v3312
      %v3349 = vunpack.c.l.b16 %v3313
      %v3350 = vunpack.c.h.b16 %v3313
      %v3351 = vunpack.c.l.b16 %v3314
      %v3352 = vunpack.c.h.b16 %v3314
      %v3353 = vunpack.c.l.b16 %v3315
      %v3354 = vunpack.c.h.b16 %v3315
      %v3355 = vunpack.c.l.b16 %v3316
      %v3356 = vunpack.c.h.b16 %v3316
      %v3357 = vunpack.c.l.b16 %v3317
      %v3358 = vunpack.c.h.b16 %v3317
      %v3359 = vunpack.c.l.b16 %v3318
      %v3360 = vunpack.c.h.b16 %v3318
      %v3361 = vunpack.c.l.b16 %v3319
      %v3362 = vunpack.c.h.b16 %v3319
      %v3363 = vunpack.c.l.b16 %v3320
      %v3364 = vunpack.c.h.b16 %v3320
      %v3365 = vunpack.c.l.b16 %v3321
      %v3366 = vunpack.c.h.b16 %v3321
      %v3367 = vunpack.c.l.b16 %v3322
      %v3368 = vunpack.c.h.b16 %v3322
      %v3369 = vunpack.c.l.b16 %v3323
      %v3370 = vunpack.c.h.b16 %v3323
      %v3371 = vunpack.c.l.b16 %v3324
      %v3372 = vunpack.c.h.b16 %v3324
      %v3373 = vpack.c.b16 %v3341, %v3341
      %v3374 = vpack.c.b16 %v3342, %v3342
      %v3375 = vpack.c.b16 %v3343, %v3343
      %v3376 = vpack.c.b16 %v3344, %v3344
      %v3377 = vpack.c.b16 %v3345, %v3345
      %v3378 = vpack.c.b16 %v3346, %v3346
      %v3379 = vpack.c.b16 %v3347, %v3347
      %v3380 = vpack.c.b16 %v3348, %v3348
      %v3381 = vpack.c.b16 %v3349, %v3349
      %v3382 = vpack.c.b16 %v3350, %v3350
      %v3383 = vpack.c.b16 %v3351, %v3351
      %v3384 = vpack.c.b16 %v3352, %v3352
      %v3385 = vpack.c.b16 %v3353, %v3353
      %v3386 = vpack.c.b16 %v3354, %v3354
      %v3387 = vpack.c.b16 %v3355, %v3355
      %v3388 = vpack.c.b16 %v3356, %v3356
      %v3389 = vpack.c.b16 %v3357, %v3357
      %v3390 = vpack.c.b16 %v3358, %v3358
      %v3391 = vpack.c.b16 %v3359, %v3359
      %v3392 = vpack.c.b16 %v3360, %v3360
      %v3393 = vpack.c.b16 %v3361, %v3361
      %v3394 = vpack.c.b16 %v3362, %v3362
      %v3395 = vpack.c.b16 %v3363, %v3363
      %v3396 = vpack.c.b16 %v3364, %v3364
      %v3397 = vpack.c.b16 %v3365, %v3365
      %v3398 = vpack.c.b16 %v3366, %v3366
      %v3399 = vpack.c.b16 %v3367, %v3367
      %v3400 = vpack.c.b16 %v3368, %v3368
      %v3401 = vpack.c.b16 %v3369, %v3369
      %v3402 = vpack.c.b16 %v3370, %v3370
      %v3403 = vpack.c.b16 %v3371, %v3371
      %v3404 = vpack.c.b16 %v3372, %v3372
      %vm3437 = vcmask 125952
      %3438 = vst.msk [vmem:[%s262] sm:$0xf] %vm3437, %v3373
      %3439 = vst.msk [vmem:[%s262 + $0x4] sm:$0xf] %vm3437, %v3374
      %3440 = vst.msk [vmem:[%s262 + $0x8] sm:$0xf] %vm3437, %v3375
      %3441 = vst.msk [vmem:[%s262 + $0xc] sm:$0xf] %vm3437, %v3376
      %3442 = vst.msk [vmem:[%s262 + $0x10] sm:$0xf] %vm3437, %v3377
      %3443 = vst.msk [vmem:[%s262 + $0x14] sm:$0xf] %vm3437, %v3378
      %3444 = vst.msk [vmem:[%s262 + $0x18] sm:$0xf] %vm3437, %v3379
      %3445 = vst.msk [vmem:[%s262 + $0x1c] sm:$0xf] %vm3437, %v3380
      %3446 = vst.msk [vmem:[%s262 + $0x20] sm:$0xf] %vm3437, %v3381
      %3447 = vst.msk [vmem:[%s262 + $0x24] sm:$0xf] %vm3437, %v3382
      %3448 = vst.msk [vmem:[%s262 + $0x28] sm:$0xf] %vm3437, %v3383
      %3449 = vst.msk [vmem:[%s262 + $0x2c] sm:$0xf] %vm3437, %v3384
      %3450 = vst.msk [vmem:[%s262 + $0x30] sm:$0xf] %vm3437, %v3385
      %3451 = vst.msk [vmem:[%s262 + $0x34] sm:$0xf] %vm3437, %v3386
      %3452 = vst.msk [vmem:[%s262 + $0x38] sm:$0xf] %vm3437, %v3387
      %3453 = vst.msk [vmem:[%s262 + $0x3c] sm:$0xf] %vm3437, %v3388
      %3454 = vst.msk [vmem:[%s262 + $0x40] sm:$0xf] %vm3437, %v3389
      %3455 = vst.msk [vmem:[%s262 + $0x44] sm:$0xf] %vm3437, %v3390
      %3456 = vst.msk [vmem:[%s262 + $0x48] sm:$0xf] %vm3437, %v3391
      %3457 = vst.msk [vmem:[%s262 + $0x4c] sm:$0xf] %vm3437, %v3392
      %3458 = vst.msk [vmem:[%s262 + $0x50] sm:$0xf] %vm3437, %v3393
      %3459 = vst.msk [vmem:[%s262 + $0x54] sm:$0xf] %vm3437, %v3394
      %3460 = vst.msk [vmem:[%s262 + $0x58] sm:$0xf] %vm3437, %v3395
      %3461 = vst.msk [vmem:[%s262 + $0x5c] sm:$0xf] %vm3437, %v3396
      %3462 = vst.msk [vmem:[%s262 + $0x60] sm:$0xf] %vm3437, %v3397
      %3463 = vst.msk [vmem:[%s262 + $0x64] sm:$0xf] %vm3437, %v3398
      %3464 = vst.msk [vmem:[%s262 + $0x68] sm:$0xf] %vm3437, %v3399
      %3465 = vst.msk [vmem:[%s262 + $0x6c] sm:$0xf] %vm3437, %v3400
      %3466 = vst.msk [vmem:[%s262 + $0x70] sm:$0xf] %vm3437, %v3401
      %3467 = vst.msk [vmem:[%s262 + $0x74] sm:$0xf] %vm3437, %v3402
      %3468 = vst.msk [vmem:[%s262 + $0x78] sm:$0xf] %vm3437, %v3403
      %3469 = vst.msk [vmem:[%s262 + $0x7c] sm:$0xf] %vm3437, %v3404
      %p3470 = scmp.lt.s32.totalorder %s18, 1
      %s3471 = scalar_select %p3470, %s18, 1
      %s3472 = smul.addr %s3471, 32
      %s3473 = smul.addr %s3472, 4
      %s3474 = scalar_lea.vmem %s4, %s3473
      %p3475 = scmp.lt.s32.totalorder %s18, 1
      %s3476 = scalar_select %p3475, %s18, 1
      %s3477 = scalar_lea.vmem %s5, %s3476
      %p3478 = scmp.lt.s32.totalorder %s18, 1
      %s3479 = scalar_select %p3478, %s18, 1
      %s3480 = scalar_lea.vmem %s6, %s3479
      // Predicated region
      $region37: #{basic_block_forward.4} parent=35 // pred_check
        %p3481 = pneg %p125
      $region38: #{basic_block_forward.4} parent=35 // pred_check_branch
        %3483 = sbr.rel (%p3481) target = $region40
      $region39: #{basic_block_forward.4} parent=35 // pred_region
        _
      $region40: #{basic_block_forward.4} parent=35 // pred_fallthru
        _
      // Predicated region
      $region41: #{basic_block_forward.4} parent=35 // pred_check
        %p3484 = pneg %p151
      $region42: #{basic_block_forward.4} parent=35 // pred_check_branch
        %3486 = sbr.rel (%p3484) target = $region44
      $region43: #{basic_block_forward.4} parent=35 // pred_region
        _
      $region44: #{basic_block_forward.4} parent=35 // pred_fallthru
        _
      // Predicated region
      $region45: #{basic_block_forward.4} parent=35 // pred_check
        %p3487 = pneg %p177
      $region46: #{basic_block_forward.4} parent=35 // pred_check_branch
        %3489 = sbr.rel (%p3487) target = $region48
      $region47: #{basic_block_forward.4} parent=35 // pred_region
        _
      $region48: #{basic_block_forward.4} parent=35 // pred_fallthru
        _
    $region36: #{basic_block_forward.4} parent=5 // pred_fallthru
      _
    %p3490 = scmp.le.s32.totalorder 2, %s13
    // Predicated region
    $region49: #{basic_block_forward.4} parent=5 // pred_check
      %p3491 = pneg %p3490
    $region50: #{basic_block_forward.4} parent=5 // pred_check_branch
      %3493 = sbr.rel (%p3491) target = $region52
    $region51: #{basic_block_forward.4} parent=5 // pred_region
      %s3494 = ssub.s32 %s13, 2
      // Predicated region
      $region53: #{basic_block_forward.4} parent=51 // pred_check
        %p3495 = pneg %p131
      $region54: #{basic_block_forward.4} parent=51 // pred_check_branch
        %3497 = sbr.rel (%p3495) target = $region56
      $region55: #{basic_block_forward.4} parent=51 // pred_region
        %p3498 = scmp.lt.s32.totalorder %s19, 1
        %s3499 = scalar_select %p3498, %s19, 1
        %s3500 = smul.addr %s3499, 32
        %s3501 = smul.addr %s3500, 4
        %s3502 = scalar_lea.vmem %s4, %s3501
      $region56: #{basic_block_forward.4} parent=51 // pred_fallthru
        _
      // Predicated region
      $region57: #{basic_block_forward.4} parent=51 // pred_check
        %p3503 = pneg %p157
      $region58: #{basic_block_forward.4} parent=51 // pred_check_branch
        %3505 = sbr.rel (%p3503) target = $region60
      $region59: #{basic_block_forward.4} parent=51 // pred_region
        %p3506 = scmp.lt.s32.totalorder %s19, 1
        %s3507 = scalar_select %p3506, %s19, 1
        %s3508 = scalar_lea.vmem %s5, %s3507
      $region60: #{basic_block_forward.4} parent=51 // pred_fallthru
        _
      // Predicated region
      $region61: #{basic_block_forward.4} parent=51 // pred_check
        %p3509 = pneg %p183
      $region62: #{basic_block_forward.4} parent=51 // pred_check_branch
        %3511 = sbr.rel (%p3509) target = $region64
      $region63: #{basic_block_forward.4} parent=51 // pred_region
        %p3512 = scmp.lt.s32.totalorder %s19, 1
        %s3513 = scalar_select %p3512, %s19, 1
        %s3514 = scalar_lea.vmem %s6, %s3513
      $region64: #{basic_block_forward.4} parent=51 // pred_fallthru
        _
    $region52: #{basic_block_forward.4} parent=5 // pred_fallthru
      _
  $region6: #{basic_block_forward.4} parent=0 // loop_footer
    %s17 = sadd.s32 1, %s13
  $region7: #{basic_block_forward.4} parent=0 // loop_footer_branch
    %12 = sbr.rel target = $region3
  $region8: #{basic_block_forward.4} parent=0 // loop_exit
    _

// kernel: basic_block_forward.3
$region0: #{basic_block_forward.3}
  #allocation0 [shape = 'u32[]', space=smem, size = 0x4, offset = 0x4, fixed_abs, tag = 'smem constant byte address 0x4 - core index']
  #allocation1 [shape = 'u32[144,128]{1,0:T(1,128)}', space=vmem, size = 0x12000, scoped, tag = 'internal scratch']
  #allocation2 [shape = 'f32[18,18,16]{2,1,0:T(8,128)}', space=vmem, size = 0x36000, scoped, tag = 'scratch operand']
  %s0 = inlined_call_operand.vmem [shape: f32[2,16,16,16], index: 0, kind: input, shape index: {}]
  %s1 = inlined_call_operand.vmem [shape: bf16[9,16,16], index: 1, kind: input, shape index: {}]
  %s2 = inlined_call_operand.vmem [shape: f32[1,16], index: 2, kind: input, shape index: {}]
  %s3 = inlined_call_operand.vmem [shape: f32[1,16], index: 3, kind: input, shape index: {}]
  %s4 = inlined_call_operand.vmem [shape: bf16[2,256,16], index: 4, kind: output, shape index: {0}]
  %s5 = inlined_call_operand.vmem [shape: f32[2,1,16], index: 5, kind: output, shape index: {1}]
  %s6 = inlined_call_operand.vmem [shape: f32[2,1,16], index: 6, kind: output, shape index: {2}]
  %7 = xla_tuple %s4, %s5, %s6
  %s8 = sld [smem:[#allocation0]]
  $region65: #{basic_block_forward.3} parent=0
    _
  %s10 = ssub.s32 1, %s8
  %s11 = scalar_select 0, %s10, %s8
  loop: start=0, step=1, limit=4
  $region2: #{basic_block_forward.3} parent=0 // loop_pre_header
    _
  $region3: #{basic_block_forward.3} parent=0 // loop_header
    %s13 = sphi 0, %s17
    %p14 = scmp.ge.s32.totalorder %s13, 4
    %s23 = sphi 0, %s25
    %s26 = sphi 0, %s23
    %s27 = sphi 0, %s26
    %s43 = sphi 0, %s27
    %s47 = sphi 0, %s47
    %s49 = sphi 0, %s47
    %s50 = sphi 0, %s49
    %s64 = sphi 0, %s50
    %s68 = sphi 0, %s68
    %s70 = sphi 0, %s68
    %s71 = sphi 0, %s70
    %s85 = sphi 0, %s71
    %s89 = sphi 0, %s89
    %s91 = sphi 0, %s89
    %s92 = sphi 0, %s91
    %s106 = sphi 0, %s92
    %s112 = sphi 0, %s114
    %s115 = sphi 0, %s112
    %s116 = sphi 0, %s115
    %s132 = sphi 0, %s116
    %s138 = sphi 0, %s140
    %s141 = sphi 0, %s138
    %s142 = sphi 0, %s141
    %s158 = sphi 0, %s142
    %s164 = sphi 0, %s166
    %s167 = sphi 0, %s164
    %s168 = sphi 0, %s167
    %s184 = sphi 0, %s168
  $region4: #{basic_block_forward.3} parent=0 // loop_header_branch
    %16 = sbr.rel (%p14) target = $region8
  $region5: #{basic_block_forward.3} parent=0 // loop_body
    %s18 = ssub.s32 %s13, 1
    %s19 = ssub.s32 %s13, 2
    %s20 = sadd.s32 %s13, 1
    %s21 = ssub.s32 %s13, %s20
    %p22 = scmp.eq.s32.totalorder %s21, 0
    %s24 = sadd.s32 %s23, 1
    %s25 = scalar_select %p22, %s23, %s24
    %p28 = pneg %p22
    %p29 = scmp.eq.s32.totalorder %s13, 1
    %p30 = por %p28, %p29
    %p31 = scmp.ne.s32.totalorder %s23, %s26
    %p32 = scmp.eq.s32.totalorder %s13, 0
    %p33 = por %p31, %p32
    %p34 = scmp.ne.s32.totalorder %s23, %s26
    %p35 = scmp.eq.s32.totalorder %s18, 1
    %p36 = por %p34, %p35
    %p37 = scmp.ne.s32.totalorder %s26, %s27
    %p38 = scmp.eq.s32.totalorder %s18, 0
    %p39 = por %p37, %p38
    %p40 = scmp.ne.s32.totalorder %s26, %s27
    %p41 = scmp.eq.s32.totalorder %s19, 1
    %p42 = por %p40, %p41
    %p44 = scmp.ne.s32.totalorder %s27, %s43
    %p45 = scmp.eq.s32.totalorder %s19, 0
    %p46 = por %p44, %p45
    %s48 = sadd.s32 %s47, 1
    %p51 = scmp.eq.s32.totalorder %s13, 1
    %p52 = scmp.ne.s32.totalorder %s47, %s49
    %p53 = scmp.eq.s32.totalorder %s13, 0
    %p54 = por %p52, %p53
    %p55 = scmp.ne.s32.totalorder %s47, %s49
    %p56 = scmp.eq.s32.totalorder %s18, 1
    %p57 = por %p55, %p56
    %p58 = scmp.ne.s32.totalorder %s49, %s50
    %p59 = scmp.eq.s32.totalorder %s18, 0
    %p60 = por %p58, %p59
    %p61 = scmp.ne.s32.totalorder %s49, %s50
    %p62 = scmp.eq.s32.totalorder %s19, 1
    %p63 = por %p61, %p62
    %p65 = scmp.ne.s32.totalorder %s50, %s64
    %p66 = scmp.eq.s32.totalorder %s19, 0
    %p67 = por %p65, %p66
    %s69 = sadd.s32 %s68, 1
    %p72 = scmp.eq.s32.totalorder %s13, 1
    %p73 = scmp.ne.s32.totalorder %s68, %s70
    %p74 = scmp.eq.s32.totalorder %s13, 0
    %p75 = por %p73, %p74
    %p76 = scmp.ne.s32.totalorder %s68, %s70
    %p77 = scmp.eq.s32.totalorder %s18, 1
    %p78 = por %p76, %p77
    %p79 = scmp.ne.s32.totalorder %s70, %s71
    %p80 = scmp.eq.s32.totalorder %s18, 0
    %p81 = por %p79, %p80
    %p82 = scmp.ne.s32.totalorder %s70, %s71
    %p83 = scmp.eq.s32.totalorder %s19, 1
    %p84 = por %p82, %p83
    %p86 = scmp.ne.s32.totalorder %s71, %s85
    %p87 = scmp.eq.s32.totalorder %s19, 0
    %p88 = por %p86, %p87
    %s90 = sadd.s32 %s89, 1
    %p93 = scmp.eq.s32.totalorder %s13, 1
    %p94 = scmp.ne.s32.totalorder %s89, %s91
    %p95 = scmp.eq.s32.totalorder %s13, 0
    %p96 = por %p94, %p95
    %p97 = scmp.ne.s32.totalorder %s89, %s91
    %p98 = scmp.eq.s32.totalorder %s18, 1
    %p99 = por %p97, %p98
    %p100 = scmp.ne.s32.totalorder %s91, %s92
    %p101 = scmp.eq.s32.totalorder %s18, 0
    %p102 = por %p100, %p101
    %p103 = scmp.ne.s32.totalorder %s91, %s92
    %p104 = scmp.eq.s32.totalorder %s19, 1
    %p105 = por %p103, %p104
    %p107 = scmp.ne.s32.totalorder %s92, %s106
    %p108 = scmp.eq.s32.totalorder %s19, 0
    %p109 = por %p107, %p108
    %s110 = ssub.s32 %s13, %s20
    %p111 = scmp.eq.s32.totalorder %s110, 0
    %s113 = sadd.s32 %s112, 1
    %s114 = scalar_select %p111, %s112, %s113
    %p117 = pneg %p111
    %p118 = scmp.eq.s32.totalorder %s13, 1
    %p119 = por %p117, %p118
    %p120 = scmp.ne.s32.totalorder %s112, %s115
    %p121 = scmp.eq.s32.totalorder %s13, 0
    %p122 = por %p120, %p121
    %p123 = scmp.ne.s32.totalorder %s112, %s115
    %p124 = scmp.eq.s32.totalorder %s18, 1
    %p125 = por %p123, %p124
    %p126 = scmp.ne.s32.totalorder %s115, %s116
    %p127 = scmp.eq.s32.totalorder %s18, 0
    %p128 = por %p126, %p127
    %p129 = scmp.ne.s32.totalorder %s115, %s116
    %p130 = scmp.eq.s32.totalorder %s19, 1
    %p131 = por %p129, %p130
    %p133 = scmp.ne.s32.totalorder %s116, %s132
    %p134 = scmp.eq.s32.totalorder %s19, 0
    %p135 = por %p133, %p134
    %s136 = ssub.s32 %s13, %s20
    %p137 = scmp.eq.s32.totalorder %s136, 0
    %s139 = sadd.s32 %s138, 1
    %s140 = scalar_select %p137, %s138, %s139
    %p143 = pneg %p137
    %p144 = scmp.eq.s32.totalorder %s13, 1
    %p145 = por %p143, %p144
    %p146 = scmp.ne.s32.totalorder %s138, %s141
    %p147 = scmp.eq.s32.totalorder %s13, 0
    %p148 = por %p146, %p147
    %p149 = scmp.ne.s32.totalorder %s138, %s141
    %p150 = scmp.eq.s32.totalorder %s18, 1
    %p151 = por %p149, %p150
    %p152 = scmp.ne.s32.totalorder %s141, %s142
    %p153 = scmp.eq.s32.totalorder %s18, 0
    %p154 = por %p152, %p153
    %p155 = scmp.ne.s32.totalorder %s141, %s142
    %p156 = scmp.eq.s32.totalorder %s19, 1
    %p157 = por %p155, %p156
    %p159 = scmp.ne.s32.totalorder %s142, %s158
    %p160 = scmp.eq.s32.totalorder %s19, 0
    %p161 = por %p159, %p160
    %s162 = ssub.s32 %s13, %s20
    %p163 = scmp.eq.s32.totalorder %s162, 0
    %s165 = sadd.s32 %s164, 1
    %s166 = scalar_select %p163, %s164, %s165
    %p169 = pneg %p163
    %p170 = scmp.eq.s32.totalorder %s13, 1
    %p171 = por %p169, %p170
    %p172 = scmp.ne.s32.totalorder %s164, %s167
    %p173 = scmp.eq.s32.totalorder %s13, 0
    %p174 = por %p172, %p173
    %p175 = scmp.ne.s32.totalorder %s164, %s167
    %p176 = scmp.eq.s32.totalorder %s18, 1
    %p177 = por %p175, %p176
    %p178 = scmp.ne.s32.totalorder %s167, %s168
    %p179 = scmp.eq.s32.totalorder %s18, 0
    %p180 = por %p178, %p179
    %p181 = scmp.ne.s32.totalorder %s167, %s168
    %p182 = scmp.eq.s32.totalorder %s19, 1
    %p183 = por %p181, %p182
    %p185 = scmp.ne.s32.totalorder %s168, %s184
    %p186 = scmp.eq.s32.totalorder %s19, 0
    %p187 = por %p185, %p186
    %p188 = scmp.le.s32.totalorder 1, %s13
    %p189 = scmp.lt.s32.totalorder %s13, 3
    %p190 = pnand %p188, %p189
    %p191 = pneg %p190
    // Predicated region
    $region9: #{basic_block_forward.3} parent=5 // pred_check
      _
    $region10: #{basic_block_forward.3} parent=5 // pred_check_branch
      %193 = sbr.rel (%p190) target = $region12
    $region11: #{basic_block_forward.3} parent=5 // pred_region
      %s194 = ssub.s32 %s13, 1
      // Predicated region
      $region13: #{basic_block_forward.3} parent=11 // pred_check
        %p195 = pneg %p60
      $region14: #{basic_block_forward.3} parent=11 // pred_check_branch
        %197 = sbr.rel (%p195) target = $region16
      $region15: #{basic_block_forward.3} parent=11 // pred_region
        _
      $region16: #{basic_block_forward.3} parent=11 // pred_fallthru
        _
      // Predicated region
      $region17: #{basic_block_forward.3} parent=11 // pred_check
        %p198 = pneg %p81
      $region18: #{basic_block_forward.3} parent=11 // pred_check_branch
        %200 = sbr.rel (%p198) target = $region20
      $region19: #{basic_block_forward.3} parent=11 // pred_region
        _
      $region20: #{basic_block_forward.3} parent=11 // pred_fallthru
        _
      // Predicated region
      $region21: #{basic_block_forward.3} parent=11 // pred_check
        %p201 = pneg %p102
      $region22: #{basic_block_forward.3} parent=11 // pred_check_branch
        %203 = sbr.rel (%p201) target = $region24
      $region23: #{basic_block_forward.3} parent=11 // pred_region
        _
      $region24: #{basic_block_forward.3} parent=11 // pred_fallthru
        _
    $region12: #{basic_block_forward.3} parent=5 // pred_fallthru
      _
    %p204 = scmp.lt.s32.totalorder %s13, 2
    // Predicated region
    $region25: #{basic_block_forward.3} parent=5 // pred_check
      %p205 = pneg %p204
    $region26: #{basic_block_forward.3} parent=5 // pred_check_branch
      %207 = sbr.rel (%p205) target = $region28
    $region27: #{basic_block_forward.3} parent=5 // pred_region
      // Predicated region
      $region29: #{basic_block_forward.3} parent=27 // pred_check
        %p208 = pneg %p33
      $region30: #{basic_block_forward.3} parent=27 // pred_check_branch
        %210 = sbr.rel (%p208) target = $region32
      $region31: #{basic_block_forward.3} parent=27 // pred_region
        %p211 = scmp.lt.s32.totalorder %s13, 1
        %s212 = scalar_select %p211, %s13, 1
        %s213 = smul.addr %s212, 32
        %s214 = smul.addr %s213, 8
        %s215 = scalar_lea.vmem %s0, %s214
      $region32: #{basic_block_forward.3} parent=27 // pred_fallthru
        _
    $region28: #{basic_block_forward.3} parent=5 // pred_fallthru
      _
    %p216 = scmp.le.s32.totalorder 1, %s13
    %p217 = scmp.lt.s32.totalorder %s13, 3
    %p218 = pnand %p216, %p217
    %p219 = pneg %p218
    // Predicated region
    $region33: #{basic_block_forward.3} parent=5 // pred_check
      _
    $region34: #{basic_block_forward.3} parent=5 // pred_check_branch
      %221 = sbr.rel (%p218) target = $region36
    $region35: #{basic_block_forward.3} parent=5 // pred_region
      %s222 = ssub.s32 %s13, 1
      %p223 = scmp.lt.s32.totalorder %s18, 1
      %s224 = scalar_select %p223, %s18, 1
      %s225 = smul.addr %s224, 32
      %s226 = smul.addr %s225, 8
      %s227 = scalar_lea.vmem %s0, %s226
      %p228 = pneg %p39
      %p229 = pneg %p36
      %p230 = pneg %p60
      %p231 = pneg %p57
      %p232 = pneg %p81
      %p233 = pneg %p78
      %p234 = pneg %p102
      %p235 = pneg %p99
      %p236 = pneg %p128
      %p237 = pneg %p125
      %p238 = scmp.lt.s32.totalorder %s18, 1
      %s239 = scalar_select %p238, %s18, 1
      %s240 = smul.addr %s239, 32
      %s241 = smul.addr %s240, 4
      %s242 = scalar_lea.vmem %s4, %s241
      %p243 = pneg %p154
      %p244 = pneg %p151
      %p245 = scmp.lt.s32.totalorder %s18, 1
      %s246 = scalar_select %p245, %s18, 1
      %s247 = scalar_lea.vmem %s5, %s246
      %p248 = pneg %p180
      %p249 = pneg %p177
      %p250 = scmp.lt.s32.totalorder %s18, 1
      %s251 = scalar_select %p250, %s18, 1
      %s252 = scalar_lea.vmem %s6, %s251
      %p253 = scmp.lt.s32.totalorder %s18, 1
      %s254 = scalar_select %p253, %s18, 1
      %s255 = smul.addr %s254, 32
      %s256 = smul.addr %s255, 8
      %s257 = scalar_lea.vmem %s0, %s256
      %p258 = scmp.lt.s32.totalorder %s18, 1
      %s259 = scalar_select %p258, %s18, 1
      %s260 = smul.addr %s259, 32
      %s261 = smul.addr %s260, 4
      %s262 = scalar_lea.vmem %s4, %s261
      %p263 = scmp.lt.s32.totalorder %s18, 1
      %s264 = scalar_select %p263, %s18, 1
      %s265 = scalar_lea.vmem %s5, %s264
      %p266 = scmp.lt.s32.totalorder %s18, 1
      %s267 = scalar_select %p266, %s18, 1
      %s268 = scalar_lea.vmem %s6, %s267
      %vm270 = vcmask 130048
      %271 = vst.msk [vmem:[#allocation2] sm:$0xff] %vm270, 0.0
      %272 = vst.msk [vmem:[#allocation2 + $0x8] sm:$0xff] %vm270, 0.0
      %vm273 = vcmask 123904
      %274 = vst.msk [vmem:[#allocation2 + $0x10] sm:$0x3] %vm273, 0.0
      %s275 = scalar_lea.vmem [#allocation2], 408
      %276 = vst.msk [vmem:[%s275] sm:$0xff] %vm270, 0.0
      %277 = vst.msk [vmem:[%s275 + $0x8] sm:$0xff] %vm270, 0.0
      %278 = vst.msk [vmem:[%s275 + $0x10] sm:$0x3] %vm273, 0.0
      %s279 = scalar_lea.vmem [#allocation2], 24
      %vm280 = vcmask 122880
      %281 = vst.msk [vmem:[%s279] sm:$0x1] %vm280, 0.0
      %282 = vst.msk [vmem:[%s279 + $0x18] sm:$0x1] %vm280, 0.0
      %283 = vst.msk [vmem:[%s279 + $0x30] sm:$0x1] %vm280, 0.0
      %284 = vst.msk [vmem:[%s279 + $0x48] sm:$0x1] %vm280, 0.0
      %285 = vst.msk [vmem:[%s279 + $0x60] sm:$0x1] %vm280, 0.0
      %286 = vst.msk [vmem:[%s279 + $0x78] sm:$0x1] %vm280, 0.0
      %287 = vst.msk [vmem:[%s279 + $0x90] sm:$0x1] %vm280, 0.0
      %288 = vst.msk [vmem:[%s279 + $0xa8] sm:$0x1] %vm280, 0.0
      %289 = vst.msk [vmem:[%s279 + $0xc0] sm:$0x1] %vm280, 0.0
      %290 = vst.msk [vmem:[%s279 + $0xd8] sm:$0x1] %vm280, 0.0
      %291 = vst.msk [vmem:[%s279 + $0xf0] sm:$0x1] %vm280, 0.0
      %292 = vst.msk [vmem:[%s279 + $0x108] sm:$0x1] %vm280, 0.0
      %293 = vst.msk [vmem:[%s279 + $0x120] sm:$0x1] %vm280, 0.0
      %294 = vst.msk [vmem:[%s279 + $0x138] sm:$0x1] %vm280, 0.0
      %295 = vst.msk [vmem:[%s279 + $0x150] sm:$0x1] %vm280, 0.0
      %296 = vst.msk [vmem:[%s279 + $0x168] sm:$0x1] %vm280, 0.0
      %297 = vst.msk [vmem:[%s279 + $0x11] sm:$0x1] %vm280, 0.0
      %298 = vst.msk [vmem:[%s279 + $0x29] sm:$0x1] %vm280, 0.0
      %299 = vst.msk [vmem:[%s279 + $0x41] sm:$0x1] %vm280, 0.0
      %300 = vst.msk [vmem:[%s279 + $0x59] sm:$0x1] %vm280, 0.0
      %301 = vst.msk [vmem:[%s279 + $0x71] sm:$0x1] %vm280, 0.0
      %302 = vst.msk [vmem:[%s279 + $0x89] sm:$0x1] %vm280, 0.0
      %303 = vst.msk [vmem:[%s279 + $0xa1] sm:$0x1] %vm280, 0.0
      %304 = vst.msk [vmem:[%s279 + $0xb9] sm:$0x1] %vm280, 0.0
      %305 = vst.msk [vmem:[%s279 + $0xd1] sm:$0x1] %vm280, 0.0
      %306 = vst.msk [vmem:[%s279 + $0xe9] sm:$0x1] %vm280, 0.0
      %307 = vst.msk [vmem:[%s279 + $0x101] sm:$0x1] %vm280, 0.0
      %308 = vst.msk [vmem:[%s279 + $0x119] sm:$0x1] %vm280, 0.0
      %309 = vst.msk [vmem:[%s279 + $0x131] sm:$0x1] %vm280, 0.0
      %310 = vst.msk [vmem:[%s279 + $0x149] sm:$0x1] %vm280, 0.0
      %311 = vst.msk [vmem:[%s279 + $0x161] sm:$0x1] %vm280, 0.0
      %312 = vst.msk [vmem:[%s279 + $0x179] sm:$0x1] %vm280, 0.0
      %v313 = vld [vmem:[%s257] sm:$0xff]
      %v314 = vld [vmem:[%s257 + $0x8] sm:$0xff]
      %v315 = vld [vmem:[%s257 + $0x10] sm:$0xff]
      %v316 = vld [vmem:[%s257 + $0x18] sm:$0xff]
      %v317 = vld [vmem:[%s257 + $0x20] sm:$0xff]
      %v318 = vld [vmem:[%s257 + $0x28] sm:$0xff]
      %v319 = vld [vmem:[%s257 + $0x30] sm:$0xff]
      %v320 = vld [vmem:[%s257 + $0x38] sm:$0xff]
      %v321 = vld [vmem:[%s257 + $0x40] sm:$0xff]
      %v322 = vld [vmem:[%s257 + $0x48] sm:$0xff]
      %v323 = vld [vmem:[%s257 + $0x50] sm:$0xff]
      %v324 = vld [vmem:[%s257 + $0x58] sm:$0xff]
      %v325 = vld [vmem:[%s257 + $0x60] sm:$0xff]
      %v326 = vld [vmem:[%s257 + $0x68] sm:$0xff]
      %v327 = vld [vmem:[%s257 + $0x70] sm:$0xff]
      %v328 = vld [vmem:[%s257 + $0x78] sm:$0xff]
      %v329 = vld [vmem:[%s257 + $0x80] sm:$0xff]
      %v330 = vld [vmem:[%s257 + $0x88] sm:$0xff]
      %v331 = vld [vmem:[%s257 + $0x90] sm:$0xff]
      %v332 = vld [vmem:[%s257 + $0x98] sm:$0xff]
      %v333 = vld [vmem:[%s257 + $0xa0] sm:$0xff]
      %v334 = vld [vmem:[%s257 + $0xa8] sm:$0xff]
      %v335 = vld [vmem:[%s257 + $0xb0] sm:$0xff]
      %v336 = vld [vmem:[%s257 + $0xb8] sm:$0xff]
      %v337 = vld [vmem:[%s257 + $0xc0] sm:$0xff]
      %v338 = vld [vmem:[%s257 + $0xc8] sm:$0xff]
      %v339 = vld [vmem:[%s257 + $0xd0] sm:$0xff]
      %v340 = vld [vmem:[%s257 + $0xd8] sm:$0xff]
      %v341 = vld [vmem:[%s257 + $0xe0] sm:$0xff]
      %v342 = vld [vmem:[%s257 + $0xe8] sm:$0xff]
      %v343 = vld [vmem:[%s257 + $0xf0] sm:$0xff]
      %v344 = vld [vmem:[%s257 + $0xf8] sm:$0xff]
      %345 = vst.msk [vmem:[%s279 + $0x1] sm:$0xff] %vm270, %v313
      %346 = vst.msk [vmem:[%s279 + $0x9] sm:$0xff] %vm270, %v314
      %347 = vst.msk [vmem:[%s279 + $0x19] sm:$0xff] %vm270, %v315
      %348 = vst.msk [vmem:[%s279 + $0x21] sm:$0xff] %vm270, %v316
      %349 = vst.msk [vmem:[%s279 + $0x31] sm:$0xff] %vm270, %v317
      %350 = vst.msk [vmem:[%s279 + $0x39] sm:$0xff] %vm270, %v318
      %351 = vst.msk [vmem:[%s279 + $0x49] sm:$0xff] %vm270, %v319
      %352 = vst.msk [vmem:[%s279 + $0x51] sm:$0xff] %vm270, %v320
      %353 = vst.msk [vmem:[%s279 + $0x61] sm:$0xff] %vm270, %v321
      %354 = vst.msk [vmem:[%s279 + $0x69] sm:$0xff] %vm270, %v322
      %355 = vst.msk [vmem:[%s279 + $0x79] sm:$0xff] %vm270, %v323
      %356 = vst.msk [vmem:[%s279 + $0x81] sm:$0xff] %vm270, %v324
      %357 = vst.msk [vmem:[%s279 + $0x91] sm:$0xff] %vm270, %v325
      %358 = vst.msk [vmem:[%s279 + $0x99] sm:$0xff] %vm270, %v326
      %359 = vst.msk [vmem:[%s279 + $0xa9] sm:$0xff] %vm270, %v327
      %360 = vst.msk [vmem:[%s279 + $0xb1] sm:$0xff] %vm270, %v328
      %361 = vst.msk [vmem:[%s279 + $0xc1] sm:$0xff] %vm270, %v329
      %362 = vst.msk [vmem:[%s279 + $0xc9] sm:$0xff] %vm270, %v330
      %363 = vst.msk [vmem:[%s279 + $0xd9] sm:$0xff] %vm270, %v331
      %364 = vst.msk [vmem:[%s279 + $0xe1] sm:$0xff] %vm270, %v332
      %365 = vst.msk [vmem:[%s279 + $0xf1] sm:$0xff] %vm270, %v333
      %366 = vst.msk [vmem:[%s279 + $0xf9] sm:$0xff] %vm270, %v334
      %367 = vst.msk [vmem:[%s279 + $0x109] sm:$0xff] %vm270, %v335
      %368 = vst.msk [vmem:[%s279 + $0x111] sm:$0xff] %vm270, %v336
      %369 = vst.msk [vmem:[%s279 + $0x121] sm:$0xff] %vm270, %v337
      %370 = vst.msk [vmem:[%s279 + $0x129] sm:$0xff] %vm270, %v338
      %371 = vst.msk [vmem:[%s279 + $0x139] sm:$0xff] %vm270, %v339
      %372 = vst.msk [vmem:[%s279 + $0x141] sm:$0xff] %vm270, %v340
      %373 = vst.msk [vmem:[%s279 + $0x151] sm:$0xff] %vm270, %v341
      %374 = vst.msk [vmem:[%s279 + $0x159] sm:$0xff] %vm270, %v342
      %375 = vst.msk [vmem:[%s279 + $0x169] sm:$0xff] %vm270, %v343
      %376 = vst.msk [vmem:[%s279 + $0x171] sm:$0xff] %vm270, %v344
      %v377 = vld [vmem:[#allocation2] sm:$0xff]
      %v378 = vld [vmem:[#allocation2 + $0x8] sm:$0xff]
      %v379 = vld [vmem:[#allocation2 + $0x18] sm:$0xff]
      %v380 = vld [vmem:[#allocation2 + $0x20] sm:$0xff]
      %v381 = vld [vmem:[#allocation2 + $0x30] sm:$0xff]
      %v382 = vld [vmem:[#allocation2 + $0x38] sm:$0xff]
      %v383 = vld [vmem:[#allocation2 + $0x48] sm:$0xff]
      %v384 = vld [vmem:[#allocation2 + $0x50] sm:$0xff]
      %v385 = vld [vmem:[#allocation2 + $0x60] sm:$0xff]
      %v386 = vld [vmem:[#allocation2 + $0x68] sm:$0xff]
      %v387 = vld [vmem:[#allocation2 + $0x78] sm:$0xff]
      %v388 = vld [vmem:[#allocation2 + $0x80] sm:$0xff]
      %v389 = vld [vmem:[#allocation2 + $0x90] sm:$0xff]
      %v390 = vld [vmem:[#allocation2 + $0x98] sm:$0xff]
      %v391 = vld [vmem:[#allocation2 + $0xa8] sm:$0xff]
      %v392 = vld [vmem:[#allocation2 + $0xb0] sm:$0xff]
      %v393 = vld [vmem:[#allocation2 + $0xc0] sm:$0xff]
      %v394 = vld [vmem:[#allocation2 + $0xc8] sm:$0xff]
      %v395 = vld [vmem:[#allocation2 + $0xd8] sm:$0xff]
      %v396 = vld [vmem:[#allocation2 + $0xe0] sm:$0xff]
      %v397 = vld [vmem:[#allocation2 + $0xf0] sm:$0xff]
      %v398 = vld [vmem:[#allocation2 + $0xf8] sm:$0xff]
      %v399 = vld [vmem:[#allocation2 + $0x108] sm:$0xff]
      %v400 = vld [vmem:[#allocation2 + $0x110] sm:$0xff]
      %v401 = vld [vmem:[#allocation2 + $0x120] sm:$0xff]
      %v402 = vld [vmem:[#allocation2 + $0x128] sm:$0xff]
      %v403 = vld [vmem:[#allocation2 + $0x138] sm:$0xff]
      %v404 = vld [vmem:[#allocation2 + $0x140] sm:$0xff]
      %v405 = vld [vmem:[#allocation2 + $0x150] sm:$0xff]
      %v406 = vld [vmem:[#allocation2 + $0x158] sm:$0xff]
      %v407 = vld [vmem:[#allocation2 + $0x168] sm:$0xff]
      %v408 = vld [vmem:[#allocation2 + $0x170] sm:$0xff]
      %v409 = vpack.c.bf16 %v378, %v377
      %v410 = vpack.c.bf16 %v380, %v379
      %v411 = vpack.c.bf16 %v382, %v381
      %v412 = vpack.c.bf16 %v384, %v383
      %v413 = vpack.c.bf16 %v386, %v385
      %v414 = vpack.c.bf16 %v388, %v387
      %v415 = vpack.c.bf16 %v390, %v389
      %v416 = vpack.c.bf16 %v392, %v391
      %v417 = vpack.c.bf16 %v394, %v393
      %v418 = vpack.c.bf16 %v396, %v395
      %v419 = vpack.c.bf16 %v398, %v397
      %v420 = vpack.c.bf16 %v400, %v399
      %v421 = vpack.c.bf16 %v402, %v401
      %v422 = vpack.c.bf16 %v404, %v403
      %v423 = vpack.c.bf16 %v406, %v405
      %v424 = vpack.c.bf16 %v408, %v407
      %v425 = vld [vmem:[%s1] sm:$0xf]
      %v426 = vld [vmem:[%s1 + $0x4] sm:$0xf]
      %v427 = vld [vmem:[#allocation2 + $0x1] sm:$0xff]
      %v428 = vld [vmem:[#allocation2 + $0x9] sm:$0xff]
      %v429 = vld [vmem:[#allocation2 + $0x19] sm:$0xff]
      %v430 = vld [vmem:[#allocation2 + $0x21] sm:$0xff]
      %v431 = vld [vmem:[#allocation2 + $0x31] sm:$0xff]
      %v432 = vld [vmem:[#allocation2 + $0x39] sm:$0xff]
      %v433 = vld [vmem:[#allocation2 + $0x49] sm:$0xff]
      %v434 = vld [vmem:[#allocation2 + $0x51] sm:$0xff]
      %v435 = vld [vmem:[#allocation2 + $0x61] sm:$0xff]
      %v436 = vld [vmem:[#allocation2 + $0x69] sm:$0xff]
      %v437 = vld [vmem:[#allocation2 + $0x79] sm:$0xff]
      %v438 = vld [vmem:[#allocation2 + $0x81] sm:$0xff]
      %v439 = vld [vmem:[#allocation2 + $0x91] sm:$0xff]
      %v440 = vld [vmem:[#allocation2 + $0x99] sm:$0xff]
      %v441 = vld [vmem:[#allocation2 + $0xa9] sm:$0xff]
      %v442 = vld [vmem:[#allocation2 + $0xb1] sm:$0xff]
      %v443 = vld [vmem:[#allocation2 + $0xc1] sm:$0xff]
      %v444 = vld [vmem:[#allocation2 + $0xc9] sm:$0xff]
      %v445 = vld [vmem:[#allocation2 + $0xd9] sm:$0xff]
      %v446 = vld [vmem:[#allocation2 + $0xe1] sm:$0xff]
      %v447 = vld [vmem:[#allocation2 + $0xf1] sm:$0xff]
      %v448 = vld [vmem:[#allocation2 + $0xf9] sm:$0xff]
      %v449 = vld [vmem:[#allocation2 + $0x109] sm:$0xff]
      %v450 = vld [vmem:[#allocation2 + $0x111] sm:$0xff]
      %v451 = vld [vmem:[#allocation2 + $0x121] sm:$0xff]
      %v452 = vld [vmem:[#allocation2 + $0x129] sm:$0xff]
      %v453 = vld [vmem:[#allocation2 + $0x139] sm:$0xff]
      %v454 = vld [vmem:[#allocation2 + $0x141] sm:$0xff]
      %v455 = vld [vmem:[#allocation2 + $0x151] sm:$0xff]
      %v456 = vld [vmem:[#allocation2 + $0x159] sm:$0xff]
      %v457 = vld [vmem:[#allocation2 + $0x169] sm:$0xff]
      %v458 = vld [vmem:[#allocation2 + $0x171] sm:$0xff]
      %v459 = vpack.c.bf16 %v428, %v427
      %v460 = vpack.c.bf16 %v430, %v429
      %v461 = vpack.c.bf16 %v432, %v431
      %v462 = vpack.c.bf16 %v434, %v433
      %v463 = vpack.c.bf16 %v436, %v435
      %v464 = vpack.c.bf16 %v438, %v437
      %v465 = vpack.c.bf16 %v440, %v439
      %v466 = vpack.c.bf16 %v442, %v441
      %v467 = vpack.c.bf16 %v444, %v443
      %v468 = vpack.c.bf16 %v446, %v445
      %v469 = vpack.c.bf16 %v448, %v447
      %v470 = vpack.c.bf16 %v450, %v449
      %v471 = vpack.c.bf16 %v452, %v451
      %v472 = vpack.c.bf16 %v454, %v453
      %v473 = vpack.c.bf16 %v456, %v455
      %v474 = vpack.c.bf16 %v458, %v457
      %s475 = scalar_lea.vmem %s1, 8
      %v476 = vld [vmem:[%s475] sm:$0xf]
      %v477 = vld [vmem:[%s475 + $0x4] sm:$0xf]
      %v480 = vunpack.c.l.b16 %v476
      %v481 = vunpack.c.l.b16 %v477
      %v482 = vpack.c.b16 %v481, %v480
      %v485 = vsel %vm270, %v459, 0
      %v488 = vsel %vm270, %v460, 0
      %v491 = vsel %vm270, %v461, 0
      %v494 = vsel %vm270, %v462, 0
      %v497 = vsel %vm270, %v463, 0
      %v500 = vsel %vm270, %v464, 0
      %v503 = vsel %vm270, %v465, 0
      %v506 = vsel %vm270, %v466, 0
      %v509 = vsel %vm270, %v467, 0
      %v512 = vsel %vm270, %v468, 0
      %v515 = vsel %vm270, %v469, 0
      %v518 = vsel %vm270, %v470, 0
      %v521 = vsel %vm270, %v471, 0
      %v524 = vsel %vm270, %v472, 0
      %v527 = vsel %vm270, %v473, 0
      %v530 = vsel %vm270, %v474, 0
      %532 = vmatprep.subr.bf16.mxu0 0
      %533 = vmatpush1.bf16.msra.mxu0 %v482
      %534 = vmatprep.subr.bf16.mxu0 0
      %535 = vmatpush1.bf16.msra.mxu0 0
      %536 = vmatprep.subr.bf16.mxu0 0
      %537 = vmatpush1.bf16.msra.mxu0 0
      %538 = vmatprep.subr.bf16.mxu0 0
      %539 = vmatpush1.bf16.msra.mxu0 0
      %540 = vmatprep.subr.bf16.mxu0 0
      %541 = vmatpush1.bf16.msra.mxu0 0
      %542 = vmatprep.subr.bf16.mxu0 0
      %543 = vmatpush1.bf16.msra.mxu0 0
      %544 = vmatprep.subr.bf16.mxu0 0
      %545 = vmatpush1.bf16.msra.mxu0 0
      %546 = vmatprep.subr.bf16.mxu0 0
      %547 = vmatpush1.bf16.msra.mxu0 0
      %548 = vmatprep.subr.bf16.mxu0 0
      %549 = vmatpush1.bf16.msra.mxu0 0
      %550 = vmatprep.subr.bf16.mxu0 0
      %551 = vmatpush1.bf16.msra.mxu0 0
      %552 = vmatprep.subr.bf16.mxu0 0
      %553 = vmatpush1.bf16.msra.mxu0 0
      %554 = vmatprep.subr.bf16.mxu0 0
      %555 = vmatpush1.bf16.msra.mxu0 0
      %556 = vmatprep.subr.bf16.mxu0 0
      %557 = vmatpush1.bf16.msra.mxu0 0
      %558 = vmatprep.subr.bf16.mxu0 0
      %559 = vmatpush1.bf16.msra.mxu0 0
      %560 = vmatprep.subr.bf16.mxu0 0
      %561 = vmatpush1.bf16.msra.mxu0 0
      %562 = vmatprep.subr.bf16.mxu0 0
      %563 = vmatpush1.bf16.msra.mxu0 0
      %564 = vmatprep.mubr.bf16.mxu0 0
      %565 = vmatmul.mubr.bf16.gmra.mrb[0].mxu0 %v485
      %v566 = vpop.f32.mrb[0].mxu0
      %v567 = vadd.f32 0.0, %v566
      %v568 = vpop.f32.mrb[0].mxu0
      %v569 = vpop.f32.mrb[0].mxu0
      %v570 = vadd.f32 0.0, %v569
      %v571 = vpop.f32.mrb[0].mxu0
      %572 = vmatprep.mubr.bf16.mxu0 0
      %573 = vmatmul.mubr.bf16.gmra.mrb[0].mxu0 %v488
      %v574 = vpop.f32.mrb[0].mxu0
      %v575 = vadd.f32 0.0, %v574
      %v576 = vpop.f32.mrb[0].mxu0
      %v577 = vpop.f32.mrb[0].mxu0
      %v578 = vadd.f32 0.0, %v577
      %v579 = vpop.f32.mrb[0].mxu0
      %580 = vmatprep.mubr.bf16.mxu0 0
      %581 = vmatmul.mubr.bf16.gmra.mrb[0].mxu0 %v491
      %v582 = vpop.f32.mrb[0].mxu0
      %v583 = vadd.f32 0.0, %v582
      %v584 = vpop.f32.mrb[0].mxu0
      %v585 = vpop.f32.mrb[0].mxu0
      %v586 = vadd.f32 0.0, %v585
      %v587 = vpop.f32.mrb[0].mxu0
      %588 = vmatprep.mubr.bf16.mxu0 0
      %589 = vmatmul.mubr.bf16.gmra.mrb[0].mxu0 %v494
      %v590 = vpop.f32.mrb[0].mxu0
      %v591 = vadd.f32 0.0, %v590
      %v592 = vpop.f32.mrb[0].mxu0
      %v593 = vpop.f32.mrb[0].mxu0
      %v594 = vadd.f32 0.0, %v593
      %v595 = vpop.f32.mrb[0].mxu0
      %596 = vmatprep.mubr.bf16.mxu0 0
      %597 = vmatmul.mubr.bf16.gmra.mrb[0].mxu0 %v497
      %v598 = vpop.f32.mrb[0].mxu0
      %v599 = vadd.f32 0.0, %v598
      %v600 = vpop.f32.mrb[0].mxu0
      %v601 = vpop.f32.mrb[0].mxu0
      %v602 = vadd.f32 0.0, %v601
      %v603 = vpop.f32.mrb[0].mxu0
      %604 = vmatprep.mubr.bf16.mxu0 0
      %605 = vmatmul.mubr.bf16.gmra.mrb[0].mxu0 %v500
      %v606 = vpop.f32.mrb[0].mxu0
      %v607 = vadd.f32 0.0, %v606
      %v608 = vpop.f32.mrb[0].mxu0
      %v609 = vpop.f32.mrb[0].mxu0
      %v610 = vadd.f32 0.0, %v609
      %v611 = vpop.f32.mrb[0].mxu0
      %612 = vmatprep.mubr.bf16.mxu0 0
      %613 = vmatmul.mubr.bf16.gmra.mrb[0].mxu0 %v503
      %v614 = vpop.f32.mrb[0].mxu0
      %v615 = vadd.f32 0.0, %v614
      %v616 = vpop.f32.mrb[0].mxu0
      %v617 = vpop.f32.mrb[0].mxu0
      %v618 = vadd.f32 0.0, %v617
      %v619 = vpop.f32.mrb[0].mxu0
      %620 = vmatprep.mubr.bf16.mxu0 0
      %621 = vmatmul.mubr.bf16.gmra.mrb[0].mxu0 %v506
      %v622 = vpop.f32.mrb[0].mxu0
      %v623 = vadd.f32 0.0, %v622
      %v624 = vpop.f32.mrb[0].mxu0
      %v625 = vpop.f32.mrb[0].mxu0
      %v626 = vadd.f32 0.0, %v625
      %v627 = vpop.f32.mrb[0].mxu0
      %628 = vmatprep.mubr.bf16.mxu0 0
      %629 = vmatmul.mubr.bf16.gmra.mrb[0].mxu0 %v509
      %v630 = vpop.f32.mrb[0].mxu0
      %v631 = vadd.f32 0.0, %v630
      %v632 = vpop.f32.mrb[0].mxu0
      %v633 = vpop.f32.mrb[0].mxu0
      %v634 = vadd.f32 0.0, %v633
      %v635 = vpop.f32.mrb[0].mxu0
      %636 = vmatprep.mubr.bf16.mxu0 0
      %637 = vmatmul.mubr.bf16.gmra.mrb[0].mxu0 %v512
      %v638 = vpop.f32.mrb[0].mxu0
      %v639 = vadd.f32 0.0, %v638
      %v640 = vpop.f32.mrb[0].mxu0
      %v641 = vpop.f32.mrb[0].mxu0
      %v642 = vadd.f32 0.0, %v641
      %v643 = vpop.f32.mrb[0].mxu0
      %644 = vmatprep.mubr.bf16.mxu0 0
      %645 = vmatmul.mubr.bf16.gmra.mrb[0].mxu0 %v515
      %v646 = vpop.f32.mrb[0].mxu0
      %v647 = vadd.f32 0.0, %v646
      %v648 = vpop.f32.mrb[0].mxu0
      %v649 = vpop.f32.mrb[0].mxu0
      %v650 = vadd.f32 0.0, %v649
      %v651 = vpop.f32.mrb[0].mxu0
      %652 = vmatprep.mubr.bf16.mxu0 0
      %653 = vmatmul.mubr.bf16.gmra.mrb[0].mxu0 %v518
      %v654 = vpop.f32.mrb[0].mxu0
      %v655 = vadd.f32 0.0, %v654
      %v656 = vpop.f32.mrb[0].mxu0
      %v657 = vpop.f32.mrb[0].mxu0
      %v658 = vadd.f32 0.0, %v657
      %v659 = vpop.f32.mrb[0].mxu0
      %660 = vmatprep.mubr.bf16.mxu0 0
      %661 = vmatmul.mubr.bf16.gmra.mrb[0].mxu0 %v521
      %v662 = vpop.f32.mrb[0].mxu0
      %v663 = vadd.f32 0.0, %v662
      %v664 = vpop.f32.mrb[0].mxu0
      %v665 = vpop.f32.mrb[0].mxu0
      %v666 = vadd.f32 0.0, %v665
      %v667 = vpop.f32.mrb[0].mxu0
      %668 = vmatprep.mubr.bf16.mxu0 0
      %669 = vmatmul.mubr.bf16.gmra.mrb[0].mxu0 %v524
      %v670 = vpop.f32.mrb[0].mxu0
      %v671 = vadd.f32 0.0, %v670
      %v672 = vpop.f32.mrb[0].mxu0
      %v673 = vpop.f32.mrb[0].mxu0
      %v674 = vadd.f32 0.0, %v673
      %v675 = vpop.f32.mrb[0].mxu0
      %676 = vmatprep.mubr.bf16.mxu0 0
      %677 = vmatmul.mubr.bf16.gmra.mrb[0].mxu0 %v527
      %v678 = vpop.f32.mrb[0].mxu0
      %v679 = vadd.f32 0.0, %v678
      %v680 = vpop.f32.mrb[0].mxu0
      %v681 = vpop.f32.mrb[0].mxu0
      %v682 = vadd.f32 0.0, %v681
      %v683 = vpop.f32.mrb[0].mxu0
      %684 = vmatprep.mubr.bf16.mxu0 0
      %685 = vmatmul.mubr.bf16.gmra.mrb[0].mxu0 %v530
      %v686 = vpop.f32.mrb[0].mxu0
      %v687 = vadd.f32 0.0, %v686
      %v688 = vpop.f32.mrb[0].mxu0
      %v689 = vpop.f32.mrb[0].mxu0
      %v690 = vadd.f32 0.0, %v689
      %v691 = vpop.f32.mrb[0].mxu0
      %692 = vdwg.mxu0
      %v695 = vunpack.c.l.b16 %v425
      %v696 = vunpack.c.l.b16 %v426
      %v697 = vpack.c.b16 %v696, %v695
      %v700 = vsel %vm270, %v409, 0
      %v703 = vsel %vm270, %v410, 0
      %v706 = vsel %vm270, %v411, 0
      %v709 = vsel %vm270, %v412, 0
      %v712 = vsel %vm270, %v413, 0
      %v715 = vsel %vm270, %v414, 0
      %v718 = vsel %vm270, %v415, 0
      %v721 = vsel %vm270, %v416, 0
      %v724 = vsel %vm270, %v417, 0
      %v727 = vsel %vm270, %v418, 0
      %v730 = vsel %vm270, %v419, 0
      %v733 = vsel %vm270, %v420, 0
      %v736 = vsel %vm270, %v421, 0
      %v739 = vsel %vm270, %v422, 0
      %v742 = vsel %vm270, %v423, 0
      %v745 = vsel %vm270, %v424, 0
      %747 = vmatprep.subr.bf16.mxu0 0
      %748 = vmatpush1.bf16.msra.mxu0 %v697
      %749 = vmatprep.subr.bf16.mxu0 0
      %750 = vmatpush1.bf16.msra.mxu0 0
      %751 = vmatprep.subr.bf16.mxu0 0
      %752 = vmatpush1.bf16.msra.mxu0 0
      %753 = vmatprep.subr.bf16.mxu0 0
      %754 = vmatpush1.bf16.msra.mxu0 0
      %755 = vmatprep.subr.bf16.mxu0 0
      %756 = vmatpush1.bf16.msra.mxu0 0
      %757 = vmatprep.subr.bf16.mxu0 0
      %758 = vmatpush1.bf16.msra.mxu0 0
      %759 = vmatprep.subr.bf16.mxu0 0
      %760 = vmatpush1.bf16.msra.mxu0 0
      %761 = vmatprep.subr.bf16.mxu0 0
      %762 = vmatpush1.bf16.msra.mxu0 0
      %763 = vmatprep.subr.bf16.mxu0 0
      %764 = vmatpush1.bf16.msra.mxu0 0
      %765 = vmatprep.subr.bf16.mxu0 0
      %766 = vmatpush1.bf16.msra.mxu0 0
      %767 = vmatprep.subr.bf16.mxu0 0
      %768 = vmatpush1.bf16.msra.mxu0 0
      %769 = vmatprep.subr.bf16.mxu0 0
      %770 = vmatpush1.bf16.msra.mxu0 0
      %771 = vmatprep.subr.bf16.mxu0 0
      %772 = vmatpush1.bf16.msra.mxu0 0
      %773 = vmatprep.subr.bf16.mxu0 0
      %774 = vmatpush1.bf16.msra.mxu0 0
      %775 = vmatprep.subr.bf16.mxu0 0
      %776 = vmatpush1.bf16.msra.mxu0 0
      %777 = vmatprep.subr.bf16.mxu0 0
      %778 = vmatpush1.bf16.msra.mxu0 0
      %779 = vmatprep.mubr.bf16.mxu0 0
      %780 = vmatmul.mubr.bf16.gmra.mrb[0].mxu0 %v700
      %v781 = vpop.f32.mrb[0].mxu0
      %v782 = vadd.f32 %v567, %v781
      %v783 = vpop.f32.mrb[0].mxu0
      %v784 = vpop.f32.mrb[0].mxu0
      %v785 = vadd.f32 %v570, %v784
      %v786 = vpop.f32.mrb[0].mxu0
      %787 = vmatprep.mubr.bf16.mxu0 0
      %788 = vmatmul.mubr.bf16.gmra.mrb[0].mxu0 %v703
      %v789 = vpop.f32.mrb[0].mxu0
      %v790 = vadd.f32 %v575, %v789
      %v791 = vpop.f32.mrb[0].mxu0
      %v792 = vpop.f32.mrb[0].mxu0
      %v793 = vadd.f32 %v578, %v792
      %v794 = vpop.f32.mrb[0].mxu0
      %795 = vmatprep.mubr.bf16.mxu0 0
      %796 = vmatmul.mubr.bf16.gmra.mrb[0].mxu0 %v706
      %v797 = vpop.f32.mrb[0].mxu0
      %v798 = vadd.f32 %v583, %v797
      %v799 = vpop.f32.mrb[0].mxu0
      %v800 = vpop.f32.mrb[0].mxu0
      %v801 = vadd.f32 %v586, %v800
      %v802 = vpop.f32.mrb[0].mxu0
      %803 = vmatprep.mubr.bf16.mxu0 0
      %804 = vmatmul.mubr.bf16.gmra.mrb[0].mxu0 %v709
      %v805 = vpop.f32.mrb[0].mxu0
      %v806 = vadd.f32 %v591, %v805
      %v807 = vpop.f32.mrb[0].mxu0
      %v808 = vpop.f32.mrb[0].mxu0
      %v809 = vadd.f32 %v594, %v808
      %v810 = vpop.f32.mrb[0].mxu0
      %811 = vmatprep.mubr.bf16.mxu0 0
      %812 = vmatmul.mubr.bf16.gmra.mrb[0].mxu0 %v712
      %v813 = vpop.f32.mrb[0].mxu0
      %v814 = vadd.f32 %v599, %v813
      %v815 = vpop.f32.mrb[0].mxu0
      %v816 = vpop.f32.mrb[0].mxu0
      %v817 = vadd.f32 %v602, %v816
      %v818 = vpop.f32.mrb[0].mxu0
      %819 = vmatprep.mubr.bf16.mxu0 0
      %820 = vmatmul.mubr.bf16.gmra.mrb[0].mxu0 %v715
      %v821 = vpop.f32.mrb[0].mxu0
      %v822 = vadd.f32 %v607, %v821
      %v823 = vpop.f32.mrb[0].mxu0
      %v824 = vpop.f32.mrb[0].mxu0
      %v825 = vadd.f32 %v610, %v824
      %v826 = vpop.f32.mrb[0].mxu0
      %827 = vmatprep.mubr.bf16.mxu0 0
      %828 = vmatmul.mubr.bf16.gmra.mrb[0].mxu0 %v718
      %v829 = vpop.f32.mrb[0].mxu0
      %v830 = vadd.f32 %v615, %v829
      %v831 = vpop.f32.mrb[0].mxu0
      %v832 = vpop.f32.mrb[0].mxu0
      %v833 = vadd.f32 %v618, %v832
      %v834 = vpop.f32.mrb[0].mxu0
      %835 = vmatprep.mubr.bf16.mxu0 0
      %836 = vmatmul.mubr.bf16.gmra.mrb[0].mxu0 %v721
      %v837 = vpop.f32.mrb[0].mxu0
      %v838 = vadd.f32 %v623, %v837
      %v839 = vpop.f32.mrb[0].mxu0
      %v840 = vpop.f32.mrb[0].mxu0
      %v841 = vadd.f32 %v626, %v840
      %v842 = vpop.f32.mrb[0].mxu0
      %843 = vmatprep.mubr.bf16.mxu0 0
      %844 = vmatmul.mubr.bf16.gmra.mrb[0].mxu0 %v724
      %v845 = vpop.f32.mrb[0].mxu0
      %v846 = vadd.f32 %v631, %v845
      %v847 = vpop.f32.mrb[0].mxu0
      %v848 = vpop.f32.mrb[0].mxu0
      %v849 = vadd.f32 %v634, %v848
      %v850 = vpop.f32.mrb[0].mxu0
      %851 = vmatprep.mubr.bf16.mxu0 0
      %852 = vmatmul.mubr.bf16.gmra.mrb[0].mxu0 %v727
      %v853 = vpop.f32.mrb[0].mxu0
      %v854 = vadd.f32 %v639, %v853
      %v855 = vpop.f32.mrb[0].mxu0
      %v856 = vpop.f32.mrb[0].mxu0
      %v857 = vadd.f32 %v642, %v856
      %v858 = vpop.f32.mrb[0].mxu0
      %859 = vmatprep.mubr.bf16.mxu0 0
      %860 = vmatmul.mubr.bf16.gmra.mrb[0].mxu0 %v730
      %v861 = vpop.f32.mrb[0].mxu0
      %v862 = vadd.f32 %v647, %v861
      %v863 = vpop.f32.mrb[0].mxu0
      %v864 = vpop.f32.mrb[0].mxu0
      %v865 = vadd.f32 %v650, %v864
      %v866 = vpop.f32.mrb[0].mxu0
      %867 = vmatprep.mubr.bf16.mxu0 0
      %868 = vmatmul.mubr.bf16.gmra.mrb[0].mxu0 %v733
      %v869 = vpop.f32.mrb[0].mxu0
      %v870 = vadd.f32 %v655, %v869
      %v871 = vpop.f32.mrb[0].mxu0
      %v872 = vpop.f32.mrb[0].mxu0
      %v873 = vadd.f32 %v658, %v872
      %v874 = vpop.f32.mrb[0].mxu0
      %875 = vmatprep.mubr.bf16.mxu0 0
      %876 = vmatmul.mubr.bf16.gmra.mrb[0].mxu0 %v736
      %v877 = vpop.f32.mrb[0].mxu0
      %v878 = vadd.f32 %v663, %v877
      %v879 = vpop.f32.mrb[0].mxu0
      %v880 = vpop.f32.mrb[0].mxu0
      %v881 = vadd.f32 %v666, %v880
      %v882 = vpop.f32.mrb[0].mxu0
      %883 = vmatprep.mubr.bf16.mxu0 0
      %884 = vmatmul.mubr.bf16.gmra.mrb[0].mxu0 %v739
      %v885 = vpop.f32.mrb[0].mxu0
      %v886 = vadd.f32 %v671, %v885
      %v887 = vpop.f32.mrb[0].mxu0
      %v888 = vpop.f32.mrb[0].mxu0
      %v889 = vadd.f32 %v674, %v888
      %v890 = vpop.f32.mrb[0].mxu0
      %891 = vmatprep.mubr.bf16.mxu0 0
      %892 = vmatmul.mubr.bf16.gmra.mrb[0].mxu0 %v742
      %v893 = vpop.f32.mrb[0].mxu0
      %v894 = vadd.f32 %v679, %v893
      %v895 = vpop.f32.mrb[0].mxu0
      %v896 = vpop.f32.mrb[0].mxu0
      %v897 = vadd.f32 %v682, %v896
      %v898 = vpop.f32.mrb[0].mxu0
      %899 = vmatprep.mubr.bf16.mxu0 0
      %900 = vmatmul.mubr.bf16.gmra.mrb[0].mxu0 %v745
      %v901 = vpop.f32.mrb[0].mxu0
      %v902 = vadd.f32 %v687, %v901
      %v903 = vpop.f32.mrb[0].mxu0
      %v904 = vpop.f32.mrb[0].mxu0
      %v905 = vadd.f32 %v690, %v904
      %v906 = vpop.f32.mrb[0].mxu0
      %907 = vdwg.mxu0
      %v908 = vld [vmem:[#allocation2 + $0x2] sm:$0xff]
      %v909 = vld [vmem:[#allocation2 + $0xa] sm:$0xff]
      %v910 = vld [vmem:[#allocation2 + $0x1a] sm:$0xff]
      %v911 = vld [vmem:[#allocation2 + $0x22] sm:$0xff]
      %v912 = vld [vmem:[#allocation2 + $0x32] sm:$0xff]
      %v913 = vld [vmem:[#allocation2 + $0x3a] sm:$0xff]
      %v914 = vld [vmem:[#allocation2 + $0x4a] sm:$0xff]
      %v915 = vld [vmem:[#allocation2 + $0x52] sm:$0xff]
      %v916 = vld [vmem:[#allocation2 + $0x62] sm:$0xff]
      %v917 = vld [vmem:[#allocation2 + $0x6a] sm:$0xff]
      %v918 = vld [vmem:[#allocation2 + $0x7a] sm:$0xff]
      %v919 = vld [vmem:[#allocation2 + $0x82] sm:$0xff]
      %v920 = vld [vmem:[#allocation2 + $0x92] sm:$0xff]
      %v921 = vld [vmem:[#allocation2 + $0x9a] sm:$0xff]
      %v922 = vld [vmem:[#allocation2 + $0xaa] sm:$0xff]
      %v923 = vld [vmem:[#allocation2 + $0xb2] sm:$0xff]
      %v924 = vld [vmem:[#allocation2 + $0xc2] sm:$0xff]
      %v925 = vld [vmem:[#allocation2 + $0xca] sm:$0xff]
      %v926 = vld [vmem:[#allocation2 + $0xda] sm:$0xff]
      %v927 = vld [vmem:[#allocation2 + $0xe2] sm:$0xff]
      %v928 = vld [vmem:[#allocation2 + $0xf2] sm:$0xff]
      %v929 = vld [vmem:[#allocation2 + $0xfa] sm:$0xff]
      %v930 = vld [vmem:[#allocation2 + $0x10a] sm:$0xff]
      %v931 = vld [vmem:[#allocation2 + $0x112] sm:$0xff]
      %v932 = vld [vmem:[#allocation2 + $0x122] sm:$0xff]
      %v933 = vld [vmem:[#allocation2 + $0x12a] sm:$0xff]
      %v934 = vld [vmem:[#allocation2 + $0x13a] sm:$0xff]
      %v935 = vld [vmem:[#allocation2 + $0x142] sm:$0xff]
      %v936 = vld [vmem:[#allocation2 + $0x152] sm:$0xff]
      %v937 = vld [vmem:[#allocation2 + $0x15a] sm:$0xff]
      %v938 = vld [vmem:[#allocation2 + $0x16a] sm:$0xff]
      %v939 = vld [vmem:[#allocation2 + $0x172] sm:$0xff]
      %v940 = vpack.c.bf16 %v909, %v908
      %v941 = vpack.c.bf16 %v911, %v910
      %v942 = vpack.c.bf16 %v913, %v912
      %v943 = vpack.c.bf16 %v915, %v914
      %v944 = vpack.c.bf16 %v917, %v916
      %v945 = vpack.c.bf16 %v919, %v918
      %v946 = vpack.c.bf16 %v921, %v920
      %v947 = vpack.c.bf16 %v923, %v922
      %v948 = vpack.c.bf16 %v925, %v924
      %v949 = vpack.c.bf16 %v927, %v926
      %v950 = vpack.c.bf16 %v929, %v928
      %v951 = vpack.c.bf16 %v931, %v930
      %v952 = vpack.c.bf16 %v933, %v932
      %v953 = vpack.c.bf16 %v935, %v934
      %v954 = vpack.c.bf16 %v937, %v936
      %v955 = vpack.c.bf16 %v939, %v938
      %s956 = scalar_lea.vmem %s1, 16
      %v957 = vld [vmem:[%s956] sm:$0xf]
      %v958 = vld [vmem:[%s956 + $0x4] sm:$0xf]
      %v961 = vunpack.c.l.b16 %v957
      %v962 = vunpack.c.l.b16 %v958
      %v963 = vpack.c.b16 %v962, %v961
      %v966 = vsel %vm270, %v940, 0
      %v969 = vsel %vm270, %v941, 0
      %v972 = vsel %vm270, %v942, 0
      %v975 = vsel %vm270, %v943, 0
      %v978 = vsel %vm270, %v944, 0
      %v981 = vsel %vm270, %v945, 0
      %v984 = vsel %vm270, %v946, 0
      %v987 = vsel %vm270, %v947, 0
      %v990 = vsel %vm270, %v948, 0
      %v993 = vsel %vm270, %v949, 0
      %v996 = vsel %vm270, %v950, 0
      %v999 = vsel %vm270, %v951, 0
      %v1002 = vsel %vm270, %v952, 0
      %v1005 = vsel %vm270, %v953, 0
      %v1008 = vsel %vm270, %v954, 0
      %v1011 = vsel %vm270, %v955, 0
      %1013 = vmatprep.subr.bf16.mxu0 0
      %1014 = vmatpush1.bf16.msra.mxu0 %v963
      %1015 = vmatprep.subr.bf16.mxu0 0
      %1016 = vmatpush1.bf16.msra.mxu0 0
      %1017 = vmatprep.subr.bf16.mxu0 0
      %1018 = vmatpush1.bf16.msra.mxu0 0
      %1019 = vmatprep.subr.bf16.mxu0 0
      %1020 = vmatpush1.bf16.msra.mxu0 0
      %1021 = vmatprep.subr.bf16.mxu0 0
      %1022 = vmatpush1.bf16.msra.mxu0 0
      %1023 = vmatprep.subr.bf16.mxu0 0
      %1024 = vmatpush1.bf16.msra.mxu0 0
      %1025 = vmatprep.subr.bf16.mxu0 0
      %1026 = vmatpush1.bf16.msra.mxu0 0
      %1027 = vmatprep.subr.bf16.mxu0 0
      %1028 = vmatpush1.bf16.msra.mxu0 0
      %1029 = vmatprep.subr.bf16.mxu0 0
      %1030 = vmatpush1.bf16.msra.mxu0 0
      %1031 = vmatprep.subr.bf16.mxu0 0
      %1032 = vmatpush1.bf16.msra.mxu0 0
      %1033 = vmatprep.subr.bf16.mxu0 0
      %1034 = vmatpush1.bf16.msra.mxu0 0
      %1035 = vmatprep.subr.bf16.mxu0 0
      %1036 = vmatpush1.bf16.msra.mxu0 0
      %1037 = vmatprep.subr.bf16.mxu0 0
      %1038 = vmatpush1.bf16.msra.mxu0 0
      %1039 = vmatprep.subr.bf16.mxu0 0
      %1040 = vmatpush1.bf16.msra.mxu0 0
      %1041 = vmatprep.subr.bf16.mxu0 0
      %1042 = vmatpush1.bf16.msra.mxu0 0
      %1043 = vmatprep.subr.bf16.mxu0 0
      %1044 = vmatpush1.bf16.msra.mxu0 0
      %1045 = vmatprep.mubr.bf16.mxu0 0
      %1046 = vmatmul.mubr.bf16.gmra.mrb[0].mxu0 %v966
      %v1047 = vpop.f32.mrb[0].mxu0
      %v1048 = vadd.f32 0.0, %v1047
      %v1049 = vpop.f32.mrb[0].mxu0
      %v1050 = vpop.f32.mrb[0].mxu0
      %v1051 = vadd.f32 0.0, %v1050
      %v1052 = vpop.f32.mrb[0].mxu0
      %1053 = vmatprep.mubr.bf16.mxu0 0
      %1054 = vmatmul.mubr.bf16.gmra.mrb[0].mxu0 %v969
      %v1055 = vpop.f32.mrb[0].mxu0
      %v1056 = vadd.f32 0.0, %v1055
      %v1057 = vpop.f32.mrb[0].mxu0
      %v1058 = vpop.f32.mrb[0].mxu0
      %v1059 = vadd.f32 0.0, %v1058
      %v1060 = vpop.f32.mrb[0].mxu0
      %1061 = vmatprep.mubr.bf16.mxu0 0
      %1062 = vmatmul.mubr.bf16.gmra.mrb[0].mxu0 %v972
      %v1063 = vpop.f32.mrb[0].mxu0
      %v1064 = vadd.f32 0.0, %v1063
      %v1065 = vpop.f32.mrb[0].mxu0
      %v1066 = vpop.f32.mrb[0].mxu0
      %v1067 = vadd.f32 0.0, %v1066
      %v1068 = vpop.f32.mrb[0].mxu0
      %1069 = vmatprep.mubr.bf16.mxu0 0
      %1070 = vmatmul.mubr.bf16.gmra.mrb[0].mxu0 %v975
      %v1071 = vpop.f32.mrb[0].mxu0
      %v1072 = vadd.f32 0.0, %v1071
      %v1073 = vpop.f32.mrb[0].mxu0
      %v1074 = vpop.f32.mrb[0].mxu0
      %v1075 = vadd.f32 0.0, %v1074
      %v1076 = vpop.f32.mrb[0].mxu0
      %1077 = vmatprep.mubr.bf16.mxu0 0
      %1078 = vmatmul.mubr.bf16.gmra.mrb[0].mxu0 %v978
      %v1079 = vpop.f32.mrb[0].mxu0
      %v1080 = vadd.f32 0.0, %v1079
      %v1081 = vpop.f32.mrb[0].mxu0
      %v1082 = vpop.f32.mrb[0].mxu0
      %v1083 = vadd.f32 0.0, %v1082
      %v1084 = vpop.f32.mrb[0].mxu0
      %1085 = vmatprep.mubr.bf16.mxu0 0
      %1086 = vmatmul.mubr.bf16.gmra.mrb[0].mxu0 %v981
      %v1087 = vpop.f32.mrb[0].mxu0
      %v1088 = vadd.f32 0.0, %v1087
      %v1089 = vpop.f32.mrb[0].mxu0
      %v1090 = vpop.f32.mrb[0].mxu0
      %v1091 = vadd.f32 0.0, %v1090
      %v1092 = vpop.f32.mrb[0].mxu0
      %1093 = vmatprep.mubr.bf16.mxu0 0
      %1094 = vmatmul.mubr.bf16.gmra.mrb[0].mxu0 %v984
      %v1095 = vpop.f32.mrb[0].mxu0
      %v1096 = vadd.f32 0.0, %v1095
      %v1097 = vpop.f32.mrb[0].mxu0
      %v1098 = vpop.f32.mrb[0].mxu0
      %v1099 = vadd.f32 0.0, %v1098
      %v1100 = vpop.f32.mrb[0].mxu0
      %1101 = vmatprep.mubr.bf16.mxu0 0
      %1102 = vmatmul.mubr.bf16.gmra.mrb[0].mxu0 %v987
      %v1103 = vpop.f32.mrb[0].mxu0
      %v1104 = vadd.f32 0.0, %v1103
      %v1105 = vpop.f32.mrb[0].mxu0
      %v1106 = vpop.f32.mrb[0].mxu0
      %v1107 = vadd.f32 0.0, %v1106
      %v1108 = vpop.f32.mrb[0].mxu0
      %1109 = vmatprep.mubr.bf16.mxu0 0
      %1110 = vmatmul.mubr.bf16.gmra.mrb[0].mxu0 %v990
      %v1111 = vpop.f32.mrb[0].mxu0
      %v1112 = vadd.f32 0.0, %v1111
      %v1113 = vpop.f32.mrb[0].mxu0
      %v1114 = vpop.f32.mrb[0].mxu0
      %v1115 = vadd.f32 0.0, %v1114
      %v1116 = vpop.f32.mrb[0].mxu0
      %1117 = vmatprep.mubr.bf16.mxu0 0
      %1118 = vmatmul.mubr.bf16.gmra.mrb[0].mxu0 %v993
      %v1119 = vpop.f32.mrb[0].mxu0
      %v1120 = vadd.f32 0.0, %v1119
      %v1121 = vpop.f32.mrb[0].mxu0
      %v1122 = vpop.f32.mrb[0].mxu0
      %v1123 = vadd.f32 0.0, %v1122
      %v1124 = vpop.f32.mrb[0].mxu0
      %1125 = vmatprep.mubr.bf16.mxu0 0
      %1126 = vmatmul.mubr.bf16.gmra.mrb[0].mxu0 %v996
      %v1127 = vpop.f32.mrb[0].mxu0
      %v1128 = vadd.f32 0.0, %v1127
      %v1129 = vpop.f32.mrb[0].mxu0
      %v1130 = vpop.f32.mrb[0].mxu0
      %v1131 = vadd.f32 0.0, %v1130
      %v1132 = vpop.f32.mrb[0].mxu0
      %1133 = vmatprep.mubr.bf16.mxu0 0
      %1134 = vmatmul.mubr.bf16.gmra.mrb[0].mxu0 %v999
      %v1135 = vpop.f32.mrb[0].mxu0
      %v1136 = vadd.f32 0.0, %v1135
      %v1137 = vpop.f32.mrb[0].mxu0
      %v1138 = vpop.f32.mrb[0].mxu0
      %v1139 = vadd.f32 0.0, %v1138
      %v1140 = vpop.f32.mrb[0].mxu0
      %1141 = vmatprep.mubr.bf16.mxu0 0
      %1142 = vmatmul.mubr.bf16.gmra.mrb[0].mxu0 %v1002
      %v1143 = vpop.f32.mrb[0].mxu0
      %v1144 = vadd.f32 0.0, %v1143
      %v1145 = vpop.f32.mrb[0].mxu0
      %v1146 = vpop.f32.mrb[0].mxu0
      %v1147 = vadd.f32 0.0, %v1146
      %v1148 = vpop.f32.mrb[0].mxu0
      %1149 = vmatprep.mubr.bf16.mxu0 0
      %1150 = vmatmul.mubr.bf16.gmra.mrb[0].mxu0 %v1005
      %v1151 = vpop.f32.mrb[0].mxu0
      %v1152 = vadd.f32 0.0, %v1151
      %v1153 = vpop.f32.mrb[0].mxu0
      %v1154 = vpop.f32.mrb[0].mxu0
      %v1155 = vadd.f32 0.0, %v1154
      %v1156 = vpop.f32.mrb[0].mxu0
      %1157 = vmatprep.mubr.bf16.mxu0 0
      %1158 = vmatmul.mubr.bf16.gmra.mrb[0].mxu0 %v1008
      %v1159 = vpop.f32.mrb[0].mxu0
      %v1160 = vadd.f32 0.0, %v1159
      %v1161 = vpop.f32.mrb[0].mxu0
      %v1162 = vpop.f32.mrb[0].mxu0
      %v1163 = vadd.f32 0.0, %v1162
      %v1164 = vpop.f32.mrb[0].mxu0
      %1165 = vmatprep.mubr.bf16.mxu0 0
      %1166 = vmatmul.mubr.bf16.gmra.mrb[0].mxu0 %v1011
      %v1167 = vpop.f32.mrb[0].mxu0
      %v1168 = vadd.f32 0.0, %v1167
      %v1169 = vpop.f32.mrb[0].mxu0
      %v1170 = vpop.f32.mrb[0].mxu0
      %v1171 = vadd.f32 0.0, %v1170
      %v1172 = vpop.f32.mrb[0].mxu0
      %1173 = vdwg.mxu0
      %v1174 = vadd.f32 %v782, %v1048
      %v1175 = vadd.f32 %v785, %v1051
      %v1176 = vadd.f32 %v790, %v1056
      %v1177 = vadd.f32 %v793, %v1059
      %v1178 = vadd.f32 %v798, %v1064
      %v1179 = vadd.f32 %v801, %v1067
      %v1180 = vadd.f32 %v806, %v1072
      %v1181 = vadd.f32 %v809, %v1075
      %v1182 = vadd.f32 %v814, %v1080
      %v1183 = vadd.f32 %v817, %v1083
      %v1184 = vadd.f32 %v822, %v1088
      %v1185 = vadd.f32 %v825, %v1091
      %v1186 = vadd.f32 %v830, %v1096
      %v1187 = vadd.f32 %v833, %v1099
      %v1188 = vadd.f32 %v838, %v1104
      %v1189 = vadd.f32 %v841, %v1107
      %v1190 = vadd.f32 %v846, %v1112
      %v1191 = vadd.f32 %v849, %v1115
      %v1192 = vadd.f32 %v854, %v1120
      %v1193 = vadd.f32 %v857, %v1123
      %v1194 = vadd.f32 %v862, %v1128
      %v1195 = vadd.f32 %v865, %v1131
      %v1196 = vadd.f32 %v870, %v1136
      %v1197 = vadd.f32 %v873, %v1139
      %v1198 = vadd.f32 %v878, %v1144
      %v1199 = vadd.f32 %v881, %v1147
      %v1200 = vadd.f32 %v886, %v1152
      %v1201 = vadd.f32 %v889, %v1155
      %v1202 = vadd.f32 %v894, %v1160
      %v1203 = vadd.f32 %v897, %v1163
      %v1204 = vadd.f32 %v902, %v1168
      %v1205 = vadd.f32 %v905, %v1171
      %v1206 = vld [vmem:[%s279] sm:$0xff]
      %v1207 = vld [vmem:[%s279 + $0x8] sm:$0xff]
      %v1208 = vld [vmem:[%s279 + $0x18] sm:$0xff]
      %v1209 = vld [vmem:[%s279 + $0x20] sm:$0xff]
      %v1210 = vld [vmem:[%s279 + $0x30] sm:$0xff]
      %v1211 = vld [vmem:[%s279 + $0x38] sm:$0xff]
      %v1212 = vld [vmem:[%s279 + $0x48] sm:$0xff]
      %v1213 = vld [vmem:[%s279 + $0x50] sm:$0xff]
      %v1214 = vld [vmem:[%s279 + $0x60] sm:$0xff]
      %v1215 = vld [vmem:[%s279 + $0x68] sm:$0xff]
      %v1216 = vld [vmem:[%s279 + $0x78] sm:$0xff]
      %v1217 = vld [vmem:[%s279 + $0x80] sm:$0xff]
      %v1218 = vld [vmem:[%s279 + $0x90] sm:$0xff]
      %v1219 = vld [vmem:[%s279 + $0x98] sm:$0xff]
      %v1220 = vld [vmem:[%s279 + $0xa8] sm:$0xff]
      %v1221 = vld [vmem:[%s279 + $0xb0] sm:$0xff]
      %v1222 = vld [vmem:[%s279 + $0xc0] sm:$0xff]
      %v1223 = vld [vmem:[%s279 + $0xc8] sm:$0xff]
      %v1224 = vld [vmem:[%s279 + $0xd8] sm:$0xff]
      %v1225 = vld [vmem:[%s279 + $0xe0] sm:$0xff]
      %v1226 = vld [vmem:[%s279 + $0xf0] sm:$0xff]
      %v1227 = vld [vmem:[%s279 + $0xf8] sm:$0xff]
      %v1228 = vld [vmem:[%s279 + $0x108] sm:$0xff]
      %v1229 = vld [vmem:[%s279 + $0x110] sm:$0xff]
      %v1230 = vld [vmem:[%s279 + $0x120] sm:$0xff]
      %v1231 = vld [vmem:[%s279 + $0x128] sm:$0xff]
      %v1232 = vld [vmem:[%s279 + $0x138] sm:$0xff]
      %v1233 = vld [vmem:[%s279 + $0x140] sm:$0xff]
      %v1234 = vld [vmem:[%s279 + $0x150] sm:$0xff]
      %v1235 = vld [vmem:[%s279 + $0x158] sm:$0xff]
      %v1236 = vld [vmem:[%s279 + $0x168] sm:$0xff]
      %v1237 = vld [vmem:[%s279 + $0x170] sm:$0xff]
      %v1238 = vpack.c.bf16 %v1207, %v1206
      %v1239 = vpack.c.bf16 %v1209, %v1208
      %v1240 = vpack.c.bf16 %v1211, %v1210
      %v1241 = vpack.c.bf16 %v1213, %v1212
      %v1242 = vpack.c.bf16 %v1215, %v1214
      %v1243 = vpack.c.bf16 %v1217, %v1216
      %v1244 = vpack.c.bf16 %v1219, %v1218
      %v1245 = vpack.c.bf16 %v1221, %v1220
      %v1246 = vpack.c.bf16 %v1223, %v1222
      %v1247 = vpack.c.bf16 %v1225, %v1224
      %v1248 = vpack.c.bf16 %v1227, %v1226
      %v1249 = vpack.c.bf16 %v1229, %v1228
      %v1250 = vpack.c.bf16 %v1231, %v1230
      %v1251 = vpack.c.bf16 %v1233, %v1232
      %v1252 = vpack.c.bf16 %v1235, %v1234
      %v1253 = vpack.c.bf16 %v1237, %v1236
      %s1254 = scalar_lea.vmem %s1, 24
      %v1255 = vld [vmem:[%s1254] sm:$0xf]
      %v1256 = vld [vmem:[%s1254 + $0x4] sm:$0xf]
      %v1259 = vunpack.c.l.b16 %v1255
      %v1260 = vunpack.c.l.b16 %v1256
      %v1261 = vpack.c.b16 %v1260, %v1259
      %v1264 = vsel %vm270, %v1238, 0
      %v1267 = vsel %vm270, %v1239, 0
      %v1270 = vsel %vm270, %v1240, 0
      %v1273 = vsel %vm270, %v1241, 0
      %v1276 = vsel %vm270, %v1242, 0
      %v1279 = vsel %vm270, %v1243, 0
      %v1282 = vsel %vm270, %v1244, 0
      %v1285 = vsel %vm270, %v1245, 0
      %v1288 = vsel %vm270, %v1246, 0
      %v1291 = vsel %vm270, %v1247, 0
      %v1294 = vsel %vm270, %v1248, 0
      %v1297 = vsel %vm270, %v1249, 0
      %v1300 = vsel %vm270, %v1250, 0
      %v1303 = vsel %vm270, %v1251, 0
      %v1306 = vsel %vm270, %v1252, 0
      %v1309 = vsel %vm270, %v1253, 0
      %1311 = vmatprep.subr.bf16.mxu0 0
      %1312 = vmatpush1.bf16.msra.mxu0 %v1261
      %1313 = vmatprep.subr.bf16.mxu0 0
      %1314 = vmatpush1.bf16.msra.mxu0 0
      %1315 = vmatprep.subr.bf16.mxu0 0
      %1316 = vmatpush1.bf16.msra.mxu0 0
      %1317 = vmatprep.subr.bf16.mxu0 0
      %1318 = vmatpush1.bf16.msra.mxu0 0
      %1319 = vmatprep.subr.bf16.mxu0 0
      %1320 = vmatpush1.bf16.msra.mxu0 0
      %1321 = vmatprep.subr.bf16.mxu0 0
      %1322 = vmatpush1.bf16.msra.mxu0 0
      %1323 = vmatprep.subr.bf16.mxu0 0
      %1324 = vmatpush1.bf16.msra.mxu0 0
      %1325 = vmatprep.subr.bf16.mxu0 0
      %1326 = vmatpush1.bf16.msra.mxu0 0
      %1327 = vmatprep.subr.bf16.mxu0 0
      %1328 = vmatpush1.bf16.msra.mxu0 0
      %1329 = vmatprep.subr.bf16.mxu0 0
      %1330 = vmatpush1.bf16.msra.mxu0 0
      %1331 = vmatprep.subr.bf16.mxu0 0
      %1332 = vmatpush1.bf16.msra.mxu0 0
      %1333 = vmatprep.subr.bf16.mxu0 0
      %1334 = vmatpush1.bf16.msra.mxu0 0
      %1335 = vmatprep.subr.bf16.mxu0 0
      %1336 = vmatpush1.bf16.msra.mxu0 0
      %1337 = vmatprep.subr.bf16.mxu0 0
      %1338 = vmatpush1.bf16.msra.mxu0 0
      %1339 = vmatprep.subr.bf16.mxu0 0
      %1340 = vmatpush1.bf16.msra.mxu0 0
      %1341 = vmatprep.subr.bf16.mxu0 0
      %1342 = vmatpush1.bf16.msra.mxu0 0
      %1343 = vmatprep.mubr.bf16.mxu0 0
      %1344 = vmatmul.mubr.bf16.gmra.mrb[0].mxu0 %v1264
      %v1345 = vpop.f32.mrb[0].mxu0
      %v1346 = vadd.f32 0.0, %v1345
      %v1347 = vpop.f32.mrb[0].mxu0
      %v1348 = vpop.f32.mrb[0].mxu0
      %v1349 = vadd.f32 0.0, %v1348
      %v1350 = vpop.f32.mrb[0].mxu0
      %1351 = vmatprep.mubr.bf16.mxu0 0
      %1352 = vmatmul.mubr.bf16.gmra.mrb[0].mxu0 %v1267
      %v1353 = vpop.f32.mrb[0].mxu0
      %v1354 = vadd.f32 0.0, %v1353
      %v1355 = vpop.f32.mrb[0].mxu0
      %v1356 = vpop.f32.mrb[0].mxu0
      %v1357 = vadd.f32 0.0, %v1356
      %v1358 = vpop.f32.mrb[0].mxu0
      %1359 = vmatprep.mubr.bf16.mxu0 0
      %1360 = vmatmul.mubr.bf16.gmra.mrb[0].mxu0 %v1270
      %v1361 = vpop.f32.mrb[0].mxu0
      %v1362 = vadd.f32 0.0, %v1361
      %v1363 = vpop.f32.mrb[0].mxu0
      %v1364 = vpop.f32.mrb[0].mxu0
      %v1365 = vadd.f32 0.0, %v1364
      %v1366 = vpop.f32.mrb[0].mxu0
      %1367 = vmatprep.mubr.bf16.mxu0 0
      %1368 = vmatmul.mubr.bf16.gmra.mrb[0].mxu0 %v1273
      %v1369 = vpop.f32.mrb[0].mxu0
      %v1370 = vadd.f32 0.0, %v1369
      %v1371 = vpop.f32.mrb[0].mxu0
      %v1372 = vpop.f32.mrb[0].mxu0
      %v1373 = vadd.f32 0.0, %v1372
      %v1374 = vpop.f32.mrb[0].mxu0
      %1375 = vmatprep.mubr.bf16.mxu0 0
      %1376 = vmatmul.mubr.bf16.gmra.mrb[0].mxu0 %v1276
      %v1377 = vpop.f32.mrb[0].mxu0
      %v1378 = vadd.f32 0.0, %v1377
      %v1379 = vpop.f32.mrb[0].mxu0
      %v1380 = vpop.f32.mrb[0].mxu0
      %v1381 = vadd.f32 0.0, %v1380
      %v1382 = vpop.f32.mrb[0].mxu0
      %1383 = vmatprep.mubr.bf16.mxu0 0
      %1384 = vmatmul.mubr.bf16.gmra.mrb[0].mxu0 %v1279
      %v1385 = vpop.f32.mrb[0].mxu0
      %v1386 = vadd.f32 0.0, %v1385
      %v1387 = vpop.f32.mrb[0].mxu0
      %v1388 = vpop.f32.mrb[0].mxu0
      %v1389 = vadd.f32 0.0, %v1388
      %v1390 = vpop.f32.mrb[0].mxu0
      %1391 = vmatprep.mubr.bf16.mxu0 0
      %1392 = vmatmul.mubr.bf16.gmra.mrb[0].mxu0 %v1282
      %v1393 = vpop.f32.mrb[0].mxu0
      %v1394 = vadd.f32 0.0, %v1393
      %v1395 = vpop.f32.mrb[0].mxu0
      %v1396 = vpop.f32.mrb[0].mxu0
      %v1397 = vadd.f32 0.0, %v1396
      %v1398 = vpop.f32.mrb[0].mxu0
      %1399 = vmatprep.mubr.bf16.mxu0 0
      %1400 = vmatmul.mubr.bf16.gmra.mrb[0].mxu0 %v1285
      %v1401 = vpop.f32.mrb[0].mxu0
      %v1402 = vadd.f32 0.0, %v1401
      %v1403 = vpop.f32.mrb[0].mxu0
      %v1404 = vpop.f32.mrb[0].mxu0
      %v1405 = vadd.f32 0.0, %v1404
      %v1406 = vpop.f32.mrb[0].mxu0
      %1407 = vmatprep.mubr.bf16.mxu0 0
      %1408 = vmatmul.mubr.bf16.gmra.mrb[0].mxu0 %v1288
      %v1409 = vpop.f32.mrb[0].mxu0
      %v1410 = vadd.f32 0.0, %v1409
      %v1411 = vpop.f32.mrb[0].mxu0
      %v1412 = vpop.f32.mrb[0].mxu0
      %v1413 = vadd.f32 0.0, %v1412
      %v1414 = vpop.f32.mrb[0].mxu0
      %1415 = vmatprep.mubr.bf16.mxu0 0
      %1416 = vmatmul.mubr.bf16.gmra.mrb[0].mxu0 %v1291
      %v1417 = vpop.f32.mrb[0].mxu0
      %v1418 = vadd.f32 0.0, %v1417
      %v1419 = vpop.f32.mrb[0].mxu0
      %v1420 = vpop.f32.mrb[0].mxu0
      %v1421 = vadd.f32 0.0, %v1420
      %v1422 = vpop.f32.mrb[0].mxu0
      %1423 = vmatprep.mubr.bf16.mxu0 0
      %1424 = vmatmul.mubr.bf16.gmra.mrb[0].mxu0 %v1294
      %v1425 = vpop.f32.mrb[0].mxu0
      %v1426 = vadd.f32 0.0, %v1425
      %v1427 = vpop.f32.mrb[0].mxu0
      %v1428 = vpop.f32.mrb[0].mxu0
      %v1429 = vadd.f32 0.0, %v1428
      %v1430 = vpop.f32.mrb[0].mxu0
      %1431 = vmatprep.mubr.bf16.mxu0 0
      %1432 = vmatmul.mubr.bf16.gmra.mrb[0].mxu0 %v1297
      %v1433 = vpop.f32.mrb[0].mxu0
      %v1434 = vadd.f32 0.0, %v1433
      %v1435 = vpop.f32.mrb[0].mxu0
      %v1436 = vpop.f32.mrb[0].mxu0
      %v1437 = vadd.f32 0.0, %v1436
      %v1438 = vpop.f32.mrb[0].mxu0
      %1439 = vmatprep.mubr.bf16.mxu0 0
      %1440 = vmatmul.mubr.bf16.gmra.mrb[0].mxu0 %v1300
      %v1441 = vpop.f32.mrb[0].mxu0
      %v1442 = vadd.f32 0.0, %v1441
      %v1443 = vpop.f32.mrb[0].mxu0
      %v1444 = vpop.f32.mrb[0].mxu0
      %v1445 = vadd.f32 0.0, %v1444
      %v1446 = vpop.f32.mrb[0].mxu0
      %1447 = vmatprep.mubr.bf16.mxu0 0
      %1448 = vmatmul.mubr.bf16.gmra.mrb[0].mxu0 %v1303
      %v1449 = vpop.f32.mrb[0].mxu0
      %v1450 = vadd.f32 0.0, %v1449
      %v1451 = vpop.f32.mrb[0].mxu0
      %v1452 = vpop.f32.mrb[0].mxu0
      %v1453 = vadd.f32 0.0, %v1452
      %v1454 = vpop.f32.mrb[0].mxu0
      %1455 = vmatprep.mubr.bf16.mxu0 0
      %1456 = vmatmul.mubr.bf16.gmra.mrb[0].mxu0 %v1306
      %v1457 = vpop.f32.mrb[0].mxu0
      %v1458 = vadd.f32 0.0, %v1457
      %v1459 = vpop.f32.mrb[0].mxu0
      %v1460 = vpop.f32.mrb[0].mxu0
      %v1461 = vadd.f32 0.0, %v1460
      %v1462 = vpop.f32.mrb[0].mxu0
      %1463 = vmatprep.mubr.bf16.mxu0 0
      %1464 = vmatmul.mubr.bf16.gmra.mrb[0].mxu0 %v1309
      %v1465 = vpop.f32.mrb[0].mxu0
      %v1466 = vadd.f32 0.0, %v1465
      %v1467 = vpop.f32.mrb[0].mxu0
      %v1468 = vpop.f32.mrb[0].mxu0
      %v1469 = vadd.f32 0.0, %v1468
      %v1470 = vpop.f32.mrb[0].mxu0
      %1471 = vdwg.mxu0
      %v1472 = vadd.f32 %v1174, %v1346
      %v1473 = vadd.f32 %v1175, %v1349
      %v1474 = vadd.f32 %v1176, %v1354
      %v1475 = vadd.f32 %v1177, %v1357
      %v1476 = vadd.f32 %v1178, %v1362
      %v1477 = vadd.f32 %v1179, %v1365
      %v1478 = vadd.f32 %v1180, %v1370
      %v1479 = vadd.f32 %v1181, %v1373
      %v1480 = vadd.f32 %v1182, %v1378
      %v1481 = vadd.f32 %v1183, %v1381
      %v1482 = vadd.f32 %v1184, %v1386
      %v1483 = vadd.f32 %v1185, %v1389
      %v1484 = vadd.f32 %v1186, %v1394
      %v1485 = vadd.f32 %v1187, %v1397
      %v1486 = vadd.f32 %v1188, %v1402
      %v1487 = vadd.f32 %v1189, %v1405
      %v1488 = vadd.f32 %v1190, %v1410
      %v1489 = vadd.f32 %v1191, %v1413
      %v1490 = vadd.f32 %v1192, %v1418
      %v1491 = vadd.f32 %v1193, %v1421
      %v1492 = vadd.f32 %v1194, %v1426
      %v1493 = vadd.f32 %v1195, %v1429
      %v1494 = vadd.f32 %v1196, %v1434
      %v1495 = vadd.f32 %v1197, %v1437
      %v1496 = vadd.f32 %v1198, %v1442
      %v1497 = vadd.f32 %v1199, %v1445
      %v1498 = vadd.f32 %v1200, %v1450
      %v1499 = vadd.f32 %v1201, %v1453
      %v1500 = vadd.f32 %v1202, %v1458
      %v1501 = vadd.f32 %v1203, %v1461
      %v1502 = vadd.f32 %v1204, %v1466
      %v1503 = vadd.f32 %v1205, %v1469
      %v1504 = vld [vmem:[%s279 + $0x1] sm:$0xff]
      %v1505 = vld [vmem:[%s279 + $0x9] sm:$0xff]
      %v1506 = vld [vmem:[%s279 + $0x19] sm:$0xff]
      %v1507 = vld [vmem:[%s279 + $0x21] sm:$0xff]
      %v1508 = vld [vmem:[%s279 + $0x31] sm:$0xff]
      %v1509 = vld [vmem:[%s279 + $0x39] sm:$0xff]
      %v1510 = vld [vmem:[%s279 + $0x49] sm:$0xff]
      %v1511 = vld [vmem:[%s279 + $0x51] sm:$0xff]
      %v1512 = vld [vmem:[%s279 + $0x61] sm:$0xff]
      %v1513 = vld [vmem:[%s279 + $0x69] sm:$0xff]
      %v1514 = vld [vmem:[%s279 + $0x79] sm:$0xff]
      %v1515 = vld [vmem:[%s279 + $0x81] sm:$0xff]
      %v1516 = vld [vmem:[%s279 + $0x91] sm:$0xff]
      %v1517 = vld [vmem:[%s279 + $0x99] sm:$0xff]
      %v1518 = vld [vmem:[%s279 + $0xa9] sm:$0xff]
      %v1519 = vld [vmem:[%s279 + $0xb1] sm:$0xff]
      %v1520 = vld [vmem:[%s279 + $0xc1] sm:$0xff]
      %v1521 = vld [vmem:[%s279 + $0xc9] sm:$0xff]
      %v1522 = vld [vmem:[%s279 + $0xd9] sm:$0xff]
      %v1523 = vld [vmem:[%s279 + $0xe1] sm:$0xff]
      %v1524 = vld [vmem:[%s279 + $0xf1] sm:$0xff]
      %v1525 = vld [vmem:[%s279 + $0xf9] sm:$0xff]
      %v1526 = vld [vmem:[%s279 + $0x109] sm:$0xff]
      %v1527 = vld [vmem:[%s279 + $0x111] sm:$0xff]
      %v1528 = vld [vmem:[%s279 + $0x121] sm:$0xff]
      %v1529 = vld [vmem:[%s279 + $0x129] sm:$0xff]
      %v1530 = vld [vmem:[%s279 + $0x139] sm:$0xff]
      %v1531 = vld [vmem:[%s279 + $0x141] sm:$0xff]
      %v1532 = vld [vmem:[%s279 + $0x151] sm:$0xff]
      %v1533 = vld [vmem:[%s279 + $0x159] sm:$0xff]
      %v1534 = vld [vmem:[%s279 + $0x169] sm:$0xff]
      %v1535 = vld [vmem:[%s279 + $0x171] sm:$0xff]
      %v1536 = vpack.c.bf16 %v1505, %v1504
      %v1537 = vpack.c.bf16 %v1507, %v1506
      %v1538 = vpack.c.bf16 %v1509, %v1508
      %v1539 = vpack.c.bf16 %v1511, %v1510
      %v1540 = vpack.c.bf16 %v1513, %v1512
      %v1541 = vpack.c.bf16 %v1515, %v1514
      %v1542 = vpack.c.bf16 %v1517, %v1516
      %v1543 = vpack.c.bf16 %v1519, %v1518
      %v1544 = vpack.c.bf16 %v1521, %v1520
      %v1545 = vpack.c.bf16 %v1523, %v1522
      %v1546 = vpack.c.bf16 %v1525, %v1524
      %v1547 = vpack.c.bf16 %v1527, %v1526
      %v1548 = vpack.c.bf16 %v1529, %v1528
      %v1549 = vpack.c.bf16 %v1531, %v1530
      %v1550 = vpack.c.bf16 %v1533, %v1532
      %v1551 = vpack.c.bf16 %v1535, %v1534
      %s1552 = scalar_lea.vmem %s1, 32
      %v1553 = vld [vmem:[%s1552] sm:$0xf]
      %v1554 = vld [vmem:[%s1552 + $0x4] sm:$0xf]
      %v1557 = vunpack.c.l.b16 %v1553
      %v1558 = vunpack.c.l.b16 %v1554
      %v1559 = vpack.c.b16 %v1558, %v1557
      %v1562 = vsel %vm270, %v1536, 0
      %v1565 = vsel %vm270, %v1537, 0
      %v1568 = vsel %vm270, %v1538, 0
      %v1571 = vsel %vm270, %v1539, 0
      %v1574 = vsel %vm270, %v1540, 0
      %v1577 = vsel %vm270, %v1541, 0
      %v1580 = vsel %vm270, %v1542, 0
      %v1583 = vsel %vm270, %v1543, 0
      %v1586 = vsel %vm270, %v1544, 0
      %v1589 = vsel %vm270, %v1545, 0
      %v1592 = vsel %vm270, %v1546, 0
      %v1595 = vsel %vm270, %v1547, 0
      %v1598 = vsel %vm270, %v1548, 0
      %v1601 = vsel %vm270, %v1549, 0
      %v1604 = vsel %vm270, %v1550, 0
      %v1607 = vsel %vm270, %v1551, 0
      %1609 = vmatprep.subr.bf16.mxu0 0
      %1610 = vmatpush1.bf16.msra.mxu0 %v1559
      %1611 = vmatprep.subr.bf16.mxu0 0
      %1612 = vmatpush1.bf16.msra.mxu0 0
      %1613 = vmatprep.subr.bf16.mxu0 0
      %1614 = vmatpush1.bf16.msra.mxu0 0
      %1615 = vmatprep.subr.bf16.mxu0 0
      %1616 = vmatpush1.bf16.msra.mxu0 0
      %1617 = vmatprep.subr.bf16.mxu0 0
      %1618 = vmatpush1.bf16.msra.mxu0 0
      %1619 = vmatprep.subr.bf16.mxu0 0
      %1620 = vmatpush1.bf16.msra.mxu0 0
      %1621 = vmatprep.subr.bf16.mxu0 0
      %1622 = vmatpush1.bf16.msra.mxu0 0
      %1623 = vmatprep.subr.bf16.mxu0 0
      %1624 = vmatpush1.bf16.msra.mxu0 0
      %1625 = vmatprep.subr.bf16.mxu0 0
      %1626 = vmatpush1.bf16.msra.mxu0 0
      %1627 = vmatprep.subr.bf16.mxu0 0
      %1628 = vmatpush1.bf16.msra.mxu0 0
      %1629 = vmatprep.subr.bf16.mxu0 0
      %1630 = vmatpush1.bf16.msra.mxu0 0
      %1631 = vmatprep.subr.bf16.mxu0 0
      %1632 = vmatpush1.bf16.msra.mxu0 0
      %1633 = vmatprep.subr.bf16.mxu0 0
      %1634 = vmatpush1.bf16.msra.mxu0 0
      %1635 = vmatprep.subr.bf16.mxu0 0
      %1636 = vmatpush1.bf16.msra.mxu0 0
      %1637 = vmatprep.subr.bf16.mxu0 0
      %1638 = vmatpush1.bf16.msra.mxu0 0
      %1639 = vmatprep.subr.bf16.mxu0 0
      %1640 = vmatpush1.bf16.msra.mxu0 0
      %1641 = vmatprep.mubr.bf16.mxu0 0
      %1642 = vmatmul.mubr.bf16.gmra.mrb[0].mxu0 %v1562
      %v1643 = vpop.f32.mrb[0].mxu0
      %v1644 = vadd.f32 0.0, %v1643
      %v1645 = vpop.f32.mrb[0].mxu0
      %v1646 = vpop.f32.mrb[0].mxu0
      %v1647 = vadd.f32 0.0, %v1646
      %v1648 = vpop.f32.mrb[0].mxu0
      %1649 = vmatprep.mubr.bf16.mxu0 0
      %1650 = vmatmul.mubr.bf16.gmra.mrb[0].mxu0 %v1565
      %v1651 = vpop.f32.mrb[0].mxu0
      %v1652 = vadd.f32 0.0, %v1651
      %v1653 = vpop.f32.mrb[0].mxu0
      %v1654 = vpop.f32.mrb[0].mxu0
      %v1655 = vadd.f32 0.0, %v1654
      %v1656 = vpop.f32.mrb[0].mxu0
      %1657 = vmatprep.mubr.bf16.mxu0 0
      %1658 = vmatmul.mubr.bf16.gmra.mrb[0].mxu0 %v1568
      %v1659 = vpop.f32.mrb[0].mxu0
      %v1660 = vadd.f32 0.0, %v1659
      %v1661 = vpop.f32.mrb[0].mxu0
      %v1662 = vpop.f32.mrb[0].mxu0
      %v1663 = vadd.f32 0.0, %v1662
      %v1664 = vpop.f32.mrb[0].mxu0
      %1665 = vmatprep.mubr.bf16.mxu0 0
      %1666 = vmatmul.mubr.bf16.gmra.mrb[0].mxu0 %v1571
      %v1667 = vpop.f32.mrb[0].mxu0
      %v1668 = vadd.f32 0.0, %v1667
      %v1669 = vpop.f32.mrb[0].mxu0
      %v1670 = vpop.f32.mrb[0].mxu0
      %v1671 = vadd.f32 0.0, %v1670
      %v1672 = vpop.f32.mrb[0].mxu0
      %1673 = vmatprep.mubr.bf16.mxu0 0
      %1674 = vmatmul.mubr.bf16.gmra.mrb[0].mxu0 %v1574
      %v1675 = vpop.f32.mrb[0].mxu0
      %v1676 = vadd.f32 0.0, %v1675
      %v1677 = vpop.f32.mrb[0].mxu0
      %v1678 = vpop.f32.mrb[0].mxu0
      %v1679 = vadd.f32 0.0, %v1678
      %v1680 = vpop.f32.mrb[0].mxu0
      %1681 = vmatprep.mubr.bf16.mxu0 0
      %1682 = vmatmul.mubr.bf16.gmra.mrb[0].mxu0 %v1577
      %v1683 = vpop.f32.mrb[0].mxu0
      %v1684 = vadd.f32 0.0, %v1683
      %v1685 = vpop.f32.mrb[0].mxu0
      %v1686 = vpop.f32.mrb[0].mxu0
      %v1687 = vadd.f32 0.0, %v1686
      %v1688 = vpop.f32.mrb[0].mxu0
      %1689 = vmatprep.mubr.bf16.mxu0 0
      %1690 = vmatmul.mubr.bf16.gmra.mrb[0].mxu0 %v1580
      %v1691 = vpop.f32.mrb[0].mxu0
      %v1692 = vadd.f32 0.0, %v1691
      %v1693 = vpop.f32.mrb[0].mxu0
      %v1694 = vpop.f32.mrb[0].mxu0
      %v1695 = vadd.f32 0.0, %v1694
      %v1696 = vpop.f32.mrb[0].mxu0
      %1697 = vmatprep.mubr.bf16.mxu0 0
      %1698 = vmatmul.mubr.bf16.gmra.mrb[0].mxu0 %v1583
      %v1699 = vpop.f32.mrb[0].mxu0
      %v1700 = vadd.f32 0.0, %v1699
      %v1701 = vpop.f32.mrb[0].mxu0
      %v1702 = vpop.f32.mrb[0].mxu0
      %v1703 = vadd.f32 0.0, %v1702
      %v1704 = vpop.f32.mrb[0].mxu0
      %1705 = vmatprep.mubr.bf16.mxu0 0
      %1706 = vmatmul.mubr.bf16.gmra.mrb[0].mxu0 %v1586
      %v1707 = vpop.f32.mrb[0].mxu0
      %v1708 = vadd.f32 0.0, %v1707
      %v1709 = vpop.f32.mrb[0].mxu0
      %v1710 = vpop.f32.mrb[0].mxu0
      %v1711 = vadd.f32 0.0, %v1710
      %v1712 = vpop.f32.mrb[0].mxu0
      %1713 = vmatprep.mubr.bf16.mxu0 0
      %1714 = vmatmul.mubr.bf16.gmra.mrb[0].mxu0 %v1589
      %v1715 = vpop.f32.mrb[0].mxu0
      %v1716 = vadd.f32 0.0, %v1715
      %v1717 = vpop.f32.mrb[0].mxu0
      %v1718 = vpop.f32.mrb[0].mxu0
      %v1719 = vadd.f32 0.0, %v1718
      %v1720 = vpop.f32.mrb[0].mxu0
      %1721 = vmatprep.mubr.bf16.mxu0 0
      %1722 = vmatmul.mubr.bf16.gmra.mrb[0].mxu0 %v1592
      %v1723 = vpop.f32.mrb[0].mxu0
      %v1724 = vadd.f32 0.0, %v1723
      %v1725 = vpop.f32.mrb[0].mxu0
      %v1726 = vpop.f32.mrb[0].mxu0
      %v1727 = vadd.f32 0.0, %v1726
      %v1728 = vpop.f32.mrb[0].mxu0
      %1729 = vmatprep.mubr.bf16.mxu0 0
      %1730 = vmatmul.mubr.bf16.gmra.mrb[0].mxu0 %v1595
      %v1731 = vpop.f32.mrb[0].mxu0
      %v1732 = vadd.f32 0.0, %v1731
      %v1733 = vpop.f32.mrb[0].mxu0
      %v1734 = vpop.f32.mrb[0].mxu0
      %v1735 = vadd.f32 0.0, %v1734
      %v1736 = vpop.f32.mrb[0].mxu0
      %1737 = vmatprep.mubr.bf16.mxu0 0
      %1738 = vmatmul.mubr.bf16.gmra.mrb[0].mxu0 %v1598
      %v1739 = vpop.f32.mrb[0].mxu0
      %v1740 = vadd.f32 0.0, %v1739
      %v1741 = vpop.f32.mrb[0].mxu0
      %v1742 = vpop.f32.mrb[0].mxu0
      %v1743 = vadd.f32 0.0, %v1742
      %v1744 = vpop.f32.mrb[0].mxu0
      %1745 = vmatprep.mubr.bf16.mxu0 0
      %1746 = vmatmul.mubr.bf16.gmra.mrb[0].mxu0 %v1601
      %v1747 = vpop.f32.mrb[0].mxu0
      %v1748 = vadd.f32 0.0, %v1747
      %v1749 = vpop.f32.mrb[0].mxu0
      %v1750 = vpop.f32.mrb[0].mxu0
      %v1751 = vadd.f32 0.0, %v1750
      %v1752 = vpop.f32.mrb[0].mxu0
      %1753 = vmatprep.mubr.bf16.mxu0 0
      %1754 = vmatmul.mubr.bf16.gmra.mrb[0].mxu0 %v1604
      %v1755 = vpop.f32.mrb[0].mxu0
      %v1756 = vadd.f32 0.0, %v1755
      %v1757 = vpop.f32.mrb[0].mxu0
      %v1758 = vpop.f32.mrb[0].mxu0
      %v1759 = vadd.f32 0.0, %v1758
      %v1760 = vpop.f32.mrb[0].mxu0
      %1761 = vmatprep.mubr.bf16.mxu0 0
      %1762 = vmatmul.mubr.bf16.gmra.mrb[0].mxu0 %v1607
      %v1763 = vpop.f32.mrb[0].mxu0
      %v1764 = vadd.f32 0.0, %v1763
      %v1765 = vpop.f32.mrb[0].mxu0
      %v1766 = vpop.f32.mrb[0].mxu0
      %v1767 = vadd.f32 0.0, %v1766
      %v1768 = vpop.f32.mrb[0].mxu0
      %1769 = vdwg.mxu0
      %v1770 = vadd.f32 %v1472, %v1644
      %v1771 = vadd.f32 %v1473, %v1647
      %v1772 = vadd.f32 %v1474, %v1652
      %v1773 = vadd.f32 %v1475, %v1655
      %v1774 = vadd.f32 %v1476, %v1660
      %v1775 = vadd.f32 %v1477, %v1663
      %v1776 = vadd.f32 %v1478, %v1668
      %v1777 = vadd.f32 %v1479, %v1671
      %v1778 = vadd.f32 %v1480, %v1676
      %v1779 = vadd.f32 %v1481, %v1679
      %v1780 = vadd.f32 %v1482, %v1684
      %v1781 = vadd.f32 %v1483, %v1687
      %v1782 = vadd.f32 %v1484, %v1692
      %v1783 = vadd.f32 %v1485, %v1695
      %v1784 = vadd.f32 %v1486, %v1700
      %v1785 = vadd.f32 %v1487, %v1703
      %v1786 = vadd.f32 %v1488, %v1708
      %v1787 = vadd.f32 %v1489, %v1711
      %v1788 = vadd.f32 %v1490, %v1716
      %v1789 = vadd.f32 %v1491, %v1719
      %v1790 = vadd.f32 %v1492, %v1724
      %v1791 = vadd.f32 %v1493, %v1727
      %v1792 = vadd.f32 %v1494, %v1732
      %v1793 = vadd.f32 %v1495, %v1735
      %v1794 = vadd.f32 %v1496, %v1740
      %v1795 = vadd.f32 %v1497, %v1743
      %v1796 = vadd.f32 %v1498, %v1748
      %v1797 = vadd.f32 %v1499, %v1751
      %v1798 = vadd.f32 %v1500, %v1756
      %v1799 = vadd.f32 %v1501, %v1759
      %v1800 = vadd.f32 %v1502, %v1764
      %v1801 = vadd.f32 %v1503, %v1767
      %v1802 = vld [vmem:[%s279 + $0x2] sm:$0xff]
      %v1803 = vld [vmem:[%s279 + $0xa] sm:$0xff]
      %v1804 = vld [vmem:[%s279 + $0x1a] sm:$0xff]
      %v1805 = vld [vmem:[%s279 + $0x22] sm:$0xff]
      %v1806 = vld [vmem:[%s279 + $0x32] sm:$0xff]
      %v1807 = vld [vmem:[%s279 + $0x3a] sm:$0xff]
      %v1808 = vld [vmem:[%s279 + $0x4a] sm:$0xff]
      %v1809 = vld [vmem:[%s279 + $0x52] sm:$0xff]
      %v1810 = vld [vmem:[%s279 + $0x62] sm:$0xff]
      %v1811 = vld [vmem:[%s279 + $0x6a] sm:$0xff]
      %v1812 = vld [vmem:[%s279 + $0x7a] sm:$0xff]
      %v1813 = vld [vmem:[%s279 + $0x82] sm:$0xff]
      %v1814 = vld [vmem:[%s279 + $0x92] sm:$0xff]
      %v1815 = vld [vmem:[%s279 + $0x9a] sm:$0xff]
      %v1816 = vld [vmem:[%s279 + $0xaa] sm:$0xff]
      %v1817 = vld [vmem:[%s279 + $0xb2] sm:$0xff]
      %v1818 = vld [vmem:[%s279 + $0xc2] sm:$0xff]
      %v1819 = vld [vmem:[%s279 + $0xca] sm:$0xff]
      %v1820 = vld [vmem:[%s279 + $0xda] sm:$0xff]
      %v1821 = vld [vmem:[%s279 + $0xe2] sm:$0xff]
      %v1822 = vld [vmem:[%s279 + $0xf2] sm:$0xff]
      %v1823 = vld [vmem:[%s279 + $0xfa] sm:$0xff]
      %v1824 = vld [vmem:[%s279 + $0x10a] sm:$0xff]
      %v1825 = vld [vmem:[%s279 + $0x112] sm:$0xff]
      %v1826 = vld [vmem:[%s279 + $0x122] sm:$0xff]
      %v1827 = vld [vmem:[%s279 + $0x12a] sm:$0xff]
      %v1828 = vld [vmem:[%s279 + $0x13a] sm:$0xff]
      %v1829 = vld [vmem:[%s279 + $0x142] sm:$0xff]
      %v1830 = vld [vmem:[%s279 + $0x152] sm:$0xff]
      %v1831 = vld [vmem:[%s279 + $0x15a] sm:$0xff]
      %v1832 = vld [vmem:[%s279 + $0x16a] sm:$0xff]
      %v1833 = vld [vmem:[%s279 + $0x172] sm:$0xff]
      %v1834 = vpack.c.bf16 %v1803, %v1802
      %v1835 = vpack.c.bf16 %v1805, %v1804
      %v1836 = vpack.c.bf16 %v1807, %v1806
      %v1837 = vpack.c.bf16 %v1809, %v1808
      %v1838 = vpack.c.bf16 %v1811, %v1810
      %v1839 = vpack.c.bf16 %v1813, %v1812
      %v1840 = vpack.c.bf16 %v1815, %v1814
      %v1841 = vpack.c.bf16 %v1817, %v1816
      %v1842 = vpack.c.bf16 %v1819, %v1818
      %v1843 = vpack.c.bf16 %v1821, %v1820
      %v1844 = vpack.c.bf16 %v1823, %v1822
      %v1845 = vpack.c.bf16 %v1825, %v1824
      %v1846 = vpack.c.bf16 %v1827, %v1826
      %v1847 = vpack.c.bf16 %v1829, %v1828
      %v1848 = vpack.c.bf16 %v1831, %v1830
      %v1849 = vpack.c.bf16 %v1833, %v1832
      %s1850 = scalar_lea.vmem %s1, 40
      %v1851 = vld [vmem:[%s1850] sm:$0xf]
      %v1852 = vld [vmem:[%s1850 + $0x4] sm:$0xf]
      %v1855 = vunpack.c.l.b16 %v1851
      %v1856 = vunpack.c.l.b16 %v1852
      %v1857 = vpack.c.b16 %v1856, %v1855
      %v1860 = vsel %vm270, %v1834, 0
      %v1863 = vsel %vm270, %v1835, 0
      %v1866 = vsel %vm270, %v1836, 0
      %v1869 = vsel %vm270, %v1837, 0
      %v1872 = vsel %vm270, %v1838, 0
      %v1875 = vsel %vm270, %v1839, 0
      %v1878 = vsel %vm270, %v1840, 0
      %v1881 = vsel %vm270, %v1841, 0
      %v1884 = vsel %vm270, %v1842, 0
      %v1887 = vsel %vm270, %v1843, 0
      %v1890 = vsel %vm270, %v1844, 0
      %v1893 = vsel %vm270, %v1845, 0
      %v1896 = vsel %vm270, %v1846, 0
      %v1899 = vsel %vm270, %v1847, 0
      %v1902 = vsel %vm270, %v1848, 0
      %v1905 = vsel %vm270, %v1849, 0
      %1907 = vmatprep.subr.bf16.mxu0 0
      %1908 = vmatpush1.bf16.msra.mxu0 %v1857
      %1909 = vmatprep.subr.bf16.mxu0 0
      %1910 = vmatpush1.bf16.msra.mxu0 0
      %1911 = vmatprep.subr.bf16.mxu0 0
      %1912 = vmatpush1.bf16.msra.mxu0 0
      %1913 = vmatprep.subr.bf16.mxu0 0
      %1914 = vmatpush1.bf16.msra.mxu0 0
      %1915 = vmatprep.subr.bf16.mxu0 0
      %1916 = vmatpush1.bf16.msra.mxu0 0
      %1917 = vmatprep.subr.bf16.mxu0 0
      %1918 = vmatpush1.bf16.msra.mxu0 0
      %1919 = vmatprep.subr.bf16.mxu0 0
      %1920 = vmatpush1.bf16.msra.mxu0 0
      %1921 = vmatprep.subr.bf16.mxu0 0
      %1922 = vmatpush1.bf16.msra.mxu0 0
      %1923 = vmatprep.subr.bf16.mxu0 0
      %1924 = vmatpush1.bf16.msra.mxu0 0
      %1925 = vmatprep.subr.bf16.mxu0 0
      %1926 = vmatpush1.bf16.msra.mxu0 0
      %1927 = vmatprep.subr.bf16.mxu0 0
      %1928 = vmatpush1.bf16.msra.mxu0 0
      %1929 = vmatprep.subr.bf16.mxu0 0
      %1930 = vmatpush1.bf16.msra.mxu0 0
      %1931 = vmatprep.subr.bf16.mxu0 0
      %1932 = vmatpush1.bf16.msra.mxu0 0
      %1933 = vmatprep.subr.bf16.mxu0 0
      %1934 = vmatpush1.bf16.msra.mxu0 0
      %1935 = vmatprep.subr.bf16.mxu0 0
      %1936 = vmatpush1.bf16.msra.mxu0 0
      %1937 = vmatprep.subr.bf16.mxu0 0
      %1938 = vmatpush1.bf16.msra.mxu0 0
      %1939 = vmatprep.mubr.bf16.mxu0 0
      %1940 = vmatmul.mubr.bf16.gmra.mrb[0].mxu0 %v1860
      %v1941 = vpop.f32.mrb[0].mxu0
      %v1942 = vadd.f32 0.0, %v1941
      %v1943 = vpop.f32.mrb[0].mxu0
      %v1944 = vpop.f32.mrb[0].mxu0
      %v1945 = vadd.f32 0.0, %v1944
      %v1946 = vpop.f32.mrb[0].mxu0
      %1947 = vmatprep.mubr.bf16.mxu0 0
      %1948 = vmatmul.mubr.bf16.gmra.mrb[0].mxu0 %v1863
      %v1949 = vpop.f32.mrb[0].mxu0
      %v1950 = vadd.f32 0.0, %v1949
      %v1951 = vpop.f32.mrb[0].mxu0
      %v1952 = vpop.f32.mrb[0].mxu0
      %v1953 = vadd.f32 0.0, %v1952
      %v1954 = vpop.f32.mrb[0].mxu0
      %1955 = vmatprep.mubr.bf16.mxu0 0
      %1956 = vmatmul.mubr.bf16.gmra.mrb[0].mxu0 %v1866
      %v1957 = vpop.f32.mrb[0].mxu0
      %v1958 = vadd.f32 0.0, %v1957
      %v1959 = vpop.f32.mrb[0].mxu0
      %v1960 = vpop.f32.mrb[0].mxu0
      %v1961 = vadd.f32 0.0, %v1960
      %v1962 = vpop.f32.mrb[0].mxu0
      %1963 = vmatprep.mubr.bf16.mxu0 0
      %1964 = vmatmul.mubr.bf16.gmra.mrb[0].mxu0 %v1869
      %v1965 = vpop.f32.mrb[0].mxu0
      %v1966 = vadd.f32 0.0, %v1965
      %v1967 = vpop.f32.mrb[0].mxu0
      %v1968 = vpop.f32.mrb[0].mxu0
      %v1969 = vadd.f32 0.0, %v1968
      %v1970 = vpop.f32.mrb[0].mxu0
      %1971 = vmatprep.mubr.bf16.mxu0 0
      %1972 = vmatmul.mubr.bf16.gmra.mrb[0].mxu0 %v1872
      %v1973 = vpop.f32.mrb[0].mxu0
      %v1974 = vadd.f32 0.0, %v1973
      %v1975 = vpop.f32.mrb[0].mxu0
      %v1976 = vpop.f32.mrb[0].mxu0
      %v1977 = vadd.f32 0.0, %v1976
      %v1978 = vpop.f32.mrb[0].mxu0
      %1979 = vmatprep.mubr.bf16.mxu0 0
      %1980 = vmatmul.mubr.bf16.gmra.mrb[0].mxu0 %v1875
      %v1981 = vpop.f32.mrb[0].mxu0
      %v1982 = vadd.f32 0.0, %v1981
      %v1983 = vpop.f32.mrb[0].mxu0
      %v1984 = vpop.f32.mrb[0].mxu0
      %v1985 = vadd.f32 0.0, %v1984
      %v1986 = vpop.f32.mrb[0].mxu0
      %1987 = vmatprep.mubr.bf16.mxu0 0
      %1988 = vmatmul.mubr.bf16.gmra.mrb[0].mxu0 %v1878
      %v1989 = vpop.f32.mrb[0].mxu0
      %v1990 = vadd.f32 0.0, %v1989
      %v1991 = vpop.f32.mrb[0].mxu0
      %v1992 = vpop.f32.mrb[0].mxu0
      %v1993 = vadd.f32 0.0, %v1992
      %v1994 = vpop.f32.mrb[0].mxu0
      %1995 = vmatprep.mubr.bf16.mxu0 0
      %1996 = vmatmul.mubr.bf16.gmra.mrb[0].mxu0 %v1881
      %v1997 = vpop.f32.mrb[0].mxu0
      %v1998 = vadd.f32 0.0, %v1997
      %v1999 = vpop.f32.mrb[0].mxu0
      %v2000 = vpop.f32.mrb[0].mxu0
      %v2001 = vadd.f32 0.0, %v2000
      %v2002 = vpop.f32.mrb[0].mxu0
      %2003 = vmatprep.mubr.bf16.mxu0 0
      %2004 = vmatmul.mubr.bf16.gmra.mrb[0].mxu0 %v1884
      %v2005 = vpop.f32.mrb[0].mxu0
      %v2006 = vadd.f32 0.0, %v2005
      %v2007 = vpop.f32.mrb[0].mxu0
      %v2008 = vpop.f32.mrb[0].mxu0
      %v2009 = vadd.f32 0.0, %v2008
      %v2010 = vpop.f32.mrb[0].mxu0
      %2011 = vmatprep.mubr.bf16.mxu0 0
      %2012 = vmatmul.mubr.bf16.gmra.mrb[0].mxu0 %v1887
      %v2013 = vpop.f32.mrb[0].mxu0
      %v2014 = vadd.f32 0.0, %v2013
      %v2015 = vpop.f32.mrb[0].mxu0
      %v2016 = vpop.f32.mrb[0].mxu0
      %v2017 = vadd.f32 0.0, %v2016
      %v2018 = vpop.f32.mrb[0].mxu0
      %2019 = vmatprep.mubr.bf16.mxu0 0
      %2020 = vmatmul.mubr.bf16.gmra.mrb[0].mxu0 %v1890
      %v2021 = vpop.f32.mrb[0].mxu0
      %v2022 = vadd.f32 0.0, %v2021
      %v2023 = vpop.f32.mrb[0].mxu0
      %v2024 = vpop.f32.mrb[0].mxu0
      %v2025 = vadd.f32 0.0, %v2024
      %v2026 = vpop.f32.mrb[0].mxu0
      %2027 = vmatprep.mubr.bf16.mxu0 0
      %2028 = vmatmul.mubr.bf16.gmra.mrb[0].mxu0 %v1893
      %v2029 = vpop.f32.mrb[0].mxu0
      %v2030 = vadd.f32 0.0, %v2029
      %v2031 = vpop.f32.mrb[0].mxu0
      %v2032 = vpop.f32.mrb[0].mxu0
      %v2033 = vadd.f32 0.0, %v2032
      %v2034 = vpop.f32.mrb[0].mxu0
      %2035 = vmatprep.mubr.bf16.mxu0 0
      %2036 = vmatmul.mubr.bf16.gmra.mrb[0].mxu0 %v1896
      %v2037 = vpop.f32.mrb[0].mxu0
      %v2038 = vadd.f32 0.0, %v2037
      %v2039 = vpop.f32.mrb[0].mxu0
      %v2040 = vpop.f32.mrb[0].mxu0
      %v2041 = vadd.f32 0.0, %v2040
      %v2042 = vpop.f32.mrb[0].mxu0
      %2043 = vmatprep.mubr.bf16.mxu0 0
      %2044 = vmatmul.mubr.bf16.gmra.mrb[0].mxu0 %v1899
      %v2045 = vpop.f32.mrb[0].mxu0
      %v2046 = vadd.f32 0.0, %v2045
      %v2047 = vpop.f32.mrb[0].mxu0
      %v2048 = vpop.f32.mrb[0].mxu0
      %v2049 = vadd.f32 0.0, %v2048
      %v2050 = vpop.f32.mrb[0].mxu0
      %2051 = vmatprep.mubr.bf16.mxu0 0
      %2052 = vmatmul.mubr.bf16.gmra.mrb[0].mxu0 %v1902
      %v2053 = vpop.f32.mrb[0].mxu0
      %v2054 = vadd.f32 0.0, %v2053
      %v2055 = vpop.f32.mrb[0].mxu0
      %v2056 = vpop.f32.mrb[0].mxu0
      %v2057 = vadd.f32 0.0, %v2056
      %v2058 = vpop.f32.mrb[0].mxu0
      %2059 = vmatprep.mubr.bf16.mxu0 0
      %2060 = vmatmul.mubr.bf16.gmra.mrb[0].mxu0 %v1905
      %v2061 = vpop.f32.mrb[0].mxu0
      %v2062 = vadd.f32 0.0, %v2061
      %v2063 = vpop.f32.mrb[0].mxu0
      %v2064 = vpop.f32.mrb[0].mxu0
      %v2065 = vadd.f32 0.0, %v2064
      %v2066 = vpop.f32.mrb[0].mxu0
      %2067 = vdwg.mxu0
      %v2068 = vadd.f32 %v1770, %v1942
      %v2069 = vadd.f32 %v1771, %v1945
      %v2070 = vadd.f32 %v1772, %v1950
      %v2071 = vadd.f32 %v1773, %v1953
      %v2072 = vadd.f32 %v1774, %v1958
      %v2073 = vadd.f32 %v1775, %v1961
      %v2074 = vadd.f32 %v1776, %v1966
      %v2075 = vadd.f32 %v1777, %v1969
      %v2076 = vadd.f32 %v1778, %v1974
      %v2077 = vadd.f32 %v1779, %v1977
      %v2078 = vadd.f32 %v1780, %v1982
      %v2079 = vadd.f32 %v1781, %v1985
      %v2080 = vadd.f32 %v1782, %v1990
      %v2081 = vadd.f32 %v1783, %v1993
      %v2082 = vadd.f32 %v1784, %v1998
      %v2083 = vadd.f32 %v1785, %v2001
      %v2084 = vadd.f32 %v1786, %v2006
      %v2085 = vadd.f32 %v1787, %v2009
      %v2086 = vadd.f32 %v1788, %v2014
      %v2087 = vadd.f32 %v1789, %v2017
      %v2088 = vadd.f32 %v1790, %v2022
      %v2089 = vadd.f32 %v1791, %v2025
      %v2090 = vadd.f32 %v1792, %v2030
      %v2091 = vadd.f32 %v1793, %v2033
      %v2092 = vadd.f32 %v1794, %v2038
      %v2093 = vadd.f32 %v1795, %v2041
      %v2094 = vadd.f32 %v1796, %v2046
      %v2095 = vadd.f32 %v1797, %v2049
      %v2096 = vadd.f32 %v1798, %v2054
      %v2097 = vadd.f32 %v1799, %v2057
      %v2098 = vadd.f32 %v1800, %v2062
      %v2099 = vadd.f32 %v1801, %v2065
      %s2100 = scalar_lea.vmem [#allocation2], 48
      %v2101 = vld [vmem:[%s2100] sm:$0xff]
      %v2102 = vld [vmem:[%s2100 + $0x8] sm:$0xff]
      %v2103 = vld [vmem:[%s2100 + $0x18] sm:$0xff]
      %v2104 = vld [vmem:[%s2100 + $0x20] sm:$0xff]
      %v2105 = vld [vmem:[%s2100 + $0x30] sm:$0xff]
      %v2106 = vld [vmem:[%s2100 + $0x38] sm:$0xff]
      %v2107 = vld [vmem:[%s2100 + $0x48] sm:$0xff]
      %v2108 = vld [vmem:[%s2100 + $0x50] sm:$0xff]
      %v2109 = vld [vmem:[%s2100 + $0x60] sm:$0xff]
      %v2110 = vld [vmem:[%s2100 + $0x68] sm:$0xff]
      %v2111 = vld [vmem:[%s2100 + $0x78] sm:$0xff]
      %v2112 = vld [vmem:[%s2100 + $0x80] sm:$0xff]
      %v2113 = vld [vmem:[%s2100 + $0x90] sm:$0xff]
      %v2114 = vld [vmem:[%s2100 + $0x98] sm:$0xff]
      %v2115 = vld [vmem:[%s2100 + $0xa8] sm:$0xff]
      %v2116 = vld [vmem:[%s2100 + $0xb0] sm:$0xff]
      %v2117 = vld [vmem:[%s2100 + $0xc0] sm:$0xff]
      %v2118 = vld [vmem:[%s2100 + $0xc8] sm:$0xff]
      %v2119 = vld [vmem:[%s2100 + $0xd8] sm:$0xff]
      %v2120 = vld [vmem:[%s2100 + $0xe0] sm:$0xff]
      %v2121 = vld [vmem:[%s2100 + $0xf0] sm:$0xff]
      %v2122 = vld [vmem:[%s2100 + $0xf8] sm:$0xff]
      %v2123 = vld [vmem:[%s2100 + $0x108] sm:$0xff]
      %v2124 = vld [vmem:[%s2100 + $0x110] sm:$0xff]
      %v2125 = vld [vmem:[%s2100 + $0x120] sm:$0xff]
      %v2126 = vld [vmem:[%s2100 + $0x128] sm:$0xff]
      %v2127 = vld [vmem:[%s2100 + $0x138] sm:$0xff]
      %v2128 = vld [vmem:[%s2100 + $0x140] sm:$0xff]
      %v2129 = vld [vmem:[%s2100 + $0x150] sm:$0xff]
      %v2130 = vld [vmem:[%s2100 + $0x158] sm:$0xff]
      %v2131 = vld [vmem:[%s2100 + $0x168] sm:$0xff]
      %v2132 = vld [vmem:[%s2100 + $0x170] sm:$0xff]
      %v2133 = vpack.c.bf16 %v2102, %v2101
      %v2134 = vpack.c.bf16 %v2104, %v2103
      %v2135 = vpack.c.bf16 %v2106, %v2105
      %v2136 = vpack.c.bf16 %v2108, %v2107
      %v2137 = vpack.c.bf16 %v2110, %v2109
      %v2138 = vpack.c.bf16 %v2112, %v2111
      %v2139 = vpack.c.bf16 %v2114, %v2113
      %v2140 = vpack.c.bf16 %v2116, %v2115
      %v2141 = vpack.c.bf16 %v2118, %v2117
      %v2142 = vpack.c.bf16 %v2120, %v2119
      %v2143 = vpack.c.bf16 %v2122, %v2121
      %v2144 = vpack.c.bf16 %v2124, %v2123
      %v2145 = vpack.c.bf16 %v2126, %v2125
      %v2146 = vpack.c.bf16 %v2128, %v2127
      %v2147 = vpack.c.bf16 %v2130, %v2129
      %v2148 = vpack.c.bf16 %v2132, %v2131
      %s2149 = scalar_lea.vmem %s1, 48
      %v2150 = vld [vmem:[%s2149] sm:$0xf]
      %v2151 = vld [vmem:[%s2149 + $0x4] sm:$0xf]
      %v2154 = vunpack.c.l.b16 %v2150
      %v2155 = vunpack.c.l.b16 %v2151
      %v2156 = vpack.c.b16 %v2155, %v2154
      %v2159 = vsel %vm270, %v2133, 0
      %v2162 = vsel %vm270, %v2134, 0
      %v2165 = vsel %vm270, %v2135, 0
      %v2168 = vsel %vm270, %v2136, 0
      %v2171 = vsel %vm270, %v2137, 0
      %v2174 = vsel %vm270, %v2138, 0
      %v2177 = vsel %vm270, %v2139, 0
      %v2180 = vsel %vm270, %v2140, 0
      %v2183 = vsel %vm270, %v2141, 0
      %v2186 = vsel %vm270, %v2142, 0
      %v2189 = vsel %vm270, %v2143, 0
      %v2192 = vsel %vm270, %v2144, 0
      %v2195 = vsel %vm270, %v2145, 0
      %v2198 = vsel %vm270, %v2146, 0
      %v2201 = vsel %vm270, %v2147, 0
      %v2204 = vsel %vm270, %v2148, 0
      %2206 = vmatprep.subr.bf16.mxu0 0
      %2207 = vmatpush1.bf16.msra.mxu0 %v2156
      %2208 = vmatprep.subr.bf16.mxu0 0
      %2209 = vmatpush1.bf16.msra.mxu0 0
      %2210 = vmatprep.subr.bf16.mxu0 0
      %2211 = vmatpush1.bf16.msra.mxu0 0
      %2212 = vmatprep.subr.bf16.mxu0 0
      %2213 = vmatpush1.bf16.msra.mxu0 0
      %2214 = vmatprep.subr.bf16.mxu0 0
      %2215 = vmatpush1.bf16.msra.mxu0 0
      %2216 = vmatprep.subr.bf16.mxu0 0
      %2217 = vmatpush1.bf16.msra.mxu0 0
      %2218 = vmatprep.subr.bf16.mxu0 0
      %2219 = vmatpush1.bf16.msra.mxu0 0
      %2220 = vmatprep.subr.bf16.mxu0 0
      %2221 = vmatpush1.bf16.msra.mxu0 0
      %2222 = vmatprep.subr.bf16.mxu0 0
      %2223 = vmatpush1.bf16.msra.mxu0 0
      %2224 = vmatprep.subr.bf16.mxu0 0
      %2225 = vmatpush1.bf16.msra.mxu0 0
      %2226 = vmatprep.subr.bf16.mxu0 0
      %2227 = vmatpush1.bf16.msra.mxu0 0
      %2228 = vmatprep.subr.bf16.mxu0 0
      %2229 = vmatpush1.bf16.msra.mxu0 0
      %2230 = vmatprep.subr.bf16.mxu0 0
      %2231 = vmatpush1.bf16.msra.mxu0 0
      %2232 = vmatprep.subr.bf16.mxu0 0
      %2233 = vmatpush1.bf16.msra.mxu0 0
      %2234 = vmatprep.subr.bf16.mxu0 0
      %2235 = vmatpush1.bf16.msra.mxu0 0
      %2236 = vmatprep.subr.bf16.mxu0 0
      %2237 = vmatpush1.bf16.msra.mxu0 0
      %2238 = vmatprep.mubr.bf16.mxu0 0
      %2239 = vmatmul.mubr.bf16.gmra.mrb[0].mxu0 %v2159
      %v2240 = vpop.f32.mrb[0].mxu0
      %v2241 = vadd.f32 0.0, %v2240
      %v2242 = vpop.f32.mrb[0].mxu0
      %v2243 = vpop.f32.mrb[0].mxu0
      %v2244 = vadd.f32 0.0, %v2243
      %v2245 = vpop.f32.mrb[0].mxu0
      %2246 = vmatprep.mubr.bf16.mxu0 0
      %2247 = vmatmul.mubr.bf16.gmra.mrb[0].mxu0 %v2162
      %v2248 = vpop.f32.mrb[0].mxu0
      %v2249 = vadd.f32 0.0, %v2248
      %v2250 = vpop.f32.mrb[0].mxu0
      %v2251 = vpop.f32.mrb[0].mxu0
      %v2252 = vadd.f32 0.0, %v2251
      %v2253 = vpop.f32.mrb[0].mxu0
      %2254 = vmatprep.mubr.bf16.mxu0 0
      %2255 = vmatmul.mubr.bf16.gmra.mrb[0].mxu0 %v2165
      %v2256 = vpop.f32.mrb[0].mxu0
      %v2257 = vadd.f32 0.0, %v2256
      %v2258 = vpop.f32.mrb[0].mxu0
      %v2259 = vpop.f32.mrb[0].mxu0
      %v2260 = vadd.f32 0.0, %v2259
      %v2261 = vpop.f32.mrb[0].mxu0
      %2262 = vmatprep.mubr.bf16.mxu0 0
      %2263 = vmatmul.mubr.bf16.gmra.mrb[0].mxu0 %v2168
      %v2264 = vpop.f32.mrb[0].mxu0
      %v2265 = vadd.f32 0.0, %v2264
      %v2266 = vpop.f32.mrb[0].mxu0
      %v2267 = vpop.f32.mrb[0].mxu0
      %v2268 = vadd.f32 0.0, %v2267
      %v2269 = vpop.f32.mrb[0].mxu0
      %2270 = vmatprep.mubr.bf16.mxu0 0
      %2271 = vmatmul.mubr.bf16.gmra.mrb[0].mxu0 %v2171
      %v2272 = vpop.f32.mrb[0].mxu0
      %v2273 = vadd.f32 0.0, %v2272
      %v2274 = vpop.f32.mrb[0].mxu0
      %v2275 = vpop.f32.mrb[0].mxu0
      %v2276 = vadd.f32 0.0, %v2275
      %v2277 = vpop.f32.mrb[0].mxu0
      %2278 = vmatprep.mubr.bf16.mxu0 0
      %2279 = vmatmul.mubr.bf16.gmra.mrb[0].mxu0 %v2174
      %v2280 = vpop.f32.mrb[0].mxu0
      %v2281 = vadd.f32 0.0, %v2280
      %v2282 = vpop.f32.mrb[0].mxu0
      %v2283 = vpop.f32.mrb[0].mxu0
      %v2284 = vadd.f32 0.0, %v2283
      %v2285 = vpop.f32.mrb[0].mxu0
      %2286 = vmatprep.mubr.bf16.mxu0 0
      %2287 = vmatmul.mubr.bf16.gmra.mrb[0].mxu0 %v2177
      %v2288 = vpop.f32.mrb[0].mxu0
      %v2289 = vadd.f32 0.0, %v2288
      %v2290 = vpop.f32.mrb[0].mxu0
      %v2291 = vpop.f32.mrb[0].mxu0
      %v2292 = vadd.f32 0.0, %v2291
      %v2293 = vpop.f32.mrb[0].mxu0
      %2294 = vmatprep.mubr.bf16.mxu0 0
      %2295 = vmatmul.mubr.bf16.gmra.mrb[0].mxu0 %v2180
      %v2296 = vpop.f32.mrb[0].mxu0
      %v2297 = vadd.f32 0.0, %v2296
      %v2298 = vpop.f32.mrb[0].mxu0
      %v2299 = vpop.f32.mrb[0].mxu0
      %v2300 = vadd.f32 0.0, %v2299
      %v2301 = vpop.f32.mrb[0].mxu0
      %2302 = vmatprep.mubr.bf16.mxu0 0
      %2303 = vmatmul.mubr.bf16.gmra.mrb[0].mxu0 %v2183
      %v2304 = vpop.f32.mrb[0].mxu0
      %v2305 = vadd.f32 0.0, %v2304
      %v2306 = vpop.f32.mrb[0].mxu0
      %v2307 = vpop.f32.mrb[0].mxu0
      %v2308 = vadd.f32 0.0, %v2307
      %v2309 = vpop.f32.mrb[0].mxu0
      %2310 = vmatprep.mubr.bf16.mxu0 0
      %2311 = vmatmul.mubr.bf16.gmra.mrb[0].mxu0 %v2186
      %v2312 = vpop.f32.mrb[0].mxu0
      %v2313 = vadd.f32 0.0, %v2312
      %v2314 = vpop.f32.mrb[0].mxu0
      %v2315 = vpop.f32.mrb[0].mxu0
      %v2316 = vadd.f32 0.0, %v2315
      %v2317 = vpop.f32.mrb[0].mxu0
      %2318 = vmatprep.mubr.bf16.mxu0 0
      %2319 = vmatmul.mubr.bf16.gmra.mrb[0].mxu0 %v2189
      %v2320 = vpop.f32.mrb[0].mxu0
      %v2321 = vadd.f32 0.0, %v2320
      %v2322 = vpop.f32.mrb[0].mxu0
      %v2323 = vpop.f32.mrb[0].mxu0
      %v2324 = vadd.f32 0.0, %v2323
      %v2325 = vpop.f32.mrb[0].mxu0
      %2326 = vmatprep.mubr.bf16.mxu0 0
      %2327 = vmatmul.mubr.bf16.gmra.mrb[0].mxu0 %v2192
      %v2328 = vpop.f32.mrb[0].mxu0
      %v2329 = vadd.f32 0.0, %v2328
      %v2330 = vpop.f32.mrb[0].mxu0
      %v2331 = vpop.f32.mrb[0].mxu0
      %v2332 = vadd.f32 0.0, %v2331
      %v2333 = vpop.f32.mrb[0].mxu0
      %2334 = vmatprep.mubr.bf16.mxu0 0
      %2335 = vmatmul.mubr.bf16.gmra.mrb[0].mxu0 %v2195
      %v2336 = vpop.f32.mrb[0].mxu0
      %v2337 = vadd.f32 0.0, %v2336
      %v2338 = vpop.f32.mrb[0].mxu0
      %v2339 = vpop.f32.mrb[0].mxu0
      %v2340 = vadd.f32 0.0, %v2339
      %v2341 = vpop.f32.mrb[0].mxu0
      %2342 = vmatprep.mubr.bf16.mxu0 0
      %2343 = vmatmul.mubr.bf16.gmra.mrb[0].mxu0 %v2198
      %v2344 = vpop.f32.mrb[0].mxu0
      %v2345 = vadd.f32 0.0, %v2344
      %v2346 = vpop.f32.mrb[0].mxu0
      %v2347 = vpop.f32.mrb[0].mxu0
      %v2348 = vadd.f32 0.0, %v2347
      %v2349 = vpop.f32.mrb[0].mxu0
      %2350 = vmatprep.mubr.bf16.mxu0 0
      %2351 = vmatmul.mubr.bf16.gmra.mrb[0].mxu0 %v2201
      %v2352 = vpop.f32.mrb[0].mxu0
      %v2353 = vadd.f32 0.0, %v2352
      %v2354 = vpop.f32.mrb[0].mxu0
      %v2355 = vpop.f32.mrb[0].mxu0
      %v2356 = vadd.f32 0.0, %v2355
      %v2357 = vpop.f32.mrb[0].mxu0
      %2358 = vmatprep.mubr.bf16.mxu0 0
      %2359 = vmatmul.mubr.bf16.gmra.mrb[0].mxu0 %v2204
      %v2360 = vpop.f32.mrb[0].mxu0
      %v2361 = vadd.f32 0.0, %v2360
      %v2362 = vpop.f32.mrb[0].mxu0
      %v2363 = vpop.f32.mrb[0].mxu0
      %v2364 = vadd.f32 0.0, %v2363
      %v2365 = vpop.f32.mrb[0].mxu0
      %2366 = vdwg.mxu0
      %v2367 = vadd.f32 %v2068, %v2241
      %v2368 = vadd.f32 %v2069, %v2244
      %v2369 = vadd.f32 %v2070, %v2249
      %v2370 = vadd.f32 %v2071, %v2252
      %v2371 = vadd.f32 %v2072, %v2257
      %v2372 = vadd.f32 %v2073, %v2260
      %v2373 = vadd.f32 %v2074, %v2265
      %v2374 = vadd.f32 %v2075, %v2268
      %v2375 = vadd.f32 %v2076, %v2273
      %v2376 = vadd.f32 %v2077, %v2276
      %v2377 = vadd.f32 %v2078, %v2281
      %v2378 = vadd.f32 %v2079, %v2284
      %v2379 = vadd.f32 %v2080, %v2289
      %v2380 = vadd.f32 %v2081, %v2292
      %v2381 = vadd.f32 %v2082, %v2297
      %v2382 = vadd.f32 %v2083, %v2300
      %v2383 = vadd.f32 %v2084, %v2305
      %v2384 = vadd.f32 %v2085, %v2308
      %v2385 = vadd.f32 %v2086, %v2313
      %v2386 = vadd.f32 %v2087, %v2316
      %v2387 = vadd.f32 %v2088, %v2321
      %v2388 = vadd.f32 %v2089, %v2324
      %v2389 = vadd.f32 %v2090, %v2329
      %v2390 = vadd.f32 %v2091, %v2332
      %v2391 = vadd.f32 %v2092, %v2337
      %v2392 = vadd.f32 %v2093, %v2340
      %v2393 = vadd.f32 %v2094, %v2345
      %v2394 = vadd.f32 %v2095, %v2348
      %v2395 = vadd.f32 %v2096, %v2353
      %v2396 = vadd.f32 %v2097, %v2356
      %v2397 = vadd.f32 %v2098, %v2361
      %v2398 = vadd.f32 %v2099, %v2364
      %v2399 = vld [vmem:[%s2100 + $0x1] sm:$0xff]
      %v2400 = vld [vmem:[%s2100 + $0x9] sm:$0xff]
      %v2401 = vld [vmem:[%s2100 + $0x19] sm:$0xff]
      %v2402 = vld [vmem:[%s2100 + $0x21] sm:$0xff]
      %v2403 = vld [vmem:[%s2100 + $0x31] sm:$0xff]
      %v2404 = vld [vmem:[%s2100 + $0x39] sm:$0xff]
      %v2405 = vld [vmem:[%s2100 + $0x49] sm:$0xff]
      %v2406 = vld [vmem:[%s2100 + $0x51] sm:$0xff]
      %v2407 = vld [vmem:[%s2100 + $0x61] sm:$0xff]
      %v2408 = vld [vmem:[%s2100 + $0x69] sm:$0xff]
      %v2409 = vld [vmem:[%s2100 + $0x79] sm:$0xff]
      %v2410 = vld [vmem:[%s2100 + $0x81] sm:$0xff]
      %v2411 = vld [vmem:[%s2100 + $0x91] sm:$0xff]
      %v2412 = vld [vmem:[%s2100 + $0x99] sm:$0xff]
      %v2413 = vld [vmem:[%s2100 + $0xa9] sm:$0xff]
      %v2414 = vld [vmem:[%s2100 + $0xb1] sm:$0xff]
      %v2415 = vld [vmem:[%s2100 + $0xc1] sm:$0xff]
      %v2416 = vld [vmem:[%s2100 + $0xc9] sm:$0xff]
      %v2417 = vld [vmem:[%s2100 + $0xd9] sm:$0xff]
      %v2418 = vld [vmem:[%s2100 + $0xe1] sm:$0xff]
      %v2419 = vld [vmem:[%s2100 + $0xf1] sm:$0xff]
      %v2420 = vld [vmem:[%s2100 + $0xf9] sm:$0xff]
      %v2421 = vld [vmem:[%s2100 + $0x109] sm:$0xff]
      %v2422 = vld [vmem:[%s2100 + $0x111] sm:$0xff]
      %v2423 = vld [vmem:[%s2100 + $0x121] sm:$0xff]
      %v2424 = vld [vmem:[%s2100 + $0x129] sm:$0xff]
      %v2425 = vld [vmem:[%s2100 + $0x139] sm:$0xff]
      %v2426 = vld [vmem:[%s2100 + $0x141] sm:$0xff]
      %v2427 = vld [vmem:[%s2100 + $0x151] sm:$0xff]
      %v2428 = vld [vmem:[%s2100 + $0x159] sm:$0xff]
      %v2429 = vld [vmem:[%s2100 + $0x169] sm:$0xff]
      %v2430 = vld [vmem:[%s2100 + $0x171] sm:$0xff]
      %v2431 = vpack.c.bf16 %v2400, %v2399
      %v2432 = vpack.c.bf16 %v2402, %v2401
      %v2433 = vpack.c.bf16 %v2404, %v2403
      %v2434 = vpack.c.bf16 %v2406, %v2405
      %v2435 = vpack.c.bf16 %v2408, %v2407
      %v2436 = vpack.c.bf16 %v2410, %v2409
      %v2437 = vpack.c.bf16 %v2412, %v2411
      %v2438 = vpack.c.bf16 %v2414, %v2413
      %v2439 = vpack.c.bf16 %v2416, %v2415
      %v2440 = vpack.c.bf16 %v2418, %v2417
      %v2441 = vpack.c.bf16 %v2420, %v2419
      %v2442 = vpack.c.bf16 %v2422, %v2421
      %v2443 = vpack.c.bf16 %v2424, %v2423
      %v2444 = vpack.c.bf16 %v2426, %v2425
      %v2445 = vpack.c.bf16 %v2428, %v2427
      %v2446 = vpack.c.bf16 %v2430, %v2429
      %s2447 = scalar_lea.vmem %s1, 56
      %v2448 = vld [vmem:[%s2447] sm:$0xf]
      %v2449 = vld [vmem:[%s2447 + $0x4] sm:$0xf]
      %v2452 = vunpack.c.l.b16 %v2448
      %v2453 = vunpack.c.l.b16 %v2449
      %v2454 = vpack.c.b16 %v2453, %v2452
      %v2457 = vsel %vm270, %v2431, 0
      %v2460 = vsel %vm270, %v2432, 0
      %v2463 = vsel %vm270, %v2433, 0
      %v2466 = vsel %vm270, %v2434, 0
      %v2469 = vsel %vm270, %v2435, 0
      %v2472 = vsel %vm270, %v2436, 0
      %v2475 = vsel %vm270, %v2437, 0
      %v2478 = vsel %vm270, %v2438, 0
      %v2481 = vsel %vm270, %v2439, 0
      %v2484 = vsel %vm270, %v2440, 0
      %v2487 = vsel %vm270, %v2441, 0
      %v2490 = vsel %vm270, %v2442, 0
      %v2493 = vsel %vm270, %v2443, 0
      %v2496 = vsel %vm270, %v2444, 0
      %v2499 = vsel %vm270, %v2445, 0
      %v2502 = vsel %vm270, %v2446, 0
      %2504 = vmatprep.subr.bf16.mxu0 0
      %2505 = vmatpush1.bf16.msra.mxu0 %v2454
      %2506 = vmatprep.subr.bf16.mxu0 0
      %2507 = vmatpush1.bf16.msra.mxu0 0
      %2508 = vmatprep.subr.bf16.mxu0 0
      %2509 = vmatpush1.bf16.msra.mxu0 0
      %2510 = vmatprep.subr.bf16.mxu0 0
      %2511 = vmatpush1.bf16.msra.mxu0 0
      %2512 = vmatprep.subr.bf16.mxu0 0
      %2513 = vmatpush1.bf16.msra.mxu0 0
      %2514 = vmatprep.subr.bf16.mxu0 0
      %2515 = vmatpush1.bf16.msra.mxu0 0
      %2516 = vmatprep.subr.bf16.mxu0 0
      %2517 = vmatpush1.bf16.msra.mxu0 0
      %2518 = vmatprep.subr.bf16.mxu0 0
      %2519 = vmatpush1.bf16.msra.mxu0 0
      %2520 = vmatprep.subr.bf16.mxu0 0
      %2521 = vmatpush1.bf16.msra.mxu0 0
      %2522 = vmatprep.subr.bf16.mxu0 0
      %2523 = vmatpush1.bf16.msra.mxu0 0
      %2524 = vmatprep.subr.bf16.mxu0 0
      %2525 = vmatpush1.bf16.msra.mxu0 0
      %2526 = vmatprep.subr.bf16.mxu0 0
      %2527 = vmatpush1.bf16.msra.mxu0 0
      %2528 = vmatprep.subr.bf16.mxu0 0
      %2529 = vmatpush1.bf16.msra.mxu0 0
      %2530 = vmatprep.subr.bf16.mxu0 0
      %2531 = vmatpush1.bf16.msra.mxu0 0
      %2532 = vmatprep.subr.bf16.mxu0 0
      %2533 = vmatpush1.bf16.msra.mxu0 0
      %2534 = vmatprep.subr.bf16.mxu0 0
      %2535 = vmatpush1.bf16.msra.mxu0 0
      %2536 = vmatprep.mubr.bf16.mxu0 0
      %2537 = vmatmul.mubr.bf16.gmra.mrb[0].mxu0 %v2457
      %v2538 = vpop.f32.mrb[0].mxu0
      %v2539 = vadd.f32 0.0, %v2538
      %v2540 = vpop.f32.mrb[0].mxu0
      %v2541 = vpop.f32.mrb[0].mxu0
      %v2542 = vadd.f32 0.0, %v2541
      %v2543 = vpop.f32.mrb[0].mxu0
      %2544 = vmatprep.mubr.bf16.mxu0 0
      %2545 = vmatmul.mubr.bf16.gmra.mrb[0].mxu0 %v2460
      %v2546 = vpop.f32.mrb[0].mxu0
      %v2547 = vadd.f32 0.0, %v2546
      %v2548 = vpop.f32.mrb[0].mxu0
      %v2549 = vpop.f32.mrb[0].mxu0
      %v2550 = vadd.f32 0.0, %v2549
      %v2551 = vpop.f32.mrb[0].mxu0
      %2552 = vmatprep.mubr.bf16.mxu0 0
      %2553 = vmatmul.mubr.bf16.gmra.mrb[0].mxu0 %v2463
      %v2554 = vpop.f32.mrb[0].mxu0
      %v2555 = vadd.f32 0.0, %v2554
      %v2556 = vpop.f32.mrb[0].mxu0
      %v2557 = vpop.f32.mrb[0].mxu0
      %v2558 = vadd.f32 0.0, %v2557
      %v2559 = vpop.f32.mrb[0].mxu0
      %2560 = vmatprep.mubr.bf16.mxu0 0
      %2561 = vmatmul.mubr.bf16.gmra.mrb[0].mxu0 %v2466
      %v2562 = vpop.f32.mrb[0].mxu0
      %v2563 = vadd.f32 0.0, %v2562
      %v2564 = vpop.f32.mrb[0].mxu0
      %v2565 = vpop.f32.mrb[0].mxu0
      %v2566 = vadd.f32 0.0, %v2565
      %v2567 = vpop.f32.mrb[0].mxu0
      %2568 = vmatprep.mubr.bf16.mxu0 0
      %2569 = vmatmul.mubr.bf16.gmra.mrb[0].mxu0 %v2469
      %v2570 = vpop.f32.mrb[0].mxu0
      %v2571 = vadd.f32 0.0, %v2570
      %v2572 = vpop.f32.mrb[0].mxu0
      %v2573 = vpop.f32.mrb[0].mxu0
      %v2574 = vadd.f32 0.0, %v2573
      %v2575 = vpop.f32.mrb[0].mxu0
      %2576 = vmatprep.mubr.bf16.mxu0 0
      %2577 = vmatmul.mubr.bf16.gmra.mrb[0].mxu0 %v2472
      %v2578 = vpop.f32.mrb[0].mxu0
      %v2579 = vadd.f32 0.0, %v2578
      %v2580 = vpop.f32.mrb[0].mxu0
      %v2581 = vpop.f32.mrb[0].mxu0
      %v2582 = vadd.f32 0.0, %v2581
      %v2583 = vpop.f32.mrb[0].mxu0
      %2584 = vmatprep.mubr.bf16.mxu0 0
      %2585 = vmatmul.mubr.bf16.gmra.mrb[0].mxu0 %v2475
      %v2586 = vpop.f32.mrb[0].mxu0
      %v2587 = vadd.f32 0.0, %v2586
      %v2588 = vpop.f32.mrb[0].mxu0
      %v2589 = vpop.f32.mrb[0].mxu0
      %v2590 = vadd.f32 0.0, %v2589
      %v2591 = vpop.f32.mrb[0].mxu0
      %2592 = vmatprep.mubr.bf16.mxu0 0
      %2593 = vmatmul.mubr.bf16.gmra.mrb[0].mxu0 %v2478
      %v2594 = vpop.f32.mrb[0].mxu0
      %v2595 = vadd.f32 0.0, %v2594
      %v2596 = vpop.f32.mrb[0].mxu0
      %v2597 = vpop.f32.mrb[0].mxu0
      %v2598 = vadd.f32 0.0, %v2597
      %v2599 = vpop.f32.mrb[0].mxu0
      %2600 = vmatprep.mubr.bf16.mxu0 0
      %2601 = vmatmul.mubr.bf16.gmra.mrb[0].mxu0 %v2481
      %v2602 = vpop.f32.mrb[0].mxu0
      %v2603 = vadd.f32 0.0, %v2602
      %v2604 = vpop.f32.mrb[0].mxu0
      %v2605 = vpop.f32.mrb[0].mxu0
      %v2606 = vadd.f32 0.0, %v2605
      %v2607 = vpop.f32.mrb[0].mxu0
      %2608 = vmatprep.mubr.bf16.mxu0 0
      %2609 = vmatmul.mubr.bf16.gmra.mrb[0].mxu0 %v2484
      %v2610 = vpop.f32.mrb[0].mxu0
      %v2611 = vadd.f32 0.0, %v2610
      %v2612 = vpop.f32.mrb[0].mxu0
      %v2613 = vpop.f32.mrb[0].mxu0
      %v2614 = vadd.f32 0.0, %v2613
      %v2615 = vpop.f32.mrb[0].mxu0
      %2616 = vmatprep.mubr.bf16.mxu0 0
      %2617 = vmatmul.mubr.bf16.gmra.mrb[0].mxu0 %v2487
      %v2618 = vpop.f32.mrb[0].mxu0
      %v2619 = vadd.f32 0.0, %v2618
      %v2620 = vpop.f32.mrb[0].mxu0
      %v2621 = vpop.f32.mrb[0].mxu0
      %v2622 = vadd.f32 0.0, %v2621
      %v2623 = vpop.f32.mrb[0].mxu0
      %2624 = vmatprep.mubr.bf16.mxu0 0
      %2625 = vmatmul.mubr.bf16.gmra.mrb[0].mxu0 %v2490
      %v2626 = vpop.f32.mrb[0].mxu0
      %v2627 = vadd.f32 0.0, %v2626
      %v2628 = vpop.f32.mrb[0].mxu0
      %v2629 = vpop.f32.mrb[0].mxu0
      %v2630 = vadd.f32 0.0, %v2629
      %v2631 = vpop.f32.mrb[0].mxu0
      %2632 = vmatprep.mubr.bf16.mxu0 0
      %2633 = vmatmul.mubr.bf16.gmra.mrb[0].mxu0 %v2493
      %v2634 = vpop.f32.mrb[0].mxu0
      %v2635 = vadd.f32 0.0, %v2634
      %v2636 = vpop.f32.mrb[0].mxu0
      %v2637 = vpop.f32.mrb[0].mxu0
      %v2638 = vadd.f32 0.0, %v2637
      %v2639 = vpop.f32.mrb[0].mxu0
      %2640 = vmatprep.mubr.bf16.mxu0 0
      %2641 = vmatmul.mubr.bf16.gmra.mrb[0].mxu0 %v2496
      %v2642 = vpop.f32.mrb[0].mxu0
      %v2643 = vadd.f32 0.0, %v2642
      %v2644 = vpop.f32.mrb[0].mxu0
      %v2645 = vpop.f32.mrb[0].mxu0
      %v2646 = vadd.f32 0.0, %v2645
      %v2647 = vpop.f32.mrb[0].mxu0
      %2648 = vmatprep.mubr.bf16.mxu0 0
      %2649 = vmatmul.mubr.bf16.gmra.mrb[0].mxu0 %v2499
      %v2650 = vpop.f32.mrb[0].mxu0
      %v2651 = vadd.f32 0.0, %v2650
      %v2652 = vpop.f32.mrb[0].mxu0
      %v2653 = vpop.f32.mrb[0].mxu0
      %v2654 = vadd.f32 0.0, %v2653
      %v2655 = vpop.f32.mrb[0].mxu0
      %2656 = vmatprep.mubr.bf16.mxu0 0
      %2657 = vmatmul.mubr.bf16.gmra.mrb[0].mxu0 %v2502
      %v2658 = vpop.f32.mrb[0].mxu0
      %v2659 = vadd.f32 0.0, %v2658
      %v2660 = vpop.f32.mrb[0].mxu0
      %v2661 = vpop.f32.mrb[0].mxu0
      %v2662 = vadd.f32 0.0, %v2661
      %v2663 = vpop.f32.mrb[0].mxu0
      %2664 = vdwg.mxu0
      %v2665 = vadd.f32 %v2367, %v2539
      %v2666 = vadd.f32 %v2368, %v2542
      %v2667 = vadd.f32 %v2369, %v2547
      %v2668 = vadd.f32 %v2370, %v2550
      %v2669 = vadd.f32 %v2371, %v2555
      %v2670 = vadd.f32 %v2372, %v2558
      %v2671 = vadd.f32 %v2373, %v2563
      %v2672 = vadd.f32 %v2374, %v2566
      %v2673 = vadd.f32 %v2375, %v2571
      %v2674 = vadd.f32 %v2376, %v2574
      %v2675 = vadd.f32 %v2377, %v2579
      %v2676 = vadd.f32 %v2378, %v2582
      %v2677 = vadd.f32 %v2379, %v2587
      %v2678 = vadd.f32 %v2380, %v2590
      %v2679 = vadd.f32 %v2381, %v2595
      %v2680 = vadd.f32 %v2382, %v2598
      %v2681 = vadd.f32 %v2383, %v2603
      %v2682 = vadd.f32 %v2384, %v2606
      %v2683 = vadd.f32 %v2385, %v2611
      %v2684 = vadd.f32 %v2386, %v2614
      %v2685 = vadd.f32 %v2387, %v2619
      %v2686 = vadd.f32 %v2388, %v2622
      %v2687 = vadd.f32 %v2389, %v2627
      %v2688 = vadd.f32 %v2390, %v2630
      %v2689 = vadd.f32 %v2391, %v2635
      %v2690 = vadd.f32 %v2392, %v2638
      %v2691 = vadd.f32 %v2393, %v2643
      %v2692 = vadd.f32 %v2394, %v2646
      %v2693 = vadd.f32 %v2395, %v2651
      %v2694 = vadd.f32 %v2396, %v2654
      %v2695 = vadd.f32 %v2397, %v2659
      %v2696 = vadd.f32 %v2398, %v2662
      %v2697 = vld [vmem:[%s2100 + $0x2] sm:$0xff]
      %v2698 = vld [vmem:[%s2100 + $0xa] sm:$0xff]
      %v2699 = vld [vmem:[%s2100 + $0x1a] sm:$0xff]
      %v2700 = vld [vmem:[%s2100 + $0x22] sm:$0xff]
      %v2701 = vld [vmem:[%s2100 + $0x32] sm:$0xff]
      %v2702 = vld [vmem:[%s2100 + $0x3a] sm:$0xff]
      %v2703 = vld [vmem:[%s2100 + $0x4a] sm:$0xff]
      %v2704 = vld [vmem:[%s2100 + $0x52] sm:$0xff]
      %v2705 = vld [vmem:[%s2100 + $0x62] sm:$0xff]
      %v2706 = vld [vmem:[%s2100 + $0x6a] sm:$0xff]
      %v2707 = vld [vmem:[%s2100 + $0x7a] sm:$0xff]
      %v2708 = vld [vmem:[%s2100 + $0x82] sm:$0xff]
      %v2709 = vld [vmem:[%s2100 + $0x92] sm:$0xff]
      %v2710 = vld [vmem:[%s2100 + $0x9a] sm:$0xff]
      %v2711 = vld [vmem:[%s2100 + $0xaa] sm:$0xff]
      %v2712 = vld [vmem:[%s2100 + $0xb2] sm:$0xff]
      %v2713 = vld [vmem:[%s2100 + $0xc2] sm:$0xff]
      %v2714 = vld [vmem:[%s2100 + $0xca] sm:$0xff]
      %v2715 = vld [vmem:[%s2100 + $0xda] sm:$0xff]
      %v2716 = vld [vmem:[%s2100 + $0xe2] sm:$0xff]
      %v2717 = vld [vmem:[%s2100 + $0xf2] sm:$0xff]
      %v2718 = vld [vmem:[%s2100 + $0xfa] sm:$0xff]
      %v2719 = vld [vmem:[%s2100 + $0x10a] sm:$0xff]
      %v2720 = vld [vmem:[%s2100 + $0x112] sm:$0xff]
      %v2721 = vld [vmem:[%s2100 + $0x122] sm:$0xff]
      %v2722 = vld [vmem:[%s2100 + $0x12a] sm:$0xff]
      %v2723 = vld [vmem:[%s2100 + $0x13a] sm:$0xff]
      %v2724 = vld [vmem:[%s2100 + $0x142] sm:$0xff]
      %v2725 = vld [vmem:[%s2100 + $0x152] sm:$0xff]
      %v2726 = vld [vmem:[%s2100 + $0x15a] sm:$0xff]
      %v2727 = vld [vmem:[%s2100 + $0x16a] sm:$0xff]
      %v2728 = vld [vmem:[%s2100 + $0x172] sm:$0xff]
      %v2729 = vpack.c.bf16 %v2698, %v2697
      %v2730 = vpack.c.bf16 %v2700, %v2699
      %v2731 = vpack.c.bf16 %v2702, %v2701
      %v2732 = vpack.c.bf16 %v2704, %v2703
      %v2733 = vpack.c.bf16 %v2706, %v2705
      %v2734 = vpack.c.bf16 %v2708, %v2707
      %v2735 = vpack.c.bf16 %v2710, %v2709
      %v2736 = vpack.c.bf16 %v2712, %v2711
      %v2737 = vpack.c.bf16 %v2714, %v2713
      %v2738 = vpack.c.bf16 %v2716, %v2715
      %v2739 = vpack.c.bf16 %v2718, %v2717
      %v2740 = vpack.c.bf16 %v2720, %v2719
      %v2741 = vpack.c.bf16 %v2722, %v2721
      %v2742 = vpack.c.bf16 %v2724, %v2723
      %v2743 = vpack.c.bf16 %v2726, %v2725
      %v2744 = vpack.c.bf16 %v2728, %v2727
      %s2745 = scalar_lea.vmem %s1, 64
      %v2746 = vld [vmem:[%s2745] sm:$0xf]
      %v2747 = vld [vmem:[%s2745 + $0x4] sm:$0xf]
      %v2750 = vunpack.c.l.b16 %v2746
      %v2751 = vunpack.c.l.b16 %v2747
      %v2752 = vpack.c.b16 %v2751, %v2750
      %v2755 = vsel %vm270, %v2729, 0
      %v2758 = vsel %vm270, %v2730, 0
      %v2761 = vsel %vm270, %v2731, 0
      %v2764 = vsel %vm270, %v2732, 0
      %v2767 = vsel %vm270, %v2733, 0
      %v2770 = vsel %vm270, %v2734, 0
      %v2773 = vsel %vm270, %v2735, 0
      %v2776 = vsel %vm270, %v2736, 0
      %v2779 = vsel %vm270, %v2737, 0
      %v2782 = vsel %vm270, %v2738, 0
      %v2785 = vsel %vm270, %v2739, 0
      %v2788 = vsel %vm270, %v2740, 0
      %v2791 = vsel %vm270, %v2741, 0
      %v2794 = vsel %vm270, %v2742, 0
      %v2797 = vsel %vm270, %v2743, 0
      %v2800 = vsel %vm270, %v2744, 0
      %2802 = vmatprep.subr.bf16.mxu0 0
      %2803 = vmatpush1.bf16.msra.mxu0 %v2752
      %2804 = vmatprep.subr.bf16.mxu0 0
      %2805 = vmatpush1.bf16.msra.mxu0 0
      %2806 = vmatprep.subr.bf16.mxu0 0
      %2807 = vmatpush1.bf16.msra.mxu0 0
      %2808 = vmatprep.subr.bf16.mxu0 0
      %2809 = vmatpush1.bf16.msra.mxu0 0
      %2810 = vmatprep.subr.bf16.mxu0 0
      %2811 = vmatpush1.bf16.msra.mxu0 0
      %2812 = vmatprep.subr.bf16.mxu0 0
      %2813 = vmatpush1.bf16.msra.mxu0 0
      %2814 = vmatprep.subr.bf16.mxu0 0
      %2815 = vmatpush1.bf16.msra.mxu0 0
      %2816 = vmatprep.subr.bf16.mxu0 0
      %2817 = vmatpush1.bf16.msra.mxu0 0
      %2818 = vmatprep.subr.bf16.mxu0 0
      %2819 = vmatpush1.bf16.msra.mxu0 0
      %2820 = vmatprep.subr.bf16.mxu0 0
      %2821 = vmatpush1.bf16.msra.mxu0 0
      %2822 = vmatprep.subr.bf16.mxu0 0
      %2823 = vmatpush1.bf16.msra.mxu0 0
      %2824 = vmatprep.subr.bf16.mxu0 0
      %2825 = vmatpush1.bf16.msra.mxu0 0
      %2826 = vmatprep.subr.bf16.mxu0 0
      %2827 = vmatpush1.bf16.msra.mxu0 0
      %2828 = vmatprep.subr.bf16.mxu0 0
      %2829 = vmatpush1.bf16.msra.mxu0 0
      %2830 = vmatprep.subr.bf16.mxu0 0
      %2831 = vmatpush1.bf16.msra.mxu0 0
      %2832 = vmatprep.subr.bf16.mxu0 0
      %2833 = vmatpush1.bf16.msra.mxu0 0
      %2834 = vmatprep.mubr.bf16.mxu0 0
      %2835 = vmatmul.mubr.bf16.gmra.mrb[0].mxu0 %v2755
      %v2836 = vpop.f32.mrb[0].mxu0
      %v2837 = vadd.f32 0.0, %v2836
      %v2838 = vpop.f32.mrb[0].mxu0
      %v2839 = vpop.f32.mrb[0].mxu0
      %v2840 = vadd.f32 0.0, %v2839
      %v2841 = vpop.f32.mrb[0].mxu0
      %2842 = vmatprep.mubr.bf16.mxu0 0
      %2843 = vmatmul.mubr.bf16.gmra.mrb[0].mxu0 %v2758
      %v2844 = vpop.f32.mrb[0].mxu0
      %v2845 = vadd.f32 0.0, %v2844
      %v2846 = vpop.f32.mrb[0].mxu0
      %v2847 = vpop.f32.mrb[0].mxu0
      %v2848 = vadd.f32 0.0, %v2847
      %v2849 = vpop.f32.mrb[0].mxu0
      %2850 = vmatprep.mubr.bf16.mxu0 0
      %2851 = vmatmul.mubr.bf16.gmra.mrb[0].mxu0 %v2761
      %v2852 = vpop.f32.mrb[0].mxu0
      %v2853 = vadd.f32 0.0, %v2852
      %v2854 = vpop.f32.mrb[0].mxu0
      %v2855 = vpop.f32.mrb[0].mxu0
      %v2856 = vadd.f32 0.0, %v2855
      %v2857 = vpop.f32.mrb[0].mxu0
      %2858 = vmatprep.mubr.bf16.mxu0 0
      %2859 = vmatmul.mubr.bf16.gmra.mrb[0].mxu0 %v2764
      %v2860 = vpop.f32.mrb[0].mxu0
      %v2861 = vadd.f32 0.0, %v2860
      %v2862 = vpop.f32.mrb[0].mxu0
      %v2863 = vpop.f32.mrb[0].mxu0
      %v2864 = vadd.f32 0.0, %v2863
      %v2865 = vpop.f32.mrb[0].mxu0
      %2866 = vmatprep.mubr.bf16.mxu0 0
      %2867 = vmatmul.mubr.bf16.gmra.mrb[0].mxu0 %v2767
      %v2868 = vpop.f32.mrb[0].mxu0
      %v2869 = vadd.f32 0.0, %v2868
      %v2870 = vpop.f32.mrb[0].mxu0
      %v2871 = vpop.f32.mrb[0].mxu0
      %v2872 = vadd.f32 0.0, %v2871
      %v2873 = vpop.f32.mrb[0].mxu0
      %2874 = vmatprep.mubr.bf16.mxu0 0
      %2875 = vmatmul.mubr.bf16.gmra.mrb[0].mxu0 %v2770
      %v2876 = vpop.f32.mrb[0].mxu0
      %v2877 = vadd.f32 0.0, %v2876
      %v2878 = vpop.f32.mrb[0].mxu0
      %v2879 = vpop.f32.mrb[0].mxu0
      %v2880 = vadd.f32 0.0, %v2879
      %v2881 = vpop.f32.mrb[0].mxu0
      %2882 = vmatprep.mubr.bf16.mxu0 0
      %2883 = vmatmul.mubr.bf16.gmra.mrb[0].mxu0 %v2773
      %v2884 = vpop.f32.mrb[0].mxu0
      %v2885 = vadd.f32 0.0, %v2884
      %v2886 = vpop.f32.mrb[0].mxu0
      %v2887 = vpop.f32.mrb[0].mxu0
      %v2888 = vadd.f32 0.0, %v2887
      %v2889 = vpop.f32.mrb[0].mxu0
      %2890 = vmatprep.mubr.bf16.mxu0 0
      %2891 = vmatmul.mubr.bf16.gmra.mrb[0].mxu0 %v2776
      %v2892 = vpop.f32.mrb[0].mxu0
      %v2893 = vadd.f32 0.0, %v2892
      %v2894 = vpop.f32.mrb[0].mxu0
      %v2895 = vpop.f32.mrb[0].mxu0
      %v2896 = vadd.f32 0.0, %v2895
      %v2897 = vpop.f32.mrb[0].mxu0
      %2898 = vmatprep.mubr.bf16.mxu0 0
      %2899 = vmatmul.mubr.bf16.gmra.mrb[0].mxu0 %v2779
      %v2900 = vpop.f32.mrb[0].mxu0
      %v2901 = vadd.f32 0.0, %v2900
      %v2902 = vpop.f32.mrb[0].mxu0
      %v2903 = vpop.f32.mrb[0].mxu0
      %v2904 = vadd.f32 0.0, %v2903
      %v2905 = vpop.f32.mrb[0].mxu0
      %2906 = vmatprep.mubr.bf16.mxu0 0
      %2907 = vmatmul.mubr.bf16.gmra.mrb[0].mxu0 %v2782
      %v2908 = vpop.f32.mrb[0].mxu0
      %v2909 = vadd.f32 0.0, %v2908
      %v2910 = vpop.f32.mrb[0].mxu0
      %v2911 = vpop.f32.mrb[0].mxu0
      %v2912 = vadd.f32 0.0, %v2911
      %v2913 = vpop.f32.mrb[0].mxu0
      %2914 = vmatprep.mubr.bf16.mxu0 0
      %2915 = vmatmul.mubr.bf16.gmra.mrb[0].mxu0 %v2785
      %v2916 = vpop.f32.mrb[0].mxu0
      %v2917 = vadd.f32 0.0, %v2916
      %v2918 = vpop.f32.mrb[0].mxu0
      %v2919 = vpop.f32.mrb[0].mxu0
      %v2920 = vadd.f32 0.0, %v2919
      %v2921 = vpop.f32.mrb[0].mxu0
      %2922 = vmatprep.mubr.bf16.mxu0 0
      %2923 = vmatmul.mubr.bf16.gmra.mrb[0].mxu0 %v2788
      %v2924 = vpop.f32.mrb[0].mxu0
      %v2925 = vadd.f32 0.0, %v2924
      %v2926 = vpop.f32.mrb[0].mxu0
      %v2927 = vpop.f32.mrb[0].mxu0
      %v2928 = vadd.f32 0.0, %v2927
      %v2929 = vpop.f32.mrb[0].mxu0
      %2930 = vmatprep.mubr.bf16.mxu0 0
      %2931 = vmatmul.mubr.bf16.gmra.mrb[0].mxu0 %v2791
      %v2932 = vpop.f32.mrb[0].mxu0
      %v2933 = vadd.f32 0.0, %v2932
      %v2934 = vpop.f32.mrb[0].mxu0
      %v2935 = vpop.f32.mrb[0].mxu0
      %v2936 = vadd.f32 0.0, %v2935
      %v2937 = vpop.f32.mrb[0].mxu0
      %2938 = vmatprep.mubr.bf16.mxu0 0
      %2939 = vmatmul.mubr.bf16.gmra.mrb[0].mxu0 %v2794
      %v2940 = vpop.f32.mrb[0].mxu0
      %v2941 = vadd.f32 0.0, %v2940
      %v2942 = vpop.f32.mrb[0].mxu0
      %v2943 = vpop.f32.mrb[0].mxu0
      %v2944 = vadd.f32 0.0, %v2943
      %v2945 = vpop.f32.mrb[0].mxu0
      %2946 = vmatprep.mubr.bf16.mxu0 0
      %2947 = vmatmul.mubr.bf16.gmra.mrb[0].mxu0 %v2797
      %v2948 = vpop.f32.mrb[0].mxu0
      %v2949 = vadd.f32 0.0, %v2948
      %v2950 = vpop.f32.mrb[0].mxu0
      %v2951 = vpop.f32.mrb[0].mxu0
      %v2952 = vadd.f32 0.0, %v2951
      %v2953 = vpop.f32.mrb[0].mxu0
      %2954 = vmatprep.mubr.bf16.mxu0 0
      %2955 = vmatmul.mubr.bf16.gmra.mrb[0].mxu0 %v2800
      %v2956 = vpop.f32.mrb[0].mxu0
      %v2957 = vadd.f32 0.0, %v2956
      %v2958 = vpop.f32.mrb[0].mxu0
      %v2959 = vpop.f32.mrb[0].mxu0
      %v2960 = vadd.f32 0.0, %v2959
      %v2961 = vpop.f32.mrb[0].mxu0
      %2962 = vdwg.mxu0
      %v2963 = vadd.f32 %v2665, %v2837
      %v2964 = vadd.f32 %v2666, %v2840
      %v2965 = vadd.f32 %v2667, %v2845
      %v2966 = vadd.f32 %v2668, %v2848
      %v2967 = vadd.f32 %v2669, %v2853
      %v2968 = vadd.f32 %v2670, %v2856
      %v2969 = vadd.f32 %v2671, %v2861
      %v2970 = vadd.f32 %v2672, %v2864
      %v2971 = vadd.f32 %v2673, %v2869
      %v2972 = vadd.f32 %v2674, %v2872
      %v2973 = vadd.f32 %v2675, %v2877
      %v2974 = vadd.f32 %v2676, %v2880
      %v2975 = vadd.f32 %v2677, %v2885
      %v2976 = vadd.f32 %v2678, %v2888
      %v2977 = vadd.f32 %v2679, %v2893
      %v2978 = vadd.f32 %v2680, %v2896
      %v2979 = vadd.f32 %v2681, %v2901
      %v2980 = vadd.f32 %v2682, %v2904
      %v2981 = vadd.f32 %v2683, %v2909
      %v2982 = vadd.f32 %v2684, %v2912
      %v2983 = vadd.f32 %v2685, %v2917
      %v2984 = vadd.f32 %v2686, %v2920
      %v2985 = vadd.f32 %v2687, %v2925
      %v2986 = vadd.f32 %v2688, %v2928
      %v2987 = vadd.f32 %v2689, %v2933
      %v2988 = vadd.f32 %v2690, %v2936
      %v2989 = vadd.f32 %v2691, %v2941
      %v2990 = vadd.f32 %v2692, %v2944
      %v2991 = vadd.f32 %v2693, %v2949
      %v2992 = vadd.f32 %v2694, %v2952
      %v2993 = vadd.f32 %v2695, %v2957
      %v2994 = vadd.f32 %v2696, %v2960
      %v2995 = vsel %vm270, %v2963, 0.0
      %v2996 = vsel %vm270, %v2964, 0.0
      %v2997 = vadd.f32 %v2995, %v2996
      %v2998 = vsel %vm270, %v2965, 0.0
      %v2999 = vadd.f32 %v2997, %v2998
      %v3000 = vsel %vm270, %v2966, 0.0
      %v3001 = vadd.f32 %v2999, %v3000
      %v3002 = vsel %vm270, %v2967, 0.0
      %v3003 = vadd.f32 %v3001, %v3002
      %v3004 = vsel %vm270, %v2968, 0.0
      %v3005 = vadd.f32 %v3003, %v3004
      %v3006 = vsel %vm270, %v2969, 0.0
      %v3007 = vadd.f32 %v3005, %v3006
      %v3008 = vsel %vm270, %v2970, 0.0
      %v3009 = vadd.f32 %v3007, %v3008
      %v3010 = vsel %vm270, %v2971, 0.0
      %v3011 = vadd.f32 %v3009, %v3010
      %v3012 = vsel %vm270, %v2972, 0.0
      %v3013 = vadd.f32 %v3011, %v3012
      %v3014 = vsel %vm270, %v2973, 0.0
      %v3015 = vadd.f32 %v3013, %v3014
      %v3016 = vsel %vm270, %v2974, 0.0
      %v3017 = vadd.f32 %v3015, %v3016
      %v3018 = vsel %vm270, %v2975, 0.0
      %v3019 = vadd.f32 %v3017, %v3018
      %v3020 = vsel %vm270, %v2976, 0.0
      %v3021 = vadd.f32 %v3019, %v3020
      %v3022 = vsel %vm270, %v2977, 0.0
      %v3023 = vadd.f32 %v3021, %v3022
      %v3024 = vsel %vm270, %v2978, 0.0
      %v3025 = vadd.f32 %v3023, %v3024
      %v3026 = vsel %vm270, %v2979, 0.0
      %v3027 = vadd.f32 %v3025, %v3026
      %v3028 = vsel %vm270, %v2980, 0.0
      %v3029 = vadd.f32 %v3027, %v3028
      %v3030 = vsel %vm270, %v2981, 0.0
      %v3031 = vadd.f32 %v3029, %v3030
      %v3032 = vsel %vm270, %v2982, 0.0
      %v3033 = vadd.f32 %v3031, %v3032
      %v3034 = vsel %vm270, %v2983, 0.0
      %v3035 = vadd.f32 %v3033, %v3034
      %v3036 = vsel %vm270, %v2984, 0.0
      %v3037 = vadd.f32 %v3035, %v3036
      %v3038 = vsel %vm270, %v2985, 0.0
      %v3039 = vadd.f32 %v3037, %v3038
      %v3040 = vsel %vm270, %v2986, 0.0
      %v3041 = vadd.f32 %v3039, %v3040
      %v3042 = vsel %vm270, %v2987, 0.0
      %v3043 = vadd.f32 %v3041, %v3042
      %v3044 = vsel %vm270, %v2988, 0.0
      %v3045 = vadd.f32 %v3043, %v3044
      %v3046 = vsel %vm270, %v2989, 0.0
      %v3047 = vadd.f32 %v3045, %v3046
      %v3048 = vsel %vm270, %v2990, 0.0
      %v3049 = vadd.f32 %v3047, %v3048
      %v3050 = vsel %vm270, %v2991, 0.0
      %v3051 = vadd.f32 %v3049, %v3050
      %v3052 = vsel %vm270, %v2992, 0.0
      %v3053 = vadd.f32 %v3051, %v3052
      %v3054 = vsel %vm270, %v2993, 0.0
      %v3055 = vadd.f32 %v3053, %v3054
      %v3056 = vsel %vm270, %v2994, 0.0
      %v3057 = vadd.f32 %v3055, %v3056
      %v3058 = vrot.slane %v3057, 4
      %v3059 = vadd.f32 %v3057, %v3058
      %v3060 = vrot.slane %v3059, 2
      %v3061 = vadd.f32 %v3059, %v3060
      %v3062 = vrot.slane %v3061, 1
      %v3063 = vadd.f32 %v3061, %v3062
      %3064 = vst.msk [vmem:[%s265] sm:$0x1] %vm280, %v3063
      %v3065 = vmul.f32 %v2963, %v2963
      %v3066 = vmul.f32 %v2964, %v2964
      %v3067 = vmul.f32 %v2965, %v2965
      %v3068 = vmul.f32 %v2966, %v2966
      %v3069 = vmul.f32 %v2967, %v2967
      %v3070 = vmul.f32 %v2968, %v2968
      %v3071 = vmul.f32 %v2969, %v2969
      %v3072 = vmul.f32 %v2970, %v2970
      %v3073 = vmul.f32 %v2971, %v2971
      %v3074 = vmul.f32 %v2972, %v2972
      %v3075 = vmul.f32 %v2973, %v2973
      %v3076 = vmul.f32 %v2974, %v2974
      %v3077 = vmul.f32 %v2975, %v2975
      %v3078 = vmul.f32 %v2976, %v2976
      %v3079 = vmul.f32 %v2977, %v2977
      %v3080 = vmul.f32 %v2978, %v2978
      %v3081 = vmul.f32 %v2979, %v2979
      %v3082 = vmul.f32 %v2980, %v2980
      %v3083 = vmul.f32 %v2981, %v2981
      %v3084 = vmul.f32 %v2982, %v2982
      %v3085 = vmul.f32 %v2983, %v2983
      %v3086 = vmul.f32 %v2984, %v2984
      %v3087 = vmul.f32 %v2985, %v2985
      %v3088 = vmul.f32 %v2986, %v2986
      %v3089 = vmul.f32 %v2987, %v2987
      %v3090 = vmul.f32 %v2988, %v2988
      %v3091 = vmul.f32 %v2989, %v2989
      %v3092 = vmul.f32 %v2990, %v2990
      %v3093 = vmul.f32 %v2991, %v2991
      %v3094 = vmul.f32 %v2992, %v2992
      %v3095 = vmul.f32 %v2993, %v2993
      %v3096 = vmul.f32 %v2994, %v2994
      %v3097 = vsel %vm270, %v3065, 0.0
      %v3098 = vsel %vm270, %v3066, 0.0
      %v3099 = vadd.f32 %v3097, %v3098
      %v3100 = vsel %vm270, %v3067, 0.0
      %v3101 = vadd.f32 %v3099, %v3100
      %v3102 = vsel %vm270, %v3068, 0.0
      %v3103 = vadd.f32 %v3101, %v3102
      %v3104 = vsel %vm270, %v3069, 0.0
      %v3105 = vadd.f32 %v3103, %v3104
      %v3106 = vsel %vm270, %v3070, 0.0
      %v3107 = vadd.f32 %v3105, %v3106
      %v3108 = vsel %vm270, %v3071, 0.0
      %v3109 = vadd.f32 %v3107, %v3108
      %v3110 = vsel %vm270, %v3072, 0.0
      %v3111 = vadd.f32 %v3109, %v3110
      %v3112 = vsel %vm270, %v3073, 0.0
      %v3113 = vadd.f32 %v3111, %v3112
      %v3114 = vsel %vm270, %v3074, 0.0
      %v3115 = vadd.f32 %v3113, %v3114
      %v3116 = vsel %vm270, %v3075, 0.0
      %v3117 = vadd.f32 %v3115, %v3116
      %v3118 = vsel %vm270, %v3076, 0.0
      %v3119 = vadd.f32 %v3117, %v3118
      %v3120 = vsel %vm270, %v3077, 0.0
      %v3121 = vadd.f32 %v3119, %v3120
      %v3122 = vsel %vm270, %v3078, 0.0
      %v3123 = vadd.f32 %v3121, %v3122
      %v3124 = vsel %vm270, %v3079, 0.0
      %v3125 = vadd.f32 %v3123, %v3124
      %v3126 = vsel %vm270, %v3080, 0.0
      %v3127 = vadd.f32 %v3125, %v3126
      %v3128 = vsel %vm270, %v3081, 0.0
      %v3129 = vadd.f32 %v3127, %v3128
      %v3130 = vsel %vm270, %v3082, 0.0
      %v3131 = vadd.f32 %v3129, %v3130
      %v3132 = vsel %vm270, %v3083, 0.0
      %v3133 = vadd.f32 %v3131, %v3132
      %v3134 = vsel %vm270, %v3084, 0.0
      %v3135 = vadd.f32 %v3133, %v3134
      %v3136 = vsel %vm270, %v3085, 0.0
      %v3137 = vadd.f32 %v3135, %v3136
      %v3138 = vsel %vm270, %v3086, 0.0
      %v3139 = vadd.f32 %v3137, %v3138
      %v3140 = vsel %vm270, %v3087, 0.0
      %v3141 = vadd.f32 %v3139, %v3140
      %v3142 = vsel %vm270, %v3088, 0.0
      %v3143 = vadd.f32 %v3141, %v3142
      %v3144 = vsel %vm270, %v3089, 0.0
      %v3145 = vadd.f32 %v3143, %v3144
      %v3146 = vsel %vm270, %v3090, 0.0
      %v3147 = vadd.f32 %v3145, %v3146
      %v3148 = vsel %vm270, %v3091, 0.0
      %v3149 = vadd.f32 %v3147, %v3148
      %v3150 = vsel %vm270, %v3092, 0.0
      %v3151 = vadd.f32 %v3149, %v3150
      %v3152 = vsel %vm270, %v3093, 0.0
      %v3153 = vadd.f32 %v3151, %v3152
      %v3154 = vsel %vm270, %v3094, 0.0
      %v3155 = vadd.f32 %v3153, %v3154
      %v3156 = vsel %vm270, %v3095, 0.0
      %v3157 = vadd.f32 %v3155, %v3156
      %v3158 = vsel %vm270, %v3096, 0.0
      %v3159 = vadd.f32 %v3157, %v3158
      %v3160 = vrot.slane %v3159, 4
      %v3161 = vadd.f32 %v3159, %v3160
      %v3162 = vrot.slane %v3161, 2
      %v3163 = vadd.f32 %v3161, %v3162
      %v3164 = vrot.slane %v3163, 1
      %v3165 = vadd.f32 %v3163, %v3164
      %3166 = vst.msk [vmem:[%s268] sm:$0x1] %vm280, %v3165
      %v3167 = vpack.c.bf16 %v2964, %v2963
      %v3168 = vpack.c.bf16 %v2966, %v2965
      %v3169 = vpack.c.bf16 %v2968, %v2967
      %v3170 = vpack.c.bf16 %v2970, %v2969
      %v3171 = vpack.c.bf16 %v2972, %v2971
      %v3172 = vpack.c.bf16 %v2974, %v2973
      %v3173 = vpack.c.bf16 %v2976, %v2975
      %v3174 = vpack.c.bf16 %v2978, %v2977
      %v3175 = vpack.c.bf16 %v2980, %v2979
      %v3176 = vpack.c.bf16 %v2982, %v2981
      %v3177 = vpack.c.bf16 %v2984, %v2983
      %v3178 = vpack.c.bf16 %v2986, %v2985
      %v3179 = vpack.c.bf16 %v2988, %v2987
      %v3180 = vpack.c.bf16 %v2990, %v2989
      %v3181 = vpack.c.bf16 %v2992, %v2991
      %v3182 = vpack.c.bf16 %v2994, %v2993
      %v3199 = vunpack.c.l.b16 %v3167
      %v3200 = vunpack.c.h.b16 %v3167
      %v3201 = vunpack.c.l.b16 %v3168
      %v3202 = vunpack.c.h.b16 %v3168
      %v3203 = vunpack.c.l.b16 %v3169
      %v3204 = vunpack.c.h.b16 %v3169
      %v3205 = vunpack.c.l.b16 %v3170
      %v3206 = vunpack.c.h.b16 %v3170
      %v3207 = vunpack.c.l.b16 %v3171
      %v3208 = vunpack.c.h.b16 %v3171
      %v3209 = vunpack.c.l.b16 %v3172
      %v3210 = vunpack.c.h.b16 %v3172
      %v3211 = vunpack.c.l.b16 %v3173
      %v3212 = vunpack.c.h.b16 %v3173
      %v3213 = vunpack.c.l.b16 %v3174
      %v3214 = vunpack.c.h.b16 %v3174
      %v3215 = vunpack.c.l.b16 %v3175
      %v3216 = vunpack.c.h.b16 %v3175
      %v3217 = vunpack.c.l.b16 %v3176
      %v3218 = vunpack.c.h.b16 %v3176
      %v3219 = vunpack.c.l.b16 %v3177
      %v3220 = vunpack.c.h.b16 %v3177
      %v3221 = vunpack.c.l.b16 %v3178
      %v3222 = vunpack.c.h.b16 %v3178
      %v3223 = vunpack.c.l.b16 %v3179
      %v3224 = vunpack.c.h.b16 %v3179
      %v3225 = vunpack.c.l.b16 %v3180
      %v3226 = vunpack.c.h.b16 %v3180
      %v3227 = vunpack.c.l.b16 %v3181
      %v3228 = vunpack.c.h.b16 %v3181
      %v3229 = vunpack.c.l.b16 %v3182
      %v3230 = vunpack.c.h.b16 %v3182
      %v3231 = vpack.c.b16 %v3199, %v3199
      %v3232 = vpack.c.b16 %v3200, %v3200
      %v3233 = vpack.c.b16 %v3201, %v3201
      %v3234 = vpack.c.b16 %v3202, %v3202
      %v3235 = vpack.c.b16 %v3203, %v3203
      %v3236 = vpack.c.b16 %v3204, %v3204
      %v3237 = vpack.c.b16 %v3205, %v3205
      %v3238 = vpack.c.b16 %v3206, %v3206
      %v3239 = vpack.c.b16 %v3207, %v3207
      %v3240 = vpack.c.b16 %v3208, %v3208
      %v3241 = vpack.c.b16 %v3209, %v3209
      %v3242 = vpack.c.b16 %v3210, %v3210
      %v3243 = vpack.c.b16 %v3211, %v3211
      %v3244 = vpack.c.b16 %v3212, %v3212
      %v3245 = vpack.c.b16 %v3213, %v3213
      %v3246 = vpack.c.b16 %v3214, %v3214
      %v3247 = vpack.c.b16 %v3215, %v3215
      %v3248 = vpack.c.b16 %v3216, %v3216
      %v3249 = vpack.c.b16 %v3217, %v3217
      %v3250 = vpack.c.b16 %v3218, %v3218
      %v3251 = vpack.c.b16 %v3219, %v3219
      %v3252 = vpack.c.b16 %v3220, %v3220
      %v3253 = vpack.c.b16 %v3221, %v3221
      %v3254 = vpack.c.b16 %v3222, %v3222
      %v3255 = vpack.c.b16 %v3223, %v3223
      %v3256 = vpack.c.b16 %v3224, %v3224
      %v3257 = vpack.c.b16 %v3225, %v3225
      %v3258 = vpack.c.b16 %v3226, %v3226
      %v3259 = vpack.c.b16 %v3227, %v3227
      %v3260 = vpack.c.b16 %v3228, %v3228
      %v3261 = vpack.c.b16 %v3229, %v3229
      %v3262 = vpack.c.b16 %v3230, %v3230
      %vm3295 = vcmask 125952
      %3296 = vst.msk [vmem:[%s262] sm:$0xf] %vm3295, %v3231
      %3297 = vst.msk [vmem:[%s262 + $0x4] sm:$0xf] %vm3295, %v3232
      %3298 = vst.msk [vmem:[%s262 + $0x8] sm:$0xf] %vm3295, %v3233
      %3299 = vst.msk [vmem:[%s262 + $0xc] sm:$0xf] %vm3295, %v3234
      %3300 = vst.msk [vmem:[%s262 + $0x10] sm:$0xf] %vm3295, %v3235
      %3301 = vst.msk [vmem:[%s262 + $0x14] sm:$0xf] %vm3295, %v3236
      %3302 = vst.msk [vmem:[%s262 + $0x18] sm:$0xf] %vm3295, %v3237
      %3303 = vst.msk [vmem:[%s262 + $0x1c] sm:$0xf] %vm3295, %v3238
      %3304 = vst.msk [vmem:[%s262 + $0x20] sm:$0xf] %vm3295, %v3239
      %3305 = vst.msk [vmem:[%s262 + $0x24] sm:$0xf] %vm3295, %v3240
      %3306 = vst.msk [vmem:[%s262 + $0x28] sm:$0xf] %vm3295, %v3241
      %3307 = vst.msk [vmem:[%s262 + $0x2c] sm:$0xf] %vm3295, %v3242
      %3308 = vst.msk [vmem:[%s262 + $0x30] sm:$0xf] %vm3295, %v3243
      %3309 = vst.msk [vmem:[%s262 + $0x34] sm:$0xf] %vm3295, %v3244
      %3310 = vst.msk [vmem:[%s262 + $0x38] sm:$0xf] %vm3295, %v3245
      %3311 = vst.msk [vmem:[%s262 + $0x3c] sm:$0xf] %vm3295, %v3246
      %3312 = vst.msk [vmem:[%s262 + $0x40] sm:$0xf] %vm3295, %v3247
      %3313 = vst.msk [vmem:[%s262 + $0x44] sm:$0xf] %vm3295, %v3248
      %3314 = vst.msk [vmem:[%s262 + $0x48] sm:$0xf] %vm3295, %v3249
      %3315 = vst.msk [vmem:[%s262 + $0x4c] sm:$0xf] %vm3295, %v3250
      %3316 = vst.msk [vmem:[%s262 + $0x50] sm:$0xf] %vm3295, %v3251
      %3317 = vst.msk [vmem:[%s262 + $0x54] sm:$0xf] %vm3295, %v3252
      %3318 = vst.msk [vmem:[%s262 + $0x58] sm:$0xf] %vm3295, %v3253
      %3319 = vst.msk [vmem:[%s262 + $0x5c] sm:$0xf] %vm3295, %v3254
      %3320 = vst.msk [vmem:[%s262 + $0x60] sm:$0xf] %vm3295, %v3255
      %3321 = vst.msk [vmem:[%s262 + $0x64] sm:$0xf] %vm3295, %v3256
      %3322 = vst.msk [vmem:[%s262 + $0x68] sm:$0xf] %vm3295, %v3257
      %3323 = vst.msk [vmem:[%s262 + $0x6c] sm:$0xf] %vm3295, %v3258
      %3324 = vst.msk [vmem:[%s262 + $0x70] sm:$0xf] %vm3295, %v3259
      %3325 = vst.msk [vmem:[%s262 + $0x74] sm:$0xf] %vm3295, %v3260
      %3326 = vst.msk [vmem:[%s262 + $0x78] sm:$0xf] %vm3295, %v3261
      %3327 = vst.msk [vmem:[%s262 + $0x7c] sm:$0xf] %vm3295, %v3262
      %p3328 = scmp.lt.s32.totalorder %s18, 1
      %s3329 = scalar_select %p3328, %s18, 1
      %s3330 = smul.addr %s3329, 32
      %s3331 = smul.addr %s3330, 4
      %s3332 = scalar_lea.vmem %s4, %s3331
      %p3333 = scmp.lt.s32.totalorder %s18, 1
      %s3334 = scalar_select %p3333, %s18, 1
      %s3335 = scalar_lea.vmem %s5, %s3334
      %p3336 = scmp.lt.s32.totalorder %s18, 1
      %s3337 = scalar_select %p3336, %s18, 1
      %s3338 = scalar_lea.vmem %s6, %s3337
      // Predicated region
      $region37: #{basic_block_forward.3} parent=35 // pred_check
        %p3339 = pneg %p125
      $region38: #{basic_block_forward.3} parent=35 // pred_check_branch
        %3341 = sbr.rel (%p3339) target = $region40
      $region39: #{basic_block_forward.3} parent=35 // pred_region
        _
      $region40: #{basic_block_forward.3} parent=35 // pred_fallthru
        _
      // Predicated region
      $region41: #{basic_block_forward.3} parent=35 // pred_check
        %p3342 = pneg %p151
      $region42: #{basic_block_forward.3} parent=35 // pred_check_branch
        %3344 = sbr.rel (%p3342) target = $region44
      $region43: #{basic_block_forward.3} parent=35 // pred_region
        _
      $region44: #{basic_block_forward.3} parent=35 // pred_fallthru
        _
      // Predicated region
      $region45: #{basic_block_forward.3} parent=35 // pred_check
        %p3345 = pneg %p177
      $region46: #{basic_block_forward.3} parent=35 // pred_check_branch
        %3347 = sbr.rel (%p3345) target = $region48
      $region47: #{basic_block_forward.3} parent=35 // pred_region
        _
      $region48: #{basic_block_forward.3} parent=35 // pred_fallthru
        _
    $region36: #{basic_block_forward.3} parent=5 // pred_fallthru
      _
    %p3348 = scmp.le.s32.totalorder 2, %s13
    // Predicated region
    $region49: #{basic_block_forward.3} parent=5 // pred_check
      %p3349 = pneg %p3348
    $region50: #{basic_block_forward.3} parent=5 // pred_check_branch
      %3351 = sbr.rel (%p3349) target = $region52
    $region51: #{basic_block_forward.3} parent=5 // pred_region
      %s3352 = ssub.s32 %s13, 2
      // Predicated region
      $region53: #{basic_block_forward.3} parent=51 // pred_check
        %p3353 = pneg %p131
      $region54: #{basic_block_forward.3} parent=51 // pred_check_branch
        %3355 = sbr.rel (%p3353) target = $region56
      $region55: #{basic_block_forward.3} parent=51 // pred_region
        %p3356 = scmp.lt.s32.totalorder %s19, 1
        %s3357 = scalar_select %p3356, %s19, 1
        %s3358 = smul.addr %s3357, 32
        %s3359 = smul.addr %s3358, 4
        %s3360 = scalar_lea.vmem %s4, %s3359
      $region56: #{basic_block_forward.3} parent=51 // pred_fallthru
        _
      // Predicated region
      $region57: #{basic_block_forward.3} parent=51 // pred_check
        %p3361 = pneg %p157
      $region58: #{basic_block_forward.3} parent=51 // pred_check_branch
        %3363 = sbr.rel (%p3361) target = $region60
      $region59: #{basic_block_forward.3} parent=51 // pred_region
        %p3364 = scmp.lt.s32.totalorder %s19, 1
        %s3365 = scalar_select %p3364, %s19, 1
        %s3366 = scalar_lea.vmem %s5, %s3365
      $region60: #{basic_block_forward.3} parent=51 // pred_fallthru
        _
      // Predicated region
      $region61: #{basic_block_forward.3} parent=51 // pred_check
        %p3367 = pneg %p183
      $region62: #{basic_block_forward.3} parent=51 // pred_check_branch
        %3369 = sbr.rel (%p3367) target = $region64
      $region63: #{basic_block_forward.3} parent=51 // pred_region
        %p3370 = scmp.lt.s32.totalorder %s19, 1
        %s3371 = scalar_select %p3370, %s19, 1
        %s3372 = scalar_lea.vmem %s6, %s3371
      $region64: #{basic_block_forward.3} parent=51 // pred_fallthru
        _
    $region52: #{basic_block_forward.3} parent=5 // pred_fallthru
      _
  $region6: #{basic_block_forward.3} parent=0 // loop_footer
    %s17 = sadd.s32 1, %s13
  $region7: #{basic_block_forward.3} parent=0 // loop_footer_branch
    %12 = sbr.rel target = $region3
  $region8: #{basic_block_forward.3} parent=0 // loop_exit
    _

// kernel: basic_block_forward.5
$region0: #{basic_block_forward.5}
  #allocation0 [shape = 'u32[]', space=smem, size = 0x4, offset = 0x4, fixed_abs, tag = 'smem constant byte address 0x4 - core index']
  #allocation1 [shape = 'u32[144,128]{1,0:T(1,128)}', space=vmem, size = 0x12000, scoped, tag = 'internal scratch']
  #allocation2 [shape = 'f32[2,22,22]{2,1,0:T(8,128)}', space=vmem, size = 0x6000, scoped, tag = 'scratch operand']
  %s0 = inlined_call_operand.vmem [shape: bf16[2,16,16,16], index: 0, kind: input, shape index: {}]
  %s1 = inlined_call_operand.vmem [shape: f32[2,16,16,16], index: 1, kind: input, shape index: {}]
  %s2 = inlined_call_operand.vmem [shape: f32[1,16], index: 2, kind: input, shape index: {}]
  %s3 = inlined_call_operand.vmem [shape: f32[1,16], index: 3, kind: input, shape index: {}]
  %s4 = inlined_call_operand.vmem [shape: f32[1,16], index: 4, kind: input, shape index: {}]
  %s5 = inlined_call_operand.vmem [shape: f32[1,16], index: 5, kind: input, shape index: {}]
  %s6 = inlined_call_operand.vmem [shape: f32[98], index: 6, kind: input, shape index: {}]
  %s7 = inlined_call_operand.vmem [shape: f32[2,16,16,16], index: 7, kind: output, shape index: {}]
  %s8 = sld [smem:[#allocation0]]
  $region65: #{basic_block_forward.5} parent=0
    _
  %s10 = ssub.s32 1, %s8
  %s11 = scalar_select 0, %s10, %s8
  $region1: #{basic_block_forward.5} parent=0
    #allocation3 [shape = 'u8[512]{0}', space=smem, size = 0x200, scoped, tag = 'input window, operand 6, single buffered']
    #allocation4 [shape = 's32[2]{0}', space=sflag, size = 0x8, scoped, tag = 'scoped memory for basic_block_forward.5']
    %12 = vsyncpa [#allocation4], 0
    loop: start=0, step=1, limit=4
    $region2: #{basic_block_forward.5} parent=1 // loop_pre_header
      _
    $region3: #{basic_block_forward.5} parent=1 // loop_header
      %s14 = sphi 0, %s18
      %p15 = scmp.ge.s32.totalorder %s14, 4
      %s24 = sphi 0, %s26
      %s27 = sphi 0, %s24
      %s28 = sphi 0, %s27
      %s44 = sphi 0, %s28
      %s50 = sphi 0, %s52
      %s53 = sphi 0, %s50
      %s54 = sphi 0, %s53
      %s70 = sphi 0, %s54
      %s74 = sphi 0, %s74
      %s76 = sphi 0, %s74
      %s77 = sphi 0, %s76
      %s91 = sphi 0, %s77
      %s95 = sphi 0, %s95
      %s97 = sphi 0, %s95
      %s98 = sphi 0, %s97
      %s112 = sphi 0, %s98
      %s116 = sphi 0, %s116
      %s118 = sphi 0, %s116
      %s119 = sphi 0, %s118
      %s133 = sphi 0, %s119
      %s137 = sphi 0, %s137
      %s139 = sphi 0, %s137
      %s140 = sphi 0, %s139
      %s154 = sphi 0, %s140
      %s158 = sphi 0, %s158
      %s160 = sphi 0, %s158
      %s161 = sphi 0, %s160
      %s175 = sphi 0, %s161
      %s181 = sphi 0, %s183
      %s184 = sphi 0, %s181
      %s185 = sphi 0, %s184
      %s201 = sphi 0, %s185
    $region4: #{basic_block_forward.5} parent=1 // loop_header_branch
      %17 = sbr.rel (%p15) target = $region8
    $region5: #{basic_block_forward.5} parent=1 // loop_body
      %s19 = ssub.s32 %s14, 1
      %s20 = ssub.s32 %s14, 2
      %s21 = sadd.s32 %s14, 1
      %s22 = ssub.s32 %s14, %s21
      %p23 = scmp.eq.s32.totalorder %s22, 0
      %s25 = sadd.s32 %s24, 1
      %s26 = scalar_select %p23, %s24, %s25
      %p29 = pneg %p23
      %p30 = scmp.eq.s32.totalorder %s14, 1
      %p31 = por %p29, %p30
      %p32 = scmp.ne.s32.totalorder %s24, %s27
      %p33 = scmp.eq.s32.totalorder %s14, 0
      %p34 = por %p32, %p33
      %p35 = scmp.ne.s32.totalorder %s24, %s27
      %p36 = scmp.eq.s32.totalorder %s19, 1
      %p37 = por %p35, %p36
      %p38 = scmp.ne.s32.totalorder %s27, %s28
      %p39 = scmp.eq.s32.totalorder %s19, 0
      %p40 = por %p38, %p39
      %p41 = scmp.ne.s32.totalorder %s27, %s28
      %p42 = scmp.eq.s32.totalorder %s20, 1
      %p43 = por %p41, %p42
      %p45 = scmp.ne.s32.totalorder %s28, %s44
      %p46 = scmp.eq.s32.totalorder %s20, 0
      %p47 = por %p45, %p46
      %s48 = ssub.s32 %s14, %s21
      %p49 = scmp.eq.s32.totalorder %s48, 0
      %s51 = sadd.s32 %s50, 1
      %s52 = scalar_select %p49, %s50, %s51
      %p55 = pneg %p49
      %p56 = scmp.eq.s32.totalorder %s14, 1
      %p57 = por %p55, %p56
      %p58 = scmp.ne.s32.totalorder %s50, %s53
      %p59 = scmp.eq.s32.totalorder %s14, 0
      %p60 = por %p58, %p59
      %p61 = scmp.ne.s32.totalorder %s50, %s53
      %p62 = scmp.eq.s32.totalorder %s19, 1
      %p63 = por %p61, %p62
      %p64 = scmp.ne.s32.totalorder %s53, %s54
      %p65 = scmp.eq.s32.totalorder %s19, 0
      %p66 = por %p64, %p65
      %p67 = scmp.ne.s32.totalorder %s53, %s54
      %p68 = scmp.eq.s32.totalorder %s20, 1
      %p69 = por %p67, %p68
      %p71 = scmp.ne.s32.totalorder %s54, %s70
      %p72 = scmp.eq.s32.totalorder %s20, 0
      %p73 = por %p71, %p72
      %s75 = sadd.s32 %s74, 1
      %p78 = scmp.eq.s32.totalorder %s14, 1
      %p79 = scmp.ne.s32.totalorder %s74, %s76
      %p80 = scmp.eq.s32.totalorder %s14, 0
      %p81 = por %p79, %p80
      %p82 = scmp.ne.s32.totalorder %s74, %s76
      %p83 = scmp.eq.s32.totalorder %s19, 1
      %p84 = por %p82, %p83
      %p85 = scmp.ne.s32.totalorder %s76, %s77
      %p86 = scmp.eq.s32.totalorder %s19, 0
      %p87 = por %p85, %p86
      %p88 = scmp.ne.s32.totalorder %s76, %s77
      %p89 = scmp.eq.s32.totalorder %s20, 1
      %p90 = por %p88, %p89
      %p92 = scmp.ne.s32.totalorder %s77, %s91
      %p93 = scmp.eq.s32.totalorder %s20, 0
      %p94 = por %p92, %p93
      %s96 = sadd.s32 %s95, 1
      %p99 = scmp.eq.s32.totalorder %s14, 1
      %p100 = scmp.ne.s32.totalorder %s95, %s97
      %p101 = scmp.eq.s32.totalorder %s14, 0
      %p102 = por %p100, %p101
      %p103 = scmp.ne.s32.totalorder %s95, %s97
      %p104 = scmp.eq.s32.totalorder %s19, 1
      %p105 = por %p103, %p104
      %p106 = scmp.ne.s32.totalorder %s97, %s98
      %p107 = scmp.eq.s32.totalorder %s19, 0
      %p108 = por %p106, %p107
      %p109 = scmp.ne.s32.totalorder %s97, %s98
      %p110 = scmp.eq.s32.totalorder %s20, 1
      %p111 = por %p109, %p110
      %p113 = scmp.ne.s32.totalorder %s98, %s112
      %p114 = scmp.eq.s32.totalorder %s20, 0
      %p115 = por %p113, %p114
      %s117 = sadd.s32 %s116, 1
      %p120 = scmp.eq.s32.totalorder %s14, 1
      %p121 = scmp.ne.s32.totalorder %s116, %s118
      %p122 = scmp.eq.s32.totalorder %s14, 0
      %p123 = por %p121, %p122
      %p124 = scmp.ne.s32.totalorder %s116, %s118
      %p125 = scmp.eq.s32.totalorder %s19, 1
      %p126 = por %p124, %p125
      %p127 = scmp.ne.s32.totalorder %s118, %s119
      %p128 = scmp.eq.s32.totalorder %s19, 0
      %p129 = por %p127, %p128
      %p130 = scmp.ne.s32.totalorder %s118, %s119
      %p131 = scmp.eq.s32.totalorder %s20, 1
      %p132 = por %p130, %p131
      %p134 = scmp.ne.s32.totalorder %s119, %s133
      %p135 = scmp.eq.s32.totalorder %s20, 0
      %p136 = por %p134, %p135
      %s138 = sadd.s32 %s137, 1
      %p141 = scmp.eq.s32.totalorder %s14, 1
      %p142 = scmp.ne.s32.totalorder %s137, %s139
      %p143 = scmp.eq.s32.totalorder %s14, 0
      %p144 = por %p142, %p143
      %p145 = scmp.ne.s32.totalorder %s137, %s139
      %p146 = scmp.eq.s32.totalorder %s19, 1
      %p147 = por %p145, %p146
      %p148 = scmp.ne.s32.totalorder %s139, %s140
      %p149 = scmp.eq.s32.totalorder %s19, 0
      %p150 = por %p148, %p149
      %p151 = scmp.ne.s32.totalorder %s139, %s140
      %p152 = scmp.eq.s32.totalorder %s20, 1
      %p153 = por %p151, %p152
      %p155 = scmp.ne.s32.totalorder %s140, %s154
      %p156 = scmp.eq.s32.totalorder %s20, 0
      %p157 = por %p155, %p156
      %s159 = sadd.s32 %s158, 1
      %p162 = scmp.eq.s32.totalorder %s14, 1
      %p163 = scmp.ne.s32.totalorder %s158, %s160
      %p164 = scmp.eq.s32.totalorder %s14, 0
      %p165 = por %p163, %p164
      %p166 = scmp.ne.s32.totalorder %s158, %s160
      %p167 = scmp.eq.s32.totalorder %s19, 1
      %p168 = por %p166, %p167
      %p169 = scmp.ne.s32.totalorder %s160, %s161
      %p170 = scmp.eq.s32.totalorder %s19, 0
      %p171 = por %p169, %p170
      %p172 = scmp.ne.s32.totalorder %s160, %s161
      %p173 = scmp.eq.s32.totalorder %s20, 1
      %p174 = por %p172, %p173
      %p176 = scmp.ne.s32.totalorder %s161, %s175
      %p177 = scmp.eq.s32.totalorder %s20, 0
      %p178 = por %p176, %p177
      %s179 = ssub.s32 %s14, %s21
      %p180 = scmp.eq.s32.totalorder %s179, 0
      %s182 = sadd.s32 %s181, 1
      %s183 = scalar_select %p180, %s181, %s182
      %p186 = pneg %p180
      %p187 = scmp.eq.s32.totalorder %s14, 1
      %p188 = por %p186, %p187
      %p189 = scmp.ne.s32.totalorder %s181, %s184
      %p190 = scmp.eq.s32.totalorder %s14, 0
      %p191 = por %p189, %p190
      %p192 = scmp.ne.s32.totalorder %s181, %s184
      %p193 = scmp.eq.s32.totalorder %s19, 1
      %p194 = por %p192, %p193
      %p195 = scmp.ne.s32.totalorder %s184, %s185
      %p196 = scmp.eq.s32.totalorder %s19, 0
      %p197 = por %p195, %p196
      %p198 = scmp.ne.s32.totalorder %s184, %s185
      %p199 = scmp.eq.s32.totalorder %s20, 1
      %p200 = por %p198, %p199
      %p202 = scmp.ne.s32.totalorder %s185, %s201
      %p203 = scmp.eq.s32.totalorder %s20, 0
      %p204 = por %p202, %p203
      %p205 = scmp.le.s32.totalorder 1, %s14
      %p206 = scmp.lt.s32.totalorder %s14, 3
      %p207 = pnand %p205, %p206
      %p208 = pneg %p207
      // Predicated region
      $region9: #{basic_block_forward.5} parent=5 // pred_check
        _
      $region10: #{basic_block_forward.5} parent=5 // pred_check_branch
        %210 = sbr.rel (%p207) target = $region12
      $region11: #{basic_block_forward.5} parent=5 // pred_region
        %s211 = ssub.s32 %s14, 1
        // Predicated region
        $region13: #{basic_block_forward.5} parent=11 // pred_check
          %p212 = pneg %p87
        $region14: #{basic_block_forward.5} parent=11 // pred_check_branch
          %214 = sbr.rel (%p212) target = $region16
        $region15: #{basic_block_forward.5} parent=11 // pred_region
          _
        $region16: #{basic_block_forward.5} parent=11 // pred_fallthru
          _
        // Predicated region
        $region17: #{basic_block_forward.5} parent=11 // pred_check
          %p215 = pneg %p108
        $region18: #{basic_block_forward.5} parent=11 // pred_check_branch
          %217 = sbr.rel (%p215) target = $region20
        $region19: #{basic_block_forward.5} parent=11 // pred_region
          _
        $region20: #{basic_block_forward.5} parent=11 // pred_fallthru
          _
        // Predicated region
        $region21: #{basic_block_forward.5} parent=11 // pred_check
          %p218 = pneg %p129
        $region22: #{basic_block_forward.5} parent=11 // pred_check_branch
          %220 = sbr.rel (%p218) target = $region24
        $region23: #{basic_block_forward.5} parent=11 // pred_region
          _
        $region24: #{basic_block_forward.5} parent=11 // pred_fallthru
          _
        // Predicated region
        $region25: #{basic_block_forward.5} parent=11 // pred_check
          %p221 = pneg %p150
        $region26: #{basic_block_forward.5} parent=11 // pred_check_branch
          %223 = sbr.rel (%p221) target = $region28
        $region27: #{basic_block_forward.5} parent=11 // pred_region
          _
        $region28: #{basic_block_forward.5} parent=11 // pred_fallthru
          _
        // Predicated region
        $region29: #{basic_block_forward.5} parent=11 // pred_check
          %p224 = pneg %p171
        $region30: #{basic_block_forward.5} parent=11 // pred_check_branch
          %226 = sbr.rel (%p224) target = $region32
        $region31: #{basic_block_forward.5} parent=11 // pred_region
          %s228 = ssub.s32 16, 16
          %229 = vsyncadd [#allocation4], %s228
          %s231 = sshll.u32 %s6, 4
          %s232 = int_to_ptr.vmem [resolvable:$true] %s231
          %234 = dma.vmem_to_smem %s232, 16, [#allocation3], [#allocation4]
        $region32: #{basic_block_forward.5} parent=11 // pred_fallthru
          _
      $region12: #{basic_block_forward.5} parent=5 // pred_fallthru
        _
      %p235 = scmp.lt.s32.totalorder %s14, 2
      // Predicated region
      $region33: #{basic_block_forward.5} parent=5 // pred_check
        %p236 = pneg %p235
      $region34: #{basic_block_forward.5} parent=5 // pred_check_branch
        %238 = sbr.rel (%p236) target = $region36
      $region35: #{basic_block_forward.5} parent=5 // pred_region
        // Predicated region
        $region37: #{basic_block_forward.5} parent=35 // pred_check
          %p239 = pneg %p34
        $region38: #{basic_block_forward.5} parent=35 // pred_check_branch
          %241 = sbr.rel (%p239) target = $region40
        $region39: #{basic_block_forward.5} parent=35 // pred_region
          %p242 = scmp.lt.s32.totalorder %s14, 1
          %s243 = scalar_select %p242, %s14, 1
          %s244 = smul.addr %s243, 32
          %s245 = smul.addr %s244, 4
          %s246 = scalar_lea.vmem %s0, %s245
        $region40: #{basic_block_forward.5} parent=35 // pred_fallthru
          _
        // Predicated region
        $region41: #{basic_block_forward.5} parent=35 // pred_check
          %p247 = pneg %p60
        $region42: #{basic_block_forward.5} parent=35 // pred_check_branch
          %249 = sbr.rel (%p247) target = $region44
        $region43: #{basic_block_forward.5} parent=35 // pred_region
          %p250 = scmp.lt.s32.totalorder %s14, 1
          %s251 = scalar_select %p250, %s14, 1
          %s252 = smul.addr %s251, 32
          %s253 = smul.addr %s252, 8
          %s254 = scalar_lea.vmem %s1, %s253
        $region44: #{basic_block_forward.5} parent=35 // pred_fallthru
          _
      $region36: #{basic_block_forward.5} parent=5 // pred_fallthru
        _
      %p255 = scmp.le.s32.totalorder 1, %s14
      %p256 = scmp.lt.s32.totalorder %s14, 3
      %p257 = pnand %p255, %p256
      %p258 = pneg %p257
      // Predicated region
      $region45: #{basic_block_forward.5} parent=5 // pred_check
        _
      $region46: #{basic_block_forward.5} parent=5 // pred_check_branch
        %260 = sbr.rel (%p257) target = $region48
      $region47: #{basic_block_forward.5} parent=5 // pred_region
        %s261 = ssub.s32 %s14, 1
        // Predicated region
        $region49: #{basic_block_forward.5} parent=47 // pred_check
          %p262 = pneg %p171
        $region50: #{basic_block_forward.5} parent=47 // pred_check_branch
          %264 = sbr.rel (%p262) target = $region52
        $region51: #{basic_block_forward.5} parent=47 // pred_region
          %265 = dma.done [#allocation4], 16
        $region52: #{basic_block_forward.5} parent=47 // pred_fallthru
          _
        %266 = sfence
        %p267 = scmp.lt.s32.totalorder %s19, 1
        %s268 = scalar_select %p267, %s19, 1
        %s269 = smul.addr %s268, 32
        %s270 = smul.addr %s269, 4
        %s271 = scalar_lea.vmem %s0, %s270
        %p272 = pneg %p40
        %p273 = pneg %p37
        %p274 = scmp.lt.s32.totalorder %s19, 1
        %s275 = scalar_select %p274, %s19, 1
        %s276 = smul.addr %s275, 32
        %s277 = smul.addr %s276, 8
        %s278 = scalar_lea.vmem %s1, %s277
        %p279 = pneg %p66
        %p280 = pneg %p63
        %p281 = pneg %p87
        %p282 = pneg %p84
        %p283 = pneg %p108
        %p284 = pneg %p105
        %p285 = pneg %p129
        %p286 = pneg %p126
        %p287 = pneg %p150
        %p288 = pneg %p147
        %p289 = pneg %p171
        %p290 = pneg %p168
        %p291 = pneg %p197
        %p292 = pneg %p194
        %p293 = scmp.lt.s32.totalorder %s19, 1
        %s294 = scalar_select %p293, %s19, 1
        %s295 = smul.addr %s294, 32
        %s296 = smul.addr %s295, 8
        %s297 = scalar_lea.vmem %s7, %s296
        %p298 = scmp.lt.s32.totalorder %s19, 1
        %s299 = scalar_select %p298, %s19, 1
        %s300 = smul.addr %s299, 32
        %s301 = smul.addr %s300, 4
        %s302 = scalar_lea.vmem %s0, %s301
        %p303 = scmp.lt.s32.totalorder %s19, 1
        %s304 = scalar_select %p303, %s19, 1
        %s305 = smul.addr %s304, 32
        %s306 = smul.addr %s305, 8
        %s307 = scalar_lea.vmem %s1, %s306
        %p308 = scmp.lt.s32.totalorder %s19, 1
        %s309 = scalar_select %p308, %s19, 1
        %s310 = smul.addr %s309, 32
        %s311 = smul.addr %s310, 8
        %s312 = scalar_lea.vmem %s7, %s311
        %v313 = vld [vmem:[%s302] sm:$0xf]
        %v314 = vld [vmem:[%s302 + $0x4] sm:$0xf]
        %v315 = vld [vmem:[%s302 + $0x8] sm:$0xf]
        %v316 = vld [vmem:[%s302 + $0xc] sm:$0xf]
        %v317 = vld [vmem:[%s302 + $0x10] sm:$0xf]
        %v318 = vld [vmem:[%s302 + $0x14] sm:$0xf]
        %v319 = vld [vmem:[%s302 + $0x18] sm:$0xf]
        %v320 = vld [vmem:[%s302 + $0x1c] sm:$0xf]
        %v321 = vld [vmem:[%s302 + $0x20] sm:$0xf]
        %v322 = vld [vmem:[%s302 + $0x24] sm:$0xf]
        %v323 = vld [vmem:[%s302 + $0x28] sm:$0xf]
        %v324 = vld [vmem:[%s302 + $0x2c] sm:$0xf]
        %v325 = vld [vmem:[%s302 + $0x30] sm:$0xf]
        %v326 = vld [vmem:[%s302 + $0x34] sm:$0xf]
        %v327 = vld [vmem:[%s302 + $0x38] sm:$0xf]
        %v328 = vld [vmem:[%s302 + $0x3c] sm:$0xf]
        %v329 = vld [vmem:[%s302 + $0x40] sm:$0xf]
        %v330 = vld [vmem:[%s302 + $0x44] sm:$0xf]
        %v331 = vld [vmem:[%s302 + $0x48] sm:$0xf]
        %v332 = vld [vmem:[%s302 + $0x4c] sm:$0xf]
        %v333 = vld [vmem:[%s302 + $0x50] sm:$0xf]
        %v334 = vld [vmem:[%s302 + $0x54] sm:$0xf]
        %v335 = vld [vmem:[%s302 + $0x58] sm:$0xf]
        %v336 = vld [vmem:[%s302 + $0x5c] sm:$0xf]
        %v337 = vld [vmem:[%s302 + $0x60] sm:$0xf]
        %v338 = vld [vmem:[%s302 + $0x64] sm:$0xf]
        %v339 = vld [vmem:[%s302 + $0x68] sm:$0xf]
        %v340 = vld [vmem:[%s302 + $0x6c] sm:$0xf]
        %v341 = vld [vmem:[%s302 + $0x70] sm:$0xf]
        %v342 = vld [vmem:[%s302 + $0x74] sm:$0xf]
        %v343 = vld [vmem:[%s302 + $0x78] sm:$0xf]
        %v344 = vld [vmem:[%s302 + $0x7c] sm:$0xf]
        %v345 = vunpack.c.l.bf16 %v313
        %v346 = vunpack.c.l.bf16 %v314
        %v347 = vunpack.c.l.bf16 %v315
        %v348 = vunpack.c.l.bf16 %v316
        %v349 = vunpack.c.l.bf16 %v317
        %v350 = vunpack.c.l.bf16 %v318
        %v351 = vunpack.c.l.bf16 %v319
        %v352 = vunpack.c.l.bf16 %v320
        %v353 = vunpack.c.l.bf16 %v321
        %v354 = vunpack.c.l.bf16 %v322
        %v355 = vunpack.c.l.bf16 %v323
        %v356 = vunpack.c.l.bf16 %v324
        %v357 = vunpack.c.l.bf16 %v325
        %v358 = vunpack.c.l.bf16 %v326
        %v359 = vunpack.c.l.bf16 %v327
        %v360 = vunpack.c.l.bf16 %v328
        %v361 = vunpack.c.l.bf16 %v329
        %v362 = vunpack.c.l.bf16 %v330
        %v363 = vunpack.c.l.bf16 %v331
        %v364 = vunpack.c.l.bf16 %v332
        %v365 = vunpack.c.l.bf16 %v333
        %v366 = vunpack.c.l.bf16 %v334
        %v367 = vunpack.c.l.bf16 %v335
        %v368 = vunpack.c.l.bf16 %v336
        %v369 = vunpack.c.l.bf16 %v337
        %v370 = vunpack.c.l.bf16 %v338
        %v371 = vunpack.c.l.bf16 %v339
        %v372 = vunpack.c.l.bf16 %v340
        %v373 = vunpack.c.l.bf16 %v341
        %v374 = vunpack.c.l.bf16 %v342
        %v375 = vunpack.c.l.bf16 %v343
        %v376 = vunpack.c.l.bf16 %v344
        %v377 = vld [vmem:[%s2] sm:$0x1]
        %v379 = vlaneseq
        %v380 = vshrl.u32 %v379, 7
        %v381 = vsub.s32 0, %v380
        %v382 = vrot.slane %v377, %v381
        %v384 = vmul.f32 %v345, %v382
        %v385 = vmul.f32 %v346, %v382
        %v386 = vmul.f32 %v347, %v382
        %v387 = vmul.f32 %v348, %v382
        %v388 = vmul.f32 %v349, %v382
        %v389 = vmul.f32 %v350, %v382
        %v390 = vmul.f32 %v351, %v382
        %v391 = vmul.f32 %v352, %v382
        %v392 = vmul.f32 %v353, %v382
        %v393 = vmul.f32 %v354, %v382
        %v394 = vmul.f32 %v355, %v382
        %v395 = vmul.f32 %v356, %v382
        %v396 = vmul.f32 %v357, %v382
        %v397 = vmul.f32 %v358, %v382
        %v398 = vmul.f32 %v359, %v382
        %v399 = vmul.f32 %v360, %v382
        %v400 = vmul.f32 %v361, %v382
        %v401 = vmul.f32 %v362, %v382
        %v402 = vmul.f32 %v363, %v382
        %v403 = vmul.f32 %v364, %v382
        %v404 = vmul.f32 %v365, %v382
        %v405 = vmul.f32 %v366, %v382
        %v406 = vmul.f32 %v367, %v382
        %v407 = vmul.f32 %v368, %v382
        %v408 = vmul.f32 %v369, %v382
        %v409 = vmul.f32 %v370, %v382
        %v410 = vmul.f32 %v371, %v382
        %v411 = vmul.f32 %v372, %v382
        %v412 = vmul.f32 %v373, %v382
        %v413 = vmul.f32 %v374, %v382
        %v414 = vmul.f32 %v375, %v382
        %v415 = vmul.f32 %v376, %v382
        %v416 = vld [vmem:[%s3] sm:$0x1]
        %v418 = vlaneseq
        %v419 = vshrl.u32 %v418, 7
        %v420 = vsub.s32 0, %v419
        %v421 = vrot.slane %v416, %v420
        %v423 = vadd.f32 %v384, %v421
        %v424 = vadd.f32 %v385, %v421
        %v425 = vadd.f32 %v386, %v421
        %v426 = vadd.f32 %v387, %v421
        %v427 = vadd.f32 %v388, %v421
        %v428 = vadd.f32 %v389, %v421
        %v429 = vadd.f32 %v390, %v421
        %v430 = vadd.f32 %v391, %v421
        %v431 = vadd.f32 %v392, %v421
        %v432 = vadd.f32 %v393, %v421
        %v433 = vadd.f32 %v394, %v421
        %v434 = vadd.f32 %v395, %v421
        %v435 = vadd.f32 %v396, %v421
        %v436 = vadd.f32 %v397, %v421
        %v437 = vadd.f32 %v398, %v421
        %v438 = vadd.f32 %v399, %v421
        %v439 = vadd.f32 %v400, %v421
        %v440 = vadd.f32 %v401, %v421
        %v441 = vadd.f32 %v402, %v421
        %v442 = vadd.f32 %v403, %v421
        %v443 = vadd.f32 %v404, %v421
        %v444 = vadd.f32 %v405, %v421
        %v445 = vadd.f32 %v406, %v421
        %v446 = vadd.f32 %v407, %v421
        %v447 = vadd.f32 %v408, %v421
        %v448 = vadd.f32 %v409, %v421
        %v449 = vadd.f32 %v410, %v421
        %v450 = vadd.f32 %v411, %v421
        %v451 = vadd.f32 %v412, %v421
        %v452 = vadd.f32 %v413, %v421
        %v453 = vadd.f32 %v414, %v421
        %v454 = vadd.f32 %v415, %v421
        %vm455 = vcmask 130048
        %v456 = vsel %vm455, %v423, 0.0
        %v457 = vsel %vm455, %v425, 0.0
        %v458 = vadd.f32 %v456, %v457
        %v459 = vsel %vm455, %v427, 0.0
        %v460 = vadd.f32 %v458, %v459
        %v461 = vsel %vm455, %v429, 0.0
        %v462 = vadd.f32 %v460, %v461
        %v463 = vsel %vm455, %v431, 0.0
        %v464 = vadd.f32 %v462, %v463
        %v465 = vsel %vm455, %v433, 0.0
        %v466 = vadd.f32 %v464, %v465
        %v467 = vsel %vm455, %v435, 0.0
        %v468 = vadd.f32 %v466, %v467
        %v469 = vsel %vm455, %v437, 0.0
        %v470 = vadd.f32 %v468, %v469
        %v471 = vsel %vm455, %v439, 0.0
        %v472 = vadd.f32 %v470, %v471
        %v473 = vsel %vm455, %v441, 0.0
        %v474 = vadd.f32 %v472, %v473
        %v475 = vsel %vm455, %v443, 0.0
        %v476 = vadd.f32 %v474, %v475
        %v477 = vsel %vm455, %v445, 0.0
        %v478 = vadd.f32 %v476, %v477
        %v479 = vsel %vm455, %v447, 0.0
        %v480 = vadd.f32 %v478, %v479
        %v481 = vsel %vm455, %v449, 0.0
        %v482 = vadd.f32 %v480, %v481
        %v483 = vsel %vm455, %v451, 0.0
        %v484 = vadd.f32 %v482, %v483
        %v485 = vsel %vm455, %v453, 0.0
        %v486 = vadd.f32 %v484, %v485
        %v487 = vsel %vm455, %v424, 0.0
        %v488 = vsel %vm455, %v426, 0.0
        %v489 = vadd.f32 %v487, %v488
        %v490 = vsel %vm455, %v428, 0.0
        %v491 = vadd.f32 %v489, %v490
        %v492 = vsel %vm455, %v430, 0.0
        %v493 = vadd.f32 %v491, %v492
        %v494 = vsel %vm455, %v432, 0.0
        %v495 = vadd.f32 %v493, %v494
        %v496 = vsel %vm455, %v434, 0.0
        %v497 = vadd.f32 %v495, %v496
        %v498 = vsel %vm455, %v436, 0.0
        %v499 = vadd.f32 %v497, %v498
        %v500 = vsel %vm455, %v438, 0.0
        %v501 = vadd.f32 %v499, %v500
        %v502 = vsel %vm455, %v440, 0.0
        %v503 = vadd.f32 %v501, %v502
        %v504 = vsel %vm455, %v442, 0.0
        %v505 = vadd.f32 %v503, %v504
        %v506 = vsel %vm455, %v444, 0.0
        %v507 = vadd.f32 %v505, %v506
        %v508 = vsel %vm455, %v446, 0.0
        %v509 = vadd.f32 %v507, %v508
        %v510 = vsel %vm455, %v448, 0.0
        %v511 = vadd.f32 %v509, %v510
        %v512 = vsel %vm455, %v450, 0.0
        %v513 = vadd.f32 %v511, %v512
        %v514 = vsel %vm455, %v452, 0.0
        %v515 = vadd.f32 %v513, %v514
        %v516 = vsel %vm455, %v454, 0.0
        %v517 = vadd.f32 %v515, %v516
        %v518 = vrcp.pop 16.0
        %v519 = vmul.f32 %v486, %v518
        %v520 = vmul.f32 %v517, %v518
        %v521 = vsel %vm455, %v519, 0.0
        %v522 = vsel %vm455, %v520, 0.0
        %v523 = vadd.f32 %v521, %v522
        %v524 = vrot.slane %v523, 4
        %v525 = vadd.f32 %v523, %v524
        %v526 = vrot.slane %v525, 2
        %v527 = vadd.f32 %v525, %v526
        %v528 = vrot.slane %v527, 1
        %v529 = vadd.f32 %v527, %v528
        %v530 = vmul.f32 %v529, %v518
        %v531 = vsel %vm455, %v423, -inf
        %v532 = vsel %vm455, %v425, -inf
        %v533 = vsel %vm455, %v427, -inf
        %v534 = vmax.f32 %v531, %v533
        %v535 = vsel %vm455, %v429, -inf
        %v536 = vmax.f32 %v532, %v535
        %v537 = vsel %vm455, %v431, -inf
        %v538 = vmax.f32 %v534, %v537
        %v539 = vsel %vm455, %v433, -inf
        %v540 = vmax.f32 %v536, %v539
        %v541 = vsel %vm455, %v435, -inf
        %v542 = vmax.f32 %v538, %v541
        %v543 = vsel %vm455, %v437, -inf
        %v544 = vmax.f32 %v540, %v543
        %v545 = vsel %vm455, %v439, -inf
        %v546 = vmax.f32 %v542, %v545
        %v547 = vsel %vm455, %v441, -inf
        %v548 = vmax.f32 %v544, %v547
        %v549 = vsel %vm455, %v443, -inf
        %v550 = vmax.f32 %v546, %v549
        %v551 = vsel %vm455, %v445, -inf
        %v552 = vmax.f32 %v548, %v551
        %v553 = vsel %vm455, %v447, -inf
        %v554 = vmax.f32 %v550, %v553
        %v555 = vsel %vm455, %v449, -inf
        %v556 = vmax.f32 %v552, %v555
        %v557 = vsel %vm455, %v451, -inf
        %v558 = vmax.f32 %v554, %v557
        %v559 = vsel %vm455, %v453, -inf
        %v560 = vmax.f32 %v556, %v559
        %v561 = vmax.f32 %v558, %v560
        %v562 = vsel %vm455, %v424, -inf
        %v563 = vsel %vm455, %v426, -inf
        %v564 = vsel %vm455, %v428, -inf
        %v565 = vmax.f32 %v562, %v564
        %v566 = vsel %vm455, %v430, -inf
        %v567 = vmax.f32 %v563, %v566
        %v568 = vsel %vm455, %v432, -inf
        %v569 = vmax.f32 %v565, %v568
        %v570 = vsel %vm455, %v434, -inf
        %v571 = vmax.f32 %v567, %v570
        %v572 = vsel %vm455, %v436, -inf
        %v573 = vmax.f32 %v569, %v572
        %v574 = vsel %vm455, %v438, -inf
        %v575 = vmax.f32 %v571, %v574
        %v576 = vsel %vm455, %v440, -inf
        %v577 = vmax.f32 %v573, %v576
        %v578 = vsel %vm455, %v442, -inf
        %v579 = vmax.f32 %v575, %v578
        %v580 = vsel %vm455, %v444, -inf
        %v581 = vmax.f32 %v577, %v580
        %v582 = vsel %vm455, %v446, -inf
        %v583 = vmax.f32 %v579, %v582
        %v584 = vsel %vm455, %v448, -inf
        %v585 = vmax.f32 %v581, %v584
        %v586 = vsel %vm455, %v450, -inf
        %v587 = vmax.f32 %v583, %v586
        %v588 = vsel %vm455, %v452, -inf
        %v589 = vmax.f32 %v585, %v588
        %v590 = vsel %vm455, %v454, -inf
        %v591 = vmax.f32 %v587, %v590
        %v592 = vmax.f32 %v589, %v591
        %v593 = vsel %vm455, %v561, -inf
        %v594 = vsel %vm455, %v592, -inf
        %v595 = vmax.f32 %v593, %v594
        %v596 = vrot.slane %v595, 4
        %v597 = vmax.f32 %v595, %v596
        %v598 = vrot.slane %v597, 2
        %v599 = vmax.f32 %v597, %v598
        %v600 = vrot.slane %v599, 1
        %v601 = vmax.f32 %v599, %v600
        %v602 = vld [vmem:[%s4] sm:$0x1]
        %v603 = vmul.f32 %v530, %v602
        %vm604 = vcmask 122880
        %v605 = vsel %vm604, %v603, 0.0
        %606 = vadd.xlane.f32.xlu0 %v605
        %v607 = vpop.xlane.xlu0 %606
        %v608 = vmax.f32 %v607, 0.0
        %v609 = vld [vmem:[%s5] sm:$0x1]
        %v610 = vmul.f32 %v608, %v609
        %v611 = vadd.f32 %v610, 0.0
        %v612 = vmul.f32 %v601, %v602
        %v613 = vsel %vm604, %v612, 0.0
        %614 = vadd.xlane.f32.xlu0 %v613
        %v615 = vpop.xlane.xlu0 %614
        %v616 = vmax.f32 %v615, 0.0
        %v617 = vmul.f32 %v616, %v609
        %v618 = vadd.f32 %v617, 0.0
        %v619 = vadd.f32 %v611, %v618
        %v620 = vxor.u32 %v619, 2147483648
        %v621 = vmul.f32 %v620, 1.442695
        %v622 = vpow.pop %v621
        %v623 = vadd.f32 %v622, 1.0
        %v624 = vrcp.pop %v623
        %v625 = vmul.f32 1.0, %v624
        %v626 = vlaneseq
        %v627 = vshrl.u32 %v626, 7
        %v628 = vsub.s32 0, %v627
        %v629 = vrot.slane %v625, %v628
        %v630 = vmul.f32 %v423, %v629
        %v631 = vmul.f32 %v424, %v629
        %v632 = vmul.f32 %v425, %v629
        %v633 = vmul.f32 %v426, %v629
        %v634 = vmul.f32 %v427, %v629
        %v635 = vmul.f32 %v428, %v629
        %v636 = vmul.f32 %v429, %v629
        %v637 = vmul.f32 %v430, %v629
        %v638 = vmul.f32 %v431, %v629
        %v639 = vmul.f32 %v432, %v629
        %v640 = vmul.f32 %v433, %v629
        %v641 = vmul.f32 %v434, %v629
        %v642 = vmul.f32 %v435, %v629
        %v643 = vmul.f32 %v436, %v629
        %v644 = vmul.f32 %v437, %v629
        %v645 = vmul.f32 %v438, %v629
        %v646 = vmul.f32 %v439, %v629
        %v647 = vmul.f32 %v440, %v629
        %v648 = vmul.f32 %v441, %v629
        %v649 = vmul.f32 %v442, %v629
        %v650 = vmul.f32 %v443, %v629
        %v651 = vmul.f32 %v444, %v629
        %v652 = vmul.f32 %v445, %v629
        %v653 = vmul.f32 %v446, %v629
        %v654 = vmul.f32 %v447, %v629
        %v655 = vmul.f32 %v448, %v629
        %v656 = vmul.f32 %v449, %v629
        %v657 = vmul.f32 %v450, %v629
        %v658 = vmul.f32 %v451, %v629
        %v659 = vmul.f32 %v452, %v629
        %v660 = vmul.f32 %v453, %v629
        %v661 = vmul.f32 %v454, %v629
        %v662 = vsel %vm455, %v630, 0.0
        %663 = vadd.xlane.f32.xlu0 %v662
        %v664 = vpop.xlane.xlu0 %663
        %v665 = vsel %vm455, %v631, 0.0
        %666 = vadd.xlane.f32.xlu0 %v665
        %v667 = vpop.xlane.xlu0 %666
        %v668 = vsel %vm455, %v632, 0.0
        %669 = vadd.xlane.f32.xlu0 %v668
        %v670 = vpop.xlane.xlu0 %669
        %v671 = vsel %vm455, %v633, 0.0
        %672 = vadd.xlane.f32.xlu0 %v671
        %v673 = vpop.xlane.xlu0 %672
        %v674 = vsel %vm455, %v634, 0.0
        %675 = vadd.xlane.f32.xlu0 %v674
        %v676 = vpop.xlane.xlu0 %675
        %v677 = vsel %vm455, %v635, 0.0
        %678 = vadd.xlane.f32.xlu0 %v677
        %v679 = vpop.xlane.xlu0 %678
        %v680 = vsel %vm455, %v636, 0.0
        %681 = vadd.xlane.f32.xlu0 %v680
        %v682 = vpop.xlane.xlu0 %681
        %v683 = vsel %vm455, %v637, 0.0
        %684 = vadd.xlane.f32.xlu0 %v683
        %v685 = vpop.xlane.xlu0 %684
        %v686 = vsel %vm455, %v638, 0.0
        %687 = vadd.xlane.f32.xlu0 %v686
        %v688 = vpop.xlane.xlu0 %687
        %v689 = vsel %vm455, %v639, 0.0
        %690 = vadd.xlane.f32.xlu0 %v689
        %v691 = vpop.xlane.xlu0 %690
        %v692 = vsel %vm455, %v640, 0.0
        %693 = vadd.xlane.f32.xlu0 %v692
        %v694 = vpop.xlane.xlu0 %693
        %v695 = vsel %vm455, %v641, 0.0
        %696 = vadd.xlane.f32.xlu0 %v695
        %v697 = vpop.xlane.xlu0 %696
        %v698 = vsel %vm455, %v642, 0.0
        %699 = vadd.xlane.f32.xlu0 %v698
        %v700 = vpop.xlane.xlu0 %699
        %v701 = vsel %vm455, %v643, 0.0
        %702 = vadd.xlane.f32.xlu0 %v701
        %v703 = vpop.xlane.xlu0 %702
        %v704 = vsel %vm455, %v644, 0.0
        %705 = vadd.xlane.f32.xlu0 %v704
        %v706 = vpop.xlane.xlu0 %705
        %v707 = vsel %vm455, %v645, 0.0
        %708 = vadd.xlane.f32.xlu0 %v707
        %v709 = vpop.xlane.xlu0 %708
        %v710 = vsel %vm455, %v646, 0.0
        %711 = vadd.xlane.f32.xlu0 %v710
        %v712 = vpop.xlane.xlu0 %711
        %v713 = vsel %vm455, %v647, 0.0
        %714 = vadd.xlane.f32.xlu0 %v713
        %v715 = vpop.xlane.xlu0 %714
        %v716 = vsel %vm455, %v648, 0.0
        %717 = vadd.xlane.f32.xlu0 %v716
        %v718 = vpop.xlane.xlu0 %717
        %v719 = vsel %vm455, %v649, 0.0
        %720 = vadd.xlane.f32.xlu0 %v719
        %v721 = vpop.xlane.xlu0 %720
        %v722 = vsel %vm455, %v650, 0.0
        %723 = vadd.xlane.f32.xlu0 %v722
        %v724 = vpop.xlane.xlu0 %723
        %v725 = vsel %vm455, %v651, 0.0
        %726 = vadd.xlane.f32.xlu0 %v725
        %v727 = vpop.xlane.xlu0 %726
        %v728 = vsel %vm455, %v652, 0.0
        %729 = vadd.xlane.f32.xlu0 %v728
        %v730 = vpop.xlane.xlu0 %729
        %v731 = vsel %vm455, %v653, 0.0
        %732 = vadd.xlane.f32.xlu0 %v731
        %v733 = vpop.xlane.xlu0 %732
        %v734 = vsel %vm455, %v654, 0.0
        %735 = vadd.xlane.f32.xlu0 %v734
        %v736 = vpop.xlane.xlu0 %735
        %v737 = vsel %vm455, %v655, 0.0
        %738 = vadd.xlane.f32.xlu0 %v737
        %v739 = vpop.xlane.xlu0 %738
        %v740 = vsel %vm455, %v656, 0.0
        %741 = vadd.xlane.f32.xlu0 %v740
        %v742 = vpop.xlane.xlu0 %741
        %v743 = vsel %vm455, %v657, 0.0
        %744 = vadd.xlane.f32.xlu0 %v743
        %v745 = vpop.xlane.xlu0 %744
        %v746 = vsel %vm455, %v658, 0.0
        %747 = vadd.xlane.f32.xlu0 %v746
        %v748 = vpop.xlane.xlu0 %747
        %v749 = vsel %vm455, %v659, 0.0
        %750 = vadd.xlane.f32.xlu0 %v749
        %v751 = vpop.xlane.xlu0 %750
        %v752 = vsel %vm455, %v660, 0.0
        %753 = vadd.xlane.f32.xlu0 %v752
        %v754 = vpop.xlane.xlu0 %753
        %v755 = vsel %vm455, %v661, 0.0
        %756 = vadd.xlane.f32.xlu0 %v755
        %v757 = vpop.xlane.xlu0 %756
        %v758 = vmul.f32 %v664, %v518
        %v759 = vmul.f32 %v667, %v518
        %v760 = vmul.f32 %v670, %v518
        %v761 = vmul.f32 %v673, %v518
        %v762 = vmul.f32 %v676, %v518
        %v763 = vmul.f32 %v679, %v518
        %v764 = vmul.f32 %v682, %v518
        %v765 = vmul.f32 %v685, %v518
        %v766 = vmul.f32 %v688, %v518
        %v767 = vmul.f32 %v691, %v518
        %v768 = vmul.f32 %v694, %v518
        %v769 = vmul.f32 %v697, %v518
        %v770 = vmul.f32 %v700, %v518
        %v771 = vmul.f32 %v703, %v518
        %v772 = vmul.f32 %v706, %v518
        %v773 = vmul.f32 %v709, %v518
        %v774 = vmul.f32 %v712, %v518
        %v775 = vmul.f32 %v715, %v518
        %v776 = vmul.f32 %v718, %v518
        %v777 = vmul.f32 %v721, %v518
        %v778 = vmul.f32 %v724, %v518
        %v779 = vmul.f32 %v727, %v518
        %v780 = vmul.f32 %v730, %v518
        %v781 = vmul.f32 %v733, %v518
        %v782 = vmul.f32 %v736, %v518
        %v783 = vmul.f32 %v739, %v518
        %v784 = vmul.f32 %v742, %v518
        %v785 = vmul.f32 %v745, %v518
        %v786 = vmul.f32 %v748, %v518
        %v787 = vmul.f32 %v751, %v518
        %v788 = vmul.f32 %v754, %v518
        %v789 = vmul.f32 %v757, %v518
        %v790 = vsel %vm455, %v630, -inf
        %791 = vmax.xlane.f32.xlu0 %v790
        %v792 = vpop.xlane.xlu0 %791
        %v793 = vsel %vm455, %v631, -inf
        %794 = vmax.xlane.f32.xlu0 %v793
        %v795 = vpop.xlane.xlu0 %794
        %v796 = vsel %vm455, %v632, -inf
        %797 = vmax.xlane.f32.xlu0 %v796
        %v798 = vpop.xlane.xlu0 %797
        %v799 = vsel %vm455, %v633, -inf
        %800 = vmax.xlane.f32.xlu0 %v799
        %v801 = vpop.xlane.xlu0 %800
        %v802 = vsel %vm455, %v634, -inf
        %803 = vmax.xlane.f32.xlu0 %v802
        %v804 = vpop.xlane.xlu0 %803
        %v805 = vsel %vm455, %v635, -inf
        %806 = vmax.xlane.f32.xlu0 %v805
        %v807 = vpop.xlane.xlu0 %806
        %v808 = vsel %vm455, %v636, -inf
        %809 = vmax.xlane.f32.xlu0 %v808
        %v810 = vpop.xlane.xlu0 %809
        %v811 = vsel %vm455, %v637, -inf
        %812 = vmax.xlane.f32.xlu0 %v811
        %v813 = vpop.xlane.xlu0 %812
        %v814 = vsel %vm455, %v638, -inf
        %815 = vmax.xlane.f32.xlu0 %v814
        %v816 = vpop.xlane.xlu0 %815
        %v817 = vsel %vm455, %v639, -inf
        %818 = vmax.xlane.f32.xlu0 %v817
        %v819 = vpop.xlane.xlu0 %818
        %v820 = vsel %vm455, %v640, -inf
        %821 = vmax.xlane.f32.xlu0 %v820
        %v822 = vpop.xlane.xlu0 %821
        %v823 = vsel %vm455, %v641, -inf
        %824 = vmax.xlane.f32.xlu0 %v823
        %v825 = vpop.xlane.xlu0 %824
        %v826 = vsel %vm455, %v642, -inf
        %827 = vmax.xlane.f32.xlu0 %v826
        %v828 = vpop.xlane.xlu0 %827
        %v829 = vsel %vm455, %v643, -inf
        %830 = vmax.xlane.f32.xlu0 %v829
        %v831 = vpop.xlane.xlu0 %830
        %v832 = vsel %vm455, %v644, -inf
        %833 = vmax.xlane.f32.xlu0 %v832
        %v834 = vpop.xlane.xlu0 %833
        %v835 = vsel %vm455, %v645, -inf
        %836 = vmax.xlane.f32.xlu0 %v835
        %v837 = vpop.xlane.xlu0 %836
        %v838 = vsel %vm455, %v646, -inf
        %839 = vmax.xlane.f32.xlu0 %v838
        %v840 = vpop.xlane.xlu0 %839
        %v841 = vsel %vm455, %v647, -inf
        %842 = vmax.xlane.f32.xlu0 %v841
        %v843 = vpop.xlane.xlu0 %842
        %v844 = vsel %vm455, %v648, -inf
        %845 = vmax.xlane.f32.xlu0 %v844
        %v846 = vpop.xlane.xlu0 %845
        %v847 = vsel %vm455, %v649, -inf
        %848 = vmax.xlane.f32.xlu0 %v847
        %v849 = vpop.xlane.xlu0 %848
        %v850 = vsel %vm455, %v650, -inf
        %851 = vmax.xlane.f32.xlu0 %v850
        %v852 = vpop.xlane.xlu0 %851
        %v853 = vsel %vm455, %v651, -inf
        %854 = vmax.xlane.f32.xlu0 %v853
        %v855 = vpop.xlane.xlu0 %854
        %v856 = vsel %vm455, %v652, -inf
        %857 = vmax.xlane.f32.xlu0 %v856
        %v858 = vpop.xlane.xlu0 %857
        %v859 = vsel %vm455, %v653, -inf
        %860 = vmax.xlane.f32.xlu0 %v859
        %v861 = vpop.xlane.xlu0 %860
        %v862 = vsel %vm455, %v654, -inf
        %863 = vmax.xlane.f32.xlu0 %v862
        %v864 = vpop.xlane.xlu0 %863
        %v865 = vsel %vm455, %v655, -inf
        %866 = vmax.xlane.f32.xlu0 %v865
        %v867 = vpop.xlane.xlu0 %866
        %v868 = vsel %vm455, %v656, -inf
        %869 = vmax.xlane.f32.xlu0 %v868
        %v870 = vpop.xlane.xlu0 %869
        %v871 = vsel %vm455, %v657, -inf
        %872 = vmax.xlane.f32.xlu0 %v871
        %v873 = vpop.xlane.xlu0 %872
        %v874 = vsel %vm455, %v658, -inf
        %875 = vmax.xlane.f32.xlu0 %v874
        %v876 = vpop.xlane.xlu0 %875
        %v877 = vsel %vm455, %v659, -inf
        %878 = vmax.xlane.f32.xlu0 %v877
        %v879 = vpop.xlane.xlu0 %878
        %v880 = vsel %vm455, %v660, -inf
        %881 = vmax.xlane.f32.xlu0 %v880
        %v882 = vpop.xlane.xlu0 %881
        %v883 = vsel %vm455, %v661, -inf
        %884 = vmax.xlane.f32.xlu0 %v883
        %v885 = vpop.xlane.xlu0 %884
        %vm886 = vcmask 179200
        %887 = vst.msk [vmem:[#allocation2] sm:$0xff] %vm886, 0.0
        %888 = vst.msk [vmem:[#allocation2 + $0x8] sm:$0xff] %vm886, 0.0
        %vm889 = vcmask 177152
        %890 = vst.msk [vmem:[#allocation2 + $0x10] sm:$0x3f] %vm889, 0.0
        %891 = vst.msk [vmem:[#allocation2 + $0x18] sm:$0xff] %vm886, 0.0
        %892 = vst.msk [vmem:[#allocation2 + $0x20] sm:$0xff] %vm886, 0.0
        %893 = vst.msk [vmem:[#allocation2 + $0x28] sm:$0x3f] %vm889, 0.0
        %v926 = vlaneseq
        %v927 = vand.u32 %v926, 127
        %v928 = vadd.s32 %v927, 4294967293
        %v929 = vlaneseq
        %v930 = vshrl.u32 %v929, 7
        %v931 = vsub.s32 %v928, %v930
        %v932 = vrot.slane %v758, %v931
        %v933 = vadd.s32 %v927, 4294967285
        %v934 = vlaneseq
        %v935 = vshrl.u32 %v934, 7
        %v936 = vsub.s32 %v933, %v935
        %v937 = vrot.slane %v759, %v936
        %vm938 = vcmask 154712
        %v939 = vsel %vm938, %v937, %v932
        %v940 = vlaneseq
        %v941 = vshrl.u32 %v940, 7
        %v942 = vsub.s32 %v928, %v941
        %v943 = vrot.slane %v760, %v942
        %v944 = vlaneseq
        %v945 = vshrl.u32 %v944, 7
        %v946 = vsub.s32 %v933, %v945
        %v947 = vrot.slane %v761, %v946
        %v948 = vsel %vm938, %v947, %v943
        %v949 = vlaneseq
        %v950 = vshrl.u32 %v949, 7
        %v951 = vsub.s32 %v928, %v950
        %v952 = vrot.slane %v762, %v951
        %v953 = vlaneseq
        %v954 = vshrl.u32 %v953, 7
        %v955 = vsub.s32 %v933, %v954
        %v956 = vrot.slane %v763, %v955
        %v957 = vsel %vm938, %v956, %v952
        %v958 = vlaneseq
        %v959 = vshrl.u32 %v958, 7
        %v960 = vsub.s32 %v928, %v959
        %v961 = vrot.slane %v764, %v960
        %v962 = vlaneseq
        %v963 = vshrl.u32 %v962, 7
        %v964 = vsub.s32 %v933, %v963
        %v965 = vrot.slane %v765, %v964
        %v966 = vsel %vm938, %v965, %v961
        %v967 = vlaneseq
        %v968 = vshrl.u32 %v967, 7
        %v969 = vsub.s32 %v928, %v968
        %v970 = vrot.slane %v766, %v969
        %v971 = vlaneseq
        %v972 = vshrl.u32 %v971, 7
        %v973 = vsub.s32 %v933, %v972
        %v974 = vrot.slane %v767, %v973
        %v975 = vsel %vm938, %v974, %v970
        %v976 = vlaneseq
        %v977 = vshrl.u32 %v976, 7
        %v978 = vsub.s32 %v928, %v977
        %v979 = vrot.slane %v768, %v978
        %v980 = vlaneseq
        %v981 = vshrl.u32 %v980, 7
        %v982 = vsub.s32 %v933, %v981
        %v983 = vrot.slane %v769, %v982
        %v984 = vsel %vm938, %v983, %v979
        %v985 = vlaneseq
        %v986 = vshrl.u32 %v985, 7
        %v987 = vsub.s32 %v928, %v986
        %v988 = vrot.slane %v770, %v987
        %v989 = vlaneseq
        %v990 = vshrl.u32 %v989, 7
        %v991 = vsub.s32 %v933, %v990
        %v992 = vrot.slane %v771, %v991
        %v993 = vsel %vm938, %v992, %v988
        %v994 = vlaneseq
        %v995 = vshrl.u32 %v994, 7
        %v996 = vsub.s32 %v928, %v995
        %v997 = vrot.slane %v772, %v996
        %v998 = vlaneseq
        %v999 = vshrl.u32 %v998, 7
        %v1000 = vsub.s32 %v933, %v999
        %v1001 = vrot.slane %v773, %v1000
        %v1002 = vsel %vm938, %v1001, %v997
        %v1003 = vlaneseq
        %v1004 = vshrl.u32 %v1003, 7
        %v1005 = vsub.s32 %v928, %v1004
        %v1006 = vrot.slane %v774, %v1005
        %v1007 = vlaneseq
        %v1008 = vshrl.u32 %v1007, 7
        %v1009 = vsub.s32 %v933, %v1008
        %v1010 = vrot.slane %v775, %v1009
        %v1011 = vsel %vm938, %v1010, %v1006
        %v1012 = vlaneseq
        %v1013 = vshrl.u32 %v1012, 7
        %v1014 = vsub.s32 %v928, %v1013
        %v1015 = vrot.slane %v776, %v1014
        %v1016 = vlaneseq
        %v1017 = vshrl.u32 %v1016, 7
        %v1018 = vsub.s32 %v933, %v1017
        %v1019 = vrot.slane %v777, %v1018
        %v1020 = vsel %vm938, %v1019, %v1015
        %v1021 = vlaneseq
        %v1022 = vshrl.u32 %v1021, 7
        %v1023 = vsub.s32 %v928, %v1022
        %v1024 = vrot.slane %v778, %v1023
        %v1025 = vlaneseq
        %v1026 = vshrl.u32 %v1025, 7
        %v1027 = vsub.s32 %v933, %v1026
        %v1028 = vrot.slane %v779, %v1027
        %v1029 = vsel %vm938, %v1028, %v1024
        %v1030 = vlaneseq
        %v1031 = vshrl.u32 %v1030, 7
        %v1032 = vsub.s32 %v928, %v1031
        %v1033 = vrot.slane %v780, %v1032
        %v1034 = vlaneseq
        %v1035 = vshrl.u32 %v1034, 7
        %v1036 = vsub.s32 %v933, %v1035
        %v1037 = vrot.slane %v781, %v1036
        %v1038 = vsel %vm938, %v1037, %v1033
        %v1039 = vlaneseq
        %v1040 = vshrl.u32 %v1039, 7
        %v1041 = vsub.s32 %v928, %v1040
        %v1042 = vrot.slane %v782, %v1041
        %v1043 = vlaneseq
        %v1044 = vshrl.u32 %v1043, 7
        %v1045 = vsub.s32 %v933, %v1044
        %v1046 = vrot.slane %v783, %v1045
        %v1047 = vsel %vm938, %v1046, %v1042
        %v1048 = vlaneseq
        %v1049 = vshrl.u32 %v1048, 7
        %v1050 = vsub.s32 %v928, %v1049
        %v1051 = vrot.slane %v784, %v1050
        %v1052 = vlaneseq
        %v1053 = vshrl.u32 %v1052, 7
        %v1054 = vsub.s32 %v933, %v1053
        %v1055 = vrot.slane %v785, %v1054
        %v1056 = vsel %vm938, %v1055, %v1051
        %v1057 = vlaneseq
        %v1058 = vshrl.u32 %v1057, 7
        %v1059 = vsub.s32 %v928, %v1058
        %v1060 = vrot.slane %v786, %v1059
        %v1061 = vlaneseq
        %v1062 = vshrl.u32 %v1061, 7
        %v1063 = vsub.s32 %v933, %v1062
        %v1064 = vrot.slane %v787, %v1063
        %v1065 = vsel %vm938, %v1064, %v1060
        %v1066 = vlaneseq
        %v1067 = vshrl.u32 %v1066, 7
        %v1068 = vsub.s32 %v928, %v1067
        %v1069 = vrot.slane %v788, %v1068
        %v1070 = vlaneseq
        %v1071 = vshrl.u32 %v1070, 7
        %v1072 = vsub.s32 %v933, %v1071
        %v1073 = vrot.slane %v789, %v1072
        %v1074 = vsel %vm938, %v1073, %v1069
        %vm1075 = vcmask 1041409
        %v1076 = vsel %vm1075, %v948, %v939
        %vm1077 = vcmask 1042434
        %v1078 = vsel %vm1077, %v957, %v1076
        %vm1079 = vcmask 1043459
        %v1080 = vsel %vm1079, %v966, %v1078
        %vm1081 = vcmask 1044484
        %v1082 = vsel %vm1081, %v975, %v1080
        %vm1083 = vcmask 1045509
        %v1084 = vsel %vm1083, %v984, %v1082
        %vm1085 = vcmask 1046534
        %v1086 = vsel %vm1085, %v993, %v1084
        %vm1087 = vcmask 1047559
        %v1088 = vsel %vm1087, %v1002, %v1086
        %v1089 = vsel %vm1075, %v1020, %v1011
        %v1090 = vsel %vm1077, %v1029, %v1089
        %v1091 = vsel %vm1079, %v1038, %v1090
        %v1092 = vsel %vm1081, %v1047, %v1091
        %v1093 = vsel %vm1083, %v1056, %v1092
        %v1094 = vsel %vm1085, %v1065, %v1093
        %v1095 = vsel %vm1087, %v1074, %v1094
        %vm1098 = vcmask 154648
        %1099 = vst.msk [vmem:[#allocation2 + $0x3] sm:$0xff] %vm1098, %v1088
        %1100 = vst.msk [vmem:[#allocation2 + $0xb] sm:$0xff] %vm1098, %v1095
        %v1133 = vlaneseq
        %v1134 = vshrl.u32 %v1133, 7
        %v1135 = vsub.s32 %v928, %v1134
        %v1136 = vrot.slane %v792, %v1135
        %v1137 = vlaneseq
        %v1138 = vshrl.u32 %v1137, 7
        %v1139 = vsub.s32 %v933, %v1138
        %v1140 = vrot.slane %v795, %v1139
        %v1141 = vsel %vm938, %v1140, %v1136
        %v1142 = vlaneseq
        %v1143 = vshrl.u32 %v1142, 7
        %v1144 = vsub.s32 %v928, %v1143
        %v1145 = vrot.slane %v798, %v1144
        %v1146 = vlaneseq
        %v1147 = vshrl.u32 %v1146, 7
        %v1148 = vsub.s32 %v933, %v1147
        %v1149 = vrot.slane %v801, %v1148
        %v1150 = vsel %vm938, %v1149, %v1145
        %v1151 = vlaneseq
        %v1152 = vshrl.u32 %v1151, 7
        %v1153 = vsub.s32 %v928, %v1152
        %v1154 = vrot.slane %v804, %v1153
        %v1155 = vlaneseq
        %v1156 = vshrl.u32 %v1155, 7
        %v1157 = vsub.s32 %v933, %v1156
        %v1158 = vrot.slane %v807, %v1157
        %v1159 = vsel %vm938, %v1158, %v1154
        %v1160 = vlaneseq
        %v1161 = vshrl.u32 %v1160, 7
        %v1162 = vsub.s32 %v928, %v1161
        %v1163 = vrot.slane %v810, %v1162
        %v1164 = vlaneseq
        %v1165 = vshrl.u32 %v1164, 7
        %v1166 = vsub.s32 %v933, %v1165
        %v1167 = vrot.slane %v813, %v1166
        %v1168 = vsel %vm938, %v1167, %v1163
        %v1169 = vlaneseq
        %v1170 = vshrl.u32 %v1169, 7
        %v1171 = vsub.s32 %v928, %v1170
        %v1172 = vrot.slane %v816, %v1171
        %v1173 = vlaneseq
        %v1174 = vshrl.u32 %v1173, 7
        %v1175 = vsub.s32 %v933, %v1174
        %v1176 = vrot.slane %v819, %v1175
        %v1177 = vsel %vm938, %v1176, %v1172
        %v1178 = vlaneseq
        %v1179 = vshrl.u32 %v1178, 7
        %v1180 = vsub.s32 %v928, %v1179
        %v1181 = vrot.slane %v822, %v1180
        %v1182 = vlaneseq
        %v1183 = vshrl.u32 %v1182, 7
        %v1184 = vsub.s32 %v933, %v1183
        %v1185 = vrot.slane %v825, %v1184
        %v1186 = vsel %vm938, %v1185, %v1181
        %v1187 = vlaneseq
        %v1188 = vshrl.u32 %v1187, 7
        %v1189 = vsub.s32 %v928, %v1188
        %v1190 = vrot.slane %v828, %v1189
        %v1191 = vlaneseq
        %v1192 = vshrl.u32 %v1191, 7
        %v1193 = vsub.s32 %v933, %v1192
        %v1194 = vrot.slane %v831, %v1193
        %v1195 = vsel %vm938, %v1194, %v1190
        %v1196 = vlaneseq
        %v1197 = vshrl.u32 %v1196, 7
        %v1198 = vsub.s32 %v928, %v1197
        %v1199 = vrot.slane %v834, %v1198
        %v1200 = vlaneseq
        %v1201 = vshrl.u32 %v1200, 7
        %v1202 = vsub.s32 %v933, %v1201
        %v1203 = vrot.slane %v837, %v1202
        %v1204 = vsel %vm938, %v1203, %v1199
        %v1205 = vlaneseq
        %v1206 = vshrl.u32 %v1205, 7
        %v1207 = vsub.s32 %v928, %v1206
        %v1208 = vrot.slane %v840, %v1207
        %v1209 = vlaneseq
        %v1210 = vshrl.u32 %v1209, 7
        %v1211 = vsub.s32 %v933, %v1210
        %v1212 = vrot.slane %v843, %v1211
        %v1213 = vsel %vm938, %v1212, %v1208
        %v1214 = vlaneseq
        %v1215 = vshrl.u32 %v1214, 7
        %v1216 = vsub.s32 %v928, %v1215
        %v1217 = vrot.slane %v846, %v1216
        %v1218 = vlaneseq
        %v1219 = vshrl.u32 %v1218, 7
        %v1220 = vsub.s32 %v933, %v1219
        %v1221 = vrot.slane %v849, %v1220
        %v1222 = vsel %vm938, %v1221, %v1217
        %v1223 = vlaneseq
        %v1224 = vshrl.u32 %v1223, 7
        %v1225 = vsub.s32 %v928, %v1224
        %v1226 = vrot.slane %v852, %v1225
        %v1227 = vlaneseq
        %v1228 = vshrl.u32 %v1227, 7
        %v1229 = vsub.s32 %v933, %v1228
        %v1230 = vrot.slane %v855, %v1229
        %v1231 = vsel %vm938, %v1230, %v1226
        %v1232 = vlaneseq
        %v1233 = vshrl.u32 %v1232, 7
        %v1234 = vsub.s32 %v928, %v1233
        %v1235 = vrot.slane %v858, %v1234
        %v1236 = vlaneseq
        %v1237 = vshrl.u32 %v1236, 7
        %v1238 = vsub.s32 %v933, %v1237
        %v1239 = vrot.slane %v861, %v1238
        %v1240 = vsel %vm938, %v1239, %v1235
        %v1241 = vlaneseq
        %v1242 = vshrl.u32 %v1241, 7
        %v1243 = vsub.s32 %v928, %v1242
        %v1244 = vrot.slane %v864, %v1243
        %v1245 = vlaneseq
        %v1246 = vshrl.u32 %v1245, 7
        %v1247 = vsub.s32 %v933, %v1246
        %v1248 = vrot.slane %v867, %v1247
        %v1249 = vsel %vm938, %v1248, %v1244
        %v1250 = vlaneseq
        %v1251 = vshrl.u32 %v1250, 7
        %v1252 = vsub.s32 %v928, %v1251
        %v1253 = vrot.slane %v870, %v1252
        %v1254 = vlaneseq
        %v1255 = vshrl.u32 %v1254, 7
        %v1256 = vsub.s32 %v933, %v1255
        %v1257 = vrot.slane %v873, %v1256
        %v1258 = vsel %vm938, %v1257, %v1253
        %v1259 = vlaneseq
        %v1260 = vshrl.u32 %v1259, 7
        %v1261 = vsub.s32 %v928, %v1260
        %v1262 = vrot.slane %v876, %v1261
        %v1263 = vlaneseq
        %v1264 = vshrl.u32 %v1263, 7
        %v1265 = vsub.s32 %v933, %v1264
        %v1266 = vrot.slane %v879, %v1265
        %v1267 = vsel %vm938, %v1266, %v1262
        %v1268 = vlaneseq
        %v1269 = vshrl.u32 %v1268, 7
        %v1270 = vsub.s32 %v928, %v1269
        %v1271 = vrot.slane %v882, %v1270
        %v1272 = vlaneseq
        %v1273 = vshrl.u32 %v1272, 7
        %v1274 = vsub.s32 %v933, %v1273
        %v1275 = vrot.slane %v885, %v1274
        %v1276 = vsel %vm938, %v1275, %v1271
        %v1277 = vsel %vm1075, %v1150, %v1141
        %v1278 = vsel %vm1077, %v1159, %v1277
        %v1279 = vsel %vm1079, %v1168, %v1278
        %v1280 = vsel %vm1081, %v1177, %v1279
        %v1281 = vsel %vm1083, %v1186, %v1280
        %v1282 = vsel %vm1085, %v1195, %v1281
        %v1283 = vsel %vm1087, %v1204, %v1282
        %v1284 = vsel %vm1075, %v1222, %v1213
        %v1285 = vsel %vm1077, %v1231, %v1284
        %v1286 = vsel %vm1079, %v1240, %v1285
        %v1287 = vsel %vm1081, %v1249, %v1286
        %v1288 = vsel %vm1083, %v1258, %v1287
        %v1289 = vsel %vm1085, %v1267, %v1288
        %v1290 = vsel %vm1087, %v1276, %v1289
        %s1293 = scalar_lea.vmem [#allocation2], 24
        %1294 = vst.msk [vmem:[%s1293 + $0x3] sm:$0xff] %vm1098, %v1283
        %1295 = vst.msk [vmem:[%s1293 + $0xb] sm:$0xff] %vm1098, %v1290
        %s1296 = sld [smem:[#allocation3]]
        %v1297 = vld [vmem:[#allocation2] sm:$0xff]
        %v1298 = vld [vmem:[#allocation2 + $0x8] sm:$0xff]
        %v1299 = vstv %s1296
        %v1300 = vmul.f32 %v1299, %v1297
        %v1301 = vmul.f32 %v1299, %v1298
        %v1302 = vadd.f32 %v1300, 0.0
        %v1303 = vadd.f32 %v1301, 0.0
        %s1304 = sld [smem:[#allocation3 + $0x1]]
        %v1305 = vstv %s1304
        %v1306 = vmul.f32 %v1305, %v1297
        %v1307 = vmul.f32 %v1305, %v1298
        %1310 = vrot.lane.b32.xlu0 %v1306, 127
        %v1311 = vpop.permute.xlu0 %1310
        %1312 = vrot.lane.b32.xlu0 %v1307, 127
        %v1313 = vpop.permute.xlu0 %1312
        %v1316 = vadd.f32 %v1302, %v1311
        %v1317 = vadd.f32 %v1303, %v1313
        %s1318 = sld [smem:[#allocation3 + $0x2]]
        %v1319 = vstv %s1318
        %v1320 = vmul.f32 %v1319, %v1297
        %v1321 = vmul.f32 %v1319, %v1298
        %1324 = vrot.lane.b32.xlu0 %v1320, 126
        %v1325 = vpop.permute.xlu0 %1324
        %1326 = vrot.lane.b32.xlu0 %v1321, 126
        %v1327 = vpop.permute.xlu0 %1326
        %v1330 = vadd.f32 %v1316, %v1325
        %v1331 = vadd.f32 %v1317, %v1327
        %s1332 = sld [smem:[#allocation3 + $0x3]]
        %v1333 = vstv %s1332
        %v1334 = vmul.f32 %v1333, %v1297
        %v1335 = vmul.f32 %v1333, %v1298
        %1338 = vrot.lane.b32.xlu0 %v1334, 125
        %v1339 = vpop.permute.xlu0 %1338
        %1340 = vrot.lane.b32.xlu0 %v1335, 125
        %v1341 = vpop.permute.xlu0 %1340
        %v1344 = vadd.f32 %v1330, %v1339
        %v1345 = vadd.f32 %v1331, %v1341
        %s1346 = sld [smem:[#allocation3 + $0x4]]
        %v1347 = vstv %s1346
        %v1348 = vmul.f32 %v1347, %v1297
        %v1349 = vmul.f32 %v1347, %v1298
        %1352 = vrot.lane.b32.xlu0 %v1348, 124
        %v1353 = vpop.permute.xlu0 %1352
        %1354 = vrot.lane.b32.xlu0 %v1349, 124
        %v1355 = vpop.permute.xlu0 %1354
        %v1358 = vadd.f32 %v1344, %v1353
        %v1359 = vadd.f32 %v1345, %v1355
        %s1360 = sld [smem:[#allocation3 + $0x5]]
        %v1361 = vstv %s1360
        %v1362 = vmul.f32 %v1361, %v1297
        %v1363 = vmul.f32 %v1361, %v1298
        %1366 = vrot.lane.b32.xlu0 %v1362, 123
        %v1367 = vpop.permute.xlu0 %1366
        %1368 = vrot.lane.b32.xlu0 %v1363, 123
        %v1369 = vpop.permute.xlu0 %1368
        %v1372 = vadd.f32 %v1358, %v1367
        %v1373 = vadd.f32 %v1359, %v1369
        %s1374 = sld [smem:[#allocation3 + $0x6]]
        %v1375 = vstv %s1374
        %v1376 = vmul.f32 %v1375, %v1297
        %v1377 = vmul.f32 %v1375, %v1298
        %1380 = vrot.lane.b32.xlu0 %v1376, 122
        %v1381 = vpop.permute.xlu0 %1380
        %1382 = vrot.lane.b32.xlu0 %v1377, 122
        %v1383 = vpop.permute.xlu0 %1382
        %v1386 = vadd.f32 %v1372, %v1381
        %v1387 = vadd.f32 %v1373, %v1383
        %s1388 = sld [smem:[#allocation3 + $0x7]]
        %v1389 = vld [vmem:[#allocation2 + $0x1] sm:$0xff]
        %v1390 = vld [vmem:[#allocation2 + $0x9] sm:$0xff]
        %v1391 = vstv %s1388
        %v1392 = vmul.f32 %v1391, %v1389
        %v1393 = vmul.f32 %v1391, %v1390
        %v1394 = vadd.f32 %v1386, %v1392
        %v1395 = vadd.f32 %v1387, %v1393
        %s1396 = sld [smem:[#allocation3 + $0x8]]
        %v1397 = vstv %s1396
        %v1398 = vmul.f32 %v1397, %v1389
        %v1399 = vmul.f32 %v1397, %v1390
        %1402 = vrot.lane.b32.xlu0 %v1398, 127
        %v1403 = vpop.permute.xlu0 %1402
        %1404 = vrot.lane.b32.xlu0 %v1399, 127
        %v1405 = vpop.permute.xlu0 %1404
        %v1408 = vadd.f32 %v1394, %v1403
        %v1409 = vadd.f32 %v1395, %v1405
        %s1410 = sld [smem:[#allocation3 + $0x9]]
        %v1411 = vstv %s1410
        %v1412 = vmul.f32 %v1411, %v1389
        %v1413 = vmul.f32 %v1411, %v1390
        %1416 = vrot.lane.b32.xlu0 %v1412, 126
        %v1417 = vpop.permute.xlu0 %1416
        %1418 = vrot.lane.b32.xlu0 %v1413, 126
        %v1419 = vpop.permute.xlu0 %1418
        %v1422 = vadd.f32 %v1408, %v1417
        %v1423 = vadd.f32 %v1409, %v1419
        %s1424 = sld [smem:[#allocation3 + $0xa]]
        %v1425 = vstv %s1424
        %v1426 = vmul.f32 %v1425, %v1389
        %v1427 = vmul.f32 %v1425, %v1390
        %1430 = vrot.lane.b32.xlu0 %v1426, 125
        %v1431 = vpop.permute.xlu0 %1430
        %1432 = vrot.lane.b32.xlu0 %v1427, 125
        %v1433 = vpop.permute.xlu0 %1432
        %v1436 = vadd.f32 %v1422, %v1431
        %v1437 = vadd.f32 %v1423, %v1433
        %s1438 = sld [smem:[#allocation3 + $0xb]]
        %v1439 = vstv %s1438
        %v1440 = vmul.f32 %v1439, %v1389
        %v1441 = vmul.f32 %v1439, %v1390
        %1444 = vrot.lane.b32.xlu0 %v1440, 124
        %v1445 = vpop.permute.xlu0 %1444
        %1446 = vrot.lane.b32.xlu0 %v1441, 124
        %v1447 = vpop.permute.xlu0 %1446
        %v1450 = vadd.f32 %v1436, %v1445
        %v1451 = vadd.f32 %v1437, %v1447
        %s1452 = sld [smem:[#allocation3 + $0xc]]
        %v1453 = vstv %s1452
        %v1454 = vmul.f32 %v1453, %v1389
        %v1455 = vmul.f32 %v1453, %v1390
        %1458 = vrot.lane.b32.xlu0 %v1454, 123
        %v1459 = vpop.permute.xlu0 %1458
        %1460 = vrot.lane.b32.xlu0 %v1455, 123
        %v1461 = vpop.permute.xlu0 %1460
        %v1464 = vadd.f32 %v1450, %v1459
        %v1465 = vadd.f32 %v1451, %v1461
        %s1466 = sld [smem:[#allocation3 + $0xd]]
        %v1467 = vstv %s1466
        %v1468 = vmul.f32 %v1467, %v1389
        %v1469 = vmul.f32 %v1467, %v1390
        %1472 = vrot.lane.b32.xlu0 %v1468, 122
        %v1473 = vpop.permute.xlu0 %1472
        %1474 = vrot.lane.b32.xlu0 %v1469, 122
        %v1475 = vpop.permute.xlu0 %1474
        %v1478 = vadd.f32 %v1464, %v1473
        %v1479 = vadd.f32 %v1465, %v1475
        %s1480 = sld [smem:[#allocation3 + $0xe]]
        %v1481 = vld [vmem:[#allocation2 + $0x2] sm:$0xff]
        %v1482 = vld [vmem:[#allocation2 + $0xa] sm:$0xff]
        %v1483 = vstv %s1480
        %v1484 = vmul.f32 %v1483, %v1481
        %v1485 = vmul.f32 %v1483, %v1482
        %v1486 = vadd.f32 %v1478, %v1484
        %v1487 = vadd.f32 %v1479, %v1485
        %s1488 = sld [smem:[#allocation3 + $0xf]]
        %v1489 = vstv %s1488
        %v1490 = vmul.f32 %v1489, %v1481
        %v1491 = vmul.f32 %v1489, %v1482
        %1494 = vrot.lane.b32.xlu0 %v1490, 127
        %v1495 = vpop.permute.xlu0 %1494
        %1496 = vrot.lane.b32.xlu0 %v1491, 127
        %v1497 = vpop.permute.xlu0 %1496
        %v1500 = vadd.f32 %v1486, %v1495
        %v1501 = vadd.f32 %v1487, %v1497
        %s1502 = sld [smem:[#allocation3 + $0x10]]
        %v1503 = vstv %s1502
        %v1504 = vmul.f32 %v1503, %v1481
        %v1505 = vmul.f32 %v1503, %v1482
        %1508 = vrot.lane.b32.xlu0 %v1504, 126
        %v1509 = vpop.permute.xlu0 %1508
        %1510 = vrot.lane.b32.xlu0 %v1505, 126
        %v1511 = vpop.permute.xlu0 %1510
        %v1514 = vadd.f32 %v1500, %v1509
        %v1515 = vadd.f32 %v1501, %v1511
        %s1516 = sld [smem:[#allocation3 + $0x11]]
        %v1517 = vstv %s1516
        %v1518 = vmul.f32 %v1517, %v1481
        %v1519 = vmul.f32 %v1517, %v1482
        %1522 = vrot.lane.b32.xlu0 %v1518, 125
        %v1523 = vpop.permute.xlu0 %1522
        %1524 = vrot.lane.b32.xlu0 %v1519, 125
        %v1525 = vpop.permute.xlu0 %1524
        %v1528 = vadd.f32 %v1514, %v1523
        %v1529 = vadd.f32 %v1515, %v1525
        %s1530 = sld [smem:[#allocation3 + $0x12]]
        %v1531 = vstv %s1530
        %v1532 = vmul.f32 %v1531, %v1481
        %v1533 = vmul.f32 %v1531, %v1482
        %1536 = vrot.lane.b32.xlu0 %v1532, 124
        %v1537 = vpop.permute.xlu0 %1536
        %1538 = vrot.lane.b32.xlu0 %v1533, 124
        %v1539 = vpop.permute.xlu0 %1538
        %v1542 = vadd.f32 %v1528, %v1537
        %v1543 = vadd.f32 %v1529, %v1539
        %s1544 = sld [smem:[#allocation3 + $0x13]]
        %v1545 = vstv %s1544
        %v1546 = vmul.f32 %v1545, %v1481
        %v1547 = vmul.f32 %v1545, %v1482
        %1550 = vrot.lane.b32.xlu0 %v1546, 123
        %v1551 = vpop.permute.xlu0 %1550
        %1552 = vrot.lane.b32.xlu0 %v1547, 123
        %v1553 = vpop.permute.xlu0 %1552
        %v1556 = vadd.f32 %v1542, %v1551
        %v1557 = vadd.f32 %v1543, %v1553
        %s1558 = sld [smem:[#allocation3 + $0x14]]
        %v1559 = vstv %s1558
        %v1560 = vmul.f32 %v1559, %v1481
        %v1561 = vmul.f32 %v1559, %v1482
        %1564 = vrot.lane.b32.xlu0 %v1560, 122
        %v1565 = vpop.permute.xlu0 %1564
        %1566 = vrot.lane.b32.xlu0 %v1561, 122
        %v1567 = vpop.permute.xlu0 %1566
        %v1570 = vadd.f32 %v1556, %v1565
        %v1571 = vadd.f32 %v1557, %v1567
        %s1572 = sld [smem:[#allocation3 + $0x15]]
        %v1573 = vld [vmem:[#allocation2 + $0x3] sm:$0xff]
        %v1574 = vld [vmem:[#allocation2 + $0xb] sm:$0xff]
        %v1575 = vstv %s1572
        %v1576 = vmul.f32 %v1575, %v1573
        %v1577 = vmul.f32 %v1575, %v1574
        %v1578 = vadd.f32 %v1570, %v1576
        %v1579 = vadd.f32 %v1571, %v1577
        %s1580 = sld [smem:[#allocation3 + $0x16]]
        %v1581 = vstv %s1580
        %v1582 = vmul.f32 %v1581, %v1573
        %v1583 = vmul.f32 %v1581, %v1574
        %1586 = vrot.lane.b32.xlu0 %v1582, 127
        %v1587 = vpop.permute.xlu0 %1586
        %1588 = vrot.lane.b32.xlu0 %v1583, 127
        %v1589 = vpop.permute.xlu0 %1588
        %v1592 = vadd.f32 %v1578, %v1587
        %v1593 = vadd.f32 %v1579, %v1589
        %s1594 = sld [smem:[#allocation3 + $0x17]]
        %v1595 = vstv %s1594
        %v1596 = vmul.f32 %v1595, %v1573
        %v1597 = vmul.f32 %v1595, %v1574
        %1600 = vrot.lane.b32.xlu0 %v1596, 126
        %v1601 = vpop.permute.xlu0 %1600
        %1602 = vrot.lane.b32.xlu0 %v1597, 126
        %v1603 = vpop.permute.xlu0 %1602
        %v1606 = vadd.f32 %v1592, %v1601
        %v1607 = vadd.f32 %v1593, %v1603
        %s1608 = sld [smem:[#allocation3 + $0x18]]
        %v1609 = vstv %s1608
        %v1610 = vmul.f32 %v1609, %v1573
        %v1611 = vmul.f32 %v1609, %v1574
        %1614 = vrot.lane.b32.xlu0 %v1610, 125
        %v1615 = vpop.permute.xlu0 %1614
        %1616 = vrot.lane.b32.xlu0 %v1611, 125
        %v1617 = vpop.permute.xlu0 %1616
        %v1620 = vadd.f32 %v1606, %v1615
        %v1621 = vadd.f32 %v1607, %v1617
        %s1622 = sld [smem:[#allocation3 + $0x19]]
        %v1623 = vstv %s1622
        %v1624 = vmul.f32 %v1623, %v1573
        %v1625 = vmul.f32 %v1623, %v1574
        %1628 = vrot.lane.b32.xlu0 %v1624, 124
        %v1629 = vpop.permute.xlu0 %1628
        %1630 = vrot.lane.b32.xlu0 %v1625, 124
        %v1631 = vpop.permute.xlu0 %1630
        %v1634 = vadd.f32 %v1620, %v1629
        %v1635 = vadd.f32 %v1621, %v1631
        %s1636 = sld [smem:[#allocation3 + $0x1a]]
        %v1637 = vstv %s1636
        %v1638 = vmul.f32 %v1637, %v1573
        %v1639 = vmul.f32 %v1637, %v1574
        %1642 = vrot.lane.b32.xlu0 %v1638, 123
        %v1643 = vpop.permute.xlu0 %1642
        %1644 = vrot.lane.b32.xlu0 %v1639, 123
        %v1645 = vpop.permute.xlu0 %1644
        %v1648 = vadd.f32 %v1634, %v1643
        %v1649 = vadd.f32 %v1635, %v1645
        %s1650 = sld [smem:[#allocation3 + $0x1b]]
        %v1651 = vstv %s1650
        %v1652 = vmul.f32 %v1651, %v1573
        %v1653 = vmul.f32 %v1651, %v1574
        %1656 = vrot.lane.b32.xlu0 %v1652, 122
        %v1657 = vpop.permute.xlu0 %1656
        %1658 = vrot.lane.b32.xlu0 %v1653, 122
        %v1659 = vpop.permute.xlu0 %1658
        %v1662 = vadd.f32 %v1648, %v1657
        %v1663 = vadd.f32 %v1649, %v1659
        %s1664 = sld [smem:[#allocation3 + $0x1c]]
        %v1665 = vld [vmem:[#allocation2 + $0x4] sm:$0xff]
        %v1666 = vld [vmem:[#allocation2 + $0xc] sm:$0xff]
        %v1667 = vstv %s1664
        %v1668 = vmul.f32 %v1667, %v1665
        %v1669 = vmul.f32 %v1667, %v1666
        %v1670 = vadd.f32 %v1662, %v1668
        %v1671 = vadd.f32 %v1663, %v1669
        %s1672 = sld [smem:[#allocation3 + $0x1d]]
        %v1673 = vstv %s1672
        %v1674 = vmul.f32 %v1673, %v1665
        %v1675 = vmul.f32 %v1673, %v1666
        %1678 = vrot.lane.b32.xlu0 %v1674, 127
        %v1679 = vpop.permute.xlu0 %1678
        %1680 = vrot.lane.b32.xlu0 %v1675, 127
        %v1681 = vpop.permute.xlu0 %1680
        %v1684 = vadd.f32 %v1670, %v1679
        %v1685 = vadd.f32 %v1671, %v1681
        %s1686 = sld [smem:[#allocation3 + $0x1e]]
        %v1687 = vstv %s1686
        %v1688 = vmul.f32 %v1687, %v1665
        %v1689 = vmul.f32 %v1687, %v1666
        %1692 = vrot.lane.b32.xlu0 %v1688, 126
        %v1693 = vpop.permute.xlu0 %1692
        %1694 = vrot.lane.b32.xlu0 %v1689, 126
        %v1695 = vpop.permute.xlu0 %1694
        %v1698 = vadd.f32 %v1684, %v1693
        %v1699 = vadd.f32 %v1685, %v1695
        %s1700 = sld [smem:[#allocation3 + $0x1f]]
        %v1701 = vstv %s1700
        %v1702 = vmul.f32 %v1701, %v1665
        %v1703 = vmul.f32 %v1701, %v1666
        %1706 = vrot.lane.b32.xlu0 %v1702, 125
        %v1707 = vpop.permute.xlu0 %1706
        %1708 = vrot.lane.b32.xlu0 %v1703, 125
        %v1709 = vpop.permute.xlu0 %1708
        %v1712 = vadd.f32 %v1698, %v1707
        %v1713 = vadd.f32 %v1699, %v1709
        %s1714 = sld [smem:[#allocation3 + $0x20]]
        %v1715 = vstv %s1714
        %v1716 = vmul.f32 %v1715, %v1665
        %v1717 = vmul.f32 %v1715, %v1666
        %1720 = vrot.lane.b32.xlu0 %v1716, 124
        %v1721 = vpop.permute.xlu0 %1720
        %1722 = vrot.lane.b32.xlu0 %v1717, 124
        %v1723 = vpop.permute.xlu0 %1722
        %v1726 = vadd.f32 %v1712, %v1721
        %v1727 = vadd.f32 %v1713, %v1723
        %s1728 = sld [smem:[#allocation3 + $0x21]]
        %v1729 = vstv %s1728
        %v1730 = vmul.f32 %v1729, %v1665
        %v1731 = vmul.f32 %v1729, %v1666
        %1734 = vrot.lane.b32.xlu0 %v1730, 123
        %v1735 = vpop.permute.xlu0 %1734
        %1736 = vrot.lane.b32.xlu0 %v1731, 123
        %v1737 = vpop.permute.xlu0 %1736
        %v1740 = vadd.f32 %v1726, %v1735
        %v1741 = vadd.f32 %v1727, %v1737
        %s1742 = sld [smem:[#allocation3 + $0x22]]
        %v1743 = vstv %s1742
        %v1744 = vmul.f32 %v1743, %v1665
        %v1745 = vmul.f32 %v1743, %v1666
        %1748 = vrot.lane.b32.xlu0 %v1744, 122
        %v1749 = vpop.permute.xlu0 %1748
        %1750 = vrot.lane.b32.xlu0 %v1745, 122
        %v1751 = vpop.permute.xlu0 %1750
        %v1754 = vadd.f32 %v1740, %v1749
        %v1755 = vadd.f32 %v1741, %v1751
        %s1756 = sld [smem:[#allocation3 + $0x23]]
        %v1757 = vld [vmem:[#allocation2 + $0x5] sm:$0xff]
        %v1758 = vld [vmem:[#allocation2 + $0xd] sm:$0xff]
        %v1759 = vstv %s1756
        %v1760 = vmul.f32 %v1759, %v1757
        %v1761 = vmul.f32 %v1759, %v1758
        %v1762 = vadd.f32 %v1754, %v1760
        %v1763 = vadd.f32 %v1755, %v1761
        %s1764 = sld [smem:[#allocation3 + $0x24]]
        %v1765 = vstv %s1764
        %v1766 = vmul.f32 %v1765, %v1757
        %v1767 = vmul.f32 %v1765, %v1758
        %1770 = vrot.lane.b32.xlu0 %v1766, 127
        %v1771 = vpop.permute.xlu0 %1770
        %1772 = vrot.lane.b32.xlu0 %v1767, 127
        %v1773 = vpop.permute.xlu0 %1772
        %v1776 = vadd.f32 %v1762, %v1771
        %v1777 = vadd.f32 %v1763, %v1773
        %s1778 = sld [smem:[#allocation3 + $0x25]]
        %v1779 = vstv %s1778
        %v1780 = vmul.f32 %v1779, %v1757
        %v1781 = vmul.f32 %v1779, %v1758
        %1784 = vrot.lane.b32.xlu0 %v1780, 126
        %v1785 = vpop.permute.xlu0 %1784
        %1786 = vrot.lane.b32.xlu0 %v1781, 126
        %v1787 = vpop.permute.xlu0 %1786
        %v1790 = vadd.f32 %v1776, %v1785
        %v1791 = vadd.f32 %v1777, %v1787
        %s1792 = sld [smem:[#allocation3 + $0x26]]
        %v1793 = vstv %s1792
        %v1794 = vmul.f32 %v1793, %v1757
        %v1795 = vmul.f32 %v1793, %v1758
        %1798 = vrot.lane.b32.xlu0 %v1794, 125
        %v1799 = vpop.permute.xlu0 %1798
        %1800 = vrot.lane.b32.xlu0 %v1795, 125
        %v1801 = vpop.permute.xlu0 %1800
        %v1804 = vadd.f32 %v1790, %v1799
        %v1805 = vadd.f32 %v1791, %v1801
        %s1806 = sld [smem:[#allocation3 + $0x27]]
        %v1807 = vstv %s1806
        %v1808 = vmul.f32 %v1807, %v1757
        %v1809 = vmul.f32 %v1807, %v1758
        %1812 = vrot.lane.b32.xlu0 %v1808, 124
        %v1813 = vpop.permute.xlu0 %1812
        %1814 = vrot.lane.b32.xlu0 %v1809, 124
        %v1815 = vpop.permute.xlu0 %1814
        %v1818 = vadd.f32 %v1804, %v1813
        %v1819 = vadd.f32 %v1805, %v1815
        %s1820 = sld [smem:[#allocation3 + $0x28]]
        %v1821 = vstv %s1820
        %v1822 = vmul.f32 %v1821, %v1757
        %v1823 = vmul.f32 %v1821, %v1758
        %1826 = vrot.lane.b32.xlu0 %v1822, 123
        %v1827 = vpop.permute.xlu0 %1826
        %1828 = vrot.lane.b32.xlu0 %v1823, 123
        %v1829 = vpop.permute.xlu0 %1828
        %v1832 = vadd.f32 %v1818, %v1827
        %v1833 = vadd.f32 %v1819, %v1829
        %s1834 = sld [smem:[#allocation3 + $0x29]]
        %v1835 = vstv %s1834
        %v1836 = vmul.f32 %v1835, %v1757
        %v1837 = vmul.f32 %v1835, %v1758
        %1840 = vrot.lane.b32.xlu0 %v1836, 122
        %v1841 = vpop.permute.xlu0 %1840
        %1842 = vrot.lane.b32.xlu0 %v1837, 122
        %v1843 = vpop.permute.xlu0 %1842
        %v1846 = vadd.f32 %v1832, %v1841
        %v1847 = vadd.f32 %v1833, %v1843
        %s1848 = sld [smem:[#allocation3 + $0x2a]]
        %v1849 = vld [vmem:[#allocation2 + $0x6] sm:$0xff]
        %v1850 = vld [vmem:[#allocation2 + $0xe] sm:$0xff]
        %v1851 = vstv %s1848
        %v1852 = vmul.f32 %v1851, %v1849
        %v1853 = vmul.f32 %v1851, %v1850
        %v1854 = vadd.f32 %v1846, %v1852
        %v1855 = vadd.f32 %v1847, %v1853
        %s1856 = sld [smem:[#allocation3 + $0x2b]]
        %v1857 = vstv %s1856
        %v1858 = vmul.f32 %v1857, %v1849
        %v1859 = vmul.f32 %v1857, %v1850
        %1862 = vrot.lane.b32.xlu0 %v1858, 127
        %v1863 = vpop.permute.xlu0 %1862
        %1864 = vrot.lane.b32.xlu0 %v1859, 127
        %v1865 = vpop.permute.xlu0 %1864
        %v1868 = vadd.f32 %v1854, %v1863
        %v1869 = vadd.f32 %v1855, %v1865
        %s1870 = sld [smem:[#allocation3 + $0x2c]]
        %v1871 = vstv %s1870
        %v1872 = vmul.f32 %v1871, %v1849
        %v1873 = vmul.f32 %v1871, %v1850
        %1876 = vrot.lane.b32.xlu0 %v1872, 126
        %v1877 = vpop.permute.xlu0 %1876
        %1878 = vrot.lane.b32.xlu0 %v1873, 126
        %v1879 = vpop.permute.xlu0 %1878
        %v1882 = vadd.f32 %v1868, %v1877
        %v1883 = vadd.f32 %v1869, %v1879
        %s1884 = sld [smem:[#allocation3 + $0x2d]]
        %v1885 = vstv %s1884
        %v1886 = vmul.f32 %v1885, %v1849
        %v1887 = vmul.f32 %v1885, %v1850
        %1890 = vrot.lane.b32.xlu0 %v1886, 125
        %v1891 = vpop.permute.xlu0 %1890
        %1892 = vrot.lane.b32.xlu0 %v1887, 125
        %v1893 = vpop.permute.xlu0 %1892
        %v1896 = vadd.f32 %v1882, %v1891
        %v1897 = vadd.f32 %v1883, %v1893
        %s1898 = sld [smem:[#allocation3 + $0x2e]]
        %v1899 = vstv %s1898
        %v1900 = vmul.f32 %v1899, %v1849
        %v1901 = vmul.f32 %v1899, %v1850
        %1904 = vrot.lane.b32.xlu0 %v1900, 124
        %v1905 = vpop.permute.xlu0 %1904
        %1906 = vrot.lane.b32.xlu0 %v1901, 124
        %v1907 = vpop.permute.xlu0 %1906
        %v1910 = vadd.f32 %v1896, %v1905
        %v1911 = vadd.f32 %v1897, %v1907
        %s1912 = sld [smem:[#allocation3 + $0x2f]]
        %v1913 = vstv %s1912
        %v1914 = vmul.f32 %v1913, %v1849
        %v1915 = vmul.f32 %v1913, %v1850
        %1918 = vrot.lane.b32.xlu0 %v1914, 123
        %v1919 = vpop.permute.xlu0 %1918
        %1920 = vrot.lane.b32.xlu0 %v1915, 123
        %v1921 = vpop.permute.xlu0 %1920
        %v1924 = vadd.f32 %v1910, %v1919
        %v1925 = vadd.f32 %v1911, %v1921
        %s1926 = sld [smem:[#allocation3 + $0x30]]
        %v1927 = vstv %s1926
        %v1928 = vmul.f32 %v1927, %v1849
        %v1929 = vmul.f32 %v1927, %v1850
        %1932 = vrot.lane.b32.xlu0 %v1928, 122
        %v1933 = vpop.permute.xlu0 %1932
        %1934 = vrot.lane.b32.xlu0 %v1929, 122
        %v1935 = vpop.permute.xlu0 %1934
        %v1938 = vadd.f32 %v1924, %v1933
        %v1939 = vadd.f32 %v1925, %v1935
        %s1940 = sld [smem:[#allocation3 + $0x31]]
        %v1941 = vld [vmem:[%s1293] sm:$0xff]
        %v1942 = vld [vmem:[%s1293 + $0x8] sm:$0xff]
        %v1943 = vstv %s1940
        %v1944 = vmul.f32 %v1943, %v1941
        %v1945 = vmul.f32 %v1943, %v1942
        %v1946 = vadd.f32 %v1938, %v1944
        %v1947 = vadd.f32 %v1939, %v1945
        %s1948 = sld [smem:[#allocation3 + $0x32]]
        %v1949 = vstv %s1948
        %v1950 = vmul.f32 %v1949, %v1941
        %v1951 = vmul.f32 %v1949, %v1942
        %1954 = vrot.lane.b32.xlu0 %v1950, 127
        %v1955 = vpop.permute.xlu0 %1954
        %1956 = vrot.lane.b32.xlu0 %v1951, 127
        %v1957 = vpop.permute.xlu0 %1956
        %v1960 = vadd.f32 %v1946, %v1955
        %v1961 = vadd.f32 %v1947, %v1957
        %s1962 = sld [smem:[#allocation3 + $0x33]]
        %v1963 = vstv %s1962
        %v1964 = vmul.f32 %v1963, %v1941
        %v1965 = vmul.f32 %v1963, %v1942
        %1968 = vrot.lane.b32.xlu0 %v1964, 126
        %v1969 = vpop.permute.xlu0 %1968
        %1970 = vrot.lane.b32.xlu0 %v1965, 126
        %v1971 = vpop.permute.xlu0 %1970
        %v1974 = vadd.f32 %v1960, %v1969
        %v1975 = vadd.f32 %v1961, %v1971
        %s1976 = sld [smem:[#allocation3 + $0x34]]
        %v1977 = vstv %s1976
        %v1978 = vmul.f32 %v1977, %v1941
        %v1979 = vmul.f32 %v1977, %v1942
        %1982 = vrot.lane.b32.xlu0 %v1978, 125
        %v1983 = vpop.permute.xlu0 %1982
        %1984 = vrot.lane.b32.xlu0 %v1979, 125
        %v1985 = vpop.permute.xlu0 %1984
        %v1988 = vadd.f32 %v1974, %v1983
        %v1989 = vadd.f32 %v1975, %v1985
        %s1990 = sld [smem:[#allocation3 + $0x35]]
        %v1991 = vstv %s1990
        %v1992 = vmul.f32 %v1991, %v1941
        %v1993 = vmul.f32 %v1991, %v1942
        %1996 = vrot.lane.b32.xlu0 %v1992, 124
        %v1997 = vpop.permute.xlu0 %1996
        %1998 = vrot.lane.b32.xlu0 %v1993, 124
        %v1999 = vpop.permute.xlu0 %1998
        %v2002 = vadd.f32 %v1988, %v1997
        %v2003 = vadd.f32 %v1989, %v1999
        %s2004 = sld [smem:[#allocation3 + $0x36]]
        %v2005 = vstv %s2004
        %v2006 = vmul.f32 %v2005, %v1941
        %v2007 = vmul.f32 %v2005, %v1942
        %2010 = vrot.lane.b32.xlu0 %v2006, 123
        %v2011 = vpop.permute.xlu0 %2010
        %2012 = vrot.lane.b32.xlu0 %v2007, 123
        %v2013 = vpop.permute.xlu0 %2012
        %v2016 = vadd.f32 %v2002, %v2011
        %v2017 = vadd.f32 %v2003, %v2013
        %s2018 = sld [smem:[#allocation3 + $0x37]]
        %v2019 = vstv %s2018
        %v2020 = vmul.f32 %v2019, %v1941
        %v2021 = vmul.f32 %v2019, %v1942
        %2024 = vrot.lane.b32.xlu0 %v2020, 122
        %v2025 = vpop.permute.xlu0 %2024
        %2026 = vrot.lane.b32.xlu0 %v2021, 122
        %v2027 = vpop.permute.xlu0 %2026
        %v2030 = vadd.f32 %v2016, %v2025
        %v2031 = vadd.f32 %v2017, %v2027
        %s2032 = sld [smem:[#allocation3 + $0x38]]
        %v2033 = vld [vmem:[%s1293 + $0x1] sm:$0xff]
        %v2034 = vld [vmem:[%s1293 + $0x9] sm:$0xff]
        %v2035 = vstv %s2032
        %v2036 = vmul.f32 %v2035, %v2033
        %v2037 = vmul.f32 %v2035, %v2034
        %v2038 = vadd.f32 %v2030, %v2036
        %v2039 = vadd.f32 %v2031, %v2037
        %s2040 = sld [smem:[#allocation3 + $0x39]]
        %v2041 = vstv %s2040
        %v2042 = vmul.f32 %v2041, %v2033
        %v2043 = vmul.f32 %v2041, %v2034
        %2046 = vrot.lane.b32.xlu0 %v2042, 127
        %v2047 = vpop.permute.xlu0 %2046
        %2048 = vrot.lane.b32.xlu0 %v2043, 127
        %v2049 = vpop.permute.xlu0 %2048
        %v2052 = vadd.f32 %v2038, %v2047
        %v2053 = vadd.f32 %v2039, %v2049
        %s2054 = sld [smem:[#allocation3 + $0x3a]]
        %v2055 = vstv %s2054
        %v2056 = vmul.f32 %v2055, %v2033
        %v2057 = vmul.f32 %v2055, %v2034
        %2060 = vrot.lane.b32.xlu0 %v2056, 126
        %v2061 = vpop.permute.xlu0 %2060
        %2062 = vrot.lane.b32.xlu0 %v2057, 126
        %v2063 = vpop.permute.xlu0 %2062
        %v2066 = vadd.f32 %v2052, %v2061
        %v2067 = vadd.f32 %v2053, %v2063
        %s2068 = sld [smem:[#allocation3 + $0x3b]]
        %v2069 = vstv %s2068
        %v2070 = vmul.f32 %v2069, %v2033
        %v2071 = vmul.f32 %v2069, %v2034
        %2074 = vrot.lane.b32.xlu0 %v2070, 125
        %v2075 = vpop.permute.xlu0 %2074
        %2076 = vrot.lane.b32.xlu0 %v2071, 125
        %v2077 = vpop.permute.xlu0 %2076
        %v2080 = vadd.f32 %v2066, %v2075
        %v2081 = vadd.f32 %v2067, %v2077
        %s2082 = sld [smem:[#allocation3 + $0x3c]]
        %v2083 = vstv %s2082
        %v2084 = vmul.f32 %v2083, %v2033
        %v2085 = vmul.f32 %v2083, %v2034
        %2088 = vrot.lane.b32.xlu0 %v2084, 124
        %v2089 = vpop.permute.xlu0 %2088
        %2090 = vrot.lane.b32.xlu0 %v2085, 124
        %v2091 = vpop.permute.xlu0 %2090
        %v2094 = vadd.f32 %v2080, %v2089
        %v2095 = vadd.f32 %v2081, %v2091
        %s2096 = sld [smem:[#allocation3 + $0x3d]]
        %v2097 = vstv %s2096
        %v2098 = vmul.f32 %v2097, %v2033
        %v2099 = vmul.f32 %v2097, %v2034
        %2102 = vrot.lane.b32.xlu0 %v2098, 123
        %v2103 = vpop.permute.xlu0 %2102
        %2104 = vrot.lane.b32.xlu0 %v2099, 123
        %v2105 = vpop.permute.xlu0 %2104
        %v2108 = vadd.f32 %v2094, %v2103
        %v2109 = vadd.f32 %v2095, %v2105
        %s2110 = sld [smem:[#allocation3 + $0x3e]]
        %v2111 = vstv %s2110
        %v2112 = vmul.f32 %v2111, %v2033
        %v2113 = vmul.f32 %v2111, %v2034
        %2116 = vrot.lane.b32.xlu0 %v2112, 122
        %v2117 = vpop.permute.xlu0 %2116
        %2118 = vrot.lane.b32.xlu0 %v2113, 122
        %v2119 = vpop.permute.xlu0 %2118
        %v2122 = vadd.f32 %v2108, %v2117
        %v2123 = vadd.f32 %v2109, %v2119
        %s2124 = sld [smem:[#allocation3 + $0x3f]]
        %v2125 = vld [vmem:[%s1293 + $0x2] sm:$0xff]
        %v2126 = vld [vmem:[%s1293 + $0xa] sm:$0xff]
        %v2127 = vstv %s2124
        %v2128 = vmul.f32 %v2127, %v2125
        %v2129 = vmul.f32 %v2127, %v2126
        %v2130 = vadd.f32 %v2122, %v2128
        %v2131 = vadd.f32 %v2123, %v2129
        %s2132 = sld [smem:[#allocation3 + $0x40]]
        %v2133 = vstv %s2132
        %v2134 = vmul.f32 %v2133, %v2125
        %v2135 = vmul.f32 %v2133, %v2126
        %2138 = vrot.lane.b32.xlu0 %v2134, 127
        %v2139 = vpop.permute.xlu0 %2138
        %2140 = vrot.lane.b32.xlu0 %v2135, 127
        %v2141 = vpop.permute.xlu0 %2140
        %v2144 = vadd.f32 %v2130, %v2139
        %v2145 = vadd.f32 %v2131, %v2141
        %s2146 = sld [smem:[#allocation3 + $0x41]]
        %v2147 = vstv %s2146
        %v2148 = vmul.f32 %v2147, %v2125
        %v2149 = vmul.f32 %v2147, %v2126
        %2152 = vrot.lane.b32.xlu0 %v2148, 126
        %v2153 = vpop.permute.xlu0 %2152
        %2154 = vrot.lane.b32.xlu0 %v2149, 126
        %v2155 = vpop.permute.xlu0 %2154
        %v2158 = vadd.f32 %v2144, %v2153
        %v2159 = vadd.f32 %v2145, %v2155
        %s2160 = sld [smem:[#allocation3 + $0x42]]
        %v2161 = vstv %s2160
        %v2162 = vmul.f32 %v2161, %v2125
        %v2163 = vmul.f32 %v2161, %v2126
        %2166 = vrot.lane.b32.xlu0 %v2162, 125
        %v2167 = vpop.permute.xlu0 %2166
        %2168 = vrot.lane.b32.xlu0 %v2163, 125
        %v2169 = vpop.permute.xlu0 %2168
        %v2172 = vadd.f32 %v2158, %v2167
        %v2173 = vadd.f32 %v2159, %v2169
        %s2174 = sld [smem:[#allocation3 + $0x43]]
        %v2175 = vstv %s2174
        %v2176 = vmul.f32 %v2175, %v2125
        %v2177 = vmul.f32 %v2175, %v2126
        %2180 = vrot.lane.b32.xlu0 %v2176, 124
        %v2181 = vpop.permute.xlu0 %2180
        %2182 = vrot.lane.b32.xlu0 %v2177, 124
        %v2183 = vpop.permute.xlu0 %2182
        %v2186 = vadd.f32 %v2172, %v2181
        %v2187 = vadd.f32 %v2173, %v2183
        %s2188 = sld [smem:[#allocation3 + $0x44]]
        %v2189 = vstv %s2188
        %v2190 = vmul.f32 %v2189, %v2125
        %v2191 = vmul.f32 %v2189, %v2126
        %2194 = vrot.lane.b32.xlu0 %v2190, 123
        %v2195 = vpop.permute.xlu0 %2194
        %2196 = vrot.lane.b32.xlu0 %v2191, 123
        %v2197 = vpop.permute.xlu0 %2196
        %v2200 = vadd.f32 %v2186, %v2195
        %v2201 = vadd.f32 %v2187, %v2197
        %s2202 = sld [smem:[#allocation3 + $0x45]]
        %v2203 = vstv %s2202
        %v2204 = vmul.f32 %v2203, %v2125
        %v2205 = vmul.f32 %v2203, %v2126
        %2208 = vrot.lane.b32.xlu0 %v2204, 122
        %v2209 = vpop.permute.xlu0 %2208
        %2210 = vrot.lane.b32.xlu0 %v2205, 122
        %v2211 = vpop.permute.xlu0 %2210
        %v2214 = vadd.f32 %v2200, %v2209
        %v2215 = vadd.f32 %v2201, %v2211
        %s2216 = sld [smem:[#allocation3 + $0x46]]
        %v2217 = vld [vmem:[%s1293 + $0x3] sm:$0xff]
        %v2218 = vld [vmem:[%s1293 + $0xb] sm:$0xff]
        %v2219 = vstv %s2216
        %v2220 = vmul.f32 %v2219, %v2217
        %v2221 = vmul.f32 %v2219, %v2218
        %v2222 = vadd.f32 %v2214, %v2220
        %v2223 = vadd.f32 %v2215, %v2221
        %s2224 = sld [smem:[#allocation3 + $0x47]]
        %v2225 = vstv %s2224
        %v2226 = vmul.f32 %v2225, %v2217
        %v2227 = vmul.f32 %v2225, %v2218
        %2230 = vrot.lane.b32.xlu0 %v2226, 127
        %v2231 = vpop.permute.xlu0 %2230
        %2232 = vrot.lane.b32.xlu0 %v2227, 127
        %v2233 = vpop.permute.xlu0 %2232
        %v2236 = vadd.f32 %v2222, %v2231
        %v2237 = vadd.f32 %v2223, %v2233
        %s2238 = sld [smem:[#allocation3 + $0x48]]
        %v2239 = vstv %s2238
        %v2240 = vmul.f32 %v2239, %v2217
        %v2241 = vmul.f32 %v2239, %v2218
        %2244 = vrot.lane.b32.xlu0 %v2240, 126
        %v2245 = vpop.permute.xlu0 %2244
        %2246 = vrot.lane.b32.xlu0 %v2241, 126
        %v2247 = vpop.permute.xlu0 %2246
        %v2250 = vadd.f32 %v2236, %v2245
        %v2251 = vadd.f32 %v2237, %v2247
        %s2252 = sld [smem:[#allocation3 + $0x49]]
        %v2253 = vstv %s2252
        %v2254 = vmul.f32 %v2253, %v2217
        %v2255 = vmul.f32 %v2253, %v2218
        %2258 = vrot.lane.b32.xlu0 %v2254, 125
        %v2259 = vpop.permute.xlu0 %2258
        %2260 = vrot.lane.b32.xlu0 %v2255, 125
        %v2261 = vpop.permute.xlu0 %2260
        %v2264 = vadd.f32 %v2250, %v2259
        %v2265 = vadd.f32 %v2251, %v2261
        %s2266 = sld [smem:[#allocation3 + $0x4a]]
        %v2267 = vstv %s2266
        %v2268 = vmul.f32 %v2267, %v2217
        %v2269 = vmul.f32 %v2267, %v2218
        %2272 = vrot.lane.b32.xlu0 %v2268, 124
        %v2273 = vpop.permute.xlu0 %2272
        %2274 = vrot.lane.b32.xlu0 %v2269, 124
        %v2275 = vpop.permute.xlu0 %2274
        %v2278 = vadd.f32 %v2264, %v2273
        %v2279 = vadd.f32 %v2265, %v2275
        %s2280 = sld [smem:[#allocation3 + $0x4b]]
        %v2281 = vstv %s2280
        %v2282 = vmul.f32 %v2281, %v2217
        %v2283 = vmul.f32 %v2281, %v2218
        %2286 = vrot.lane.b32.xlu0 %v2282, 123
        %v2287 = vpop.permute.xlu0 %2286
        %2288 = vrot.lane.b32.xlu0 %v2283, 123
        %v2289 = vpop.permute.xlu0 %2288
        %v2292 = vadd.f32 %v2278, %v2287
        %v2293 = vadd.f32 %v2279, %v2289
        %s2294 = sld [smem:[#allocation3 + $0x4c]]
        %v2295 = vstv %s2294
        %v2296 = vmul.f32 %v2295, %v2217
        %v2297 = vmul.f32 %v2295, %v2218
        %2300 = vrot.lane.b32.xlu0 %v2296, 122
        %v2301 = vpop.permute.xlu0 %2300
        %2302 = vrot.lane.b32.xlu0 %v2297, 122
        %v2303 = vpop.permute.xlu0 %2302
        %v2306 = vadd.f32 %v2292, %v2301
        %v2307 = vadd.f32 %v2293, %v2303
        %s2308 = sld [smem:[#allocation3 + $0x4d]]
        %v2309 = vld [vmem:[%s1293 + $0x4] sm:$0xff]
        %v2310 = vld [vmem:[%s1293 + $0xc] sm:$0xff]
        %v2311 = vstv %s2308
        %v2312 = vmul.f32 %v2311, %v2309
        %v2313 = vmul.f32 %v2311, %v2310
        %v2314 = vadd.f32 %v2306, %v2312
        %v2315 = vadd.f32 %v2307, %v2313
        %s2316 = sld [smem:[#allocation3 + $0x4e]]
        %v2317 = vstv %s2316
        %v2318 = vmul.f32 %v2317, %v2309
        %v2319 = vmul.f32 %v2317, %v2310
        %2322 = vrot.lane.b32.xlu0 %v2318, 127
        %v2323 = vpop.permute.xlu0 %2322
        %2324 = vrot.lane.b32.xlu0 %v2319, 127
        %v2325 = vpop.permute.xlu0 %2324
        %v2328 = vadd.f32 %v2314, %v2323
        %v2329 = vadd.f32 %v2315, %v2325
        %s2330 = sld [smem:[#allocation3 + $0x4f]]
        %v2331 = vstv %s2330
        %v2332 = vmul.f32 %v2331, %v2309
        %v2333 = vmul.f32 %v2331, %v2310
        %2336 = vrot.lane.b32.xlu0 %v2332, 126
        %v2337 = vpop.permute.xlu0 %2336
        %2338 = vrot.lane.b32.xlu0 %v2333, 126
        %v2339 = vpop.permute.xlu0 %2338
        %v2342 = vadd.f32 %v2328, %v2337
        %v2343 = vadd.f32 %v2329, %v2339
        %s2344 = sld [smem:[#allocation3 + $0x50]]
        %v2345 = vstv %s2344
        %v2346 = vmul.f32 %v2345, %v2309
        %v2347 = vmul.f32 %v2345, %v2310
        %2350 = vrot.lane.b32.xlu0 %v2346, 125
        %v2351 = vpop.permute.xlu0 %2350
        %2352 = vrot.lane.b32.xlu0 %v2347, 125
        %v2353 = vpop.permute.xlu0 %2352
        %v2356 = vadd.f32 %v2342, %v2351
        %v2357 = vadd.f32 %v2343, %v2353
        %s2358 = sld [smem:[#allocation3 + $0x51]]
        %v2359 = vstv %s2358
        %v2360 = vmul.f32 %v2359, %v2309
        %v2361 = vmul.f32 %v2359, %v2310
        %2364 = vrot.lane.b32.xlu0 %v2360, 124
        %v2365 = vpop.permute.xlu0 %2364
        %2366 = vrot.lane.b32.xlu0 %v2361, 124
        %v2367 = vpop.permute.xlu0 %2366
        %v2370 = vadd.f32 %v2356, %v2365
        %v2371 = vadd.f32 %v2357, %v2367
        %s2372 = sld [smem:[#allocation3 + $0x52]]
        %v2373 = vstv %s2372
        %v2374 = vmul.f32 %v2373, %v2309
        %v2375 = vmul.f32 %v2373, %v2310
        %2378 = vrot.lane.b32.xlu0 %v2374, 123
        %v2379 = vpop.permute.xlu0 %2378
        %2380 = vrot.lane.b32.xlu0 %v2375, 123
        %v2381 = vpop.permute.xlu0 %2380
        %v2384 = vadd.f32 %v2370, %v2379
        %v2385 = vadd.f32 %v2371, %v2381
        %s2386 = sld [smem:[#allocation3 + $0x53]]
        %v2387 = vstv %s2386
        %v2388 = vmul.f32 %v2387, %v2309
        %v2389 = vmul.f32 %v2387, %v2310
        %2392 = vrot.lane.b32.xlu0 %v2388, 122
        %v2393 = vpop.permute.xlu0 %2392
        %2394 = vrot.lane.b32.xlu0 %v2389, 122
        %v2395 = vpop.permute.xlu0 %2394
        %v2398 = vadd.f32 %v2384, %v2393
        %v2399 = vadd.f32 %v2385, %v2395
        %s2400 = sld [smem:[#allocation3 + $0x54]]
        %v2401 = vld [vmem:[%s1293 + $0x5] sm:$0xff]
        %v2402 = vld [vmem:[%s1293 + $0xd] sm:$0xff]
        %v2403 = vstv %s2400
        %v2404 = vmul.f32 %v2403, %v2401
        %v2405 = vmul.f32 %v2403, %v2402
        %v2406 = vadd.f32 %v2398, %v2404
        %v2407 = vadd.f32 %v2399, %v2405
        %s2408 = sld [smem:[#allocation3 + $0x55]]
        %v2409 = vstv %s2408
        %v2410 = vmul.f32 %v2409, %v2401
        %v2411 = vmul.f32 %v2409, %v2402
        %2414 = vrot.lane.b32.xlu0 %v2410, 127
        %v2415 = vpop.permute.xlu0 %2414
        %2416 = vrot.lane.b32.xlu0 %v2411, 127
        %v2417 = vpop.permute.xlu0 %2416
        %v2420 = vadd.f32 %v2406, %v2415
        %v2421 = vadd.f32 %v2407, %v2417
        %s2422 = sld [smem:[#allocation3 + $0x56]]
        %v2423 = vstv %s2422
        %v2424 = vmul.f32 %v2423, %v2401
        %v2425 = vmul.f32 %v2423, %v2402
        %2428 = vrot.lane.b32.xlu0 %v2424, 126
        %v2429 = vpop.permute.xlu0 %2428
        %2430 = vrot.lane.b32.xlu0 %v2425, 126
        %v2431 = vpop.permute.xlu0 %2430
        %v2434 = vadd.f32 %v2420, %v2429
        %v2435 = vadd.f32 %v2421, %v2431
        %s2436 = sld [smem:[#allocation3 + $0x57]]
        %v2437 = vstv %s2436
        %v2438 = vmul.f32 %v2437, %v2401
        %v2439 = vmul.f32 %v2437, %v2402
        %2442 = vrot.lane.b32.xlu0 %v2438, 125
        %v2443 = vpop.permute.xlu0 %2442
        %2444 = vrot.lane.b32.xlu0 %v2439, 125
        %v2445 = vpop.permute.xlu0 %2444
        %v2448 = vadd.f32 %v2434, %v2443
        %v2449 = vadd.f32 %v2435, %v2445
        %s2450 = sld [smem:[#allocation3 + $0x58]]
        %v2451 = vstv %s2450
        %v2452 = vmul.f32 %v2451, %v2401
        %v2453 = vmul.f32 %v2451, %v2402
        %2456 = vrot.lane.b32.xlu0 %v2452, 124
        %v2457 = vpop.permute.xlu0 %2456
        %2458 = vrot.lane.b32.xlu0 %v2453, 124
        %v2459 = vpop.permute.xlu0 %2458
        %v2462 = vadd.f32 %v2448, %v2457
        %v2463 = vadd.f32 %v2449, %v2459
        %s2464 = sld [smem:[#allocation3 + $0x59]]
        %v2465 = vstv %s2464
        %v2466 = vmul.f32 %v2465, %v2401
        %v2467 = vmul.f32 %v2465, %v2402
        %2470 = vrot.lane.b32.xlu0 %v2466, 123
        %v2471 = vpop.permute.xlu0 %2470
        %2472 = vrot.lane.b32.xlu0 %v2467, 123
        %v2473 = vpop.permute.xlu0 %2472
        %v2476 = vadd.f32 %v2462, %v2471
        %v2477 = vadd.f32 %v2463, %v2473
        %s2478 = sld [smem:[#allocation3 + $0x5a]]
        %v2479 = vstv %s2478
        %v2480 = vmul.f32 %v2479, %v2401
        %v2481 = vmul.f32 %v2479, %v2402
        %2484 = vrot.lane.b32.xlu0 %v2480, 122
        %v2485 = vpop.permute.xlu0 %2484
        %2486 = vrot.lane.b32.xlu0 %v2481, 122
        %v2487 = vpop.permute.xlu0 %2486
        %v2490 = vadd.f32 %v2476, %v2485
        %v2491 = vadd.f32 %v2477, %v2487
        %s2492 = sld [smem:[#allocation3 + $0x5b]]
        %v2493 = vld [vmem:[%s1293 + $0x6] sm:$0xff]
        %v2494 = vld [vmem:[%s1293 + $0xe] sm:$0xff]
        %v2495 = vstv %s2492
        %v2496 = vmul.f32 %v2495, %v2493
        %v2497 = vmul.f32 %v2495, %v2494
        %v2498 = vadd.f32 %v2490, %v2496
        %v2499 = vadd.f32 %v2491, %v2497
        %s2500 = sld [smem:[#allocation3 + $0x5c]]
        %v2501 = vstv %s2500
        %v2502 = vmul.f32 %v2501, %v2493
        %v2503 = vmul.f32 %v2501, %v2494
        %2506 = vrot.lane.b32.xlu0 %v2502, 127
        %v2507 = vpop.permute.xlu0 %2506
        %2508 = vrot.lane.b32.xlu0 %v2503, 127
        %v2509 = vpop.permute.xlu0 %2508
        %v2512 = vadd.f32 %v2498, %v2507
        %v2513 = vadd.f32 %v2499, %v2509
        %s2514 = sld [smem:[#allocation3 + $0x5d]]
        %v2515 = vstv %s2514
        %v2516 = vmul.f32 %v2515, %v2493
        %v2517 = vmul.f32 %v2515, %v2494
        %2520 = vrot.lane.b32.xlu0 %v2516, 126
        %v2521 = vpop.permute.xlu0 %2520
        %2522 = vrot.lane.b32.xlu0 %v2517, 126
        %v2523 = vpop.permute.xlu0 %2522
        %v2526 = vadd.f32 %v2512, %v2521
        %v2527 = vadd.f32 %v2513, %v2523
        %s2528 = sld [smem:[#allocation3 + $0x5e]]
        %v2529 = vstv %s2528
        %v2530 = vmul.f32 %v2529, %v2493
        %v2531 = vmul.f32 %v2529, %v2494
        %2534 = vrot.lane.b32.xlu0 %v2530, 125
        %v2535 = vpop.permute.xlu0 %2534
        %2536 = vrot.lane.b32.xlu0 %v2531, 125
        %v2537 = vpop.permute.xlu0 %2536
        %v2540 = vadd.f32 %v2526, %v2535
        %v2541 = vadd.f32 %v2527, %v2537
        %s2542 = sld [smem:[#allocation3 + $0x5f]]
        %v2543 = vstv %s2542
        %v2544 = vmul.f32 %v2543, %v2493
        %v2545 = vmul.f32 %v2543, %v2494
        %2548 = vrot.lane.b32.xlu0 %v2544, 124
        %v2549 = vpop.permute.xlu0 %2548
        %2550 = vrot.lane.b32.xlu0 %v2545, 124
        %v2551 = vpop.permute.xlu0 %2550
        %v2554 = vadd.f32 %v2540, %v2549
        %v2555 = vadd.f32 %v2541, %v2551
        %s2556 = sld [smem:[#allocation3 + $0x60]]
        %v2557 = vstv %s2556
        %v2558 = vmul.f32 %v2557, %v2493
        %v2559 = vmul.f32 %v2557, %v2494
        %2562 = vrot.lane.b32.xlu0 %v2558, 123
        %v2563 = vpop.permute.xlu0 %2562
        %2564 = vrot.lane.b32.xlu0 %v2559, 123
        %v2565 = vpop.permute.xlu0 %2564
        %v2568 = vadd.f32 %v2554, %v2563
        %v2569 = vadd.f32 %v2555, %v2565
        %s2570 = sld [smem:[#allocation3 + $0x61]]
        %v2571 = vstv %s2570
        %v2572 = vmul.f32 %v2571, %v2493
        %v2573 = vmul.f32 %v2571, %v2494
        %2576 = vrot.lane.b32.xlu0 %v2572, 122
        %v2577 = vpop.permute.xlu0 %2576
        %2578 = vrot.lane.b32.xlu0 %v2573, 122
        %v2579 = vpop.permute.xlu0 %2578
        %v2582 = vadd.f32 %v2568, %v2577
        %v2583 = vadd.f32 %v2569, %v2579
        %v2584 = vxor.u32 %v2582, 2147483648
        %v2585 = vxor.u32 %v2583, 2147483648
        %v2586 = vmul.f32 %v2584, 1.442695
        %v2587 = vpow.pop %v2586
        %v2588 = vmul.f32 %v2585, 1.442695
        %v2589 = vpow.pop %v2588
        %v2590 = vadd.f32 %v2587, 1.0
        %v2591 = vadd.f32 %v2589, 1.0
        %v2592 = vrcp.pop %v2590
        %v2593 = vmul.f32 1.0, %v2592
        %v2594 = vrcp.pop %v2591
        %v2595 = vmul.f32 1.0, %v2594
        %v2596 = vlaneseq
        %v2597 = vshrl.u32 %v2596, 7
        %v2598 = vsub.s32 0, %v2597
        %v2599 = vrot.slane %v2593, %v2598
        %2601 = vbcast.lane.b32.xlu0 %v2599, 256
        %v2602 = vpop.permute.xlu0 %2601
        %s2604 = sor.u32 256, 8
        %2605 = vbcast.lane.b32.xlu0 %v2599, %s2604
        %v2606 = vpop.permute.xlu0 %2605
        %v2607 = vlaneseq
        %v2608 = vshrl.u32 %v2607, 7
        %v2609 = vsub.s32 1, %v2608
        %v2610 = vrot.slane %v2593, %v2609
        %2612 = vbcast.lane.b32.xlu0 %v2610, 256
        %v2613 = vpop.permute.xlu0 %2612
        %s2615 = sor.u32 256, 8
        %2616 = vbcast.lane.b32.xlu0 %v2610, %s2615
        %v2617 = vpop.permute.xlu0 %2616
        %v2618 = vlaneseq
        %v2619 = vshrl.u32 %v2618, 7
        %v2620 = vsub.s32 2, %v2619
        %v2621 = vrot.slane %v2593, %v2620
        %2623 = vbcast.lane.b32.xlu0 %v2621, 256
        %v2624 = vpop.permute.xlu0 %2623
        %s2626 = sor.u32 256, 8
        %2627 = vbcast.lane.b32.xlu0 %v2621, %s2626
        %v2628 = vpop.permute.xlu0 %2627
        %v2629 = vlaneseq
        %v2630 = vshrl.u32 %v2629, 7
        %v2631 = vsub.s32 3, %v2630
        %v2632 = vrot.slane %v2593, %v2631
        %2634 = vbcast.lane.b32.xlu0 %v2632, 256
        %v2635 = vpop.permute.xlu0 %2634
        %s2637 = sor.u32 256, 8
        %2638 = vbcast.lane.b32.xlu0 %v2632, %s2637
        %v2639 = vpop.permute.xlu0 %2638
        %v2640 = vlaneseq
        %v2641 = vshrl.u32 %v2640, 7
        %v2642 = vsub.s32 4, %v2641
        %v2643 = vrot.slane %v2593, %v2642
        %2645 = vbcast.lane.b32.xlu0 %v2643, 256
        %v2646 = vpop.permute.xlu0 %2645
        %s2648 = sor.u32 256, 8
        %2649 = vbcast.lane.b32.xlu0 %v2643, %s2648
        %v2650 = vpop.permute.xlu0 %2649
        %v2651 = vlaneseq
        %v2652 = vshrl.u32 %v2651, 7
        %v2653 = vsub.s32 5, %v2652
        %v2654 = vrot.slane %v2593, %v2653
        %2656 = vbcast.lane.b32.xlu0 %v2654, 256
        %v2657 = vpop.permute.xlu0 %2656
        %s2659 = sor.u32 256, 8
        %2660 = vbcast.lane.b32.xlu0 %v2654, %s2659
        %v2661 = vpop.permute.xlu0 %2660
        %v2662 = vlaneseq
        %v2663 = vshrl.u32 %v2662, 7
        %v2664 = vsub.s32 6, %v2663
        %v2665 = vrot.slane %v2593, %v2664
        %2667 = vbcast.lane.b32.xlu0 %v2665, 256
        %v2668 = vpop.permute.xlu0 %2667
        %s2670 = sor.u32 256, 8
        %2671 = vbcast.lane.b32.xlu0 %v2665, %s2670
        %v2672 = vpop.permute.xlu0 %2671
        %v2673 = vlaneseq
        %v2674 = vshrl.u32 %v2673, 7
        %v2675 = vsub.s32 7, %v2674
        %v2676 = vrot.slane %v2593, %v2675
        %2678 = vbcast.lane.b32.xlu0 %v2676, 256
        %v2679 = vpop.permute.xlu0 %2678
        %s2681 = sor.u32 256, 8
        %2682 = vbcast.lane.b32.xlu0 %v2676, %s2681
        %v2683 = vpop.permute.xlu0 %2682
        %v2684 = vlaneseq
        %v2685 = vshrl.u32 %v2684, 7
        %v2686 = vsub.s32 0, %v2685
        %v2687 = vrot.slane %v2595, %v2686
        %2689 = vbcast.lane.b32.xlu0 %v2687, 256
        %v2690 = vpop.permute.xlu0 %2689
        %s2692 = sor.u32 256, 8
        %2693 = vbcast.lane.b32.xlu0 %v2687, %s2692
        %v2694 = vpop.permute.xlu0 %2693
        %v2695 = vlaneseq
        %v2696 = vshrl.u32 %v2695, 7
        %v2697 = vsub.s32 1, %v2696
        %v2698 = vrot.slane %v2595, %v2697
        %2700 = vbcast.lane.b32.xlu0 %v2698, 256
        %v2701 = vpop.permute.xlu0 %2700
        %s2703 = sor.u32 256, 8
        %2704 = vbcast.lane.b32.xlu0 %v2698, %s2703
        %v2705 = vpop.permute.xlu0 %2704
        %v2706 = vlaneseq
        %v2707 = vshrl.u32 %v2706, 7
        %v2708 = vsub.s32 2, %v2707
        %v2709 = vrot.slane %v2595, %v2708
        %2711 = vbcast.lane.b32.xlu0 %v2709, 256
        %v2712 = vpop.permute.xlu0 %2711
        %s2714 = sor.u32 256, 8
        %2715 = vbcast.lane.b32.xlu0 %v2709, %s2714
        %v2716 = vpop.permute.xlu0 %2715
        %v2717 = vlaneseq
        %v2718 = vshrl.u32 %v2717, 7
        %v2719 = vsub.s32 3, %v2718
        %v2720 = vrot.slane %v2595, %v2719
        %2722 = vbcast.lane.b32.xlu0 %v2720, 256
        %v2723 = vpop.permute.xlu0 %2722
        %s2725 = sor.u32 256, 8
        %2726 = vbcast.lane.b32.xlu0 %v2720, %s2725
        %v2727 = vpop.permute.xlu0 %2726
        %v2728 = vlaneseq
        %v2729 = vshrl.u32 %v2728, 7
        %v2730 = vsub.s32 4, %v2729
        %v2731 = vrot.slane %v2595, %v2730
        %2733 = vbcast.lane.b32.xlu0 %v2731, 256
        %v2734 = vpop.permute.xlu0 %2733
        %s2736 = sor.u32 256, 8
        %2737 = vbcast.lane.b32.xlu0 %v2731, %s2736
        %v2738 = vpop.permute.xlu0 %2737
        %v2739 = vlaneseq
        %v2740 = vshrl.u32 %v2739, 7
        %v2741 = vsub.s32 5, %v2740
        %v2742 = vrot.slane %v2595, %v2741
        %2744 = vbcast.lane.b32.xlu0 %v2742, 256
        %v2745 = vpop.permute.xlu0 %2744
        %s2747 = sor.u32 256, 8
        %2748 = vbcast.lane.b32.xlu0 %v2742, %s2747
        %v2749 = vpop.permute.xlu0 %2748
        %v2750 = vlaneseq
        %v2751 = vshrl.u32 %v2750, 7
        %v2752 = vsub.s32 6, %v2751
        %v2753 = vrot.slane %v2595, %v2752
        %2755 = vbcast.lane.b32.xlu0 %v2753, 256
        %v2756 = vpop.permute.xlu0 %2755
        %s2758 = sor.u32 256, 8
        %2759 = vbcast.lane.b32.xlu0 %v2753, %s2758
        %v2760 = vpop.permute.xlu0 %2759
        %v2761 = vlaneseq
        %v2762 = vshrl.u32 %v2761, 7
        %v2763 = vsub.s32 7, %v2762
        %v2764 = vrot.slane %v2595, %v2763
        %2766 = vbcast.lane.b32.xlu0 %v2764, 256
        %v2767 = vpop.permute.xlu0 %2766
        %s2769 = sor.u32 256, 8
        %2770 = vbcast.lane.b32.xlu0 %v2764, %s2769
        %v2771 = vpop.permute.xlu0 %2770
        %v2772 = vmul.f32 %v630, %v2602
        %v2773 = vmul.f32 %v631, %v2606
        %v2774 = vmul.f32 %v632, %v2613
        %v2775 = vmul.f32 %v633, %v2617
        %v2776 = vmul.f32 %v634, %v2624
        %v2777 = vmul.f32 %v635, %v2628
        %v2778 = vmul.f32 %v636, %v2635
        %v2779 = vmul.f32 %v637, %v2639
        %v2780 = vmul.f32 %v638, %v2646
        %v2781 = vmul.f32 %v639, %v2650
        %v2782 = vmul.f32 %v640, %v2657
        %v2783 = vmul.f32 %v641, %v2661
        %v2784 = vmul.f32 %v642, %v2668
        %v2785 = vmul.f32 %v643, %v2672
        %v2786 = vmul.f32 %v644, %v2679
        %v2787 = vmul.f32 %v645, %v2683
        %v2788 = vmul.f32 %v646, %v2690
        %v2789 = vmul.f32 %v647, %v2694
        %v2790 = vmul.f32 %v648, %v2701
        %v2791 = vmul.f32 %v649, %v2705
        %v2792 = vmul.f32 %v650, %v2712
        %v2793 = vmul.f32 %v651, %v2716
        %v2794 = vmul.f32 %v652, %v2723
        %v2795 = vmul.f32 %v653, %v2727
        %v2796 = vmul.f32 %v654, %v2734
        %v2797 = vmul.f32 %v655, %v2738
        %v2798 = vmul.f32 %v656, %v2745
        %v2799 = vmul.f32 %v657, %v2749
        %v2800 = vmul.f32 %v658, %v2756
        %v2801 = vmul.f32 %v659, %v2760
        %v2802 = vmul.f32 %v660, %v2767
        %v2803 = vmul.f32 %v661, %v2771
        %v2804 = vld [vmem:[%s307] sm:$0xff]
        %v2805 = vld [vmem:[%s307 + $0x8] sm:$0xff]
        %v2806 = vld [vmem:[%s307 + $0x10] sm:$0xff]
        %v2807 = vld [vmem:[%s307 + $0x18] sm:$0xff]
        %v2808 = vld [vmem:[%s307 + $0x20] sm:$0xff]
        %v2809 = vld [vmem:[%s307 + $0x28] sm:$0xff]
        %v2810 = vld [vmem:[%s307 + $0x30] sm:$0xff]
        %v2811 = vld [vmem:[%s307 + $0x38] sm:$0xff]
        %v2812 = vld [vmem:[%s307 + $0x40] sm:$0xff]
        %v2813 = vld [vmem:[%s307 + $0x48] sm:$0xff]
        %v2814 = vld [vmem:[%s307 + $0x50] sm:$0xff]
        %v2815 = vld [vmem:[%s307 + $0x58] sm:$0xff]
        %v2816 = vld [vmem:[%s307 + $0x60] sm:$0xff]
        %v2817 = vld [vmem:[%s307 + $0x68] sm:$0xff]
        %v2818 = vld [vmem:[%s307 + $0x70] sm:$0xff]
        %v2819 = vld [vmem:[%s307 + $0x78] sm:$0xff]
        %v2820 = vld [vmem:[%s307 + $0x80] sm:$0xff]
        %v2821 = vld [vmem:[%s307 + $0x88] sm:$0xff]
        %v2822 = vld [vmem:[%s307 + $0x90] sm:$0xff]
        %v2823 = vld [vmem:[%s307 + $0x98] sm:$0xff]
        %v2824 = vld [vmem:[%s307 + $0xa0] sm:$0xff]
        %v2825 = vld [vmem:[%s307 + $0xa8] sm:$0xff]
        %v2826 = vld [vmem:[%s307 + $0xb0] sm:$0xff]
        %v2827 = vld [vmem:[%s307 + $0xb8] sm:$0xff]
        %v2828 = vld [vmem:[%s307 + $0xc0] sm:$0xff]
        %v2829 = vld [vmem:[%s307 + $0xc8] sm:$0xff]
        %v2830 = vld [vmem:[%s307 + $0xd0] sm:$0xff]
        %v2831 = vld [vmem:[%s307 + $0xd8] sm:$0xff]
        %v2832 = vld [vmem:[%s307 + $0xe0] sm:$0xff]
        %v2833 = vld [vmem:[%s307 + $0xe8] sm:$0xff]
        %v2834 = vld [vmem:[%s307 + $0xf0] sm:$0xff]
        %v2835 = vld [vmem:[%s307 + $0xf8] sm:$0xff]
        %v2836 = vadd.f32 %v2772, %v2804
        %v2837 = vadd.f32 %v2773, %v2805
        %v2838 = vadd.f32 %v2774, %v2806
        %v2839 = vadd.f32 %v2775, %v2807
        %v2840 = vadd.f32 %v2776, %v2808
        %v2841 = vadd.f32 %v2777, %v2809
        %v2842 = vadd.f32 %v2778, %v2810
        %v2843 = vadd.f32 %v2779, %v2811
        %v2844 = vadd.f32 %v2780, %v2812
        %v2845 = vadd.f32 %v2781, %v2813
        %v2846 = vadd.f32 %v2782, %v2814
        %v2847 = vadd.f32 %v2783, %v2815
        %v2848 = vadd.f32 %v2784, %v2816
        %v2849 = vadd.f32 %v2785, %v2817
        %v2850 = vadd.f32 %v2786, %v2818
        %v2851 = vadd.f32 %v2787, %v2819
        %v2852 = vadd.f32 %v2788, %v2820
        %v2853 = vadd.f32 %v2789, %v2821
        %v2854 = vadd.f32 %v2790, %v2822
        %v2855 = vadd.f32 %v2791, %v2823
        %v2856 = vadd.f32 %v2792, %v2824
        %v2857 = vadd.f32 %v2793, %v2825
        %v2858 = vadd.f32 %v2794, %v2826
        %v2859 = vadd.f32 %v2795, %v2827
        %v2860 = vadd.f32 %v2796, %v2828
        %v2861 = vadd.f32 %v2797, %v2829
        %v2862 = vadd.f32 %v2798, %v2830
        %v2863 = vadd.f32 %v2799, %v2831
        %v2864 = vadd.f32 %v2800, %v2832
        %v2865 = vadd.f32 %v2801, %v2833
        %v2866 = vadd.f32 %v2802, %v2834
        %v2867 = vadd.f32 %v2803, %v2835
        %v2868 = vmax.f32 %v2836, 0.0
        %v2869 = vmax.f32 %v2837, 0.0
        %v2870 = vmax.f32 %v2838, 0.0
        %v2871 = vmax.f32 %v2839, 0.0
        %v2872 = vmax.f32 %v2840, 0.0
        %v2873 = vmax.f32 %v2841, 0.0
        %v2874 = vmax.f32 %v2842, 0.0
        %v2875 = vmax.f32 %v2843, 0.0
        %v2876 = vmax.f32 %v2844, 0.0
        %v2877 = vmax.f32 %v2845, 0.0
        %v2878 = vmax.f32 %v2846, 0.0
        %v2879 = vmax.f32 %v2847, 0.0
        %v2880 = vmax.f32 %v2848, 0.0
        %v2881 = vmax.f32 %v2849, 0.0
        %v2882 = vmax.f32 %v2850, 0.0
        %v2883 = vmax.f32 %v2851, 0.0
        %v2884 = vmax.f32 %v2852, 0.0
        %v2885 = vmax.f32 %v2853, 0.0
        %v2886 = vmax.f32 %v2854, 0.0
        %v2887 = vmax.f32 %v2855, 0.0
        %v2888 = vmax.f32 %v2856, 0.0
        %v2889 = vmax.f32 %v2857, 0.0
        %v2890 = vmax.f32 %v2858, 0.0
        %v2891 = vmax.f32 %v2859, 0.0
        %v2892 = vmax.f32 %v2860, 0.0
        %v2893 = vmax.f32 %v2861, 0.0
        %v2894 = vmax.f32 %v2862, 0.0
        %v2895 = vmax.f32 %v2863, 0.0
        %v2896 = vmax.f32 %v2864, 0.0
        %v2897 = vmax.f32 %v2865, 0.0
        %v2898 = vmax.f32 %v2866, 0.0
        %v2899 = vmax.f32 %v2867, 0.0
        %2900 = vst.msk [vmem:[%s312] sm:$0xff] %vm455, %v2868
        %2901 = vst.msk [vmem:[%s312 + $0x8] sm:$0xff] %vm455, %v2869
        %2902 = vst.msk [vmem:[%s312 + $0x10] sm:$0xff] %vm455, %v2870
        %2903 = vst.msk [vmem:[%s312 + $0x18] sm:$0xff] %vm455, %v2871
        %2904 = vst.msk [vmem:[%s312 + $0x20] sm:$0xff] %vm455, %v2872
        %2905 = vst.msk [vmem:[%s312 + $0x28] sm:$0xff] %vm455, %v2873
        %2906 = vst.msk [vmem:[%s312 + $0x30] sm:$0xff] %vm455, %v2874
        %2907 = vst.msk [vmem:[%s312 + $0x38] sm:$0xff] %vm455, %v2875
        %2908 = vst.msk [vmem:[%s312 + $0x40] sm:$0xff] %vm455, %v2876
        %2909 = vst.msk [vmem:[%s312 + $0x48] sm:$0xff] %vm455, %v2877
        %2910 = vst.msk [vmem:[%s312 + $0x50] sm:$0xff] %vm455, %v2878
        %2911 = vst.msk [vmem:[%s312 + $0x58] sm:$0xff] %vm455, %v2879
        %2912 = vst.msk [vmem:[%s312 + $0x60] sm:$0xff] %vm455, %v2880
        %2913 = vst.msk [vmem:[%s312 + $0x68] sm:$0xff] %vm455, %v2881
        %2914 = vst.msk [vmem:[%s312 + $0x70] sm:$0xff] %vm455, %v2882
        %2915 = vst.msk [vmem:[%s312 + $0x78] sm:$0xff] %vm455, %v2883
        %2916 = vst.msk [vmem:[%s312 + $0x80] sm:$0xff] %vm455, %v2884
        %2917 = vst.msk [vmem:[%s312 + $0x88] sm:$0xff] %vm455, %v2885
        %2918 = vst.msk [vmem:[%s312 + $0x90] sm:$0xff] %vm455, %v2886
        %2919 = vst.msk [vmem:[%s312 + $0x98] sm:$0xff] %vm455, %v2887
        %2920 = vst.msk [vmem:[%s312 + $0xa0] sm:$0xff] %vm455, %v2888
        %2921 = vst.msk [vmem:[%s312 + $0xa8] sm:$0xff] %vm455, %v2889
        %2922 = vst.msk [vmem:[%s312 + $0xb0] sm:$0xff] %vm455, %v2890
        %2923 = vst.msk [vmem:[%s312 + $0xb8] sm:$0xff] %vm455, %v2891
        %2924 = vst.msk [vmem:[%s312 + $0xc0] sm:$0xff] %vm455, %v2892
        %2925 = vst.msk [vmem:[%s312 + $0xc8] sm:$0xff] %vm455, %v2893
        %2926 = vst.msk [vmem:[%s312 + $0xd0] sm:$0xff] %vm455, %v2894
        %2927 = vst.msk [vmem:[%s312 + $0xd8] sm:$0xff] %vm455, %v2895
        %2928 = vst.msk [vmem:[%s312 + $0xe0] sm:$0xff] %vm455, %v2896
        %2929 = vst.msk [vmem:[%s312 + $0xe8] sm:$0xff] %vm455, %v2897
        %2930 = vst.msk [vmem:[%s312 + $0xf0] sm:$0xff] %vm455, %v2898
        %2931 = vst.msk [vmem:[%s312 + $0xf8] sm:$0xff] %vm455, %v2899
        %p2932 = scmp.lt.s32.totalorder %s19, 1
        %s2933 = scalar_select %p2932, %s19, 1
        %s2934 = smul.addr %s2933, 32
        %s2935 = smul.addr %s2934, 8
        %s2936 = scalar_lea.vmem %s7, %s2935
        // Predicated region
        $region53: #{basic_block_forward.5} parent=47 // pred_check
          %p2937 = pneg %p194
        $region54: #{basic_block_forward.5} parent=47 // pred_check_branch
          %2939 = sbr.rel (%p2937) target = $region56
        $region55: #{basic_block_forward.5} parent=47 // pred_region
          _
        $region56: #{basic_block_forward.5} parent=47 // pred_fallthru
          _
      $region48: #{basic_block_forward.5} parent=5 // pred_fallthru
        _
      %p2940 = scmp.le.s32.totalorder 2, %s14
      // Predicated region
      $region57: #{basic_block_forward.5} parent=5 // pred_check
        %p2941 = pneg %p2940
      $region58: #{basic_block_forward.5} parent=5 // pred_check_branch
        %2943 = sbr.rel (%p2941) target = $region60
      $region59: #{basic_block_forward.5} parent=5 // pred_region
        %s2944 = ssub.s32 %s14, 2
        // Predicated region
        $region61: #{basic_block_forward.5} parent=59 // pred_check
          %p2945 = pneg %p200
        $region62: #{basic_block_forward.5} parent=59 // pred_check_branch
          %2947 = sbr.rel (%p2945) target = $region64
        $region63: #{basic_block_forward.5} parent=59 // pred_region
          %p2948 = scmp.lt.s32.totalorder %s20, 1
          %s2949 = scalar_select %p2948, %s20, 1
          %s2950 = smul.addr %s2949, 32
          %s2951 = smul.addr %s2950, 8
          %s2952 = scalar_lea.vmem %s7, %s2951
        $region64: #{basic_block_forward.5} parent=59 // pred_fallthru
          _
      $region60: #{basic_block_forward.5} parent=5 // pred_fallthru
        _
    $region6: #{basic_block_forward.5} parent=1 // loop_footer
      %s18 = sadd.s32 1, %s14
    $region7: #{basic_block_forward.5} parent=1 // loop_footer_branch
      %13 = sbr.rel target = $region3
    $region8: #{basic_block_forward.5} parent=1 // loop_exit
      _
    %2953 = vsyncpa [#allocation4], 1
    %s2954 = scalar_lea.sflag [#allocation4], 1
    %2955 = vsyncpa %s2954, 1

</llo_original>
